<compile_context>
chip_gen: v5e
topology: v5e:2x2
jax: 0.10.0
libtpu: 0.0.40
codegen_flags: <defaults>
</compile_context>

<pallas_src>
import functools

import numpy as np
import jax
import jax.numpy as jnp
from jax.experimental import pallas as pl
from jax.experimental.pallas import tpu as pltpu

# ----------------------------- model sizes -----------------------------
BATCH = 2
SEQ = 8            # text sequence length
HIDDEN = 32        # language_config.hidden_size
NUM_HEADS = 4      # language_config.num_attention_heads
FF_DIM = 64        # language_config.intermediate_size
VOCAB = 128
N_BERT_LAYERS = 2
MASK_TOKEN_ID = 4

T_AUDIO = 8        # audio frames (AST seq len)
M_MELS = 16        # mel bins per frame
AUDIO_DIM = 32     # audio_config.hidden_size
AUDIO_FF = 64

FUSION_IDX = 0     # fuse after BERT layer 0

BERT_EPS = 1e-12   # BERT LayerNorm eps
FUSION_EPS = 1e-5  # nn.LayerNorm / nn.MultiheadAttention default eps


# ======================= in-kernel math helpers =======================


def _mm(a, w):
    """MXU matmul: bf16 operands, f32 accumulation."""
    return jnp.dot(a.astype(jnp.bfloat16), w.astype(jnp.bfloat16),
                   preferred_element_type=jnp.float32)


def _mm_t(a, b):
    """a @ b.T (contract last dims of both), bf16 operands, f32 accumulation."""
    return jax.lax.dot_general(a.astype(jnp.bfloat16), b.astype(jnp.bfloat16),
                               (((1,), (1,)), ((), ())),
                               preferred_element_type=jnp.float32)


def _ln(x, g, b, eps):
    mu = jnp.mean(x, axis=-1, keepdims=True)
    var = jnp.mean((x - mu) ** 2, axis=-1, keepdims=True)
    return (x - mu) * jax.lax.rsqrt(var + eps) * g + b


def _softmax_rows(s):
    m = jnp.max(s, axis=-1, keepdims=True)
    p = jnp.exp(s - m)
    return p * pl.reciprocal(jnp.sum(p, axis=-1, keepdims=True), approx=True)


def _sigmoid(x):
    return 1.0 / (1.0 + jnp.exp(-x))


def _gelu(x):
    # TODO(synk): BERT / nn.GELU use exact erf-GELU; tanh approximation used here.
    return jax.nn.gelu(x, approximate=True)


def _self_attn_layer(x, w, ctx_s, *, batch, seq, num_heads, eps):
    """Post-LN transformer encoder layer on a flattened (batch*seq, d) value."""
    (qkv_w, qkv_b, o_w, o_b, ln1_g, ln1_b,
     int_w, int_b, out_w, out_b, ln2_g, ln2_b) = w
    d = x.shape[1]
    dh = d // num_heads
    scale = 1.0 / float(dh) ** 0.5

    qkv = _mm(x, qkv_w) + qkv_b                                  # (B*S, 3D)
    for b in range(batch):                                       # static unroll
        r0 = b * seq
        for h in range(num_heads):                               # static unroll
            qh = qkv[r0:r0 + seq, h * dh:(h + 1) * dh]
            kh = qkv[r0:r0 + seq, d + h * dh:d + (h + 1) * dh]
            vh = qkv[r0:r0 + seq, 2 * d + h * dh:2 * d + (h + 1) * dh]
            p = _softmax_rows(_mm_t(qh, kh) * scale)
            ctx_s[r0:r0 + seq, h * dh:(h + 1) * dh] = _mm(p, vh)
    attn = _mm(ctx_s[...], o_w) + o_b        # one head-merged output projection
    h1 = _ln(x + attn, ln1_g, ln1_b, eps)
    inter = _gelu(_mm(h1, int_w) + int_b)
    ffn = _mm(inter, out_w) + out_b
    return _ln(h1 + ffn, ln2_g, ln2_b, eps)


def _fusion_layer(txt, aud, w, ctx_s, *, batch, seq_q, seq_kv, num_heads, eps):
    """FusionLayer: cross-attn(q=text, kv=audio) + LN + FFN + LN + fusion gate."""
    (q_w, q_b, kv_w, kv_b, o_w, o_b, ln1_g, ln1_b,
     ffn1_w, ffn1_b, ffn2_w, ffn2_b, ln2_g, ln2_b,
     ga_w, ga_b, gt_w, gt_b) = w
    d = txt.shape[1]
    dh = d // num_heads
    scale = 1.0 / float(dh) ** 0.5

    q = _mm(txt, q_w) + q_b                                      # (B*S, D)
    kv = _mm(aud, kv_w) + kv_b                                   # (B*Ta, 2D)
    for b in range(batch):                                       # static unroll
        qr, kr = b * seq_q, b * seq_kv
        for h in range(num_heads):                               # static unroll
            qh = q[qr:qr + seq_q, h * dh:(h + 1) * dh]
            kh = kv[kr:kr + seq_kv, h * dh:(h + 1) * dh]
            vh = kv[kr:kr + seq_kv, d + h * dh:d + (h + 1) * dh]
            p = _softmax_rows(_mm_t(qh, kh) * scale)
            ctx_s[qr:qr + seq_q, h * dh:(h + 1) * dh] = _mm(p, vh)
    attn = _mm(ctx_s[...], o_w) + o_b
    out1 = _ln(txt + attn, ln1_g, ln1_b, eps)
    f = _gelu(_mm(out1, ffn1_w) + ffn1_b)
    f = _mm(f, ffn2_w) + ffn2_b                                  # dropout = identity (eval)
    out2 = _ln(out1 + f, ln2_g, ln2_b, eps)
    gate = _sigmoid(_mm(out2, ga_w) + ga_b + _mm(txt, gt_w) + gt_b)
    return gate * out2 + (1.0 - gate) * txt


def _full_spec(shape):
    return pl.BlockSpec(shape, lambda *_: (0,) * len(shape))


# ====================== fused audio pipeline kernel ======================
# TODO(synk): the pretrained ASTModel is replaced by a synthetic 1-layer
# transformer audio encoder (same hidden size); AudioMLP matches the module.


def _audio_pipeline_kernel(*refs, batch, seq, num_heads, eps):
    (x_ref, pw_ref, pb_ref, pos_ref,
     qkv_w, qkv_b, o_w, o_b, ln1_g, ln1_b,
     int_w, int_b, out_w, out_b, ln2_g, ln2_b,
     fc1_w, fc1_b, fc2_w, fc2_b,
     o_ref, ctx_s) = refs

    x = _mm(x_ref[...], pw_ref[...]) + pb_ref[...] + pos_ref[...]   # (B*T, Da)
    w = (qkv_w[...], qkv_b[...], o_w[...], o_b[...], ln1_g[...], ln1_b[...],
         int_w[...], int_b[...], out_w[...], out_b[...], ln2_g[...], ln2_b[...])
    x = _self_attn_layer(x, w, ctx_s, batch=batch, seq=seq,
                         num_heads=num_heads, eps=eps)
    a = jnp.maximum(_mm(x, fc1_w[...]) + fc1_b[...], 0.0)           # AudioMLP ReLU
    o_ref[...] = (_mm(a, fc2_w[...]) + fc2_b[...]).astype(o_ref.dtype)


def audio_pipeline(audio_features, ap, mp):
    b, t, m = audio_features.shape
    da = ap["proj_w"].shape[1]
    ho = mp["fc2_w"].shape[1]
    lp = ap["layer"]
    x2d = audio_features.reshape(b * t, m)
    pos2d = jnp.tile(ap["pos"], (b, 1))
    args = [x2d, ap["proj_w"], ap["proj_b"], pos2d,
            lp["qkv_w"], lp["qkv_b"], lp["o_w"], lp["o_b"],
            lp["ln1_g"], lp["ln1_b"], lp["inter_w"], lp["inter_b"],
            lp["out_w"], lp["out_b"], lp["ln2_g"], lp["ln2_b"],
            mp["fc1_w"], mp["fc1_b"], mp["fc2_w"], mp["fc2_b"]]
    kernel = functools.partial(_audio_pipeline_kernel, batch=b, seq=t,
                               num_heads=NUM_HEADS, eps=BERT_EPS)
    return pl.pallas_call(
        kernel,
        out_shape=jax.ShapeDtypeStruct((b * t, ho), jnp.float32),
        grid=(1,),
        in_specs=[_full_spec(a.shape) for a in args],
        out_specs=_full_spec((b * t, ho)),
        scratch_shapes=[pltpu.VMEM((b * t, da), jnp.float32)],
    )(*args)


# ============ fused BERT stack + fusion + MLM head + loss kernel ============


def _fused_bert_kernel(*refs, n_layers, fusion_idx, do_fusion, batch, seq,
                       t_audio, num_heads):
    (emb_ref, emb_g_ref, emb_b_ref,
     eqkv_w, eqkv_b, eo_w, eo_b, eln1_g, eln1_b,
     eint_w, eint_b, eout_w, eout_b, eln2_g, eln2_b,
     aud_ref, fmask_ref,
     fq_w, fq_b, fkv_w, fkv_b, fo_w, fo_b, fln1_g, fln1_b,
     fffn1_w, fffn1_b, fffn2_w, fffn2_b, fln2_g, fln2_b,
     fga_w, fga_b, fgt_w, fgt_b,
     ct_w, ct_b, cln_g, cln_b, cdec_w, cdec_b,
     tgt_ref,
     logits_ref, loss_ref, ctx_s) = refs

    # BERT embeddings LayerNorm (word+pos+type sum computed outside the kernel).
    h = _ln(emb_ref[...].astype(jnp.float32), emb_g_ref[...], emb_b_ref[...],
            BERT_EPS)

    if do_fusion:
        fusion_w = (fq_w[...], fq_b[...], fkv_w[...], fkv_b[...],
                    fo_w[...], fo_b[...], fln1_g[...], fln1_b[...],
                    fffn1_w[...], fffn1_b[...], fffn2_w[...], fffn2_b[...],
                    fln2_g[...], fln2_b[...], fga_w[...], fga_b[...],
                    fgt_w[...], fgt_b[...])
        aud = aud_ref[...].astype(jnp.float32)
        fmask = fmask_ref[...]                                   # (B*S, 1) {0,1}

        def apply_fusion(hh):
            # FusionLayer is row-independent over text positions, so computing it
            # for every row and mask-selecting the span rows of in_audio batch
            # elements is exactly the reference gather -> fuse -> scatter.
            fused = _fusion_layer(hh, aud, fusion_w, ctx_s, batch=batch,
                                  seq_q=seq, seq_kv=t_audio,
                                  num_heads=num_heads, eps=FUSION_EPS)
            return fmask * fused + (1.0 - fmask) * hh

        if fusion_idx == -1:
            h = apply_fusion(h)

    for l in range(n_layers):                                    # static unroll
        w = (eqkv_w[l], eqkv_b[l], eo_w[l], eo_b[l], eln1_g[l], eln1_b[l],
             eint_w[l], eint_b[l], eout_w[l], eout_b[l], eln2_g[l], eln2_b[l])
        h = _self_attn_layer(h, w, ctx_s, batch=batch, seq=seq,
                             num_heads=num_heads, eps=BERT_EPS)
        if do_fusion and l == fusion_idx:
            h = apply_fusion(h)

    # MLM head: transform (dense + GELU + LN) -> decoder -> logits (V=128 lanes)
    t = _gelu(_mm(h, ct_w[...]) + ct_b[...])
    t = _ln(t, cln_g[...], cln_b[...], BERT_EPS)
    logits = _mm(t, cdec_w[...]) + cdec_b[...]                   # (B*S, V)
    logits_ref[...] = logits.astype(logits_ref.dtype)

    # fused log-softmax + masked NLL (ignore_index = -100); logits stay in VMEM
    m = jnp.max(logits, axis=-1, keepdims=True)
    lse = jnp.log(jnp.sum(jnp.exp(logits - m), axis=-1, keepdims=True)) + m
    logp = logits - lse
    tgt = tgt_ref[...]                                           # (B*S, 1) int32
    n, v = logits.shape
    col = jax.lax.broadcasted_iota(jnp.int32, (n, v), 1)
    nll = -jnp.sum(jnp.where(col == tgt, logp, 0.0), axis=-1, keepdims=True)
    valid = (tgt >= 0).astype(jnp.float32)
    # matches torch CrossEntropyLoss: mean over valid targets (NaN if none)
    loss_ref[0] = jnp.sum(nll * valid) / jnp.sum(valid)


def bert_stack_and_mlm(emb2d, aud2d, fmask2d, tgt2d, params, *, in_audio,
                       fusion_idx):
    n, _ = emb2d.shape
    enc = params["encoder"]
    fus = params["fusion"]
    cls = params["cls"]
    embp = params["embeddings"]
    v = cls["dec_w"].shape[1]
    n_layers = enc["qkv_w"].shape[0]
    do_fusion = bool(any(in_audio))

    args = [emb2d, embp["ln_g"], embp["ln_b"],
            enc["qkv_w"], enc["qkv_b"], enc["o_w"], enc["o_b"],
            enc["ln1_g"], enc["ln1_b"], enc["inter_w"], enc["inter_b"],
            enc["out_w"], enc["out_b"], enc["ln2_g"], enc["ln2_b"],
            aud2d, fmask2d,
            fus["q_w"], fus["q_b"], fus["kv_w"], fus["kv_b"],
            fus["o_w"], fus["o_b"], fus["ln1_g"], fus["ln1_b"],
            fus["ffn1_w"], fus["ffn1_b"], fus["ffn2_w"], fus["ffn2_b"],
            fus["ln2_g"], fus["ln2_b"],
            fus["ga_w"], fus["ga_b"], fus["gt_w"], fus["gt_b"],
            cls["t_w"], cls["t_b"], cls["ln_g"], cls["ln_b"],
            cls["dec_w"], cls["dec_b"],
            tgt2d]

    kernel = functools.partial(
        _fused_bert_kernel, n_layers=n_layers, fusion_idx=fusion_idx,
        do_fusion=do_fusion, batch=BATCH, seq=SEQ, t_audio=T_AUDIO,
        num_heads=NUM_HEADS)

    return pl.pallas_call(
        kernel,
        out_shape=(jax.ShapeDtypeStruct((n, v), jnp.float32),
                   jax.ShapeDtypeStruct((1,), jnp.float32)),
        grid=(1,),
        in_specs=[_full_spec(a.shape) for a in args],
        out_specs=(_full_spec((n, v)),
                   pl.BlockSpec(memory_space=pltpu.MemorySpace.SMEM)),
        scratch_shapes=[pltpu.VMEM((n, HIDDEN), jnp.float32)],
    )(*args)


# ============================= full forward =============================


def audio_imagination_bert_forward(params, audio_features, span_token_pos,
                                   input_ids, targets, in_audio, fusion_idx):
    bsz, s = input_ids.shape

    # 1) fused audio pipeline (AST-like encoder + AudioMLP): ONE pallas_call.
    audio_embs2d = audio_pipeline(audio_features, params["audio"], params["mlp"])

    # 2) BERT embeddings sum (tiny XLA gather+adds; LN is inside the main kernel).
    emb = (jnp.take(params["embeddings"]["word"], input_ids, axis=0)
           + params["embeddings"]["pos"][None, :, :]
           + params["embeddings"]["type"][0][None, None, :])
    emb2d = emb.reshape(bsz * s, HIDDEN)

    # 3) per-row fusion mask (batch in in_audio AND start <= pos < min(end, S)).
    in_aud_vec = jnp.asarray(np.asarray(in_audio, dtype=np.float32))
    starts = span_token_pos[:, 0]
    ends = jnp.minimum(span_token_pos[:, 1], s)
    pos = jnp.arange(s, dtype=jnp.int32)
    row_mask = (pos[None, :] >= starts[:, None]) & (pos[None, :] < ends[:, None])
    fuse_mask2d = (row_mask.astype(jnp.float32) * in_aud_vec[:, None]
                   ).reshape(bsz * s, 1)

    # 4) targets with ignore_index applied outside masked positions.
    mask_token_index = input_ids == MASK_TOKEN_ID
    targets_m2d = jnp.where(mask_token_index, targets, -100
                            ).astype(jnp.int32).reshape(bsz * s, 1)

    # 5) fused BERT stack + fusion + MLM head + loss: ONE pallas_call.
    logits2d, loss = bert_stack_and_mlm(
        emb2d, audio_embs2d, fuse_mask2d, targets_m2d, params,
        in_audio=in_audio, fusion_idx=fusion_idx)
    logits = logits2d.reshape(bsz, s, VOCAB)
    return loss[0], logits, mask_token_index


def extract_mask_token_embeddings(logits_np, mask_np):
    # Variable-length per-example lists -> host-side, matching the PyTorch helper.
    preds = []
    for i in range(mask_np.shape[0]):
        idx = np.nonzero(mask_np[i])[0]
        if len(idx) > 0:
            preds.append(np.argmax(logits_np[i, idx], axis=-1))
        else:
            preds.append(np.array([], dtype=np.int64))
    return preds


# ============================ parameter init ============================


def init_params(key):
    keys = iter(jax.random.split(key, 64))

    def w(*shape):
        # MXU weight matrices stored bf16 (native MXU dtype, half the DMA bytes).
        return (jax.random.normal(next(keys), shape, jnp.float32) * 0.02
                ).astype(jnp.bfloat16)

    def fw(*shape):  # f32 tables used by the XLA embedding gather
        return jax.random.normal(next(keys), shape, jnp.float32) * 0.02

    def b(*shape):
        return jnp.zeros(shape, jnp.float32)

    def ones(*shape):
        return jnp.ones(shape, jnp.float32)

    def enc_layer(d, ff):
        return {"qkv_w": w(d, 3 * d), "qkv_b": b(1, 3 * d),
                "o_w": w(d, d), "o_b": b(1, d),
                "ln1_g": ones(1, d), "ln1_b": b(1, d),
                "inter_w": w(d, ff), "inter_b": b(1, ff),
                "out_w": w(ff, d), "out_b": b(1, d),
                "ln2_g": ones(1, d), "ln2_b": b(1, d)}

    def enc_stack(nl, d, ff):
        return {"qkv_w": w(nl, d, 3 * d), "qkv_b": b(nl, 1, 3 * d),
                "o_w": w(nl, d, d), "o_b": b(nl, 1, d),
                "ln1_g": ones(nl, 1, d), "ln1_b": b(nl, 1, d),
                "inter_w": w(nl, d, ff), "inter_b": b(nl, 1, ff),
                "out_w": w(nl, ff, d), "out_b": b(nl, 1, d),
                "ln2_g": ones(nl, 1, d), "ln2_b": b(nl, 1, d)}

    return {
        "audio": {"proj_w": w(M_MELS, AUDIO_DIM), "proj_b": b(1, AUDIO_DIM),
                  "pos": fw(T_AUDIO, AUDIO_DIM),
                  "layer": enc_layer(AUDIO_DIM, AUDIO_FF)},
        "mlp": {"fc1_w": w(AUDIO_DIM, HIDDEN), "fc1_b": b(1, HIDDEN),
                "fc2_w": w(HIDDEN, HIDDEN), "fc2_b": b(1, HIDDEN)},
        "embeddings": {"word": fw(VOCAB, HIDDEN), "pos": fw(SEQ, HIDDEN),
                       "type": fw(2, HIDDEN),
                       "ln_g": ones(1, HIDDEN), "ln_b": b(1, HIDDEN)},
        "encoder": enc_stack(N_BERT_LAYERS, HIDDEN, FF_DIM),
        "fusion": {"q_w": w(HIDDEN, HIDDEN), "q_b": b(1, HIDDEN),
                   "kv_w": w(HIDDEN, 2 * HIDDEN), "kv_b": b(1, 2 * HIDDEN),
                   "o_w": w(HIDDEN, HIDDEN), "o_b": b(1, HIDDEN),
                   "ln1_g": ones(1, HIDDEN), "ln1_b": b(1, HIDDEN),
                   "ffn1_w": w(HIDDEN, FF_DIM), "ffn1_b": b(1, FF_DIM),
                   "ffn2_w": w(FF_DIM, HIDDEN), "ffn2_b": b(1, HIDDEN),
                   "ln2_g": ones(1, HIDDEN), "ln2_b": b(1, HIDDEN),
                   "ga_w": w(HIDDEN, HIDDEN), "ga_b": b(1, HIDDEN),
                   "gt_w": w(HIDDEN, HIDDEN), "gt_b": b(1, HIDDEN)},
        "cls": {"t_w": w(HIDDEN, HIDDEN), "t_b": b(1, HIDDEN),
                "ln_g": ones(1, HIDDEN), "ln_b": b(1, HIDDEN),
                "dec_w": w(HIDDEN, VOCAB), "dec_b": b(1, VOCAB)},
    }


# ================================ main ================================

if __name__ == "__main__":
    key = jax.random.PRNGKey(0)
    k_par, k_audio, k_ids, k_tgt = jax.random.split(key, 4)

    params = init_params(k_par)

    audio_features = jax.random.normal(k_audio, (BATCH, T_AUDIO, M_MELS),
                                       jnp.float32)
    input_ids = jax.random.randint(k_ids, (BATCH, SEQ), 5, VOCAB, dtype=jnp.int32)
    input_ids = input_ids.at[0, 3].set(MASK_TOKEN_ID)
    input_ids = input_ids.at[1, 6].set(MASK_TOKEN_ID)
    targets = jax.random.randint(k_tgt, (BATCH, SEQ), 0, VOCAB, dtype=jnp.int32)

    span_token_pos = jnp.array([[2, 5], [1, 4]], dtype=jnp.int32)   # (B, 2) spans
    in_audio = (True, False)

    forward = jax.jit(audio_imagination_bert_forward,
                      static_argnames=("in_audio", "fusion_idx"))

    loss, logits, mask_token_index = forward(
        params, audio_features, span_token_pos, input_ids, targets,
        in_audio=in_audio, fusion_idx=FUSION_IDX)

    loss = jax.block_until_ready(loss)
    logits = jax.block_until_ready(logits)
    predicted_token_ids = extract_mask_token_embeddings(
        np.asarray(logits), np.asarray(mask_token_index))

    assert logits.shape == (BATCH, SEQ, VOCAB)
    assert np.isfinite(float(loss))
    assert all(p.shape[0] == 1 for p in predicted_token_ids)
    print("KERNEL_OK")
</pallas_src>

<mosaic_0001>
module attributes {stable_mosaic.version = 11 : i64} {
  func.func @_audio_pipeline_kernel(%arg0: i32, %arg1: memref<16x16xf32, #tpu.memory_space<vmem>>, %arg2: memref<16x32xbf16, #tpu.memory_space<vmem>>, %arg3: memref<1x32xf32, #tpu.memory_space<vmem>>, %arg4: memref<16x32xf32, #tpu.memory_space<vmem>>, %arg5: memref<32x96xbf16, #tpu.memory_space<vmem>>, %arg6: memref<1x96xf32, #tpu.memory_space<vmem>>, %arg7: memref<32x32xbf16, #tpu.memory_space<vmem>>, %arg8: memref<1x32xf32, #tpu.memory_space<vmem>>, %arg9: memref<1x32xf32, #tpu.memory_space<vmem>>, %arg10: memref<1x32xf32, #tpu.memory_space<vmem>>, %arg11: memref<32x64xbf16, #tpu.memory_space<vmem>>, %arg12: memref<1x64xf32, #tpu.memory_space<vmem>>, %arg13: memref<64x32xbf16, #tpu.memory_space<vmem>>, %arg14: memref<1x32xf32, #tpu.memory_space<vmem>>, %arg15: memref<1x32xf32, #tpu.memory_space<vmem>>, %arg16: memref<1x32xf32, #tpu.memory_space<vmem>>, %arg17: memref<32x32xbf16, #tpu.memory_space<vmem>>, %arg18: memref<1x32xf32, #tpu.memory_space<vmem>>, %arg19: memref<32x32xbf16, #tpu.memory_space<vmem>>, %arg20: memref<1x32xf32, #tpu.memory_space<vmem>>, %arg21: memref<16x32xf32, #tpu.memory_space<vmem>>, %arg22: memref<16x32xf32, #tpu.memory_space<vmem>>) attributes {dimension_semantics = [#tpu.dimension_semantics<arbitrary>], iteration_bounds = array<i64: 1>, scalar_prefetch = 0 : i64, scratch_operands = 1 : i64, tpu.core_type = #tpu.core_type<tc>, window_params = [{pipeline_mode = #tpu.pipeline_mode<synchronous>, transform_indices = @transform_0, window_bounds = array<i64: 16, 16>}, {pipeline_mode = #tpu.pipeline_mode<synchronous>, transform_indices = @transform_1, window_bounds = array<i64: 16, 32>}, {pipeline_mode = #tpu.pipeline_mode<synchronous>, transform_indices = @transform_2, window_bounds = array<i64: 1, 32>}, {pipeline_mode = #tpu.pipeline_mode<synchronous>, transform_indices = @transform_3, window_bounds = array<i64: 16, 32>}, {pipeline_mode = #tpu.pipeline_mode<synchronous>, transform_indices = @transform_4, window_bounds = array<i64: 32, 96>}, {pipeline_mode = #tpu.pipeline_mode<synchronous>, transform_indices = @transform_5, window_bounds = array<i64: 1, 96>}, {pipeline_mode = #tpu.pipeline_mode<synchronous>, transform_indices = @transform_6, window_bounds = array<i64: 32, 32>}, {pipeline_mode = #tpu.pipeline_mode<synchronous>, transform_indices = @transform_7, window_bounds = array<i64: 1, 32>}, {pipeline_mode = #tpu.pipeline_mode<synchronous>, transform_indices = @transform_8, window_bounds = array<i64: 1, 32>}, {pipeline_mode = #tpu.pipeline_mode<synchronous>, transform_indices = @transform_9, window_bounds = array<i64: 1, 32>}, {pipeline_mode = #tpu.pipeline_mode<synchronous>, transform_indices = @transform_10, window_bounds = array<i64: 32, 64>}, {pipeline_mode = #tpu.pipeline_mode<synchronous>, transform_indices = @transform_11, window_bounds = array<i64: 1, 64>}, {pipeline_mode = #tpu.pipeline_mode<synchronous>, transform_indices = @transform_12, window_bounds = array<i64: 64, 32>}, {pipeline_mode = #tpu.pipeline_mode<synchronous>, transform_indices = @transform_13, window_bounds = array<i64: 1, 32>}, {pipeline_mode = #tpu.pipeline_mode<synchronous>, transform_indices = @transform_14, window_bounds = array<i64: 1, 32>}, {pipeline_mode = #tpu.pipeline_mode<synchronous>, transform_indices = @transform_15, window_bounds = array<i64: 1, 32>}, {pipeline_mode = #tpu.pipeline_mode<synchronous>, transform_indices = @transform_16, window_bounds = array<i64: 32, 32>}, {pipeline_mode = #tpu.pipeline_mode<synchronous>, transform_indices = @transform_17, window_bounds = array<i64: 1, 32>}, {pipeline_mode = #tpu.pipeline_mode<synchronous>, transform_indices = @transform_18, window_bounds = array<i64: 32, 32>}, {pipeline_mode = #tpu.pipeline_mode<synchronous>, transform_indices = @transform_19, window_bounds = array<i64: 1, 32>}, {pipeline_mode = #tpu.pipeline_mode<synchronous>, transform_indices = @transform_20, window_bounds = array<i64: 16, 32>}]} {
    %c0 = arith.constant 0 : index
    %c0_0 = arith.constant 0 : index
    %0 = vector.load %arg1[%c0, %c0_0] : memref<16x16xf32, #tpu.memory_space<vmem>>, vector<16x16xf32>
    %c0_1 = arith.constant 0 : index
    %c0_2 = arith.constant 0 : index
    %1 = vector.load %arg2[%c0_1, %c0_2] : memref<16x32xbf16, #tpu.memory_space<vmem>>, vector<16x32xbf16>
    %2 = arith.truncf %0 : vector<16x16xf32> to vector<16x16xbf16>
    %cst = arith.constant dense<0.000000e+00> : vector<16x32xf32>
    %3 = tpu.matmul %2, %1, %cst {dimension_numbers = #tpu.dot_dimension_numbers<[1], [0], [0], [1], [0, 0, 1, 1], [], []>} : vector<16x16xbf16>, vector<16x32xbf16>, vector<16x32xf32> -> vector<16x32xf32>
    %c0_3 = arith.constant 0 : index
    %c0_4 = arith.constant 0 : index
    %4 = vector.load %arg3[%c0_3, %c0_4] : memref<1x32xf32, #tpu.memory_space<vmem>>, vector<1x32xf32>
    %5 = vector.broadcast %4 : vector<1x32xf32> to vector<16x32xf32>
    %6 = arith.addf %3, %5 : vector<16x32xf32>
    %c0_5 = arith.constant 0 : index
    %c0_6 = arith.constant 0 : index
    %7 = vector.load %arg4[%c0_5, %c0_6] : memref<16x32xf32, #tpu.memory_space<vmem>>, vector<16x32xf32>
    %8 = arith.addf %6, %7 : vector<16x32xf32>
    %c0_7 = arith.constant 0 : index
    %c0_8 = arith.constant 0 : index
    %9 = vector.load %arg5[%c0_7, %c0_8] : memref<32x96xbf16, #tpu.memory_space<vmem>>, vector<32x96xbf16>
    %c0_9 = arith.constant 0 : index
    %c0_10 = arith.constant 0 : index
    %10 = vector.load %arg6[%c0_9, %c0_10] : memref<1x96xf32, #tpu.memory_space<vmem>>, vector<1x96xf32>
    %c0_11 = arith.constant 0 : index
    %c0_12 = arith.constant 0 : index
    %11 = vector.load %arg7[%c0_11, %c0_12] : memref<32x32xbf16, #tpu.memory_space<vmem>>, vector<32x32xbf16>
    %c0_13 = arith.constant 0 : index
    %c0_14 = arith.constant 0 : index
    %12 = vector.load %arg8[%c0_13, %c0_14] : memref<1x32xf32, #tpu.memory_space<vmem>>, vector<1x32xf32>
    %c0_15 = arith.constant 0 : index
    %c0_16 = arith.constant 0 : index
    %13 = vector.load %arg9[%c0_15, %c0_16] : memref<1x32xf32, #tpu.memory_space<vmem>>, vector<1x32xf32>
    %c0_17 = arith.constant 0 : index
    %c0_18 = arith.constant 0 : index
    %14 = vector.load %arg10[%c0_17, %c0_18] : memref<1x32xf32, #tpu.memory_space<vmem>>, vector<1x32xf32>
    %c0_19 = arith.constant 0 : index
    %c0_20 = arith.constant 0 : index
    %15 = vector.load %arg11[%c0_19, %c0_20] : memref<32x64xbf16, #tpu.memory_space<vmem>>, vector<32x64xbf16>
    %c0_21 = arith.constant 0 : index
    %c0_22 = arith.constant 0 : index
    %16 = vector.load %arg12[%c0_21, %c0_22] : memref<1x64xf32, #tpu.memory_space<vmem>>, vector<1x64xf32>
    %c0_23 = arith.constant 0 : index
    %c0_24 = arith.constant 0 : index
    %17 = vector.load %arg13[%c0_23, %c0_24] : memref<64x32xbf16, #tpu.memory_space<vmem>>, vector<64x32xbf16>
    %c0_25 = arith.constant 0 : index
    %c0_26 = arith.constant 0 : index
    %18 = vector.load %arg14[%c0_25, %c0_26] : memref<1x32xf32, #tpu.memory_space<vmem>>, vector<1x32xf32>
    %c0_27 = arith.constant 0 : index
    %c0_28 = arith.constant 0 : index
    %19 = vector.load %arg15[%c0_27, %c0_28] : memref<1x32xf32, #tpu.memory_space<vmem>>, vector<1x32xf32>
    %c0_29 = arith.constant 0 : index
    %c0_30 = arith.constant 0 : index
    %20 = vector.load %arg16[%c0_29, %c0_30] : memref<1x32xf32, #tpu.memory_space<vmem>>, vector<1x32xf32>
    %21 = arith.truncf %8 : vector<16x32xf32> to vector<16x32xbf16>
    %cst_31 = arith.constant dense<0.000000e+00> : vector<16x96xf32>
    %22 = tpu.matmul %21, %9, %cst_31 {dimension_numbers = #tpu.dot_dimension_numbers<[1], [0], [0], [1], [0, 0, 1, 1], [], []>} : vector<16x32xbf16>, vector<32x96xbf16>, vector<16x96xf32> -> vector<16x96xf32>
    %23 = vector.broadcast %10 : vector<1x96xf32> to vector<16x96xf32>
    %24 = arith.addf %22, %23 : vector<16x96xf32>
    %25 = vector.extract_strided_slice %24 {offsets = [0, 0], sizes = [8, 8], strides = [1, 1]} : vector<16x96xf32> to vector<8x8xf32>
    %26 = vector.extract_strided_slice %24 {offsets = [0, 32], sizes = [8, 8], strides = [1, 1]} : vector<16x96xf32> to vector<8x8xf32>
    %27 = vector.extract_strided_slice %24 {offsets = [0, 64], sizes = [8, 8], strides = [1, 1]} : vector<16x96xf32> to vector<8x8xf32>
    %28 = arith.truncf %25 : vector<8x8xf32> to vector<8x8xbf16>
    %29 = arith.truncf %26 : vector<8x8xf32> to vector<8x8xbf16>
    %cst_32 = arith.constant dense<0.000000e+00> : vector<8x8xf32>
    %30 = tpu.matmul %28, %29, %cst_32 {dimension_numbers = #tpu.dot_dimension_numbers<[1], [1], [0], [0], [0, 0, 1, 0], [], []>} : vector<8x8xbf16>, vector<8x8xbf16>, vector<8x8xf32> -> vector<8x8xf32>
    %cst_33 = arith.constant 0.353553385 : f32
    %31 = vector.broadcast %cst_33 : f32 to vector<8x8xf32>
    %32 = arith.mulf %30, %31 : vector<8x8xf32>
    %cst_34 = arith.constant dense<0xFF800000> : vector<8xf32>
    %33 = vector.multi_reduction <maximumf>, %32, %cst_34 [1] : vector<8x8xf32> to vector<8xf32>
    %34 = vector.shape_cast %33 : vector<8xf32> to vector<8x1xf32>
    %35 = vector.broadcast %34 : vector<8x1xf32> to vector<8x8xf32>
    %36 = arith.subf %32, %35 : vector<8x8xf32>
    %37 = math.exp %36 : vector<8x8xf32>
    %cst_35 = arith.constant dense<0.000000e+00> : vector<8xf32>
    %38 = vector.multi_reduction <add>, %37, %cst_35 [1] : vector<8x8xf32> to vector<8xf32>
    %39 = vector.shape_cast %38 : vector<8xf32> to vector<8x1xf32>
    %40 = tpu.reciprocal %39 {approx = true} : vector<8x1xf32> -> vector<8x1xf32>
    %41 = vector.broadcast %40 : vector<8x1xf32> to vector<8x8xf32>
    %42 = arith.mulf %37, %41 : vector<8x8xf32>
    %43 = arith.truncf %42 : vector<8x8xf32> to vector<8x8xbf16>
    %44 = arith.truncf %27 : vector<8x8xf32> to vector<8x8xbf16>
    %cst_36 = arith.constant dense<0.000000e+00> : vector<8x8xf32>
    %45 = tpu.matmul %43, %44, %cst_36 {dimension_numbers = #tpu.dot_dimension_numbers<[1], [0], [0], [1], [0, 0, 1, 1], [], []>} : vector<8x8xbf16>, vector<8x8xbf16>, vector<8x8xf32> -> vector<8x8xf32>
    %c0_37 = arith.constant 0 : index
    %c0_38 = arith.constant 0 : index
    %46 = vector.load %arg22[%c0_37, %c0_38] : memref<16x32xf32, #tpu.memory_space<vmem>>, vector<8x8xf32>
    tpu.vector_store %arg22[%c0_37, %c0_38], %45 {strides = array<i32>} : memref<16x32xf32, #tpu.memory_space<vmem>>, vector<8x8xf32>,
    %47 = vector.extract_strided_slice %24 {offsets = [0, 8], sizes = [8, 8], strides = [1, 1]} : vector<16x96xf32> to vector<8x8xf32>
    %48 = vector.extract_strided_slice %24 {offsets = [0, 40], sizes = [8, 8], strides = [1, 1]} : vector<16x96xf32> to vector<8x8xf32>
    %49 = vector.extract_strided_slice %24 {offsets = [0, 72], sizes = [8, 8], strides = [1, 1]} : vector<16x96xf32> to vector<8x8xf32>
    %50 = arith.truncf %47 : vector<8x8xf32> to vector<8x8xbf16>
    %51 = arith.truncf %48 : vector<8x8xf32> to vector<8x8xbf16>
    %cst_39 = arith.constant dense<0.000000e+00> : vector<8x8xf32>
    %52 = tpu.matmul %50, %51, %cst_39 {dimension_numbers = #tpu.dot_dimension_numbers<[1], [1], [0], [0], [0, 0, 1, 0], [], []>} : vector<8x8xbf16>, vector<8x8xbf16>, vector<8x8xf32> -> vector<8x8xf32>
    %cst_40 = arith.constant 0.353553385 : f32
    %53 = vector.broadcast %cst_40 : f32 to vector<8x8xf32>
    %54 = arith.mulf %52, %53 : vector<8x8xf32>
    %cst_41 = arith.constant dense<0xFF800000> : vector<8xf32>
    %55 = vector.multi_reduction <maximumf>, %54, %cst_41 [1] : vector<8x8xf32> to vector<8xf32>
    %56 = vector.shape_cast %55 : vector<8xf32> to vector<8x1xf32>
    %57 = vector.broadcast %56 : vector<8x1xf32> to vector<8x8xf32>
    %58 = arith.subf %54, %57 : vector<8x8xf32>
    %59 = math.exp %58 : vector<8x8xf32>
    %cst_42 = arith.constant dense<0.000000e+00> : vector<8xf32>
    %60 = vector.multi_reduction <add>, %59, %cst_42 [1] : vector<8x8xf32> to vector<8xf32>
    %61 = vector.shape_cast %60 : vector<8xf32> to vector<8x1xf32>
    %62 = tpu.reciprocal %61 {approx = true} : vector<8x1xf32> -> vector<8x1xf32>
    %63 = vector.broadcast %62 : vector<8x1xf32> to vector<8x8xf32>
    %64 = arith.mulf %59, %63 : vector<8x8xf32>
    %65 = arith.truncf %64 : vector<8x8xf32> to vector<8x8xbf16>
    %66 = arith.truncf %49 : vector<8x8xf32> to vector<8x8xbf16>
    %cst_43 = arith.constant dense<0.000000e+00> : vector<8x8xf32>
    %67 = tpu.matmul %65, %66, %cst_43 {dimension_numbers = #tpu.dot_dimension_numbers<[1], [0], [0], [1], [0, 0, 1, 1], [], []>} : vector<8x8xbf16>, vector<8x8xbf16>, vector<8x8xf32> -> vector<8x8xf32>
    %c0_44 = arith.constant 0 : index
    %c8 = arith.constant 8 : index
    %68 = vector.load %arg22[%c0_44, %c8] : memref<16x32xf32, #tpu.memory_space<vmem>>, vector<8x8xf32>
    tpu.vector_store %arg22[%c0_44, %c8], %67 {strides = array<i32>} : memref<16x32xf32, #tpu.memory_space<vmem>>, vector<8x8xf32>,
    %69 = vector.extract_strided_slice %24 {offsets = [0, 16], sizes = [8, 8], strides = [1, 1]} : vector<16x96xf32> to vector<8x8xf32>
    %70 = vector.extract_strided_slice %24 {offsets = [0, 48], sizes = [8, 8], strides = [1, 1]} : vector<16x96xf32> to vector<8x8xf32>
    %71 = vector.extract_strided_slice %24 {offsets = [0, 80], sizes = [8, 8], strides = [1, 1]} : vector<16x96xf32> to vector<8x8xf32>
    %72 = arith.truncf %69 : vector<8x8xf32> to vector<8x8xbf16>
    %73 = arith.truncf %70 : vector<8x8xf32> to vector<8x8xbf16>
    %cst_45 = arith.constant dense<0.000000e+00> : vector<8x8xf32>
    %74 = tpu.matmul %72, %73, %cst_45 {dimension_numbers = #tpu.dot_dimension_numbers<[1], [1], [0], [0], [0, 0, 1, 0], [], []>} : vector<8x8xbf16>, vector<8x8xbf16>, vector<8x8xf32> -> vector<8x8xf32>
    %cst_46 = arith.constant 0.353553385 : f32
    %75 = vector.broadcast %cst_46 : f32 to vector<8x8xf32>
    %76 = arith.mulf %74, %75 : vector<8x8xf32>
    %cst_47 = arith.constant dense<0xFF800000> : vector<8xf32>
    %77 = vector.multi_reduction <maximumf>, %76, %cst_47 [1] : vector<8x8xf32> to vector<8xf32>
    %78 = vector.shape_cast %77 : vector<8xf32> to vector<8x1xf32>
    %79 = vector.broadcast %78 : vector<8x1xf32> to vector<8x8xf32>
    %80 = arith.subf %76, %79 : vector<8x8xf32>
    %81 = math.exp %80 : vector<8x8xf32>
    %cst_48 = arith.constant dense<0.000000e+00> : vector<8xf32>
    %82 = vector.multi_reduction <add>, %81, %cst_48 [1] : vector<8x8xf32> to vector<8xf32>
    %83 = vector.shape_cast %82 : vector<8xf32> to vector<8x1xf32>
    %84 = tpu.reciprocal %83 {approx = true} : vector<8x1xf32> -> vector<8x1xf32>
    %85 = vector.broadcast %84 : vector<8x1xf32> to vector<8x8xf32>
    %86 = arith.mulf %81, %85 : vector<8x8xf32>
    %87 = arith.truncf %86 : vector<8x8xf32> to vector<8x8xbf16>
    %88 = arith.truncf %71 : vector<8x8xf32> to vector<8x8xbf16>
    %cst_49 = arith.constant dense<0.000000e+00> : vector<8x8xf32>
    %89 = tpu.matmul %87, %88, %cst_49 {dimension_numbers = #tpu.dot_dimension_numbers<[1], [0], [0], [1], [0, 0, 1, 1], [], []>} : vector<8x8xbf16>, vector<8x8xbf16>, vector<8x8xf32> -> vector<8x8xf32>
    %c0_50 = arith.constant 0 : index
    %c16 = arith.constant 16 : index
    %90 = vector.load %arg22[%c0_50, %c16] : memref<16x32xf32, #tpu.memory_space<vmem>>, vector<8x8xf32>
    tpu.vector_store %arg22[%c0_50, %c16], %89 {strides = array<i32>} : memref<16x32xf32, #tpu.memory_space<vmem>>, vector<8x8xf32>,
    %91 = vector.extract_strided_slice %24 {offsets = [0, 24], sizes = [8, 8], strides = [1, 1]} : vector<16x96xf32> to vector<8x8xf32>
    %92 = vector.extract_strided_slice %24 {offsets = [0, 56], sizes = [8, 8], strides = [1, 1]} : vector<16x96xf32> to vector<8x8xf32>
    %93 = vector.extract_strided_slice %24 {offsets = [0, 88], sizes = [8, 8], strides = [1, 1]} : vector<16x96xf32> to vector<8x8xf32>
    %94 = arith.truncf %91 : vector<8x8xf32> to vector<8x8xbf16>
    %95 = arith.truncf %92 : vector<8x8xf32> to vector<8x8xbf16>
    %cst_51 = arith.constant dense<0.000000e+00> : vector<8x8xf32>
    %96 = tpu.matmul %94, %95, %cst_51 {dimension_numbers = #tpu.dot_dimension_numbers<[1], [1], [0], [0], [0, 0, 1, 0], [], []>} : vector<8x8xbf16>, vector<8x8xbf16>, vector<8x8xf32> -> vector<8x8xf32>
    %cst_52 = arith.constant 0.353553385 : f32
    %97 = vector.broadcast %cst_52 : f32 to vector<8x8xf32>
    %98 = arith.mulf %96, %97 : vector<8x8xf32>
    %cst_53 = arith.constant dense<0xFF800000> : vector<8xf32>
    %99 = vector.multi_reduction <maximumf>, %98, %cst_53 [1] : vector<8x8xf32> to vector<8xf32>
    %100 = vector.shape_cast %99 : vector<8xf32> to vector<8x1xf32>
    %101 = vector.broadcast %100 : vector<8x1xf32> to vector<8x8xf32>
    %102 = arith.subf %98, %101 : vector<8x8xf32>
    %103 = math.exp %102 : vector<8x8xf32>
    %cst_54 = arith.constant dense<0.000000e+00> : vector<8xf32>
    %104 = vector.multi_reduction <add>, %103, %cst_54 [1] : vector<8x8xf32> to vector<8xf32>
    %105 = vector.shape_cast %104 : vector<8xf32> to vector<8x1xf32>
    %106 = tpu.reciprocal %105 {approx = true} : vector<8x1xf32> -> vector<8x1xf32>
    %107 = vector.broadcast %106 : vector<8x1xf32> to vector<8x8xf32>
    %108 = arith.mulf %103, %107 : vector<8x8xf32>
    %109 = arith.truncf %108 : vector<8x8xf32> to vector<8x8xbf16>
    %110 = arith.truncf %93 : vector<8x8xf32> to vector<8x8xbf16>
    %cst_55 = arith.constant dense<0.000000e+00> : vector<8x8xf32>
    %111 = tpu.matmul %109, %110, %cst_55 {dimension_numbers = #tpu.dot_dimension_numbers<[1], [0], [0], [1], [0, 0, 1, 1], [], []>} : vector<8x8xbf16>, vector<8x8xbf16>, vector<8x8xf32> -> vector<8x8xf32>
    %c0_56 = arith.constant 0 : index
    %c24 = arith.constant 24 : index
    %112 = vector.load %arg22[%c0_56, %c24] : memref<16x32xf32, #tpu.memory_space<vmem>>, vector<8x8xf32>
    tpu.vector_store %arg22[%c0_56, %c24], %111 {strides = array<i32>} : memref<16x32xf32, #tpu.memory_space<vmem>>, vector<8x8xf32>,
    %113 = vector.extract_strided_slice %24 {offsets = [8, 0], sizes = [8, 8], strides = [1, 1]} : vector<16x96xf32> to vector<8x8xf32>
    %114 = vector.extract_strided_slice %24 {offsets = [8, 32], sizes = [8, 8], strides = [1, 1]} : vector<16x96xf32> to vector<8x8xf32>
    %115 = vector.extract_strided_slice %24 {offsets = [8, 64], sizes = [8, 8], strides = [1, 1]} : vector<16x96xf32> to vector<8x8xf32>
    %116 = arith.truncf %113 : vector<8x8xf32> to vector<8x8xbf16>
    %117 = arith.truncf %114 : vector<8x8xf32> to vector<8x8xbf16>
    %cst_57 = arith.constant dense<0.000000e+00> : vector<8x8xf32>
    %118 = tpu.matmul %116, %117, %cst_57 {dimension_numbers = #tpu.dot_dimension_numbers<[1], [1], [0], [0], [0, 0, 1, 0], [], []>} : vector<8x8xbf16>, vector<8x8xbf16>, vector<8x8xf32> -> vector<8x8xf32>
    %cst_58 = arith.constant 0.353553385 : f32
    %119 = vector.broadcast %cst_58 : f32 to vector<8x8xf32>
    %120 = arith.mulf %118, %119 : vector<8x8xf32>
    %cst_59 = arith.constant dense<0xFF800000> : vector<8xf32>
    %121 = vector.multi_reduction <maximumf>, %120, %cst_59 [1] : vector<8x8xf32> to vector<8xf32>
    %122 = vector.shape_cast %121 : vector<8xf32> to vector<8x1xf32>
    %123 = vector.broadcast %122 : vector<8x1xf32> to vector<8x8xf32>
    %124 = arith.subf %120, %123 : vector<8x8xf32>
    %125 = math.exp %124 : vector<8x8xf32>
    %cst_60 = arith.constant dense<0.000000e+00> : vector<8xf32>
    %126 = vector.multi_reduction <add>, %125, %cst_60 [1] : vector<8x8xf32> to vector<8xf32>
    %127 = vector.shape_cast %126 : vector<8xf32> to vector<8x1xf32>
    %128 = tpu.reciprocal %127 {approx = true} : vector<8x1xf32> -> vector<8x1xf32>
    %129 = vector.broadcast %128 : vector<8x1xf32> to vector<8x8xf32>
    %130 = arith.mulf %125, %129 : vector<8x8xf32>
    %131 = arith.truncf %130 : vector<8x8xf32> to vector<8x8xbf16>
    %132 = arith.truncf %115 : vector<8x8xf32> to vector<8x8xbf16>
    %cst_61 = arith.constant dense<0.000000e+00> : vector<8x8xf32>
    %133 = tpu.matmul %131, %132, %cst_61 {dimension_numbers = #tpu.dot_dimension_numbers<[1], [0], [0], [1], [0, 0, 1, 1], [], []>} : vector<8x8xbf16>, vector<8x8xbf16>, vector<8x8xf32> -> vector<8x8xf32>
    %c8_62 = arith.constant 8 : index
    %c0_63 = arith.constant 0 : index
    %134 = vector.load %arg22[%c8_62, %c0_63] : memref<16x32xf32, #tpu.memory_space<vmem>>, vector<8x8xf32>
    tpu.vector_store %arg22[%c8_62, %c0_63], %133 {strides = array<i32>} : memref<16x32xf32, #tpu.memory_space<vmem>>, vector<8x8xf32>,
    %135 = vector.extract_strided_slice %24 {offsets = [8, 8], sizes = [8, 8], strides = [1, 1]} : vector<16x96xf32> to vector<8x8xf32>
    %136 = vector.extract_strided_slice %24 {offsets = [8, 40], sizes = [8, 8], strides = [1, 1]} : vector<16x96xf32> to vector<8x8xf32>
    %137 = vector.extract_strided_slice %24 {offsets = [8, 72], sizes = [8, 8], strides = [1, 1]} : vector<16x96xf32> to vector<8x8xf32>
    %138 = arith.truncf %135 : vector<8x8xf32> to vector<8x8xbf16>
    %139 = arith.truncf %136 : vector<8x8xf32> to vector<8x8xbf16>
    %cst_64 = arith.constant dense<0.000000e+00> : vector<8x8xf32>
    %140 = tpu.matmul %138, %139, %cst_64 {dimension_numbers = #tpu.dot_dimension_numbers<[1], [1], [0], [0], [0, 0, 1, 0], [], []>} : vector<8x8xbf16>, vector<8x8xbf16>, vector<8x8xf32> -> vector<8x8xf32>
    %cst_65 = arith.constant 0.353553385 : f32
    %141 = vector.broadcast %cst_65 : f32 to vector<8x8xf32>
    %142 = arith.mulf %140, %141 : vector<8x8xf32>
    %cst_66 = arith.constant dense<0xFF800000> : vector<8xf32>
    %143 = vector.multi_reduction <maximumf>, %142, %cst_66 [1] : vector<8x8xf32> to vector<8xf32>
    %144 = vector.shape_cast %143 : vector<8xf32> to vector<8x1xf32>
    %145 = vector.broadcast %144 : vector<8x1xf32> to vector<8x8xf32>
    %146 = arith.subf %142, %145 : vector<8x8xf32>
    %147 = math.exp %146 : vector<8x8xf32>
    %cst_67 = arith.constant dense<0.000000e+00> : vector<8xf32>
    %148 = vector.multi_reduction <add>, %147, %cst_67 [1] : vector<8x8xf32> to vector<8xf32>
    %149 = vector.shape_cast %148 : vector<8xf32> to vector<8x1xf32>
    %150 = tpu.reciprocal %149 {approx = true} : vector<8x1xf32> -> vector<8x1xf32>
    %151 = vector.broadcast %150 : vector<8x1xf32> to vector<8x8xf32>
    %152 = arith.mulf %147, %151 : vector<8x8xf32>
    %153 = arith.truncf %152 : vector<8x8xf32> to vector<8x8xbf16>
    %154 = arith.truncf %137 : vector<8x8xf32> to vector<8x8xbf16>
    %cst_68 = arith.constant dense<0.000000e+00> : vector<8x8xf32>
    %155 = tpu.matmul %153, %154, %cst_68 {dimension_numbers = #tpu.dot_dimension_numbers<[1], [0], [0], [1], [0, 0, 1, 1], [], []>} : vector<8x8xbf16>, vector<8x8xbf16>, vector<8x8xf32> -> vector<8x8xf32>
    %c8_69 = arith.constant 8 : index
    %c8_70 = arith.constant 8 : index
    %156 = vector.load %arg22[%c8_69, %c8_70] : memref<16x32xf32, #tpu.memory_space<vmem>>, vector<8x8xf32>
    tpu.vector_store %arg22[%c8_69, %c8_70], %155 {strides = array<i32>} : memref<16x32xf32, #tpu.memory_space<vmem>>, vector<8x8xf32>,
    %157 = vector.extract_strided_slice %24 {offsets = [8, 16], sizes = [8, 8], strides = [1, 1]} : vector<16x96xf32> to vector<8x8xf32>
    %158 = vector.extract_strided_slice %24 {offsets = [8, 48], sizes = [8, 8], strides = [1, 1]} : vector<16x96xf32> to vector<8x8xf32>
    %159 = vector.extract_strided_slice %24 {offsets = [8, 80], sizes = [8, 8], strides = [1, 1]} : vector<16x96xf32> to vector<8x8xf32>
    %160 = arith.truncf %157 : vector<8x8xf32> to vector<8x8xbf16>
    %161 = arith.truncf %158 : vector<8x8xf32> to vector<8x8xbf16>
    %cst_71 = arith.constant dense<0.000000e+00> : vector<8x8xf32>
    %162 = tpu.matmul %160, %161, %cst_71 {dimension_numbers = #tpu.dot_dimension_numbers<[1], [1], [0], [0], [0, 0, 1, 0], [], []>} : vector<8x8xbf16>, vector<8x8xbf16>, vector<8x8xf32> -> vector<8x8xf32>
    %cst_72 = arith.constant 0.353553385 : f32
    %163 = vector.broadcast %cst_72 : f32 to vector<8x8xf32>
    %164 = arith.mulf %162, %163 : vector<8x8xf32>
    %cst_73 = arith.constant dense<0xFF800000> : vector<8xf32>
    %165 = vector.multi_reduction <maximumf>, %164, %cst_73 [1] : vector<8x8xf32> to vector<8xf32>
    %166 = vector.shape_cast %165 : vector<8xf32> to vector<8x1xf32>
    %167 = vector.broadcast %166 : vector<8x1xf32> to vector<8x8xf32>
    %168 = arith.subf %164, %167 : vector<8x8xf32>
    %169 = math.exp %168 : vector<8x8xf32>
    %cst_74 = arith.constant dense<0.000000e+00> : vector<8xf32>
    %170 = vector.multi_reduction <add>, %169, %cst_74 [1] : vector<8x8xf32> to vector<8xf32>
    %171 = vector.shape_cast %170 : vector<8xf32> to vector<8x1xf32>
    %172 = tpu.reciprocal %171 {approx = true} : vector<8x1xf32> -> vector<8x1xf32>
    %173 = vector.broadcast %172 : vector<8x1xf32> to vector<8x8xf32>
    %174 = arith.mulf %169, %173 : vector<8x8xf32>
    %175 = arith.truncf %174 : vector<8x8xf32> to vector<8x8xbf16>
    %176 = arith.truncf %159 : vector<8x8xf32> to vector<8x8xbf16>
    %cst_75 = arith.constant dense<0.000000e+00> : vector<8x8xf32>
    %177 = tpu.matmul %175, %176, %cst_75 {dimension_numbers = #tpu.dot_dimension_numbers<[1], [0], [0], [1], [0, 0, 1, 1], [], []>} : vector<8x8xbf16>, vector<8x8xbf16>, vector<8x8xf32> -> vector<8x8xf32>
    %c8_76 = arith.constant 8 : index
    %c16_77 = arith.constant 16 : index
    %178 = vector.load %arg22[%c8_76, %c16_77] : memref<16x32xf32, #tpu.memory_space<vmem>>, vector<8x8xf32>
    tpu.vector_store %arg22[%c8_76, %c16_77], %177 {strides = array<i32>} : memref<16x32xf32, #tpu.memory_space<vmem>>, vector<8x8xf32>,
    %179 = vector.extract_strided_slice %24 {offsets = [8, 24], sizes = [8, 8], strides = [1, 1]} : vector<16x96xf32> to vector<8x8xf32>
    %180 = vector.extract_strided_slice %24 {offsets = [8, 56], sizes = [8, 8], strides = [1, 1]} : vector<16x96xf32> to vector<8x8xf32>
    %181 = vector.extract_strided_slice %24 {offsets = [8, 88], sizes = [8, 8], strides = [1, 1]} : vector<16x96xf32> to vector<8x8xf32>
    %182 = arith.truncf %179 : vector<8x8xf32> to vector<8x8xbf16>
    %183 = arith.truncf %180 : vector<8x8xf32> to vector<8x8xbf16>
    %cst_78 = arith.constant dense<0.000000e+00> : vector<8x8xf32>
    %184 = tpu.matmul %182, %183, %cst_78 {dimension_numbers = #tpu.dot_dimension_numbers<[1], [1], [0], [0], [0, 0, 1, 0], [], []>} : vector<8x8xbf16>, vector<8x8xbf16>, vector<8x8xf32> -> vector<8x8xf32>
    %cst_79 = arith.constant 0.353553385 : f32
    %185 = vector.broadcast %cst_79 : f32 to vector<8x8xf32>
    %186 = arith.mulf %184, %185 : vector<8x8xf32>
    %cst_80 = arith.constant dense<0xFF800000> : vector<8xf32>
    %187 = vector.multi_reduction <maximumf>, %186, %cst_80 [1] : vector<8x8xf32> to vector<8xf32>
    %188 = vector.shape_cast %187 : vector<8xf32> to vector<8x1xf32>
    %189 = vector.broadcast %188 : vector<8x1xf32> to vector<8x8xf32>
    %190 = arith.subf %186, %189 : vector<8x8xf32>
    %191 = math.exp %190 : vector<8x8xf32>
    %cst_81 = arith.constant dense<0.000000e+00> : vector<8xf32>
    %192 = vector.multi_reduction <add>, %191, %cst_81 [1] : vector<8x8xf32> to vector<8xf32>
    %193 = vector.shape_cast %192 : vector<8xf32> to vector<8x1xf32>
    %194 = tpu.reciprocal %193 {approx = true} : vector<8x1xf32> -> vector<8x1xf32>
    %195 = vector.broadcast %194 : vector<8x1xf32> to vector<8x8xf32>
    %196 = arith.mulf %191, %195 : vector<8x8xf32>
    %197 = arith.truncf %196 : vector<8x8xf32> to vector<8x8xbf16>
    %198 = arith.truncf %181 : vector<8x8xf32> to vector<8x8xbf16>
    %cst_82 = arith.constant dense<0.000000e+00> : vector<8x8xf32>
    %199 = tpu.matmul %197, %198, %cst_82 {dimension_numbers = #tpu.dot_dimension_numbers<[1], [0], [0], [1], [0, 0, 1, 1], [], []>} : vector<8x8xbf16>, vector<8x8xbf16>, vector<8x8xf32> -> vector<8x8xf32>
    %c8_83 = arith.constant 8 : index
    %c24_84 = arith.constant 24 : index
    %200 = vector.load %arg22[%c8_83, %c24_84] : memref<16x32xf32, #tpu.memory_space<vmem>>, vector<8x8xf32>
    tpu.vector_store %arg22[%c8_83, %c24_84], %199 {strides = array<i32>} : memref<16x32xf32, #tpu.memory_space<vmem>>, vector<8x8xf32>,
    %c0_85 = arith.constant 0 : index
    %c0_86 = arith.constant 0 : index
    %201 = vector.load %arg22[%c0_85, %c0_86] : memref<16x32xf32, #tpu.memory_space<vmem>>, vector<16x32xf32>
    %202 = arith.truncf %201 : vector<16x32xf32> to vector<16x32xbf16>
    %cst_87 = arith.constant dense<0.000000e+00> : vector<16x32xf32>
    %203 = tpu.matmul %202, %11, %cst_87 {dimension_numbers = #tpu.dot_dimension_numbers<[1], [0], [0], [1], [0, 0, 1, 1], [], []>} : vector<16x32xbf16>, vector<32x32xbf16>, vector<16x32xf32> -> vector<16x32xf32>
    %204 = vector.broadcast %12 : vector<1x32xf32> to vector<16x32xf32>
    %205 = arith.addf %203, %204 : vector<16x32xf32>
    %206 = arith.addf %8, %205 : vector<16x32xf32>
    %cst_88 = arith.constant dense<0.000000e+00> : vector<16xf32>
    %207 = vector.multi_reduction <add>, %206, %cst_88 [1] : vector<16x32xf32> to vector<16xf32>
    %208 = vector.shape_cast %207 : vector<16xf32> to vector<16x1xf32>
    %cst_89 = arith.constant 3.200000e+01 : f32
    %209 = vector.broadcast %cst_89 : f32 to vector<16x1xf32>
    %210 = arith.divf %208, %209 : vector<16x1xf32>
    %211 = vector.broadcast %210 : vector<16x1xf32> to vector<16x32xf32>
    %212 = arith.subf %206, %211 : vector<16x32xf32>
    %213 = arith.mulf %212, %212 : vector<16x32xf32>
    %cst_90 = arith.constant dense<0.000000e+00> : vector<16xf32>
    %214 = vector.multi_reduction <add>, %213, %cst_90 [1] : vector<16x32xf32> to vector<16xf32>
    %215 = vector.shape_cast %214 : vector<16xf32> to vector<16x1xf32>
    %cst_91 = arith.constant 3.200000e+01 : f32
    %216 = vector.broadcast %cst_91 : f32 to vector<16x1xf32>
    %217 = arith.divf %215, %216 : vector<16x1xf32>
    %218 = vector.broadcast %210 : vector<16x1xf32> to vector<16x32xf32>
    %219 = arith.subf %206, %218 : vector<16x32xf32>
    %cst_92 = arith.constant 9.99999996E-13 : f32
    %220 = vector.broadcast %cst_92 : f32 to vector<16x1xf32>
    %221 = arith.addf %217, %220 : vector<16x1xf32>
    %222 = math.rsqrt %221 : vector<16x1xf32>
    %223 = vector.broadcast %222 : vector<16x1xf32> to vector<16x32xf32>
    %224 = arith.mulf %219, %223 : vector<16x32xf32>
    %225 = vector.broadcast %13 : vector<1x32xf32> to vector<16x32xf32>
    %226 = arith.mulf %224, %225 : vector<16x32xf32>
    %227 = vector.broadcast %14 : vector<1x32xf32> to vector<16x32xf32>
    %228 = arith.addf %226, %227 : vector<16x32xf32>
    %229 = arith.truncf %228 : vector<16x32xf32> to vector<16x32xbf16>
    %cst_93 = arith.constant dense<0.000000e+00> : vector<16x64xf32>
    %230 = tpu.matmul %229, %15, %cst_93 {dimension_numbers = #tpu.dot_dimension_numbers<[1], [0], [0], [1], [0, 0, 1, 1], [], []>} : vector<16x32xbf16>, vector<32x64xbf16>, vector<16x64xf32> -> vector<16x64xf32>
    %231 = vector.broadcast %16 : vector<1x64xf32> to vector<16x64xf32>
    %232 = arith.addf %230, %231 : vector<16x64xf32>
    %233 = arith.mulf %232, %232 : vector<16x64xf32>
    %234 = arith.mulf %232, %233 : vector<16x64xf32>
    %cst_94 = arith.constant 4.471500e-02 : f32
    %235 = vector.broadcast %cst_94 : f32 to vector<16x64xf32>
    %236 = arith.mulf %235, %234 : vector<16x64xf32>
    %237 = arith.addf %232, %236 : vector<16x64xf32>
    %cst_95 = arith.constant 0.797884583 : f32
    %238 = vector.broadcast %cst_95 : f32 to vector<16x64xf32>
    %239 = arith.mulf %238, %237 : vector<16x64xf32>
    %240 = math.tanh %239 : vector<16x64xf32>
    %cst_96 = arith.constant 1.000000e+00 : f32
    %241 = vector.broadcast %cst_96 : f32 to vector<16x64xf32>
    %242 = arith.addf %241, %240 : vector<16x64xf32>
    %cst_97 = arith.constant 5.000000e-01 : f32
    %243 = vector.broadcast %cst_97 : f32 to vector<16x64xf32>
    %244 = arith.mulf %243, %242 : vector<16x64xf32>
    %245 = arith.mulf %232, %244 : vector<16x64xf32>
    %246 = arith.truncf %245 : vector<16x64xf32> to vector<16x64xbf16>
    %cst_98 = arith.constant dense<0.000000e+00> : vector<16x32xf32>
    %247 = tpu.matmul %246, %17, %cst_98 {dimension_numbers = #tpu.dot_dimension_numbers<[1], [0], [0], [1], [0, 0, 1, 1], [], []>} : vector<16x64xbf16>, vector<64x32xbf16>, vector<16x32xf32> -> vector<16x32xf32>
    %248 = vector.broadcast %18 : vector<1x32xf32> to vector<16x32xf32>
    %249 = arith.addf %247, %248 : vector<16x32xf32>
    %250 = arith.addf %228, %249 : vector<16x32xf32>
    %cst_99 = arith.constant dense<0.000000e+00> : vector<16xf32>
    %251 = vector.multi_reduction <add>, %250, %cst_99 [1] : vector<16x32xf32> to vector<16xf32>
    %252 = vector.shape_cast %251 : vector<16xf32> to vector<16x1xf32>
    %cst_100 = arith.constant 3.200000e+01 : f32
    %253 = vector.broadcast %cst_100 : f32 to vector<16x1xf32>
    %254 = arith.divf %252, %253 : vector<16x1xf32>
    %255 = vector.broadcast %254 : vector<16x1xf32> to vector<16x32xf32>
    %256 = arith.subf %250, %255 : vector<16x32xf32>
    %257 = arith.mulf %256, %256 : vector<16x32xf32>
    %cst_101 = arith.constant dense<0.000000e+00> : vector<16xf32>
    %258 = vector.multi_reduction <add>, %257, %cst_101 [1] : vector<16x32xf32> to vector<16xf32>
    %259 = vector.shape_cast %258 : vector<16xf32> to vector<16x1xf32>
    %cst_102 = arith.constant 3.200000e+01 : f32
    %260 = vector.broadcast %cst_102 : f32 to vector<16x1xf32>
    %261 = arith.divf %259, %260 : vector<16x1xf32>
    %262 = vector.broadcast %254 : vector<16x1xf32> to vector<16x32xf32>
    %263 = arith.subf %250, %262 : vector<16x32xf32>
    %cst_103 = arith.constant 9.99999996E-13 : f32
    %264 = vector.broadcast %cst_103 : f32 to vector<16x1xf32>
    %265 = arith.addf %261, %264 : vector<16x1xf32>
    %266 = math.rsqrt %265 : vector<16x1xf32>
    %267 = vector.broadcast %266 : vector<16x1xf32> to vector<16x32xf32>
    %268 = arith.mulf %263, %267 : vector<16x32xf32>
    %269 = vector.broadcast %19 : vector<1x32xf32> to vector<16x32xf32>
    %270 = arith.mulf %268, %269 : vector<16x32xf32>
    %271 = vector.broadcast %20 : vector<1x32xf32> to vector<16x32xf32>
    %272 = arith.addf %270, %271 : vector<16x32xf32>
    %c0_104 = arith.constant 0 : index
    %c0_105 = arith.constant 0 : index
    %273 = vector.load %arg17[%c0_104, %c0_105] : memref<32x32xbf16, #tpu.memory_space<vmem>>, vector<32x32xbf16>
    %274 = arith.truncf %272 : vector<16x32xf32> to vector<16x32xbf16>
    %cst_106 = arith.constant dense<0.000000e+00> : vector<16x32xf32>
    %275 = tpu.matmul %274, %273, %cst_106 {dimension_numbers = #tpu.dot_dimension_numbers<[1], [0], [0], [1], [0, 0, 1, 1], [], []>} : vector<16x32xbf16>, vector<32x32xbf16>, vector<16x32xf32> -> vector<16x32xf32>
    %c0_107 = arith.constant 0 : index
    %c0_108 = arith.constant 0 : index
    %276 = vector.load %arg18[%c0_107, %c0_108] : memref<1x32xf32, #tpu.memory_space<vmem>>, vector<1x32xf32>
    %277 = vector.broadcast %276 : vector<1x32xf32> to vector<16x32xf32>
    %278 = arith.addf %275, %277 : vector<16x32xf32>
    %cst_109 = arith.constant 0.000000e+00 : f32
    %279 = vector.broadcast %cst_109 : f32 to vector<16x32xf32>
    %280 = arith.maximumf %278, %279 : vector<16x32xf32>
    %c0_110 = arith.constant 0 : index
    %c0_111 = arith.constant 0 : index
    %281 = vector.load %arg19[%c0_110, %c0_111] : memref<32x32xbf16, #tpu.memory_space<vmem>>, vector<32x32xbf16>
    %282 = arith.truncf %280 : vector<16x32xf32> to vector<16x32xbf16>
    %cst_112 = arith.constant dense<0.000000e+00> : vector<16x32xf32>
    %283 = tpu.matmul %282, %281, %cst_112 {dimension_numbers = #tpu.dot_dimension_numbers<[1], [0], [0], [1], [0, 0, 1, 1], [], []>} : vector<16x32xbf16>, vector<32x32xbf16>, vector<16x32xf32> -> vector<16x32xf32>
    %c0_113 = arith.constant 0 : index
    %c0_114 = arith.constant 0 : index
    %284 = vector.load %arg20[%c0_113, %c0_114] : memref<1x32xf32, #tpu.memory_space<vmem>>, vector<1x32xf32>
    %285 = vector.broadcast %284 : vector<1x32xf32> to vector<16x32xf32>
    %286 = arith.addf %283, %285 : vector<16x32xf32>
    %c0_115 = arith.constant 0 : index
    %c0_116 = arith.constant 0 : index
    %287 = vector.load %arg21[%c0_115, %c0_116] : memref<16x32xf32, #tpu.memory_space<vmem>>, vector<16x32xf32>
    tpu.vector_store %arg21[%c0_115, %c0_116], %286 {strides = array<i32>} : memref<16x32xf32, #tpu.memory_space<vmem>>, vector<16x32xf32>,
    return
  }
  func.func @transform_0(%arg0: i32) -> (i32, i32) {
    %c0_i32 = arith.constant 0 : i32
    %c0_i32_0 = arith.constant 0 : i32
    %c0_i32_1 = arith.constant 0 : i32
    return %c0_i32, %c0_i32_0 : i32, i32
  }
  func.func @transform_1(%arg0: i32) -> (i32, i32) {
    %c0_i32 = arith.constant 0 : i32
    %c0_i32_0 = arith.constant 0 : i32
    %c0_i32_1 = arith.constant 0 : i32
    return %c0_i32, %c0_i32_0 : i32, i32
  }
  func.func @transform_2(%arg0: i32) -> (i32, i32) {
    %c0_i32 = arith.constant 0 : i32
    %c0_i32_0 = arith.constant 0 : i32
    %c0_i32_1 = arith.constant 0 : i32
    return %c0_i32, %c0_i32_0 : i32, i32
  }
  func.func @transform_3(%arg0: i32) -> (i32, i32) {
    %c0_i32 = arith.constant 0 : i32
    %c0_i32_0 = arith.constant 0 : i32
    %c0_i32_1 = arith.constant 0 : i32
    return %c0_i32, %c0_i32_0 : i32, i32
  }
  func.func @transform_4(%arg0: i32) -> (i32, i32) {
    %c0_i32 = arith.constant 0 : i32
    %c0_i32_0 = arith.constant 0 : i32
    %c0_i32_1 = arith.constant 0 : i32
    return %c0_i32, %c0_i32_0 : i32, i32
  }
  func.func @transform_5(%arg0: i32) -> (i32, i32) {
    %c0_i32 = arith.constant 0 : i32
    %c0_i32_0 = arith.constant 0 : i32
    %c0_i32_1 = arith.constant 0 : i32
    return %c0_i32, %c0_i32_0 : i32, i32
  }
  func.func @transform_6(%arg0: i32) -> (i32, i32) {
    %c0_i32 = arith.constant 0 : i32
    %c0_i32_0 = arith.constant 0 : i32
    %c0_i32_1 = arith.constant 0 : i32
    return %c0_i32, %c0_i32_0 : i32, i32
  }
  func.func @transform_7(%arg0: i32) -> (i32, i32) {
    %c0_i32 = arith.constant 0 : i32
    %c0_i32_0 = arith.constant 0 : i32
    %c0_i32_1 = arith.constant 0 : i32
    return %c0_i32, %c0_i32_0 : i32, i32
  }
  func.func @transform_8(%arg0: i32) -> (i32, i32) {
    %c0_i32 = arith.constant 0 : i32
    %c0_i32_0 = arith.constant 0 : i32
    %c0_i32_1 = arith.constant 0 : i32
    return %c0_i32, %c0_i32_0 : i32, i32
  }
  func.func @transform_9(%arg0: i32) -> (i32, i32) {
    %c0_i32 = arith.constant 0 : i32
    %c0_i32_0 = arith.constant 0 : i32
    %c0_i32_1 = arith.constant 0 : i32
    return %c0_i32, %c0_i32_0 : i32, i32
  }
  func.func @transform_10(%arg0: i32) -> (i32, i32) {
    %c0_i32 = arith.constant 0 : i32
    %c0_i32_0 = arith.constant 0 : i32
    %c0_i32_1 = arith.constant 0 : i32
    return %c0_i32, %c0_i32_0 : i32, i32
  }
  func.func @transform_11(%arg0: i32) -> (i32, i32) {
    %c0_i32 = arith.constant 0 : i32
    %c0_i32_0 = arith.constant 0 : i32
    %c0_i32_1 = arith.constant 0 : i32
    return %c0_i32, %c0_i32_0 : i32, i32
  }
  func.func @transform_12(%arg0: i32) -> (i32, i32) {
    %c0_i32 = arith.constant 0 : i32
    %c0_i32_0 = arith.constant 0 : i32
    %c0_i32_1 = arith.constant 0 : i32
    return %c0_i32, %c0_i32_0 : i32, i32
  }
  func.func @transform_13(%arg0: i32) -> (i32, i32) {
    %c0_i32 = arith.constant 0 : i32
    %c0_i32_0 = arith.constant 0 : i32
    %c0_i32_1 = arith.constant 0 : i32
    return %c0_i32, %c0_i32_0 : i32, i32
  }
  func.func @transform_14(%arg0: i32) -> (i32, i32) {
    %c0_i32 = arith.constant 0 : i32
    %c0_i32_0 = arith.constant 0 : i32
    %c0_i32_1 = arith.constant 0 : i32
    return %c0_i32, %c0_i32_0 : i32, i32
  }
  func.func @transform_15(%arg0: i32) -> (i32, i32) {
    %c0_i32 = arith.constant 0 : i32
    %c0_i32_0 = arith.constant 0 : i32
    %c0_i32_1 = arith.constant 0 : i32
    return %c0_i32, %c0_i32_0 : i32, i32
  }
  func.func @transform_16(%arg0: i32) -> (i32, i32) {
    %c0_i32 = arith.constant 0 : i32
    %c0_i32_0 = arith.constant 0 : i32
    %c0_i32_1 = arith.constant 0 : i32
    return %c0_i32, %c0_i32_0 : i32, i32
  }
  func.func @transform_17(%arg0: i32) -> (i32, i32) {
    %c0_i32 = arith.constant 0 : i32
    %c0_i32_0 = arith.constant 0 : i32
    %c0_i32_1 = arith.constant 0 : i32
    return %c0_i32, %c0_i32_0 : i32, i32
  }
  func.func @transform_18(%arg0: i32) -> (i32, i32) {
    %c0_i32 = arith.constant 0 : i32
    %c0_i32_0 = arith.constant 0 : i32
    %c0_i32_1 = arith.constant 0 : i32
    return %c0_i32, %c0_i32_0 : i32, i32
  }
  func.func @transform_19(%arg0: i32) -> (i32, i32) {
    %c0_i32 = arith.constant 0 : i32
    %c0_i32_0 = arith.constant 0 : i32
    %c0_i32_1 = arith.constant 0 : i32
    return %c0_i32, %c0_i32_0 : i32, i32
  }
  func.func @transform_20(%arg0: i32) -> (i32, i32) {
    %c0_i32 = arith.constant 0 : i32
    %c0_i32_0 = arith.constant 0 : i32
    %c0_i32_1 = arith.constant 0 : i32
    return %c0_i32, %c0_i32_0 : i32, i32
  }
}

module attributes {stable_mosaic.version = 11 : i64} {
  func.func @_fused_bert_kernel(%arg0: i32, %arg1: memref<16x32xf32, #tpu.memory_space<vmem>>, %arg2: memref<1x32xf32, #tpu.memory_space<vmem>>, %arg3: memref<1x32xf32, #tpu.memory_space<vmem>>, %arg4: memref<2x32x96xbf16, #tpu.memory_space<vmem>>, %arg5: memref<2x1x96xf32, #tpu.memory_space<vmem>>, %arg6: memref<2x32x32xbf16, #tpu.memory_space<vmem>>, %arg7: memref<2x1x32xf32, #tpu.memory_space<vmem>>, %arg8: memref<2x1x32xf32, #tpu.memory_space<vmem>>, %arg9: memref<2x1x32xf32, #tpu.memory_space<vmem>>, %arg10: memref<2x32x64xbf16, #tpu.memory_space<vmem>>, %arg11: memref<2x1x64xf32, #tpu.memory_space<vmem>>, %arg12: memref<2x64x32xbf16, #tpu.memory_space<vmem>>, %arg13: memref<2x1x32xf32, #tpu.memory_space<vmem>>, %arg14: memref<2x1x32xf32, #tpu.memory_space<vmem>>, %arg15: memref<2x1x32xf32, #tpu.memory_space<vmem>>, %arg16: memref<16x32xf32, #tpu.memory_space<vmem>>, %arg17: memref<16x1xf32, #tpu.memory_space<vmem>>, %arg18: memref<32x32xbf16, #tpu.memory_space<vmem>>, %arg19: memref<1x32xf32, #tpu.memory_space<vmem>>, %arg20: memref<32x64xbf16, #tpu.memory_space<vmem>>, %arg21: memref<1x64xf32, #tpu.memory_space<vmem>>, %arg22: memref<32x32xbf16, #tpu.memory_space<vmem>>, %arg23: memref<1x32xf32, #tpu.memory_space<vmem>>, %arg24: memref<1x32xf32, #tpu.memory_space<vmem>>, %arg25: memref<1x32xf32, #tpu.memory_space<vmem>>, %arg26: memref<32x64xbf16, #tpu.memory_space<vmem>>, %arg27: memref<1x64xf32, #tpu.memory_space<vmem>>, %arg28: memref<64x32xbf16, #tpu.memory_space<vmem>>, %arg29: memref<1x32xf32, #tpu.memory_space<vmem>>, %arg30: memref<1x32xf32, #tpu.memory_space<vmem>>, %arg31: memref<1x32xf32, #tpu.memory_space<vmem>>, %arg32: memref<32x32xbf16, #tpu.memory_space<vmem>>, %arg33: memref<1x32xf32, #tpu.memory_space<vmem>>, %arg34: memref<32x32xbf16, #tpu.memory_space<vmem>>, %arg35: memref<1x32xf32, #tpu.memory_space<vmem>>, %arg36: memref<32x32xbf16, #tpu.memory_space<vmem>>, %arg37: memref<1x32xf32, #tpu.memory_space<vmem>>, %arg38: memref<1x32xf32, #tpu.memory_space<vmem>>, %arg39: memref<1x32xf32, #tpu.memory_space<vmem>>, %arg40: memref<32x128xbf16, #tpu.memory_space<vmem>>, %arg41: memref<1x128xf32, #tpu.memory_space<vmem>>, %arg42: memref<16x1xi32, #tpu.memory_space<vmem>>, %arg43: memref<16x128xf32, #tpu.memory_space<vmem>>, %arg44: memref<1xf32, #tpu.memory_space<smem>>, %arg45: memref<16x32xf32, #tpu.memory_space<vmem>>) attributes {dimension_semantics = [#tpu.dimension_semantics<arbitrary>], iteration_bounds = array<i64: 1>, scalar_prefetch = 0 : i64, scratch_operands = 1 : i64, tpu.core_type = #tpu.core_type<tc>, window_params = [{pipeline_mode = #tpu.pipeline_mode<synchronous>, transform_indices = @transform_0, window_bounds = array<i64: 16, 32>}, {pipeline_mode = #tpu.pipeline_mode<synchronous>, transform_indices = @transform_1, window_bounds = array<i64: 1, 32>}, {pipeline_mode = #tpu.pipeline_mode<synchronous>, transform_indices = @transform_2, window_bounds = array<i64: 1, 32>}, {pipeline_mode = #tpu.pipeline_mode<synchronous>, transform_indices = @transform_3, window_bounds = array<i64: 2, 32, 96>}, {pipeline_mode = #tpu.pipeline_mode<synchronous>, transform_indices = @transform_4, window_bounds = array<i64: 2, 1, 96>}, {pipeline_mode = #tpu.pipeline_mode<synchronous>, transform_indices = @transform_5, window_bounds = array<i64: 2, 32, 32>}, {pipeline_mode = #tpu.pipeline_mode<synchronous>, transform_indices = @transform_6, window_bounds = array<i64: 2, 1, 32>}, {pipeline_mode = #tpu.pipeline_mode<synchronous>, transform_indices = @transform_7, window_bounds = array<i64: 2, 1, 32>}, {pipeline_mode = #tpu.pipeline_mode<synchronous>, transform_indices = @transform_8, window_bounds = array<i64: 2, 1, 32>}, {pipeline_mode = #tpu.pipeline_mode<synchronous>, transform_indices = @transform_9, window_bounds = array<i64: 2, 32, 64>}, {pipeline_mode = #tpu.pipeline_mode<synchronous>, transform_indices = @transform_10, window_bounds = array<i64: 2, 1, 64>}, {pipeline_mode = #tpu.pipeline_mode<synchronous>, transform_indices = @transform_11, window_bounds = array<i64: 2, 64, 32>}, {pipeline_mode = #tpu.pipeline_mode<synchronous>, transform_indices = @transform_12, window_bounds = array<i64: 2, 1, 32>}, {pipeline_mode = #tpu.pipeline_mode<synchronous>, transform_indices = @transform_13, window_bounds = array<i64: 2, 1, 32>}, {pipeline_mode = #tpu.pipeline_mode<synchronous>, transform_indices = @transform_14, window_bounds = array<i64: 2, 1, 32>}, {pipeline_mode = #tpu.pipeline_mode<synchronous>, transform_indices = @transform_15, window_bounds = array<i64: 16, 32>}, {pipeline_mode = #tpu.pipeline_mode<synchronous>, transform_indices = @transform_16, window_bounds = array<i64: 16, 1>}, {pipeline_mode = #tpu.pipeline_mode<synchronous>, transform_indices = @transform_17, window_bounds = array<i64: 32, 32>}, {pipeline_mode = #tpu.pipeline_mode<synchronous>, transform_indices = @transform_18, window_bounds = array<i64: 1, 32>}, {pipeline_mode = #tpu.pipeline_mode<synchronous>, transform_indices = @transform_19, window_bounds = array<i64: 32, 64>}, {pipeline_mode = #tpu.pipeline_mode<synchronous>, transform_indices = @transform_20, window_bounds = array<i64: 1, 64>}, {pipeline_mode = #tpu.pipeline_mode<synchronous>, transform_indices = @transform_21, window_bounds = array<i64: 32, 32>}, {pipeline_mode = #tpu.pipeline_mode<synchronous>, transform_indices = @transform_22, window_bounds = array<i64: 1, 32>}, {pipeline_mode = #tpu.pipeline_mode<synchronous>, transform_indices = @transform_23, window_bounds = array<i64: 1, 32>}, {pipeline_mode = #tpu.pipeline_mode<synchronous>, transform_indices = @transform_24, window_bounds = array<i64: 1, 32>}, {pipeline_mode = #tpu.pipeline_mode<synchronous>, transform_indices = @transform_25, window_bounds = array<i64: 32, 64>}, {pipeline_mode = #tpu.pipeline_mode<synchronous>, transform_indices = @transform_26, window_bounds = array<i64: 1, 64>}, {pipeline_mode = #tpu.pipeline_mode<synchronous>, transform_indices = @transform_27, window_bounds = array<i64: 64, 32>}, {pipeline_mode = #tpu.pipeline_mode<synchronous>, transform_indices = @transform_28, window_bounds = array<i64: 1, 32>}, {pipeline_mode = #tpu.pipeline_mode<synchronous>, transform_indices = @transform_29, window_bounds = array<i64: 1, 32>}, {pipeline_mode = #tpu.pipeline_mode<synchronous>, transform_indices = @transform_30, window_bounds = array<i64: 1, 32>}, {pipeline_mode = #tpu.pipeline_mode<synchronous>, transform_indices = @transform_31, window_bounds = array<i64: 32, 32>}, {pipeline_mode = #tpu.pipeline_mode<synchronous>, transform_indices = @transform_32, window_bounds = array<i64: 1, 32>}, {pipeline_mode = #tpu.pipeline_mode<synchronous>, transform_indices = @transform_33, window_bounds = array<i64: 32, 32>}, {pipeline_mode = #tpu.pipeline_mode<synchronous>, transform_indices = @transform_34, window_bounds = array<i64: 1, 32>}, {pipeline_mode = #tpu.pipeline_mode<synchronous>, transform_indices = @transform_35, window_bounds = array<i64: 32, 32>}, {pipeline_mode = #tpu.pipeline_mode<synchronous>, transform_indices = @transform_36, window_bounds = array<i64: 1, 32>}, {pipeline_mode = #tpu.pipeline_mode<synchronous>, transform_indices = @transform_37, window_bounds = array<i64: 1, 32>}, {pipeline_mode = #tpu.pipeline_mode<synchronous>, transform_indices = @transform_38, window_bounds = array<i64: 1, 32>}, {pipeline_mode = #tpu.pipeline_mode<synchronous>, transform_indices = @transform_39, window_bounds = array<i64: 32, 128>}, {pipeline_mode = #tpu.pipeline_mode<synchronous>, transform_indices = @transform_40, window_bounds = array<i64: 1, 128>}, {pipeline_mode = #tpu.pipeline_mode<synchronous>, transform_indices = @transform_41, window_bounds = array<i64: 16, 1>}, {pipeline_mode = #tpu.pipeline_mode<synchronous>, transform_indices = @transform_42, window_bounds = array<i64: 16, 128>}, {transform_indices = @transform_43, window_bounds = array<i64: 1>}]} {
    %c0 = arith.constant 0 : index
    %c0_0 = arith.constant 0 : index
    %0 = vector.load %arg1[%c0, %c0_0] : memref<16x32xf32, #tpu.memory_space<vmem>>, vector<16x32xf32>
    %c0_1 = arith.constant 0 : index
    %c0_2 = arith.constant 0 : index
    %1 = vector.load %arg2[%c0_1, %c0_2] : memref<1x32xf32, #tpu.memory_space<vmem>>, vector<1x32xf32>
    %c0_3 = arith.constant 0 : index
    %c0_4 = arith.constant 0 : index
    %2 = vector.load %arg3[%c0_3, %c0_4] : memref<1x32xf32, #tpu.memory_space<vmem>>, vector<1x32xf32>
    %cst = arith.constant dense<0.000000e+00> : vector<16xf32>
    %3 = vector.multi_reduction <add>, %0, %cst [1] : vector<16x32xf32> to vector<16xf32>
    %4 = vector.shape_cast %3 : vector<16xf32> to vector<16x1xf32>
    %cst_5 = arith.constant 3.200000e+01 : f32
    %5 = vector.broadcast %cst_5 : f32 to vector<16x1xf32>
    %6 = arith.divf %4, %5 : vector<16x1xf32>
    %7 = vector.broadcast %6 : vector<16x1xf32> to vector<16x32xf32>
    %8 = arith.subf %0, %7 : vector<16x32xf32>
    %9 = arith.mulf %8, %8 : vector<16x32xf32>
    %cst_6 = arith.constant dense<0.000000e+00> : vector<16xf32>
    %10 = vector.multi_reduction <add>, %9, %cst_6 [1] : vector<16x32xf32> to vector<16xf32>
    %11 = vector.shape_cast %10 : vector<16xf32> to vector<16x1xf32>
    %cst_7 = arith.constant 3.200000e+01 : f32
    %12 = vector.broadcast %cst_7 : f32 to vector<16x1xf32>
    %13 = arith.divf %11, %12 : vector<16x1xf32>
    %14 = vector.broadcast %6 : vector<16x1xf32> to vector<16x32xf32>
    %15 = arith.subf %0, %14 : vector<16x32xf32>
    %cst_8 = arith.constant 9.99999996E-13 : f32
    %16 = vector.broadcast %cst_8 : f32 to vector<16x1xf32>
    %17 = arith.addf %13, %16 : vector<16x1xf32>
    %18 = math.rsqrt %17 : vector<16x1xf32>
    %19 = vector.broadcast %18 : vector<16x1xf32> to vector<16x32xf32>
    %20 = arith.mulf %15, %19 : vector<16x32xf32>
    %21 = vector.broadcast %1 : vector<1x32xf32> to vector<16x32xf32>
    %22 = arith.mulf %20, %21 : vector<16x32xf32>
    %23 = vector.broadcast %2 : vector<1x32xf32> to vector<16x32xf32>
    %24 = arith.addf %22, %23 : vector<16x32xf32>
    %c0_9 = arith.constant 0 : index
    %c0_10 = arith.constant 0 : index
    %25 = vector.load %arg18[%c0_9, %c0_10] : memref<32x32xbf16, #tpu.memory_space<vmem>>, vector<32x32xbf16>
    %c0_11 = arith.constant 0 : index
    %c0_12 = arith.constant 0 : index
    %26 = vector.load %arg19[%c0_11, %c0_12] : memref<1x32xf32, #tpu.memory_space<vmem>>, vector<1x32xf32>
    %c0_13 = arith.constant 0 : index
    %c0_14 = arith.constant 0 : index
    %27 = vector.load %arg20[%c0_13, %c0_14] : memref<32x64xbf16, #tpu.memory_space<vmem>>, vector<32x64xbf16>
    %c0_15 = arith.constant 0 : index
    %c0_16 = arith.constant 0 : index
    %28 = vector.load %arg21[%c0_15, %c0_16] : memref<1x64xf32, #tpu.memory_space<vmem>>, vector<1x64xf32>
    %c0_17 = arith.constant 0 : index
    %c0_18 = arith.constant 0 : index
    %29 = vector.load %arg22[%c0_17, %c0_18] : memref<32x32xbf16, #tpu.memory_space<vmem>>, vector<32x32xbf16>
    %c0_19 = arith.constant 0 : index
    %c0_20 = arith.constant 0 : index
    %30 = vector.load %arg23[%c0_19, %c0_20] : memref<1x32xf32, #tpu.memory_space<vmem>>, vector<1x32xf32>
    %c0_21 = arith.constant 0 : index
    %c0_22 = arith.constant 0 : index
    %31 = vector.load %arg24[%c0_21, %c0_22] : memref<1x32xf32, #tpu.memory_space<vmem>>, vector<1x32xf32>
    %c0_23 = arith.constant 0 : index
    %c0_24 = arith.constant 0 : index
    %32 = vector.load %arg25[%c0_23, %c0_24] : memref<1x32xf32, #tpu.memory_space<vmem>>, vector<1x32xf32>
    %c0_25 = arith.constant 0 : index
    %c0_26 = arith.constant 0 : index
    %33 = vector.load %arg26[%c0_25, %c0_26] : memref<32x64xbf16, #tpu.memory_space<vmem>>, vector<32x64xbf16>
    %c0_27 = arith.constant 0 : index
    %c0_28 = arith.constant 0 : index
    %34 = vector.load %arg27[%c0_27, %c0_28] : memref<1x64xf32, #tpu.memory_space<vmem>>, vector<1x64xf32>
    %c0_29 = arith.constant 0 : index
    %c0_30 = arith.constant 0 : index
    %35 = vector.load %arg28[%c0_29, %c0_30] : memref<64x32xbf16, #tpu.memory_space<vmem>>, vector<64x32xbf16>
    %c0_31 = arith.constant 0 : index
    %c0_32 = arith.constant 0 : index
    %36 = vector.load %arg29[%c0_31, %c0_32] : memref<1x32xf32, #tpu.memory_space<vmem>>, vector<1x32xf32>
    %c0_33 = arith.constant 0 : index
    %c0_34 = arith.constant 0 : index
    %37 = vector.load %arg30[%c0_33, %c0_34] : memref<1x32xf32, #tpu.memory_space<vmem>>, vector<1x32xf32>
    %c0_35 = arith.constant 0 : index
    %c0_36 = arith.constant 0 : index
    %38 = vector.load %arg31[%c0_35, %c0_36] : memref<1x32xf32, #tpu.memory_space<vmem>>, vector<1x32xf32>
    %c0_37 = arith.constant 0 : index
    %c0_38 = arith.constant 0 : index
    %39 = vector.load %arg32[%c0_37, %c0_38] : memref<32x32xbf16, #tpu.memory_space<vmem>>, vector<32x32xbf16>
    %c0_39 = arith.constant 0 : index
    %c0_40 = arith.constant 0 : index
    %40 = vector.load %arg33[%c0_39, %c0_40] : memref<1x32xf32, #tpu.memory_space<vmem>>, vector<1x32xf32>
    %c0_41 = arith.constant 0 : index
    %c0_42 = arith.constant 0 : index
    %41 = vector.load %arg34[%c0_41, %c0_42] : memref<32x32xbf16, #tpu.memory_space<vmem>>, vector<32x32xbf16>
    %c0_43 = arith.constant 0 : index
    %c0_44 = arith.constant 0 : index
    %42 = vector.load %arg35[%c0_43, %c0_44] : memref<1x32xf32, #tpu.memory_space<vmem>>, vector<1x32xf32>
    %c0_45 = arith.constant 0 : index
    %c0_46 = arith.constant 0 : index
    %43 = vector.load %arg16[%c0_45, %c0_46] : memref<16x32xf32, #tpu.memory_space<vmem>>, vector<16x32xf32>
    %c0_47 = arith.constant 0 : index
    %c0_48 = arith.constant 0 : index
    %44 = vector.load %arg17[%c0_47, %c0_48] : memref<16x1xf32, #tpu.memory_space<vmem>>, vector<16x1xf32>
    %c0_49 = arith.constant 0 : index
    %c0_50 = arith.constant 0 : index
    %c0_51 = arith.constant 0 : index
    %45 = vector.load %arg4[%c0_49, %c0_50, %c0_51] : memref<2x32x96xbf16, #tpu.memory_space<vmem>>, vector<1x32x96xbf16>
    %46 = vector.shape_cast %45 : vector<1x32x96xbf16> to vector<32x96xbf16>
    %c0_52 = arith.constant 0 : index
    %c0_53 = arith.constant 0 : index
    %c0_54 = arith.constant 0 : index
    %47 = vector.load %arg5[%c0_52, %c0_53, %c0_54] : memref<2x1x96xf32, #tpu.memory_space<vmem>>, vector<1x1x96xf32>
    %48 = vector.shape_cast %47 : vector<1x1x96xf32> to vector<1x96xf32>
    %c0_55 = arith.constant 0 : index
    %c0_56 = arith.constant 0 : index
    %c0_57 = arith.constant 0 : index
    %49 = vector.load %arg6[%c0_55, %c0_56, %c0_57] : memref<2x32x32xbf16, #tpu.memory_space<vmem>>, vector<1x32x32xbf16>
    %50 = vector.shape_cast %49 : vector<1x32x32xbf16> to vector<32x32xbf16>
    %c0_58 = arith.constant 0 : index
    %c0_59 = arith.constant 0 : index
    %c0_60 = arith.constant 0 : index
    %51 = vector.load %arg7[%c0_58, %c0_59, %c0_60] : memref<2x1x32xf32, #tpu.memory_space<vmem>>, vector<1x1x32xf32>
    %52 = vector.shape_cast %51 : vector<1x1x32xf32> to vector<1x32xf32>
    %c0_61 = arith.constant 0 : index
    %c0_62 = arith.constant 0 : index
    %c0_63 = arith.constant 0 : index
    %53 = vector.load %arg8[%c0_61, %c0_62, %c0_63] : memref<2x1x32xf32, #tpu.memory_space<vmem>>, vector<1x1x32xf32>
    %54 = vector.shape_cast %53 : vector<1x1x32xf32> to vector<1x32xf32>
    %c0_64 = arith.constant 0 : index
    %c0_65 = arith.constant 0 : index
    %c0_66 = arith.constant 0 : index
    %55 = vector.load %arg9[%c0_64, %c0_65, %c0_66] : memref<2x1x32xf32, #tpu.memory_space<vmem>>, vector<1x1x32xf32>
    %56 = vector.shape_cast %55 : vector<1x1x32xf32> to vector<1x32xf32>
    %c0_67 = arith.constant 0 : index
    %c0_68 = arith.constant 0 : index
    %c0_69 = arith.constant 0 : index
    %57 = vector.load %arg10[%c0_67, %c0_68, %c0_69] : memref<2x32x64xbf16, #tpu.memory_space<vmem>>, vector<1x32x64xbf16>
    %58 = vector.shape_cast %57 : vector<1x32x64xbf16> to vector<32x64xbf16>
    %c0_70 = arith.constant 0 : index
    %c0_71 = arith.constant 0 : index
    %c0_72 = arith.constant 0 : index
    %59 = vector.load %arg11[%c0_70, %c0_71, %c0_72] : memref<2x1x64xf32, #tpu.memory_space<vmem>>, vector<1x1x64xf32>
    %60 = vector.shape_cast %59 : vector<1x1x64xf32> to vector<1x64xf32>
    %c0_73 = arith.constant 0 : index
    %c0_74 = arith.constant 0 : index
    %c0_75 = arith.constant 0 : index
    %61 = vector.load %arg12[%c0_73, %c0_74, %c0_75] : memref<2x64x32xbf16, #tpu.memory_space<vmem>>, vector<1x64x32xbf16>
    %62 = vector.shape_cast %61 : vector<1x64x32xbf16> to vector<64x32xbf16>
    %c0_76 = arith.constant 0 : index
    %c0_77 = arith.constant 0 : index
    %c0_78 = arith.constant 0 : index
    %63 = vector.load %arg13[%c0_76, %c0_77, %c0_78] : memref<2x1x32xf32, #tpu.memory_space<vmem>>, vector<1x1x32xf32>
    %64 = vector.shape_cast %63 : vector<1x1x32xf32> to vector<1x32xf32>
    %c0_79 = arith.constant 0 : index
    %c0_80 = arith.constant 0 : index
    %c0_81 = arith.constant 0 : index
    %65 = vector.load %arg14[%c0_79, %c0_80, %c0_81] : memref<2x1x32xf32, #tpu.memory_space<vmem>>, vector<1x1x32xf32>
    %66 = vector.shape_cast %65 : vector<1x1x32xf32> to vector<1x32xf32>
    %c0_82 = arith.constant 0 : index
    %c0_83 = arith.constant 0 : index
    %c0_84 = arith.constant 0 : index
    %67 = vector.load %arg15[%c0_82, %c0_83, %c0_84] : memref<2x1x32xf32, #tpu.memory_space<vmem>>, vector<1x1x32xf32>
    %68 = vector.shape_cast %67 : vector<1x1x32xf32> to vector<1x32xf32>
    %69 = arith.truncf %24 : vector<16x32xf32> to vector<16x32xbf16>
    %cst_85 = arith.constant dense<0.000000e+00> : vector<16x96xf32>
    %70 = tpu.matmul %69, %46, %cst_85 {dimension_numbers = #tpu.dot_dimension_numbers<[1], [0], [0], [1], [0, 0, 1, 1], [], []>} : vector<16x32xbf16>, vector<32x96xbf16>, vector<16x96xf32> -> vector<16x96xf32>
    %71 = vector.broadcast %48 : vector<1x96xf32> to vector<16x96xf32>
    %72 = arith.addf %70, %71 : vector<16x96xf32>
    %73 = vector.extract_strided_slice %72 {offsets = [0, 0], sizes = [8, 8], strides = [1, 1]} : vector<16x96xf32> to vector<8x8xf32>
    %74 = vector.extract_strided_slice %72 {offsets = [0, 32], sizes = [8, 8], strides = [1, 1]} : vector<16x96xf32> to vector<8x8xf32>
    %75 = vector.extract_strided_slice %72 {offsets = [0, 64], sizes = [8, 8], strides = [1, 1]} : vector<16x96xf32> to vector<8x8xf32>
    %76 = arith.truncf %73 : vector<8x8xf32> to vector<8x8xbf16>
    %77 = arith.truncf %74 : vector<8x8xf32> to vector<8x8xbf16>
    %cst_86 = arith.constant dense<0.000000e+00> : vector<8x8xf32>
    %78 = tpu.matmul %76, %77, %cst_86 {dimension_numbers = #tpu.dot_dimension_numbers<[1], [1], [0], [0], [0, 0, 1, 0], [], []>} : vector<8x8xbf16>, vector<8x8xbf16>, vector<8x8xf32> -> vector<8x8xf32>
    %cst_87 = arith.constant 0.353553385 : f32
    %79 = vector.broadcast %cst_87 : f32 to vector<8x8xf32>
    %80 = arith.mulf %78, %79 : vector<8x8xf32>
    %cst_88 = arith.constant dense<0xFF800000> : vector<8xf32>
    %81 = vector.multi_reduction <maximumf>, %80, %cst_88 [1] : vector<8x8xf32> to vector<8xf32>
    %82 = vector.shape_cast %81 : vector<8xf32> to vector<8x1xf32>
    %83 = vector.broadcast %82 : vector<8x1xf32> to vector<8x8xf32>
    %84 = arith.subf %80, %83 : vector<8x8xf32>
    %85 = math.exp %84 : vector<8x8xf32>
    %cst_89 = arith.constant dense<0.000000e+00> : vector<8xf32>
    %86 = vector.multi_reduction <add>, %85, %cst_89 [1] : vector<8x8xf32> to vector<8xf32>
    %87 = vector.shape_cast %86 : vector<8xf32> to vector<8x1xf32>
    %88 = tpu.reciprocal %87 {approx = true} : vector<8x1xf32> -> vector<8x1xf32>
    %89 = vector.broadcast %88 : vector<8x1xf32> to vector<8x8xf32>
    %90 = arith.mulf %85, %89 : vector<8x8xf32>
    %91 = arith.truncf %90 : vector<8x8xf32> to vector<8x8xbf16>
    %92 = arith.truncf %75 : vector<8x8xf32> to vector<8x8xbf16>
    %cst_90 = arith.constant dense<0.000000e+00> : vector<8x8xf32>
    %93 = tpu.matmul %91, %92, %cst_90 {dimension_numbers = #tpu.dot_dimension_numbers<[1], [0], [0], [1], [0, 0, 1, 1], [], []>} : vector<8x8xbf16>, vector<8x8xbf16>, vector<8x8xf32> -> vector<8x8xf32>
    %c0_91 = arith.constant 0 : index
    %c0_92 = arith.constant 0 : index
    %94 = vector.load %arg45[%c0_91, %c0_92] : memref<16x32xf32, #tpu.memory_space<vmem>>, vector<8x8xf32>
    tpu.vector_store %arg45[%c0_91, %c0_92], %93 {strides = array<i32>} : memref<16x32xf32, #tpu.memory_space<vmem>>, vector<8x8xf32>,
    %95 = vector.extract_strided_slice %72 {offsets = [0, 8], sizes = [8, 8], strides = [1, 1]} : vector<16x96xf32> to vector<8x8xf32>
    %96 = vector.extract_strided_slice %72 {offsets = [0, 40], sizes = [8, 8], strides = [1, 1]} : vector<16x96xf32> to vector<8x8xf32>
    %97 = vector.extract_strided_slice %72 {offsets = [0, 72], sizes = [8, 8], strides = [1, 1]} : vector<16x96xf32> to vector<8x8xf32>
    %98 = arith.truncf %95 : vector<8x8xf32> to vector<8x8xbf16>
    %99 = arith.truncf %96 : vector<8x8xf32> to vector<8x8xbf16>
    %cst_93 = arith.constant dense<0.000000e+00> : vector<8x8xf32>
    %100 = tpu.matmul %98, %99, %cst_93 {dimension_numbers = #tpu.dot_dimension_numbers<[1], [1], [0], [0], [0, 0, 1, 0], [], []>} : vector<8x8xbf16>, vector<8x8xbf16>, vector<8x8xf32> -> vector<8x8xf32>
    %cst_94 = arith.constant 0.353553385 : f32
    %101 = vector.broadcast %cst_94 : f32 to vector<8x8xf32>
    %102 = arith.mulf %100, %101 : vector<8x8xf32>
    %cst_95 = arith.constant dense<0xFF800000> : vector<8xf32>
    %103 = vector.multi_reduction <maximumf>, %102, %cst_95 [1] : vector<8x8xf32> to vector<8xf32>
    %104 = vector.shape_cast %103 : vector<8xf32> to vector<8x1xf32>
    %105 = vector.broadcast %104 : vector<8x1xf32> to vector<8x8xf32>
    %106 = arith.subf %102, %105 : vector<8x8xf32>
    %107 = math.exp %106 : vector<8x8xf32>
    %cst_96 = arith.constant dense<0.000000e+00> : vector<8xf32>
    %108 = vector.multi_reduction <add>, %107, %cst_96 [1] : vector<8x8xf32> to vector<8xf32>
    %109 = vector.shape_cast %108 : vector<8xf32> to vector<8x1xf32>
    %110 = tpu.reciprocal %109 {approx = true} : vector<8x1xf32> -> vector<8x1xf32>
    %111 = vector.broadcast %110 : vector<8x1xf32> to vector<8x8xf32>
    %112 = arith.mulf %107, %111 : vector<8x8xf32>
    %113 = arith.truncf %112 : vector<8x8xf32> to vector<8x8xbf16>
    %114 = arith.truncf %97 : vector<8x8xf32> to vector<8x8xbf16>
    %cst_97 = arith.constant dense<0.000000e+00> : vector<8x8xf32>
    %115 = tpu.matmul %113, %114, %cst_97 {dimension_numbers = #tpu.dot_dimension_numbers<[1], [0], [0], [1], [0, 0, 1, 1], [], []>} : vector<8x8xbf16>, vector<8x8xbf16>, vector<8x8xf32> -> vector<8x8xf32>
    %c0_98 = arith.constant 0 : index
    %c8 = arith.constant 8 : index
    %116 = vector.load %arg45[%c0_98, %c8] : memref<16x32xf32, #tpu.memory_space<vmem>>, vector<8x8xf32>
    tpu.vector_store %arg45[%c0_98, %c8], %115 {strides = array<i32>} : memref<16x32xf32, #tpu.memory_space<vmem>>, vector<8x8xf32>,
    %117 = vector.extract_strided_slice %72 {offsets = [0, 16], sizes = [8, 8], strides = [1, 1]} : vector<16x96xf32> to vector<8x8xf32>
    %118 = vector.extract_strided_slice %72 {offsets = [0, 48], sizes = [8, 8], strides = [1, 1]} : vector<16x96xf32> to vector<8x8xf32>
    %119 = vector.extract_strided_slice %72 {offsets = [0, 80], sizes = [8, 8], strides = [1, 1]} : vector<16x96xf32> to vector<8x8xf32>
    %120 = arith.truncf %117 : vector<8x8xf32> to vector<8x8xbf16>
    %121 = arith.truncf %118 : vector<8x8xf32> to vector<8x8xbf16>
    %cst_99 = arith.constant dense<0.000000e+00> : vector<8x8xf32>
    %122 = tpu.matmul %120, %121, %cst_99 {dimension_numbers = #tpu.dot_dimension_numbers<[1], [1], [0], [0], [0, 0, 1, 0], [], []>} : vector<8x8xbf16>, vector<8x8xbf16>, vector<8x8xf32> -> vector<8x8xf32>
    %cst_100 = arith.constant 0.353553385 : f32
    %123 = vector.broadcast %cst_100 : f32 to vector<8x8xf32>
    %124 = arith.mulf %122, %123 : vector<8x8xf32>
    %cst_101 = arith.constant dense<0xFF800000> : vector<8xf32>
    %125 = vector.multi_reduction <maximumf>, %124, %cst_101 [1] : vector<8x8xf32> to vector<8xf32>
    %126 = vector.shape_cast %125 : vector<8xf32> to vector<8x1xf32>
    %127 = vector.broadcast %126 : vector<8x1xf32> to vector<8x8xf32>
    %128 = arith.subf %124, %127 : vector<8x8xf32>
    %129 = math.exp %128 : vector<8x8xf32>
    %cst_102 = arith.constant dense<0.000000e+00> : vector<8xf32>
    %130 = vector.multi_reduction <add>, %129, %cst_102 [1] : vector<8x8xf32> to vector<8xf32>
    %131 = vector.shape_cast %130 : vector<8xf32> to vector<8x1xf32>
    %132 = tpu.reciprocal %131 {approx = true} : vector<8x1xf32> -> vector<8x1xf32>
    %133 = vector.broadcast %132 : vector<8x1xf32> to vector<8x8xf32>
    %134 = arith.mulf %129, %133 : vector<8x8xf32>
    %135 = arith.truncf %134 : vector<8x8xf32> to vector<8x8xbf16>
    %136 = arith.truncf %119 : vector<8x8xf32> to vector<8x8xbf16>
    %cst_103 = arith.constant dense<0.000000e+00> : vector<8x8xf32>
    %137 = tpu.matmul %135, %136, %cst_103 {dimension_numbers = #tpu.dot_dimension_numbers<[1], [0], [0], [1], [0, 0, 1, 1], [], []>} : vector<8x8xbf16>, vector<8x8xbf16>, vector<8x8xf32> -> vector<8x8xf32>
    %c0_104 = arith.constant 0 : index
    %c16 = arith.constant 16 : index
    %138 = vector.load %arg45[%c0_104, %c16] : memref<16x32xf32, #tpu.memory_space<vmem>>, vector<8x8xf32>
    tpu.vector_store %arg45[%c0_104, %c16], %137 {strides = array<i32>} : memref<16x32xf32, #tpu.memory_space<vmem>>, vector<8x8xf32>,
    %139 = vector.extract_strided_slice %72 {offsets = [0, 24], sizes = [8, 8], strides = [1, 1]} : vector<16x96xf32> to vector<8x8xf32>
    %140 = vector.extract_strided_slice %72 {offsets = [0, 56], sizes = [8, 8], strides = [1, 1]} : vector<16x96xf32> to vector<8x8xf32>
    %141 = vector.extract_strided_slice %72 {offsets = [0, 88], sizes = [8, 8], strides = [1, 1]} : vector<16x96xf32> to vector<8x8xf32>
    %142 = arith.truncf %139 : vector<8x8xf32> to vector<8x8xbf16>
    %143 = arith.truncf %140 : vector<8x8xf32> to vector<8x8xbf16>
    %cst_105 = arith.constant dense<0.000000e+00> : vector<8x8xf32>
    %144 = tpu.matmul %142, %143, %cst_105 {dimension_numbers = #tpu.dot_dimension_numbers<[1], [1], [0], [0], [0, 0, 1, 0], [], []>} : vector<8x8xbf16>, vector<8x8xbf16>, vector<8x8xf32> -> vector<8x8xf32>
    %cst_106 = arith.constant 0.353553385 : f32
    %145 = vector.broadcast %cst_106 : f32 to vector<8x8xf32>
    %146 = arith.mulf %144, %145 : vector<8x8xf32>
    %cst_107 = arith.constant dense<0xFF800000> : vector<8xf32>
    %147 = vector.multi_reduction <maximumf>, %146, %cst_107 [1] : vector<8x8xf32> to vector<8xf32>
    %148 = vector.shape_cast %147 : vector<8xf32> to vector<8x1xf32>
    %149 = vector.broadcast %148 : vector<8x1xf32> to vector<8x8xf32>
    %150 = arith.subf %146, %149 : vector<8x8xf32>
    %151 = math.exp %150 : vector<8x8xf32>
    %cst_108 = arith.constant dense<0.000000e+00> : vector<8xf32>
    %152 = vector.multi_reduction <add>, %151, %cst_108 [1] : vector<8x8xf32> to vector<8xf32>
    %153 = vector.shape_cast %152 : vector<8xf32> to vector<8x1xf32>
    %154 = tpu.reciprocal %153 {approx = true} : vector<8x1xf32> -> vector<8x1xf32>
    %155 = vector.broadcast %154 : vector<8x1xf32> to vector<8x8xf32>
    %156 = arith.mulf %151, %155 : vector<8x8xf32>
    %157 = arith.truncf %156 : vector<8x8xf32> to vector<8x8xbf16>
    %158 = arith.truncf %141 : vector<8x8xf32> to vector<8x8xbf16>
    %cst_109 = arith.constant dense<0.000000e+00> : vector<8x8xf32>
    %159 = tpu.matmul %157, %158, %cst_109 {dimension_numbers = #tpu.dot_dimension_numbers<[1], [0], [0], [1], [0, 0, 1, 1], [], []>} : vector<8x8xbf16>, vector<8x8xbf16>, vector<8x8xf32> -> vector<8x8xf32>
    %c0_110 = arith.constant 0 : index
    %c24 = arith.constant 24 : index
    %160 = vector.load %arg45[%c0_110, %c24] : memref<16x32xf32, #tpu.memory_space<vmem>>, vector<8x8xf32>
    tpu.vector_store %arg45[%c0_110, %c24], %159 {strides = array<i32>} : memref<16x32xf32, #tpu.memory_space<vmem>>, vector<8x8xf32>,
    %161 = vector.extract_strided_slice %72 {offsets = [8, 0], sizes = [8, 8], strides = [1, 1]} : vector<16x96xf32> to vector<8x8xf32>
    %162 = vector.extract_strided_slice %72 {offsets = [8, 32], sizes = [8, 8], strides = [1, 1]} : vector<16x96xf32> to vector<8x8xf32>
    %163 = vector.extract_strided_slice %72 {offsets = [8, 64], sizes = [8, 8], strides = [1, 1]} : vector<16x96xf32> to vector<8x8xf32>
    %164 = arith.truncf %161 : vector<8x8xf32> to vector<8x8xbf16>
    %165 = arith.truncf %162 : vector<8x8xf32> to vector<8x8xbf16>
    %cst_111 = arith.constant dense<0.000000e+00> : vector<8x8xf32>
    %166 = tpu.matmul %164, %165, %cst_111 {dimension_numbers = #tpu.dot_dimension_numbers<[1], [1], [0], [0], [0, 0, 1, 0], [], []>} : vector<8x8xbf16>, vector<8x8xbf16>, vector<8x8xf32> -> vector<8x8xf32>
    %cst_112 = arith.constant 0.353553385 : f32
    %167 = vector.broadcast %cst_112 : f32 to vector<8x8xf32>
    %168 = arith.mulf %166, %167 : vector<8x8xf32>
    %cst_113 = arith.constant dense<0xFF800000> : vector<8xf32>
    %169 = vector.multi_reduction <maximumf>, %168, %cst_113 [1] : vector<8x8xf32> to vector<8xf32>
    %170 = vector.shape_cast %169 : vector<8xf32> to vector<8x1xf32>
    %171 = vector.broadcast %170 : vector<8x1xf32> to vector<8x8xf32>
    %172 = arith.subf %168, %171 : vector<8x8xf32>
    %173 = math.exp %172 : vector<8x8xf32>
    %cst_114 = arith.constant dense<0.000000e+00> : vector<8xf32>
    %174 = vector.multi_reduction <add>, %173, %cst_114 [1] : vector<8x8xf32> to vector<8xf32>
    %175 = vector.shape_cast %174 : vector<8xf32> to vector<8x1xf32>
    %176 = tpu.reciprocal %175 {approx = true} : vector<8x1xf32> -> vector<8x1xf32>
    %177 = vector.broadcast %176 : vector<8x1xf32> to vector<8x8xf32>
    %178 = arith.mulf %173, %177 : vector<8x8xf32>
    %179 = arith.truncf %178 : vector<8x8xf32> to vector<8x8xbf16>
    %180 = arith.truncf %163 : vector<8x8xf32> to vector<8x8xbf16>
    %cst_115 = arith.constant dense<0.000000e+00> : vector<8x8xf32>
    %181 = tpu.matmul %179, %180, %cst_115 {dimension_numbers = #tpu.dot_dimension_numbers<[1], [0], [0], [1], [0, 0, 1, 1], [], []>} : vector<8x8xbf16>, vector<8x8xbf16>, vector<8x8xf32> -> vector<8x8xf32>
    %c8_116 = arith.constant 8 : index
    %c0_117 = arith.constant 0 : index
    %182 = vector.load %arg45[%c8_116, %c0_117] : memref<16x32xf32, #tpu.memory_space<vmem>>, vector<8x8xf32>
    tpu.vector_store %arg45[%c8_116, %c0_117], %181 {strides = array<i32>} : memref<16x32xf32, #tpu.memory_space<vmem>>, vector<8x8xf32>,
    %183 = vector.extract_strided_slice %72 {offsets = [8, 8], sizes = [8, 8], strides = [1, 1]} : vector<16x96xf32> to vector<8x8xf32>
    %184 = vector.extract_strided_slice %72 {offsets = [8, 40], sizes = [8, 8], strides = [1, 1]} : vector<16x96xf32> to vector<8x8xf32>
    %185 = vector.extract_strided_slice %72 {offsets = [8, 72], sizes = [8, 8], strides = [1, 1]} : vector<16x96xf32> to vector<8x8xf32>
    %186 = arith.truncf %183 : vector<8x8xf32> to vector<8x8xbf16>
    %187 = arith.truncf %184 : vector<8x8xf32> to vector<8x8xbf16>
    %cst_118 = arith.constant dense<0.000000e+00> : vector<8x8xf32>
    %188 = tpu.matmul %186, %187, %cst_118 {dimension_numbers = #tpu.dot_dimension_numbers<[1], [1], [0], [0], [0, 0, 1, 0], [], []>} : vector<8x8xbf16>, vector<8x8xbf16>, vector<8x8xf32> -> vector<8x8xf32>
    %cst_119 = arith.constant 0.353553385 : f32
    %189 = vector.broadcast %cst_119 : f32 to vector<8x8xf32>
    %190 = arith.mulf %188, %189 : vector<8x8xf32>
    %cst_120 = arith.constant dense<0xFF800000> : vector<8xf32>
    %191 = vector.multi_reduction <maximumf>, %190, %cst_120 [1] : vector<8x8xf32> to vector<8xf32>
    %192 = vector.shape_cast %191 : vector<8xf32> to vector<8x1xf32>
    %193 = vector.broadcast %192 : vector<8x1xf32> to vector<8x8xf32>
    %194 = arith.subf %190, %193 : vector<8x8xf32>
    %195 = math.exp %194 : vector<8x8xf32>
    %cst_121 = arith.constant dense<0.000000e+00> : vector<8xf32>
    %196 = vector.multi_reduction <add>, %195, %cst_121 [1] : vector<8x8xf32> to vector<8xf32>
    %197 = vector.shape_cast %196 : vector<8xf32> to vector<8x1xf32>
    %198 = tpu.reciprocal %197 {approx = true} : vector<8x1xf32> -> vector<8x1xf32>
    %199 = vector.broadcast %198 : vector<8x1xf32> to vector<8x8xf32>
    %200 = arith.mulf %195, %199 : vector<8x8xf32>
    %201 = arith.truncf %200 : vector<8x8xf32> to vector<8x8xbf16>
    %202 = arith.truncf %185 : vector<8x8xf32> to vector<8x8xbf16>
    %cst_122 = arith.constant dense<0.000000e+00> : vector<8x8xf32>
    %203 = tpu.matmul %201, %202, %cst_122 {dimension_numbers = #tpu.dot_dimension_numbers<[1], [0], [0], [1], [0, 0, 1, 1], [], []>} : vector<8x8xbf16>, vector<8x8xbf16>, vector<8x8xf32> -> vector<8x8xf32>
    %c8_123 = arith.constant 8 : index
    %c8_124 = arith.constant 8 : index
    %204 = vector.load %arg45[%c8_123, %c8_124] : memref<16x32xf32, #tpu.memory_space<vmem>>, vector<8x8xf32>
    tpu.vector_store %arg45[%c8_123, %c8_124], %203 {strides = array<i32>} : memref<16x32xf32, #tpu.memory_space<vmem>>, vector<8x8xf32>,
    %205 = vector.extract_strided_slice %72 {offsets = [8, 16], sizes = [8, 8], strides = [1, 1]} : vector<16x96xf32> to vector<8x8xf32>
    %206 = vector.extract_strided_slice %72 {offsets = [8, 48], sizes = [8, 8], strides = [1, 1]} : vector<16x96xf32> to vector<8x8xf32>
    %207 = vector.extract_strided_slice %72 {offsets = [8, 80], sizes = [8, 8], strides = [1, 1]} : vector<16x96xf32> to vector<8x8xf32>
    %208 = arith.truncf %205 : vector<8x8xf32> to vector<8x8xbf16>
    %209 = arith.truncf %206 : vector<8x8xf32> to vector<8x8xbf16>
    %cst_125 = arith.constant dense<0.000000e+00> : vector<8x8xf32>
    %210 = tpu.matmul %208, %209, %cst_125 {dimension_numbers = #tpu.dot_dimension_numbers<[1], [1], [0], [0], [0, 0, 1, 0], [], []>} : vector<8x8xbf16>, vector<8x8xbf16>, vector<8x8xf32> -> vector<8x8xf32>
    %cst_126 = arith.constant 0.353553385 : f32
    %211 = vector.broadcast %cst_126 : f32 to vector<8x8xf32>
    %212 = arith.mulf %210, %211 : vector<8x8xf32>
    %cst_127 = arith.constant dense<0xFF800000> : vector<8xf32>
    %213 = vector.multi_reduction <maximumf>, %212, %cst_127 [1] : vector<8x8xf32> to vector<8xf32>
    %214 = vector.shape_cast %213 : vector<8xf32> to vector<8x1xf32>
    %215 = vector.broadcast %214 : vector<8x1xf32> to vector<8x8xf32>
    %216 = arith.subf %212, %215 : vector<8x8xf32>
    %217 = math.exp %216 : vector<8x8xf32>
    %cst_128 = arith.constant dense<0.000000e+00> : vector<8xf32>
    %218 = vector.multi_reduction <add>, %217, %cst_128 [1] : vector<8x8xf32> to vector<8xf32>
    %219 = vector.shape_cast %218 : vector<8xf32> to vector<8x1xf32>
    %220 = tpu.reciprocal %219 {approx = true} : vector<8x1xf32> -> vector<8x1xf32>
    %221 = vector.broadcast %220 : vector<8x1xf32> to vector<8x8xf32>
    %222 = arith.mulf %217, %221 : vector<8x8xf32>
    %223 = arith.truncf %222 : vector<8x8xf32> to vector<8x8xbf16>
    %224 = arith.truncf %207 : vector<8x8xf32> to vector<8x8xbf16>
    %cst_129 = arith.constant dense<0.000000e+00> : vector<8x8xf32>
    %225 = tpu.matmul %223, %224, %cst_129 {dimension_numbers = #tpu.dot_dimension_numbers<[1], [0], [0], [1], [0, 0, 1, 1], [], []>} : vector<8x8xbf16>, vector<8x8xbf16>, vector<8x8xf32> -> vector<8x8xf32>
    %c8_130 = arith.constant 8 : index
    %c16_131 = arith.constant 16 : index
    %226 = vector.load %arg45[%c8_130, %c16_131] : memref<16x32xf32, #tpu.memory_space<vmem>>, vector<8x8xf32>
    tpu.vector_store %arg45[%c8_130, %c16_131], %225 {strides = array<i32>} : memref<16x32xf32, #tpu.memory_space<vmem>>, vector<8x8xf32>,
    %227 = vector.extract_strided_slice %72 {offsets = [8, 24], sizes = [8, 8], strides = [1, 1]} : vector<16x96xf32> to vector<8x8xf32>
    %228 = vector.extract_strided_slice %72 {offsets = [8, 56], sizes = [8, 8], strides = [1, 1]} : vector<16x96xf32> to vector<8x8xf32>
    %229 = vector.extract_strided_slice %72 {offsets = [8, 88], sizes = [8, 8], strides = [1, 1]} : vector<16x96xf32> to vector<8x8xf32>
    %230 = arith.truncf %227 : vector<8x8xf32> to vector<8x8xbf16>
    %231 = arith.truncf %228 : vector<8x8xf32> to vector<8x8xbf16>
    %cst_132 = arith.constant dense<0.000000e+00> : vector<8x8xf32>
    %232 = tpu.matmul %230, %231, %cst_132 {dimension_numbers = #tpu.dot_dimension_numbers<[1], [1], [0], [0], [0, 0, 1, 0], [], []>} : vector<8x8xbf16>, vector<8x8xbf16>, vector<8x8xf32> -> vector<8x8xf32>
    %cst_133 = arith.constant 0.353553385 : f32
    %233 = vector.broadcast %cst_133 : f32 to vector<8x8xf32>
    %234 = arith.mulf %232, %233 : vector<8x8xf32>
    %cst_134 = arith.constant dense<0xFF800000> : vector<8xf32>
    %235 = vector.multi_reduction <maximumf>, %234, %cst_134 [1] : vector<8x8xf32> to vector<8xf32>
    %236 = vector.shape_cast %235 : vector<8xf32> to vector<8x1xf32>
    %237 = vector.broadcast %236 : vector<8x1xf32> to vector<8x8xf32>
    %238 = arith.subf %234, %237 : vector<8x8xf32>
    %239 = math.exp %238 : vector<8x8xf32>
    %cst_135 = arith.constant dense<0.000000e+00> : vector<8xf32>
    %240 = vector.multi_reduction <add>, %239, %cst_135 [1] : vector<8x8xf32> to vector<8xf32>
    %241 = vector.shape_cast %240 : vector<8xf32> to vector<8x1xf32>
    %242 = tpu.reciprocal %241 {approx = true} : vector<8x1xf32> -> vector<8x1xf32>
    %243 = vector.broadcast %242 : vector<8x1xf32> to vector<8x8xf32>
    %244 = arith.mulf %239, %243 : vector<8x8xf32>
    %245 = arith.truncf %244 : vector<8x8xf32> to vector<8x8xbf16>
    %246 = arith.truncf %229 : vector<8x8xf32> to vector<8x8xbf16>
    %cst_136 = arith.constant dense<0.000000e+00> : vector<8x8xf32>
    %247 = tpu.matmul %245, %246, %cst_136 {dimension_numbers = #tpu.dot_dimension_numbers<[1], [0], [0], [1], [0, 0, 1, 1], [], []>} : vector<8x8xbf16>, vector<8x8xbf16>, vector<8x8xf32> -> vector<8x8xf32>
    %c8_137 = arith.constant 8 : index
    %c24_138 = arith.constant 24 : index
    %248 = vector.load %arg45[%c8_137, %c24_138] : memref<16x32xf32, #tpu.memory_space<vmem>>, vector<8x8xf32>
    tpu.vector_store %arg45[%c8_137, %c24_138], %247 {strides = array<i32>} : memref<16x32xf32, #tpu.memory_space<vmem>>, vector<8x8xf32>,
    %c0_139 = arith.constant 0 : index
    %c0_140 = arith.constant 0 : index
    %249 = vector.load %arg45[%c0_139, %c0_140] : memref<16x32xf32, #tpu.memory_space<vmem>>, vector<16x32xf32>
    %250 = arith.truncf %249 : vector<16x32xf32> to vector<16x32xbf16>
    %cst_141 = arith.constant dense<0.000000e+00> : vector<16x32xf32>
    %251 = tpu.matmul %250, %50, %cst_141 {dimension_numbers = #tpu.dot_dimension_numbers<[1], [0], [0], [1], [0, 0, 1, 1], [], []>} : vector<16x32xbf16>, vector<32x32xbf16>, vector<16x32xf32> -> vector<16x32xf32>
    %252 = vector.broadcast %52 : vector<1x32xf32> to vector<16x32xf32>
    %253 = arith.addf %251, %252 : vector<16x32xf32>
    %254 = arith.addf %24, %253 : vector<16x32xf32>
    %cst_142 = arith.constant dense<0.000000e+00> : vector<16xf32>
    %255 = vector.multi_reduction <add>, %254, %cst_142 [1] : vector<16x32xf32> to vector<16xf32>
    %256 = vector.shape_cast %255 : vector<16xf32> to vector<16x1xf32>
    %cst_143 = arith.constant 3.200000e+01 : f32
    %257 = vector.broadcast %cst_143 : f32 to vector<16x1xf32>
    %258 = arith.divf %256, %257 : vector<16x1xf32>
    %259 = vector.broadcast %258 : vector<16x1xf32> to vector<16x32xf32>
    %260 = arith.subf %254, %259 : vector<16x32xf32>
    %261 = arith.mulf %260, %260 : vector<16x32xf32>
    %cst_144 = arith.constant dense<0.000000e+00> : vector<16xf32>
    %262 = vector.multi_reduction <add>, %261, %cst_144 [1] : vector<16x32xf32> to vector<16xf32>
    %263 = vector.shape_cast %262 : vector<16xf32> to vector<16x1xf32>
    %cst_145 = arith.constant 3.200000e+01 : f32
    %264 = vector.broadcast %cst_145 : f32 to vector<16x1xf32>
    %265 = arith.divf %263, %264 : vector<16x1xf32>
    %266 = vector.broadcast %258 : vector<16x1xf32> to vector<16x32xf32>
    %267 = arith.subf %254, %266 : vector<16x32xf32>
    %cst_146 = arith.constant 9.99999996E-13 : f32
    %268 = vector.broadcast %cst_146 : f32 to vector<16x1xf32>
    %269 = arith.addf %265, %268 : vector<16x1xf32>
    %270 = math.rsqrt %269 : vector<16x1xf32>
    %271 = vector.broadcast %270 : vector<16x1xf32> to vector<16x32xf32>
    %272 = arith.mulf %267, %271 : vector<16x32xf32>
    %273 = vector.broadcast %54 : vector<1x32xf32> to vector<16x32xf32>
    %274 = arith.mulf %272, %273 : vector<16x32xf32>
    %275 = vector.broadcast %56 : vector<1x32xf32> to vector<16x32xf32>
    %276 = arith.addf %274, %275 : vector<16x32xf32>
    %277 = arith.truncf %276 : vector<16x32xf32> to vector<16x32xbf16>
    %cst_147 = arith.constant dense<0.000000e+00> : vector<16x64xf32>
    %278 = tpu.matmul %277, %58, %cst_147 {dimension_numbers = #tpu.dot_dimension_numbers<[1], [0], [0], [1], [0, 0, 1, 1], [], []>} : vector<16x32xbf16>, vector<32x64xbf16>, vector<16x64xf32> -> vector<16x64xf32>
    %279 = vector.broadcast %60 : vector<1x64xf32> to vector<16x64xf32>
    %280 = arith.addf %278, %279 : vector<16x64xf32>
    %281 = arith.mulf %280, %280 : vector<16x64xf32>
    %282 = arith.mulf %280, %281 : vector<16x64xf32>
    %cst_148 = arith.constant 4.471500e-02 : f32
    %283 = vector.broadcast %cst_148 : f32 to vector<16x64xf32>
    %284 = arith.mulf %283, %282 : vector<16x64xf32>
    %285 = arith.addf %280, %284 : vector<16x64xf32>
    %cst_149 = arith.constant 0.797884583 : f32
    %286 = vector.broadcast %cst_149 : f32 to vector<16x64xf32>
    %287 = arith.mulf %286, %285 : vector<16x64xf32>
    %288 = math.tanh %287 : vector<16x64xf32>
    %cst_150 = arith.constant 1.000000e+00 : f32
    %289 = vector.broadcast %cst_150 : f32 to vector<16x64xf32>
    %290 = arith.addf %289, %288 : vector<16x64xf32>
    %cst_151 = arith.constant 5.000000e-01 : f32
    %291 = vector.broadcast %cst_151 : f32 to vector<16x64xf32>
    %292 = arith.mulf %291, %290 : vector<16x64xf32>
    %293 = arith.mulf %280, %292 : vector<16x64xf32>
    %294 = arith.truncf %293 : vector<16x64xf32> to vector<16x64xbf16>
    %cst_152 = arith.constant dense<0.000000e+00> : vector<16x32xf32>
    %295 = tpu.matmul %294, %62, %cst_152 {dimension_numbers = #tpu.dot_dimension_numbers<[1], [0], [0], [1], [0, 0, 1, 1], [], []>} : vector<16x64xbf16>, vector<64x32xbf16>, vector<16x32xf32> -> vector<16x32xf32>
    %296 = vector.broadcast %64 : vector<1x32xf32> to vector<16x32xf32>
    %297 = arith.addf %295, %296 : vector<16x32xf32>
    %298 = arith.addf %276, %297 : vector<16x32xf32>
    %cst_153 = arith.constant dense<0.000000e+00> : vector<16xf32>
    %299 = vector.multi_reduction <add>, %298, %cst_153 [1] : vector<16x32xf32> to vector<16xf32>
    %300 = vector.shape_cast %299 : vector<16xf32> to vector<16x1xf32>
    %cst_154 = arith.constant 3.200000e+01 : f32
    %301 = vector.broadcast %cst_154 : f32 to vector<16x1xf32>
    %302 = arith.divf %300, %301 : vector<16x1xf32>
    %303 = vector.broadcast %302 : vector<16x1xf32> to vector<16x32xf32>
    %304 = arith.subf %298, %303 : vector<16x32xf32>
    %305 = arith.mulf %304, %304 : vector<16x32xf32>
    %cst_155 = arith.constant dense<0.000000e+00> : vector<16xf32>
    %306 = vector.multi_reduction <add>, %305, %cst_155 [1] : vector<16x32xf32> to vector<16xf32>
    %307 = vector.shape_cast %306 : vector<16xf32> to vector<16x1xf32>
    %cst_156 = arith.constant 3.200000e+01 : f32
    %308 = vector.broadcast %cst_156 : f32 to vector<16x1xf32>
    %309 = arith.divf %307, %308 : vector<16x1xf32>
    %310 = vector.broadcast %302 : vector<16x1xf32> to vector<16x32xf32>
    %311 = arith.subf %298, %310 : vector<16x32xf32>
    %cst_157 = arith.constant 9.99999996E-13 : f32
    %312 = vector.broadcast %cst_157 : f32 to vector<16x1xf32>
    %313 = arith.addf %309, %312 : vector<16x1xf32>
    %314 = math.rsqrt %313 : vector<16x1xf32>
    %315 = vector.broadcast %314 : vector<16x1xf32> to vector<16x32xf32>
    %316 = arith.mulf %311, %315 : vector<16x32xf32>
    %317 = vector.broadcast %66 : vector<1x32xf32> to vector<16x32xf32>
    %318 = arith.mulf %316, %317 : vector<16x32xf32>
    %319 = vector.broadcast %68 : vector<1x32xf32> to vector<16x32xf32>
    %320 = arith.addf %318, %319 : vector<16x32xf32>
    %321 = arith.truncf %320 : vector<16x32xf32> to vector<16x32xbf16>
    %cst_158 = arith.constant dense<0.000000e+00> : vector<16x32xf32>
    %322 = tpu.matmul %321, %25, %cst_158 {dimension_numbers = #tpu.dot_dimension_numbers<[1], [0], [0], [1], [0, 0, 1, 1], [], []>} : vector<16x32xbf16>, vector<32x32xbf16>, vector<16x32xf32> -> vector<16x32xf32>
    %323 = vector.broadcast %26 : vector<1x32xf32> to vector<16x32xf32>
    %324 = arith.addf %322, %323 : vector<16x32xf32>
    %325 = arith.truncf %43 : vector<16x32xf32> to vector<16x32xbf16>
    %cst_159 = arith.constant dense<0.000000e+00> : vector<16x64xf32>
    %326 = tpu.matmul %325, %27, %cst_159 {dimension_numbers = #tpu.dot_dimension_numbers<[1], [0], [0], [1], [0, 0, 1, 1], [], []>} : vector<16x32xbf16>, vector<32x64xbf16>, vector<16x64xf32> -> vector<16x64xf32>
    %327 = vector.broadcast %28 : vector<1x64xf32> to vector<16x64xf32>
    %328 = arith.addf %326, %327 : vector<16x64xf32>
    %329 = vector.extract_strided_slice %324 {offsets = [0, 0], sizes = [8, 8], strides = [1, 1]} : vector<16x32xf32> to vector<8x8xf32>
    %330 = vector.extract_strided_slice %328 {offsets = [0, 0], sizes = [8, 8], strides = [1, 1]} : vector<16x64xf32> to vector<8x8xf32>
    %331 = vector.extract_strided_slice %328 {offsets = [0, 32], sizes = [8, 8], strides = [1, 1]} : vector<16x64xf32> to vector<8x8xf32>
    %332 = arith.truncf %329 : vector<8x8xf32> to vector<8x8xbf16>
    %333 = arith.truncf %330 : vector<8x8xf32> to vector<8x8xbf16>
    %cst_160 = arith.constant dense<0.000000e+00> : vector<8x8xf32>
    %334 = tpu.matmul %332, %333, %cst_160 {dimension_numbers = #tpu.dot_dimension_numbers<[1], [1], [0], [0], [0, 0, 1, 0], [], []>} : vector<8x8xbf16>, vector<8x8xbf16>, vector<8x8xf32> -> vector<8x8xf32>
    %cst_161 = arith.constant 0.353553385 : f32
    %335 = vector.broadcast %cst_161 : f32 to vector<8x8xf32>
    %336 = arith.mulf %334, %335 : vector<8x8xf32>
    %cst_162 = arith.constant dense<0xFF800000> : vector<8xf32>
    %337 = vector.multi_reduction <maximumf>, %336, %cst_162 [1] : vector<8x8xf32> to vector<8xf32>
    %338 = vector.shape_cast %337 : vector<8xf32> to vector<8x1xf32>
    %339 = vector.broadcast %338 : vector<8x1xf32> to vector<8x8xf32>
    %340 = arith.subf %336, %339 : vector<8x8xf32>
    %341 = math.exp %340 : vector<8x8xf32>
    %cst_163 = arith.constant dense<0.000000e+00> : vector<8xf32>
    %342 = vector.multi_reduction <add>, %341, %cst_163 [1] : vector<8x8xf32> to vector<8xf32>
    %343 = vector.shape_cast %342 : vector<8xf32> to vector<8x1xf32>
    %344 = tpu.reciprocal %343 {approx = true} : vector<8x1xf32> -> vector<8x1xf32>
    %345 = vector.broadcast %344 : vector<8x1xf32> to vector<8x8xf32>
    %346 = arith.mulf %341, %345 : vector<8x8xf32>
    %347 = arith.truncf %346 : vector<8x8xf32> to vector<8x8xbf16>
    %348 = arith.truncf %331 : vector<8x8xf32> to vector<8x8xbf16>
    %cst_164 = arith.constant dense<0.000000e+00> : vector<8x8xf32>
    %349 = tpu.matmul %347, %348, %cst_164 {dimension_numbers = #tpu.dot_dimension_numbers<[1], [0], [0], [1], [0, 0, 1, 1], [], []>} : vector<8x8xbf16>, vector<8x8xbf16>, vector<8x8xf32> -> vector<8x8xf32>
    %c0_165 = arith.constant 0 : index
    %c0_166 = arith.constant 0 : index
    %350 = vector.load %arg45[%c0_165, %c0_166] : memref<16x32xf32, #tpu.memory_space<vmem>>, vector<8x8xf32>
    tpu.vector_store %arg45[%c0_165, %c0_166], %349 {strides = array<i32>} : memref<16x32xf32, #tpu.memory_space<vmem>>, vector<8x8xf32>,
    %351 = vector.extract_strided_slice %324 {offsets = [0, 8], sizes = [8, 8], strides = [1, 1]} : vector<16x32xf32> to vector<8x8xf32>
    %352 = vector.extract_strided_slice %328 {offsets = [0, 8], sizes = [8, 8], strides = [1, 1]} : vector<16x64xf32> to vector<8x8xf32>
    %353 = vector.extract_strided_slice %328 {offsets = [0, 40], sizes = [8, 8], strides = [1, 1]} : vector<16x64xf32> to vector<8x8xf32>
    %354 = arith.truncf %351 : vector<8x8xf32> to vector<8x8xbf16>
    %355 = arith.truncf %352 : vector<8x8xf32> to vector<8x8xbf16>
    %cst_167 = arith.constant dense<0.000000e+00> : vector<8x8xf32>
    %356 = tpu.matmul %354, %355, %cst_167 {dimension_numbers = #tpu.dot_dimension_numbers<[1], [1], [0], [0], [0, 0, 1, 0], [], []>} : vector<8x8xbf16>, vector<8x8xbf16>, vector<8x8xf32> -> vector<8x8xf32>
    %cst_168 = arith.constant 0.353553385 : f32
    %357 = vector.broadcast %cst_168 : f32 to vector<8x8xf32>
    %358 = arith.mulf %356, %357 : vector<8x8xf32>
    %cst_169 = arith.constant dense<0xFF800000> : vector<8xf32>
    %359 = vector.multi_reduction <maximumf>, %358, %cst_169 [1] : vector<8x8xf32> to vector<8xf32>
    %360 = vector.shape_cast %359 : vector<8xf32> to vector<8x1xf32>
    %361 = vector.broadcast %360 : vector<8x1xf32> to vector<8x8xf32>
    %362 = arith.subf %358, %361 : vector<8x8xf32>
    %363 = math.exp %362 : vector<8x8xf32>
    %cst_170 = arith.constant dense<0.000000e+00> : vector<8xf32>
    %364 = vector.multi_reduction <add>, %363, %cst_170 [1] : vector<8x8xf32> to vector<8xf32>
    %365 = vector.shape_cast %364 : vector<8xf32> to vector<8x1xf32>
    %366 = tpu.reciprocal %365 {approx = true} : vector<8x1xf32> -> vector<8x1xf32>
    %367 = vector.broadcast %366 : vector<8x1xf32> to vector<8x8xf32>
    %368 = arith.mulf %363, %367 : vector<8x8xf32>
    %369 = arith.truncf %368 : vector<8x8xf32> to vector<8x8xbf16>
    %370 = arith.truncf %353 : vector<8x8xf32> to vector<8x8xbf16>
    %cst_171 = arith.constant dense<0.000000e+00> : vector<8x8xf32>
    %371 = tpu.matmul %369, %370, %cst_171 {dimension_numbers = #tpu.dot_dimension_numbers<[1], [0], [0], [1], [0, 0, 1, 1], [], []>} : vector<8x8xbf16>, vector<8x8xbf16>, vector<8x8xf32> -> vector<8x8xf32>
    %c0_172 = arith.constant 0 : index
    %c8_173 = arith.constant 8 : index
    %372 = vector.load %arg45[%c0_172, %c8_173] : memref<16x32xf32, #tpu.memory_space<vmem>>, vector<8x8xf32>
    tpu.vector_store %arg45[%c0_172, %c8_173], %371 {strides = array<i32>} : memref<16x32xf32, #tpu.memory_space<vmem>>, vector<8x8xf32>,
    %373 = vector.extract_strided_slice %324 {offsets = [0, 16], sizes = [8, 8], strides = [1, 1]} : vector<16x32xf32> to vector<8x8xf32>
    %374 = vector.extract_strided_slice %328 {offsets = [0, 16], sizes = [8, 8], strides = [1, 1]} : vector<16x64xf32> to vector<8x8xf32>
    %375 = vector.extract_strided_slice %328 {offsets = [0, 48], sizes = [8, 8], strides = [1, 1]} : vector<16x64xf32> to vector<8x8xf32>
    %376 = arith.truncf %373 : vector<8x8xf32> to vector<8x8xbf16>
    %377 = arith.truncf %374 : vector<8x8xf32> to vector<8x8xbf16>
    %cst_174 = arith.constant dense<0.000000e+00> : vector<8x8xf32>
    %378 = tpu.matmul %376, %377, %cst_174 {dimension_numbers = #tpu.dot_dimension_numbers<[1], [1], [0], [0], [0, 0, 1, 0], [], []>} : vector<8x8xbf16>, vector<8x8xbf16>, vector<8x8xf32> -> vector<8x8xf32>
    %cst_175 = arith.constant 0.353553385 : f32
    %379 = vector.broadcast %cst_175 : f32 to vector<8x8xf32>
    %380 = arith.mulf %378, %379 : vector<8x8xf32>
    %cst_176 = arith.constant dense<0xFF800000> : vector<8xf32>
    %381 = vector.multi_reduction <maximumf>, %380, %cst_176 [1] : vector<8x8xf32> to vector<8xf32>
    %382 = vector.shape_cast %381 : vector<8xf32> to vector<8x1xf32>
    %383 = vector.broadcast %382 : vector<8x1xf32> to vector<8x8xf32>
    %384 = arith.subf %380, %383 : vector<8x8xf32>
    %385 = math.exp %384 : vector<8x8xf32>
    %cst_177 = arith.constant dense<0.000000e+00> : vector<8xf32>
    %386 = vector.multi_reduction <add>, %385, %cst_177 [1] : vector<8x8xf32> to vector<8xf32>
    %387 = vector.shape_cast %386 : vector<8xf32> to vector<8x1xf32>
    %388 = tpu.reciprocal %387 {approx = true} : vector<8x1xf32> -> vector<8x1xf32>
    %389 = vector.broadcast %388 : vector<8x1xf32> to vector<8x8xf32>
    %390 = arith.mulf %385, %389 : vector<8x8xf32>
    %391 = arith.truncf %390 : vector<8x8xf32> to vector<8x8xbf16>
    %392 = arith.truncf %375 : vector<8x8xf32> to vector<8x8xbf16>
    %cst_178 = arith.constant dense<0.000000e+00> : vector<8x8xf32>
    %393 = tpu.matmul %391, %392, %cst_178 {dimension_numbers = #tpu.dot_dimension_numbers<[1], [0], [0], [1], [0, 0, 1, 1], [], []>} : vector<8x8xbf16>, vector<8x8xbf16>, vector<8x8xf32> -> vector<8x8xf32>
    %c0_179 = arith.constant 0 : index
    %c16_180 = arith.constant 16 : index
    %394 = vector.load %arg45[%c0_179, %c16_180] : memref<16x32xf32, #tpu.memory_space<vmem>>, vector<8x8xf32>
    tpu.vector_store %arg45[%c0_179, %c16_180], %393 {strides = array<i32>} : memref<16x32xf32, #tpu.memory_space<vmem>>, vector<8x8xf32>,
    %395 = vector.extract_strided_slice %324 {offsets = [0, 24], sizes = [8, 8], strides = [1, 1]} : vector<16x32xf32> to vector<8x8xf32>
    %396 = vector.extract_strided_slice %328 {offsets = [0, 24], sizes = [8, 8], strides = [1, 1]} : vector<16x64xf32> to vector<8x8xf32>
    %397 = vector.extract_strided_slice %328 {offsets = [0, 56], sizes = [8, 8], strides = [1, 1]} : vector<16x64xf32> to vector<8x8xf32>
    %398 = arith.truncf %395 : vector<8x8xf32> to vector<8x8xbf16>
    %399 = arith.truncf %396 : vector<8x8xf32> to vector<8x8xbf16>
    %cst_181 = arith.constant dense<0.000000e+00> : vector<8x8xf32>
    %400 = tpu.matmul %398, %399, %cst_181 {dimension_numbers = #tpu.dot_dimension_numbers<[1], [1], [0], [0], [0, 0, 1, 0], [], []>} : vector<8x8xbf16>, vector<8x8xbf16>, vector<8x8xf32> -> vector<8x8xf32>
    %cst_182 = arith.constant 0.353553385 : f32
    %401 = vector.broadcast %cst_182 : f32 to vector<8x8xf32>
    %402 = arith.mulf %400, %401 : vector<8x8xf32>
    %cst_183 = arith.constant dense<0xFF800000> : vector<8xf32>
    %403 = vector.multi_reduction <maximumf>, %402, %cst_183 [1] : vector<8x8xf32> to vector<8xf32>
    %404 = vector.shape_cast %403 : vector<8xf32> to vector<8x1xf32>
    %405 = vector.broadcast %404 : vector<8x1xf32> to vector<8x8xf32>
    %406 = arith.subf %402, %405 : vector<8x8xf32>
    %407 = math.exp %406 : vector<8x8xf32>
    %cst_184 = arith.constant dense<0.000000e+00> : vector<8xf32>
    %408 = vector.multi_reduction <add>, %407, %cst_184 [1] : vector<8x8xf32> to vector<8xf32>
    %409 = vector.shape_cast %408 : vector<8xf32> to vector<8x1xf32>
    %410 = tpu.reciprocal %409 {approx = true} : vector<8x1xf32> -> vector<8x1xf32>
    %411 = vector.broadcast %410 : vector<8x1xf32> to vector<8x8xf32>
    %412 = arith.mulf %407, %411 : vector<8x8xf32>
    %413 = arith.truncf %412 : vector<8x8xf32> to vector<8x8xbf16>
    %414 = arith.truncf %397 : vector<8x8xf32> to vector<8x8xbf16>
    %cst_185 = arith.constant dense<0.000000e+00> : vector<8x8xf32>
    %415 = tpu.matmul %413, %414, %cst_185 {dimension_numbers = #tpu.dot_dimension_numbers<[1], [0], [0], [1], [0, 0, 1, 1], [], []>} : vector<8x8xbf16>, vector<8x8xbf16>, vector<8x8xf32> -> vector<8x8xf32>
    %c0_186 = arith.constant 0 : index
    %c24_187 = arith.constant 24 : index
    %416 = vector.load %arg45[%c0_186, %c24_187] : memref<16x32xf32, #tpu.memory_space<vmem>>, vector<8x8xf32>
    tpu.vector_store %arg45[%c0_186, %c24_187], %415 {strides = array<i32>} : memref<16x32xf32, #tpu.memory_space<vmem>>, vector<8x8xf32>,
    %417 = vector.extract_strided_slice %324 {offsets = [8, 0], sizes = [8, 8], strides = [1, 1]} : vector<16x32xf32> to vector<8x8xf32>
    %418 = vector.extract_strided_slice %328 {offsets = [8, 0], sizes = [8, 8], strides = [1, 1]} : vector<16x64xf32> to vector<8x8xf32>
    %419 = vector.extract_strided_slice %328 {offsets = [8, 32], sizes = [8, 8], strides = [1, 1]} : vector<16x64xf32> to vector<8x8xf32>
    %420 = arith.truncf %417 : vector<8x8xf32> to vector<8x8xbf16>
    %421 = arith.truncf %418 : vector<8x8xf32> to vector<8x8xbf16>
    %cst_188 = arith.constant dense<0.000000e+00> : vector<8x8xf32>
    %422 = tpu.matmul %420, %421, %cst_188 {dimension_numbers = #tpu.dot_dimension_numbers<[1], [1], [0], [0], [0, 0, 1, 0], [], []>} : vector<8x8xbf16>, vector<8x8xbf16>, vector<8x8xf32> -> vector<8x8xf32>
    %cst_189 = arith.constant 0.353553385 : f32
    %423 = vector.broadcast %cst_189 : f32 to vector<8x8xf32>
    %424 = arith.mulf %422, %423 : vector<8x8xf32>
    %cst_190 = arith.constant dense<0xFF800000> : vector<8xf32>
    %425 = vector.multi_reduction <maximumf>, %424, %cst_190 [1] : vector<8x8xf32> to vector<8xf32>
    %426 = vector.shape_cast %425 : vector<8xf32> to vector<8x1xf32>
    %427 = vector.broadcast %426 : vector<8x1xf32> to vector<8x8xf32>
    %428 = arith.subf %424, %427 : vector<8x8xf32>
    %429 = math.exp %428 : vector<8x8xf32>
    %cst_191 = arith.constant dense<0.000000e+00> : vector<8xf32>
    %430 = vector.multi_reduction <add>, %429, %cst_191 [1] : vector<8x8xf32> to vector<8xf32>
    %431 = vector.shape_cast %430 : vector<8xf32> to vector<8x1xf32>
    %432 = tpu.reciprocal %431 {approx = true} : vector<8x1xf32> -> vector<8x1xf32>
    %433 = vector.broadcast %432 : vector<8x1xf32> to vector<8x8xf32>
    %434 = arith.mulf %429, %433 : vector<8x8xf32>
    %435 = arith.truncf %434 : vector<8x8xf32> to vector<8x8xbf16>
    %436 = arith.truncf %419 : vector<8x8xf32> to vector<8x8xbf16>
    %cst_192 = arith.constant dense<0.000000e+00> : vector<8x8xf32>
    %437 = tpu.matmul %435, %436, %cst_192 {dimension_numbers = #tpu.dot_dimension_numbers<[1], [0], [0], [1], [0, 0, 1, 1], [], []>} : vector<8x8xbf16>, vector<8x8xbf16>, vector<8x8xf32> -> vector<8x8xf32>
    %c8_193 = arith.constant 8 : index
    %c0_194 = arith.constant 0 : index
    %438 = vector.load %arg45[%c8_193, %c0_194] : memref<16x32xf32, #tpu.memory_space<vmem>>, vector<8x8xf32>
    tpu.vector_store %arg45[%c8_193, %c0_194], %437 {strides = array<i32>} : memref<16x32xf32, #tpu.memory_space<vmem>>, vector<8x8xf32>,
    %439 = vector.extract_strided_slice %324 {offsets = [8, 8], sizes = [8, 8], strides = [1, 1]} : vector<16x32xf32> to vector<8x8xf32>
    %440 = vector.extract_strided_slice %328 {offsets = [8, 8], sizes = [8, 8], strides = [1, 1]} : vector<16x64xf32> to vector<8x8xf32>
    %441 = vector.extract_strided_slice %328 {offsets = [8, 40], sizes = [8, 8], strides = [1, 1]} : vector<16x64xf32> to vector<8x8xf32>
    %442 = arith.truncf %439 : vector<8x8xf32> to vector<8x8xbf16>
    %443 = arith.truncf %440 : vector<8x8xf32> to vector<8x8xbf16>
    %cst_195 = arith.constant dense<0.000000e+00> : vector<8x8xf32>
    %444 = tpu.matmul %442, %443, %cst_195 {dimension_numbers = #tpu.dot_dimension_numbers<[1], [1], [0], [0], [0, 0, 1, 0], [], []>} : vector<8x8xbf16>, vector<8x8xbf16>, vector<8x8xf32> -> vector<8x8xf32>
    %cst_196 = arith.constant 0.353553385 : f32
    %445 = vector.broadcast %cst_196 : f32 to vector<8x8xf32>
    %446 = arith.mulf %444, %445 : vector<8x8xf32>
    %cst_197 = arith.constant dense<0xFF800000> : vector<8xf32>
    %447 = vector.multi_reduction <maximumf>, %446, %cst_197 [1] : vector<8x8xf32> to vector<8xf32>
    %448 = vector.shape_cast %447 : vector<8xf32> to vector<8x1xf32>
    %449 = vector.broadcast %448 : vector<8x1xf32> to vector<8x8xf32>
    %450 = arith.subf %446, %449 : vector<8x8xf32>
    %451 = math.exp %450 : vector<8x8xf32>
    %cst_198 = arith.constant dense<0.000000e+00> : vector<8xf32>
    %452 = vector.multi_reduction <add>, %451, %cst_198 [1] : vector<8x8xf32> to vector<8xf32>
    %453 = vector.shape_cast %452 : vector<8xf32> to vector<8x1xf32>
    %454 = tpu.reciprocal %453 {approx = true} : vector<8x1xf32> -> vector<8x1xf32>
    %455 = vector.broadcast %454 : vector<8x1xf32> to vector<8x8xf32>
    %456 = arith.mulf %451, %455 : vector<8x8xf32>
    %457 = arith.truncf %456 : vector<8x8xf32> to vector<8x8xbf16>
    %458 = arith.truncf %441 : vector<8x8xf32> to vector<8x8xbf16>
    %cst_199 = arith.constant dense<0.000000e+00> : vector<8x8xf32>
    %459 = tpu.matmul %457, %458, %cst_199 {dimension_numbers = #tpu.dot_dimension_numbers<[1], [0], [0], [1], [0, 0, 1, 1], [], []>} : vector<8x8xbf16>, vector<8x8xbf16>, vector<8x8xf32> -> vector<8x8xf32>
    %c8_200 = arith.constant 8 : index
    %c8_201 = arith.constant 8 : index
    %460 = vector.load %arg45[%c8_200, %c8_201] : memref<16x32xf32, #tpu.memory_space<vmem>>, vector<8x8xf32>
    tpu.vector_store %arg45[%c8_200, %c8_201], %459 {strides = array<i32>} : memref<16x32xf32, #tpu.memory_space<vmem>>, vector<8x8xf32>,
    %461 = vector.extract_strided_slice %324 {offsets = [8, 16], sizes = [8, 8], strides = [1, 1]} : vector<16x32xf32> to vector<8x8xf32>
    %462 = vector.extract_strided_slice %328 {offsets = [8, 16], sizes = [8, 8], strides = [1, 1]} : vector<16x64xf32> to vector<8x8xf32>
    %463 = vector.extract_strided_slice %328 {offsets = [8, 48], sizes = [8, 8], strides = [1, 1]} : vector<16x64xf32> to vector<8x8xf32>
    %464 = arith.truncf %461 : vector<8x8xf32> to vector<8x8xbf16>
    %465 = arith.truncf %462 : vector<8x8xf32> to vector<8x8xbf16>
    %cst_202 = arith.constant dense<0.000000e+00> : vector<8x8xf32>
    %466 = tpu.matmul %464, %465, %cst_202 {dimension_numbers = #tpu.dot_dimension_numbers<[1], [1], [0], [0], [0, 0, 1, 0], [], []>} : vector<8x8xbf16>, vector<8x8xbf16>, vector<8x8xf32> -> vector<8x8xf32>
    %cst_203 = arith.constant 0.353553385 : f32
    %467 = vector.broadcast %cst_203 : f32 to vector<8x8xf32>
    %468 = arith.mulf %466, %467 : vector<8x8xf32>
    %cst_204 = arith.constant dense<0xFF800000> : vector<8xf32>
    %469 = vector.multi_reduction <maximumf>, %468, %cst_204 [1] : vector<8x8xf32> to vector<8xf32>
    %470 = vector.shape_cast %469 : vector<8xf32> to vector<8x1xf32>
    %471 = vector.broadcast %470 : vector<8x1xf32> to vector<8x8xf32>
    %472 = arith.subf %468, %471 : vector<8x8xf32>
    %473 = math.exp %472 : vector<8x8xf32>
    %cst_205 = arith.constant dense<0.000000e+00> : vector<8xf32>
    %474 = vector.multi_reduction <add>, %473, %cst_205 [1] : vector<8x8xf32> to vector<8xf32>
    %475 = vector.shape_cast %474 : vector<8xf32> to vector<8x1xf32>
    %476 = tpu.reciprocal %475 {approx = true} : vector<8x1xf32> -> vector<8x1xf32>
    %477 = vector.broadcast %476 : vector<8x1xf32> to vector<8x8xf32>
    %478 = arith.mulf %473, %477 : vector<8x8xf32>
    %479 = arith.truncf %478 : vector<8x8xf32> to vector<8x8xbf16>
    %480 = arith.truncf %463 : vector<8x8xf32> to vector<8x8xbf16>
    %cst_206 = arith.constant dense<0.000000e+00> : vector<8x8xf32>
    %481 = tpu.matmul %479, %480, %cst_206 {dimension_numbers = #tpu.dot_dimension_numbers<[1], [0], [0], [1], [0, 0, 1, 1], [], []>} : vector<8x8xbf16>, vector<8x8xbf16>, vector<8x8xf32> -> vector<8x8xf32>
    %c8_207 = arith.constant 8 : index
    %c16_208 = arith.constant 16 : index
    %482 = vector.load %arg45[%c8_207, %c16_208] : memref<16x32xf32, #tpu.memory_space<vmem>>, vector<8x8xf32>
    tpu.vector_store %arg45[%c8_207, %c16_208], %481 {strides = array<i32>} : memref<16x32xf32, #tpu.memory_space<vmem>>, vector<8x8xf32>,
    %483 = vector.extract_strided_slice %324 {offsets = [8, 24], sizes = [8, 8], strides = [1, 1]} : vector<16x32xf32> to vector<8x8xf32>
    %484 = vector.extract_strided_slice %328 {offsets = [8, 24], sizes = [8, 8], strides = [1, 1]} : vector<16x64xf32> to vector<8x8xf32>
    %485 = vector.extract_strided_slice %328 {offsets = [8, 56], sizes = [8, 8], strides = [1, 1]} : vector<16x64xf32> to vector<8x8xf32>
    %486 = arith.truncf %483 : vector<8x8xf32> to vector<8x8xbf16>
    %487 = arith.truncf %484 : vector<8x8xf32> to vector<8x8xbf16>
    %cst_209 = arith.constant dense<0.000000e+00> : vector<8x8xf32>
    %488 = tpu.matmul %486, %487, %cst_209 {dimension_numbers = #tpu.dot_dimension_numbers<[1], [1], [0], [0], [0, 0, 1, 0], [], []>} : vector<8x8xbf16>, vector<8x8xbf16>, vector<8x8xf32> -> vector<8x8xf32>
    %cst_210 = arith.constant 0.353553385 : f32
    %489 = vector.broadcast %cst_210 : f32 to vector<8x8xf32>
    %490 = arith.mulf %488, %489 : vector<8x8xf32>
    %cst_211 = arith.constant dense<0xFF800000> : vector<8xf32>
    %491 = vector.multi_reduction <maximumf>, %490, %cst_211 [1] : vector<8x8xf32> to vector<8xf32>
    %492 = vector.shape_cast %491 : vector<8xf32> to vector<8x1xf32>
    %493 = vector.broadcast %492 : vector<8x1xf32> to vector<8x8xf32>
    %494 = arith.subf %490, %493 : vector<8x8xf32>
    %495 = math.exp %494 : vector<8x8xf32>
    %cst_212 = arith.constant dense<0.000000e+00> : vector<8xf32>
    %496 = vector.multi_reduction <add>, %495, %cst_212 [1] : vector<8x8xf32> to vector<8xf32>
    %497 = vector.shape_cast %496 : vector<8xf32> to vector<8x1xf32>
    %498 = tpu.reciprocal %497 {approx = true} : vector<8x1xf32> -> vector<8x1xf32>
    %499 = vector.broadcast %498 : vector<8x1xf32> to vector<8x8xf32>
    %500 = arith.mulf %495, %499 : vector<8x8xf32>
    %501 = arith.truncf %500 : vector<8x8xf32> to vector<8x8xbf16>
    %502 = arith.truncf %485 : vector<8x8xf32> to vector<8x8xbf16>
    %cst_213 = arith.constant dense<0.000000e+00> : vector<8x8xf32>
    %503 = tpu.matmul %501, %502, %cst_213 {dimension_numbers = #tpu.dot_dimension_numbers<[1], [0], [0], [1], [0, 0, 1, 1], [], []>} : vector<8x8xbf16>, vector<8x8xbf16>, vector<8x8xf32> -> vector<8x8xf32>
    %c8_214 = arith.constant 8 : index
    %c24_215 = arith.constant 24 : index
    %504 = vector.load %arg45[%c8_214, %c24_215] : memref<16x32xf32, #tpu.memory_space<vmem>>, vector<8x8xf32>
    tpu.vector_store %arg45[%c8_214, %c24_215], %503 {strides = array<i32>} : memref<16x32xf32, #tpu.memory_space<vmem>>, vector<8x8xf32>,
    %c0_216 = arith.constant 0 : index
    %c0_217 = arith.constant 0 : index
    %505 = vector.load %arg45[%c0_216, %c0_217] : memref<16x32xf32, #tpu.memory_space<vmem>>, vector<16x32xf32>
    %506 = arith.truncf %505 : vector<16x32xf32> to vector<16x32xbf16>
    %cst_218 = arith.constant dense<0.000000e+00> : vector<16x32xf32>
    %507 = tpu.matmul %506, %29, %cst_218 {dimension_numbers = #tpu.dot_dimension_numbers<[1], [0], [0], [1], [0, 0, 1, 1], [], []>} : vector<16x32xbf16>, vector<32x32xbf16>, vector<16x32xf32> -> vector<16x32xf32>
    %508 = vector.broadcast %30 : vector<1x32xf32> to vector<16x32xf32>
    %509 = arith.addf %507, %508 : vector<16x32xf32>
    %510 = arith.addf %320, %509 : vector<16x32xf32>
    %cst_219 = arith.constant dense<0.000000e+00> : vector<16xf32>
    %511 = vector.multi_reduction <add>, %510, %cst_219 [1] : vector<16x32xf32> to vector<16xf32>
    %512 = vector.shape_cast %511 : vector<16xf32> to vector<16x1xf32>
    %cst_220 = arith.constant 3.200000e+01 : f32
    %513 = vector.broadcast %cst_220 : f32 to vector<16x1xf32>
    %514 = arith.divf %512, %513 : vector<16x1xf32>
    %515 = vector.broadcast %514 : vector<16x1xf32> to vector<16x32xf32>
    %516 = arith.subf %510, %515 : vector<16x32xf32>
    %517 = arith.mulf %516, %516 : vector<16x32xf32>
    %cst_221 = arith.constant dense<0.000000e+00> : vector<16xf32>
    %518 = vector.multi_reduction <add>, %517, %cst_221 [1] : vector<16x32xf32> to vector<16xf32>
    %519 = vector.shape_cast %518 : vector<16xf32> to vector<16x1xf32>
    %cst_222 = arith.constant 3.200000e+01 : f32
    %520 = vector.broadcast %cst_222 : f32 to vector<16x1xf32>
    %521 = arith.divf %519, %520 : vector<16x1xf32>
    %522 = vector.broadcast %514 : vector<16x1xf32> to vector<16x32xf32>
    %523 = arith.subf %510, %522 : vector<16x32xf32>
    %cst_223 = arith.constant 9.99999974E-6 : f32
    %524 = vector.broadcast %cst_223 : f32 to vector<16x1xf32>
    %525 = arith.addf %521, %524 : vector<16x1xf32>
    %526 = math.rsqrt %525 : vector<16x1xf32>
    %527 = vector.broadcast %526 : vector<16x1xf32> to vector<16x32xf32>
    %528 = arith.mulf %523, %527 : vector<16x32xf32>
    %529 = vector.broadcast %31 : vector<1x32xf32> to vector<16x32xf32>
    %530 = arith.mulf %528, %529 : vector<16x32xf32>
    %531 = vector.broadcast %32 : vector<1x32xf32> to vector<16x32xf32>
    %532 = arith.addf %530, %531 : vector<16x32xf32>
    %533 = arith.truncf %532 : vector<16x32xf32> to vector<16x32xbf16>
    %cst_224 = arith.constant dense<0.000000e+00> : vector<16x64xf32>
    %534 = tpu.matmul %533, %33, %cst_224 {dimension_numbers = #tpu.dot_dimension_numbers<[1], [0], [0], [1], [0, 0, 1, 1], [], []>} : vector<16x32xbf16>, vector<32x64xbf16>, vector<16x64xf32> -> vector<16x64xf32>
    %535 = vector.broadcast %34 : vector<1x64xf32> to vector<16x64xf32>
    %536 = arith.addf %534, %535 : vector<16x64xf32>
    %537 = arith.mulf %536, %536 : vector<16x64xf32>
    %538 = arith.mulf %536, %537 : vector<16x64xf32>
    %cst_225 = arith.constant 4.471500e-02 : f32
    %539 = vector.broadcast %cst_225 : f32 to vector<16x64xf32>
    %540 = arith.mulf %539, %538 : vector<16x64xf32>
    %541 = arith.addf %536, %540 : vector<16x64xf32>
    %cst_226 = arith.constant 0.797884583 : f32
    %542 = vector.broadcast %cst_226 : f32 to vector<16x64xf32>
    %543 = arith.mulf %542, %541 : vector<16x64xf32>
    %544 = math.tanh %543 : vector<16x64xf32>
    %cst_227 = arith.constant 1.000000e+00 : f32
    %545 = vector.broadcast %cst_227 : f32 to vector<16x64xf32>
    %546 = arith.addf %545, %544 : vector<16x64xf32>
    %cst_228 = arith.constant 5.000000e-01 : f32
    %547 = vector.broadcast %cst_228 : f32 to vector<16x64xf32>
    %548 = arith.mulf %547, %546 : vector<16x64xf32>
    %549 = arith.mulf %536, %548 : vector<16x64xf32>
    %550 = arith.truncf %549 : vector<16x64xf32> to vector<16x64xbf16>
    %cst_229 = arith.constant dense<0.000000e+00> : vector<16x32xf32>
    %551 = tpu.matmul %550, %35, %cst_229 {dimension_numbers = #tpu.dot_dimension_numbers<[1], [0], [0], [1], [0, 0, 1, 1], [], []>} : vector<16x64xbf16>, vector<64x32xbf16>, vector<16x32xf32> -> vector<16x32xf32>
    %552 = vector.broadcast %36 : vector<1x32xf32> to vector<16x32xf32>
    %553 = arith.addf %551, %552 : vector<16x32xf32>
    %554 = arith.addf %532, %553 : vector<16x32xf32>
    %cst_230 = arith.constant dense<0.000000e+00> : vector<16xf32>
    %555 = vector.multi_reduction <add>, %554, %cst_230 [1] : vector<16x32xf32> to vector<16xf32>
    %556 = vector.shape_cast %555 : vector<16xf32> to vector<16x1xf32>
    %cst_231 = arith.constant 3.200000e+01 : f32
    %557 = vector.broadcast %cst_231 : f32 to vector<16x1xf32>
    %558 = arith.divf %556, %557 : vector<16x1xf32>
    %559 = vector.broadcast %558 : vector<16x1xf32> to vector<16x32xf32>
    %560 = arith.subf %554, %559 : vector<16x32xf32>
    %561 = arith.mulf %560, %560 : vector<16x32xf32>
    %cst_232 = arith.constant dense<0.000000e+00> : vector<16xf32>
    %562 = vector.multi_reduction <add>, %561, %cst_232 [1] : vector<16x32xf32> to vector<16xf32>
    %563 = vector.shape_cast %562 : vector<16xf32> to vector<16x1xf32>
    %cst_233 = arith.constant 3.200000e+01 : f32
    %564 = vector.broadcast %cst_233 : f32 to vector<16x1xf32>
    %565 = arith.divf %563, %564 : vector<16x1xf32>
    %566 = vector.broadcast %558 : vector<16x1xf32> to vector<16x32xf32>
    %567 = arith.subf %554, %566 : vector<16x32xf32>
    %cst_234 = arith.constant 9.99999974E-6 : f32
    %568 = vector.broadcast %cst_234 : f32 to vector<16x1xf32>
    %569 = arith.addf %565, %568 : vector<16x1xf32>
    %570 = math.rsqrt %569 : vector<16x1xf32>
    %571 = vector.broadcast %570 : vector<16x1xf32> to vector<16x32xf32>
    %572 = arith.mulf %567, %571 : vector<16x32xf32>
    %573 = vector.broadcast %37 : vector<1x32xf32> to vector<16x32xf32>
    %574 = arith.mulf %572, %573 : vector<16x32xf32>
    %575 = vector.broadcast %38 : vector<1x32xf32> to vector<16x32xf32>
    %576 = arith.addf %574, %575 : vector<16x32xf32>
    %577 = arith.truncf %576 : vector<16x32xf32> to vector<16x32xbf16>
    %cst_235 = arith.constant dense<0.000000e+00> : vector<16x32xf32>
    %578 = tpu.matmul %577, %39, %cst_235 {dimension_numbers = #tpu.dot_dimension_numbers<[1], [0], [0], [1], [0, 0, 1, 1], [], []>} : vector<16x32xbf16>, vector<32x32xbf16>, vector<16x32xf32> -> vector<16x32xf32>
    %579 = vector.broadcast %40 : vector<1x32xf32> to vector<16x32xf32>
    %580 = arith.addf %578, %579 : vector<16x32xf32>
    %581 = arith.truncf %320 : vector<16x32xf32> to vector<16x32xbf16>
    %cst_236 = arith.constant dense<0.000000e+00> : vector<16x32xf32>
    %582 = tpu.matmul %581, %41, %cst_236 {dimension_numbers = #tpu.dot_dimension_numbers<[1], [0], [0], [1], [0, 0, 1, 1], [], []>} : vector<16x32xbf16>, vector<32x32xbf16>, vector<16x32xf32> -> vector<16x32xf32>
    %583 = arith.addf %580, %582 : vector<16x32xf32>
    %584 = vector.broadcast %42 : vector<1x32xf32> to vector<16x32xf32>
    %585 = arith.addf %583, %584 : vector<16x32xf32>
    %cst_237 = arith.constant 0.000000e+00 : f32
    %586 = vector.broadcast %cst_237 : f32 to vector<16x32xf32>
    %587 = arith.subf %586, %585 : vector<16x32xf32>
    %588 = math.exp %587 : vector<16x32xf32>
    %cst_238 = arith.constant 1.000000e+00 : f32
    %589 = vector.broadcast %cst_238 : f32 to vector<16x32xf32>
    %590 = arith.addf %589, %588 : vector<16x32xf32>
    %cst_239 = arith.constant 1.000000e+00 : f32
    %591 = vector.broadcast %cst_239 : f32 to vector<16x32xf32>
    %592 = arith.divf %591, %590 : vector<16x32xf32>
    %593 = arith.mulf %592, %576 : vector<16x32xf32>
    %cst_240 = arith.constant 1.000000e+00 : f32
    %594 = vector.broadcast %cst_240 : f32 to vector<16x32xf32>
    %595 = arith.subf %594, %592 : vector<16x32xf32>
    %596 = arith.mulf %595, %320 : vector<16x32xf32>
    %597 = arith.addf %593, %596 : vector<16x32xf32>
    %598 = vector.broadcast %44 : vector<16x1xf32> to vector<16x32xf32>
    %599 = arith.mulf %598, %597 : vector<16x32xf32>
    %cst_241 = arith.constant 1.000000e+00 : f32
    %600 = vector.broadcast %cst_241 : f32 to vector<16x1xf32>
    %601 = arith.subf %600, %44 : vector<16x1xf32>
    %602 = vector.broadcast %601 : vector<16x1xf32> to vector<16x32xf32>
    %603 = arith.mulf %602, %320 : vector<16x32xf32>
    %604 = arith.addf %599, %603 : vector<16x32xf32>
    %c1 = arith.constant 1 : index
    %c0_242 = arith.constant 0 : index
    %c0_243 = arith.constant 0 : index
    %605 = vector.load %arg4[%c1, %c0_242, %c0_243] : memref<2x32x96xbf16, #tpu.memory_space<vmem>>, vector<1x32x96xbf16>
    %606 = vector.shape_cast %605 : vector<1x32x96xbf16> to vector<32x96xbf16>
    %c1_244 = arith.constant 1 : index
    %c0_245 = arith.constant 0 : index
    %c0_246 = arith.constant 0 : index
    %607 = vector.load %arg5[%c1_244, %c0_245, %c0_246] : memref<2x1x96xf32, #tpu.memory_space<vmem>>, vector<1x1x96xf32>
    %608 = vector.shape_cast %607 : vector<1x1x96xf32> to vector<1x96xf32>
    %c1_247 = arith.constant 1 : index
    %c0_248 = arith.constant 0 : index
    %c0_249 = arith.constant 0 : index
    %609 = vector.load %arg6[%c1_247, %c0_248, %c0_249] : memref<2x32x32xbf16, #tpu.memory_space<vmem>>, vector<1x32x32xbf16>
    %610 = vector.shape_cast %609 : vector<1x32x32xbf16> to vector<32x32xbf16>
    %c1_250 = arith.constant 1 : index
    %c0_251 = arith.constant 0 : index
    %c0_252 = arith.constant 0 : index
    %611 = vector.load %arg7[%c1_250, %c0_251, %c0_252] : memref<2x1x32xf32, #tpu.memory_space<vmem>>, vector<1x1x32xf32>
    %612 = vector.shape_cast %611 : vector<1x1x32xf32> to vector<1x32xf32>
    %c1_253 = arith.constant 1 : index
    %c0_254 = arith.constant 0 : index
    %c0_255 = arith.constant 0 : index
    %613 = vector.load %arg8[%c1_253, %c0_254, %c0_255] : memref<2x1x32xf32, #tpu.memory_space<vmem>>, vector<1x1x32xf32>
    %614 = vector.shape_cast %613 : vector<1x1x32xf32> to vector<1x32xf32>
    %c1_256 = arith.constant 1 : index
    %c0_257 = arith.constant 0 : index
    %c0_258 = arith.constant 0 : index
    %615 = vector.load %arg9[%c1_256, %c0_257, %c0_258] : memref<2x1x32xf32, #tpu.memory_space<vmem>>, vector<1x1x32xf32>
    %616 = vector.shape_cast %615 : vector<1x1x32xf32> to vector<1x32xf32>
    %c1_259 = arith.constant 1 : index
    %c0_260 = arith.constant 0 : index
    %c0_261 = arith.constant 0 : index
    %617 = vector.load %arg10[%c1_259, %c0_260, %c0_261] : memref<2x32x64xbf16, #tpu.memory_space<vmem>>, vector<1x32x64xbf16>
    %618 = vector.shape_cast %617 : vector<1x32x64xbf16> to vector<32x64xbf16>
    %c1_262 = arith.constant 1 : index
    %c0_263 = arith.constant 0 : index
    %c0_264 = arith.constant 0 : index
    %619 = vector.load %arg11[%c1_262, %c0_263, %c0_264] : memref<2x1x64xf32, #tpu.memory_space<vmem>>, vector<1x1x64xf32>
    %620 = vector.shape_cast %619 : vector<1x1x64xf32> to vector<1x64xf32>
    %c1_265 = arith.constant 1 : index
    %c0_266 = arith.constant 0 : index
    %c0_267 = arith.constant 0 : index
    %621 = vector.load %arg12[%c1_265, %c0_266, %c0_267] : memref<2x64x32xbf16, #tpu.memory_space<vmem>>, vector<1x64x32xbf16>
    %622 = vector.shape_cast %621 : vector<1x64x32xbf16> to vector<64x32xbf16>
    %c1_268 = arith.constant 1 : index
    %c0_269 = arith.constant 0 : index
    %c0_270 = arith.constant 0 : index
    %623 = vector.load %arg13[%c1_268, %c0_269, %c0_270] : memref<2x1x32xf32, #tpu.memory_space<vmem>>, vector<1x1x32xf32>
    %624 = vector.shape_cast %623 : vector<1x1x32xf32> to vector<1x32xf32>
    %c1_271 = arith.constant 1 : index
    %c0_272 = arith.constant 0 : index
    %c0_273 = arith.constant 0 : index
    %625 = vector.load %arg14[%c1_271, %c0_272, %c0_273] : memref<2x1x32xf32, #tpu.memory_space<vmem>>, vector<1x1x32xf32>
    %626 = vector.shape_cast %625 : vector<1x1x32xf32> to vector<1x32xf32>
    %c1_274 = arith.constant 1 : index
    %c0_275 = arith.constant 0 : index
    %c0_276 = arith.constant 0 : index
    %627 = vector.load %arg15[%c1_274, %c0_275, %c0_276] : memref<2x1x32xf32, #tpu.memory_space<vmem>>, vector<1x1x32xf32>
    %628 = vector.shape_cast %627 : vector<1x1x32xf32> to vector<1x32xf32>
    %629 = arith.truncf %604 : vector<16x32xf32> to vector<16x32xbf16>
    %cst_277 = arith.constant dense<0.000000e+00> : vector<16x96xf32>
    %630 = tpu.matmul %629, %606, %cst_277 {dimension_numbers = #tpu.dot_dimension_numbers<[1], [0], [0], [1], [0, 0, 1, 1], [], []>} : vector<16x32xbf16>, vector<32x96xbf16>, vector<16x96xf32> -> vector<16x96xf32>
    %631 = vector.broadcast %608 : vector<1x96xf32> to vector<16x96xf32>
    %632 = arith.addf %630, %631 : vector<16x96xf32>
    %633 = vector.extract_strided_slice %632 {offsets = [0, 0], sizes = [8, 8], strides = [1, 1]} : vector<16x96xf32> to vector<8x8xf32>
    %634 = vector.extract_strided_slice %632 {offsets = [0, 32], sizes = [8, 8], strides = [1, 1]} : vector<16x96xf32> to vector<8x8xf32>
    %635 = vector.extract_strided_slice %632 {offsets = [0, 64], sizes = [8, 8], strides = [1, 1]} : vector<16x96xf32> to vector<8x8xf32>
    %636 = arith.truncf %633 : vector<8x8xf32> to vector<8x8xbf16>
    %637 = arith.truncf %634 : vector<8x8xf32> to vector<8x8xbf16>
    %cst_278 = arith.constant dense<0.000000e+00> : vector<8x8xf32>
    %638 = tpu.matmul %636, %637, %cst_278 {dimension_numbers = #tpu.dot_dimension_numbers<[1], [1], [0], [0], [0, 0, 1, 0], [], []>} : vector<8x8xbf16>, vector<8x8xbf16>, vector<8x8xf32> -> vector<8x8xf32>
    %cst_279 = arith.constant 0.353553385 : f32
    %639 = vector.broadcast %cst_279 : f32 to vector<8x8xf32>
    %640 = arith.mulf %638, %639 : vector<8x8xf32>
    %cst_280 = arith.constant dense<0xFF800000> : vector<8xf32>
    %641 = vector.multi_reduction <maximumf>, %640, %cst_280 [1] : vector<8x8xf32> to vector<8xf32>
    %642 = vector.shape_cast %641 : vector<8xf32> to vector<8x1xf32>
    %643 = vector.broadcast %642 : vector<8x1xf32> to vector<8x8xf32>
    %644 = arith.subf %640, %643 : vector<8x8xf32>
    %645 = math.exp %644 : vector<8x8xf32>
    %cst_281 = arith.constant dense<0.000000e+00> : vector<8xf32>
    %646 = vector.multi_reduction <add>, %645, %cst_281 [1] : vector<8x8xf32> to vector<8xf32>
    %647 = vector.shape_cast %646 : vector<8xf32> to vector<8x1xf32>
    %648 = tpu.reciprocal %647 {approx = true} : vector<8x1xf32> -> vector<8x1xf32>
    %649 = vector.broadcast %648 : vector<8x1xf32> to vector<8x8xf32>
    %650 = arith.mulf %645, %649 : vector<8x8xf32>
    %651 = arith.truncf %650 : vector<8x8xf32> to vector<8x8xbf16>
    %652 = arith.truncf %635 : vector<8x8xf32> to vector<8x8xbf16>
    %cst_282 = arith.constant dense<0.000000e+00> : vector<8x8xf32>
    %653 = tpu.matmul %651, %652, %cst_282 {dimension_numbers = #tpu.dot_dimension_numbers<[1], [0], [0], [1], [0, 0, 1, 1], [], []>} : vector<8x8xbf16>, vector<8x8xbf16>, vector<8x8xf32> -> vector<8x8xf32>
    %c0_283 = arith.constant 0 : index
    %c0_284 = arith.constant 0 : index
    %654 = vector.load %arg45[%c0_283, %c0_284] : memref<16x32xf32, #tpu.memory_space<vmem>>, vector<8x8xf32>
    tpu.vector_store %arg45[%c0_283, %c0_284], %653 {strides = array<i32>} : memref<16x32xf32, #tpu.memory_space<vmem>>, vector<8x8xf32>,
    %655 = vector.extract_strided_slice %632 {offsets = [0, 8], sizes = [8, 8], strides = [1, 1]} : vector<16x96xf32> to vector<8x8xf32>
    %656 = vector.extract_strided_slice %632 {offsets = [0, 40], sizes = [8, 8], strides = [1, 1]} : vector<16x96xf32> to vector<8x8xf32>
    %657 = vector.extract_strided_slice %632 {offsets = [0, 72], sizes = [8, 8], strides = [1, 1]} : vector<16x96xf32> to vector<8x8xf32>
    %658 = arith.truncf %655 : vector<8x8xf32> to vector<8x8xbf16>
    %659 = arith.truncf %656 : vector<8x8xf32> to vector<8x8xbf16>
    %cst_285 = arith.constant dense<0.000000e+00> : vector<8x8xf32>
    %660 = tpu.matmul %658, %659, %cst_285 {dimension_numbers = #tpu.dot_dimension_numbers<[1], [1], [0], [0], [0, 0, 1, 0], [], []>} : vector<8x8xbf16>, vector<8x8xbf16>, vector<8x8xf32> -> vector<8x8xf32>
    %cst_286 = arith.constant 0.353553385 : f32
    %661 = vector.broadcast %cst_286 : f32 to vector<8x8xf32>
    %662 = arith.mulf %660, %661 : vector<8x8xf32>
    %cst_287 = arith.constant dense<0xFF800000> : vector<8xf32>
    %663 = vector.multi_reduction <maximumf>, %662, %cst_287 [1] : vector<8x8xf32> to vector<8xf32>
    %664 = vector.shape_cast %663 : vector<8xf32> to vector<8x1xf32>
    %665 = vector.broadcast %664 : vector<8x1xf32> to vector<8x8xf32>
    %666 = arith.subf %662, %665 : vector<8x8xf32>
    %667 = math.exp %666 : vector<8x8xf32>
    %cst_288 = arith.constant dense<0.000000e+00> : vector<8xf32>
    %668 = vector.multi_reduction <add>, %667, %cst_288 [1] : vector<8x8xf32> to vector<8xf32>
    %669 = vector.shape_cast %668 : vector<8xf32> to vector<8x1xf32>
    %670 = tpu.reciprocal %669 {approx = true} : vector<8x1xf32> -> vector<8x1xf32>
    %671 = vector.broadcast %670 : vector<8x1xf32> to vector<8x8xf32>
    %672 = arith.mulf %667, %671 : vector<8x8xf32>
    %673 = arith.truncf %672 : vector<8x8xf32> to vector<8x8xbf16>
    %674 = arith.truncf %657 : vector<8x8xf32> to vector<8x8xbf16>
    %cst_289 = arith.constant dense<0.000000e+00> : vector<8x8xf32>
    %675 = tpu.matmul %673, %674, %cst_289 {dimension_numbers = #tpu.dot_dimension_numbers<[1], [0], [0], [1], [0, 0, 1, 1], [], []>} : vector<8x8xbf16>, vector<8x8xbf16>, vector<8x8xf32> -> vector<8x8xf32>
    %c0_290 = arith.constant 0 : index
    %c8_291 = arith.constant 8 : index
    %676 = vector.load %arg45[%c0_290, %c8_291] : memref<16x32xf32, #tpu.memory_space<vmem>>, vector<8x8xf32>
    tpu.vector_store %arg45[%c0_290, %c8_291], %675 {strides = array<i32>} : memref<16x32xf32, #tpu.memory_space<vmem>>, vector<8x8xf32>,
    %677 = vector.extract_strided_slice %632 {offsets = [0, 16], sizes = [8, 8], strides = [1, 1]} : vector<16x96xf32> to vector<8x8xf32>
    %678 = vector.extract_strided_slice %632 {offsets = [0, 48], sizes = [8, 8], strides = [1, 1]} : vector<16x96xf32> to vector<8x8xf32>
    %679 = vector.extract_strided_slice %632 {offsets = [0, 80], sizes = [8, 8], strides = [1, 1]} : vector<16x96xf32> to vector<8x8xf32>
    %680 = arith.truncf %677 : vector<8x8xf32> to vector<8x8xbf16>
    %681 = arith.truncf %678 : vector<8x8xf32> to vector<8x8xbf16>
    %cst_292 = arith.constant dense<0.000000e+00> : vector<8x8xf32>
    %682 = tpu.matmul %680, %681, %cst_292 {dimension_numbers = #tpu.dot_dimension_numbers<[1], [1], [0], [0], [0, 0, 1, 0], [], []>} : vector<8x8xbf16>, vector<8x8xbf16>, vector<8x8xf32> -> vector<8x8xf32>
    %cst_293 = arith.constant 0.353553385 : f32
    %683 = vector.broadcast %cst_293 : f32 to vector<8x8xf32>
    %684 = arith.mulf %682, %683 : vector<8x8xf32>
    %cst_294 = arith.constant dense<0xFF800000> : vector<8xf32>
    %685 = vector.multi_reduction <maximumf>, %684, %cst_294 [1] : vector<8x8xf32> to vector<8xf32>
    %686 = vector.shape_cast %685 : vector<8xf32> to vector<8x1xf32>
    %687 = vector.broadcast %686 : vector<8x1xf32> to vector<8x8xf32>
    %688 = arith.subf %684, %687 : vector<8x8xf32>
    %689 = math.exp %688 : vector<8x8xf32>
    %cst_295 = arith.constant dense<0.000000e+00> : vector<8xf32>
    %690 = vector.multi_reduction <add>, %689, %cst_295 [1] : vector<8x8xf32> to vector<8xf32>
    %691 = vector.shape_cast %690 : vector<8xf32> to vector<8x1xf32>
    %692 = tpu.reciprocal %691 {approx = true} : vector<8x1xf32> -> vector<8x1xf32>
    %693 = vector.broadcast %692 : vector<8x1xf32> to vector<8x8xf32>
    %694 = arith.mulf %689, %693 : vector<8x8xf32>
    %695 = arith.truncf %694 : vector<8x8xf32> to vector<8x8xbf16>
    %696 = arith.truncf %679 : vector<8x8xf32> to vector<8x8xbf16>
    %cst_296 = arith.constant dense<0.000000e+00> : vector<8x8xf32>
    %697 = tpu.matmul %695, %696, %cst_296 {dimension_numbers = #tpu.dot_dimension_numbers<[1], [0], [0], [1], [0, 0, 1, 1], [], []>} : vector<8x8xbf16>, vector<8x8xbf16>, vector<8x8xf32> -> vector<8x8xf32>
    %c0_297 = arith.constant 0 : index
    %c16_298 = arith.constant 16 : index
    %698 = vector.load %arg45[%c0_297, %c16_298] : memref<16x32xf32, #tpu.memory_space<vmem>>, vector<8x8xf32>
    tpu.vector_store %arg45[%c0_297, %c16_298], %697 {strides = array<i32>} : memref<16x32xf32, #tpu.memory_space<vmem>>, vector<8x8xf32>,
    %699 = vector.extract_strided_slice %632 {offsets = [0, 24], sizes = [8, 8], strides = [1, 1]} : vector<16x96xf32> to vector<8x8xf32>
    %700 = vector.extract_strided_slice %632 {offsets = [0, 56], sizes = [8, 8], strides = [1, 1]} : vector<16x96xf32> to vector<8x8xf32>
    %701 = vector.extract_strided_slice %632 {offsets = [0, 88], sizes = [8, 8], strides = [1, 1]} : vector<16x96xf32> to vector<8x8xf32>
    %702 = arith.truncf %699 : vector<8x8xf32> to vector<8x8xbf16>
    %703 = arith.truncf %700 : vector<8x8xf32> to vector<8x8xbf16>
    %cst_299 = arith.constant dense<0.000000e+00> : vector<8x8xf32>
    %704 = tpu.matmul %702, %703, %cst_299 {dimension_numbers = #tpu.dot_dimension_numbers<[1], [1], [0], [0], [0, 0, 1, 0], [], []>} : vector<8x8xbf16>, vector<8x8xbf16>, vector<8x8xf32> -> vector<8x8xf32>
    %cst_300 = arith.constant 0.353553385 : f32
    %705 = vector.broadcast %cst_300 : f32 to vector<8x8xf32>
    %706 = arith.mulf %704, %705 : vector<8x8xf32>
    %cst_301 = arith.constant dense<0xFF800000> : vector<8xf32>
    %707 = vector.multi_reduction <maximumf>, %706, %cst_301 [1] : vector<8x8xf32> to vector<8xf32>
    %708 = vector.shape_cast %707 : vector<8xf32> to vector<8x1xf32>
    %709 = vector.broadcast %708 : vector<8x1xf32> to vector<8x8xf32>
    %710 = arith.subf %706, %709 : vector<8x8xf32>
    %711 = math.exp %710 : vector<8x8xf32>
    %cst_302 = arith.constant dense<0.000000e+00> : vector<8xf32>
    %712 = vector.multi_reduction <add>, %711, %cst_302 [1] : vector<8x8xf32> to vector<8xf32>
    %713 = vector.shape_cast %712 : vector<8xf32> to vector<8x1xf32>
    %714 = tpu.reciprocal %713 {approx = true} : vector<8x1xf32> -> vector<8x1xf32>
    %715 = vector.broadcast %714 : vector<8x1xf32> to vector<8x8xf32>
    %716 = arith.mulf %711, %715 : vector<8x8xf32>
    %717 = arith.truncf %716 : vector<8x8xf32> to vector<8x8xbf16>
    %718 = arith.truncf %701 : vector<8x8xf32> to vector<8x8xbf16>
    %cst_303 = arith.constant dense<0.000000e+00> : vector<8x8xf32>
    %719 = tpu.matmul %717, %718, %cst_303 {dimension_numbers = #tpu.dot_dimension_numbers<[1], [0], [0], [1], [0, 0, 1, 1], [], []>} : vector<8x8xbf16>, vector<8x8xbf16>, vector<8x8xf32> -> vector<8x8xf32>
    %c0_304 = arith.constant 0 : index
    %c24_305 = arith.constant 24 : index
    %720 = vector.load %arg45[%c0_304, %c24_305] : memref<16x32xf32, #tpu.memory_space<vmem>>, vector<8x8xf32>
    tpu.vector_store %arg45[%c0_304, %c24_305], %719 {strides = array<i32>} : memref<16x32xf32, #tpu.memory_space<vmem>>, vector<8x8xf32>,
    %721 = vector.extract_strided_slice %632 {offsets = [8, 0], sizes = [8, 8], strides = [1, 1]} : vector<16x96xf32> to vector<8x8xf32>
    %722 = vector.extract_strided_slice %632 {offsets = [8, 32], sizes = [8, 8], strides = [1, 1]} : vector<16x96xf32> to vector<8x8xf32>
    %723 = vector.extract_strided_slice %632 {offsets = [8, 64], sizes = [8, 8], strides = [1, 1]} : vector<16x96xf32> to vector<8x8xf32>
    %724 = arith.truncf %721 : vector<8x8xf32> to vector<8x8xbf16>
    %725 = arith.truncf %722 : vector<8x8xf32> to vector<8x8xbf16>
    %cst_306 = arith.constant dense<0.000000e+00> : vector<8x8xf32>
    %726 = tpu.matmul %724, %725, %cst_306 {dimension_numbers = #tpu.dot_dimension_numbers<[1], [1], [0], [0], [0, 0, 1, 0], [], []>} : vector<8x8xbf16>, vector<8x8xbf16>, vector<8x8xf32> -> vector<8x8xf32>
    %cst_307 = arith.constant 0.353553385 : f32
    %727 = vector.broadcast %cst_307 : f32 to vector<8x8xf32>
    %728 = arith.mulf %726, %727 : vector<8x8xf32>
    %cst_308 = arith.constant dense<0xFF800000> : vector<8xf32>
    %729 = vector.multi_reduction <maximumf>, %728, %cst_308 [1] : vector<8x8xf32> to vector<8xf32>
    %730 = vector.shape_cast %729 : vector<8xf32> to vector<8x1xf32>
    %731 = vector.broadcast %730 : vector<8x1xf32> to vector<8x8xf32>
    %732 = arith.subf %728, %731 : vector<8x8xf32>
    %733 = math.exp %732 : vector<8x8xf32>
    %cst_309 = arith.constant dense<0.000000e+00> : vector<8xf32>
    %734 = vector.multi_reduction <add>, %733, %cst_309 [1] : vector<8x8xf32> to vector<8xf32>
    %735 = vector.shape_cast %734 : vector<8xf32> to vector<8x1xf32>
    %736 = tpu.reciprocal %735 {approx = true} : vector<8x1xf32> -> vector<8x1xf32>
    %737 = vector.broadcast %736 : vector<8x1xf32> to vector<8x8xf32>
    %738 = arith.mulf %733, %737 : vector<8x8xf32>
    %739 = arith.truncf %738 : vector<8x8xf32> to vector<8x8xbf16>
    %740 = arith.truncf %723 : vector<8x8xf32> to vector<8x8xbf16>
    %cst_310 = arith.constant dense<0.000000e+00> : vector<8x8xf32>
    %741 = tpu.matmul %739, %740, %cst_310 {dimension_numbers = #tpu.dot_dimension_numbers<[1], [0], [0], [1], [0, 0, 1, 1], [], []>} : vector<8x8xbf16>, vector<8x8xbf16>, vector<8x8xf32> -> vector<8x8xf32>
    %c8_311 = arith.constant 8 : index
    %c0_312 = arith.constant 0 : index
    %742 = vector.load %arg45[%c8_311, %c0_312] : memref<16x32xf32, #tpu.memory_space<vmem>>, vector<8x8xf32>
    tpu.vector_store %arg45[%c8_311, %c0_312], %741 {strides = array<i32>} : memref<16x32xf32, #tpu.memory_space<vmem>>, vector<8x8xf32>,
    %743 = vector.extract_strided_slice %632 {offsets = [8, 8], sizes = [8, 8], strides = [1, 1]} : vector<16x96xf32> to vector<8x8xf32>
    %744 = vector.extract_strided_slice %632 {offsets = [8, 40], sizes = [8, 8], strides = [1, 1]} : vector<16x96xf32> to vector<8x8xf32>
    %745 = vector.extract_strided_slice %632 {offsets = [8, 72], sizes = [8, 8], strides = [1, 1]} : vector<16x96xf32> to vector<8x8xf32>
    %746 = arith.truncf %743 : vector<8x8xf32> to vector<8x8xbf16>
    %747 = arith.truncf %744 : vector<8x8xf32> to vector<8x8xbf16>
    %cst_313 = arith.constant dense<0.000000e+00> : vector<8x8xf32>
    %748 = tpu.matmul %746, %747, %cst_313 {dimension_numbers = #tpu.dot_dimension_numbers<[1], [1], [0], [0], [0, 0, 1, 0], [], []>} : vector<8x8xbf16>, vector<8x8xbf16>, vector<8x8xf32> -> vector<8x8xf32>
    %cst_314 = arith.constant 0.353553385 : f32
    %749 = vector.broadcast %cst_314 : f32 to vector<8x8xf32>
    %750 = arith.mulf %748, %749 : vector<8x8xf32>
    %cst_315 = arith.constant dense<0xFF800000> : vector<8xf32>
    %751 = vector.multi_reduction <maximumf>, %750, %cst_315 [1] : vector<8x8xf32> to vector<8xf32>
    %752 = vector.shape_cast %751 : vector<8xf32> to vector<8x1xf32>
    %753 = vector.broadcast %752 : vector<8x1xf32> to vector<8x8xf32>
    %754 = arith.subf %750, %753 : vector<8x8xf32>
    %755 = math.exp %754 : vector<8x8xf32>
    %cst_316 = arith.constant dense<0.000000e+00> : vector<8xf32>
    %756 = vector.multi_reduction <add>, %755, %cst_316 [1] : vector<8x8xf32> to vector<8xf32>
    %757 = vector.shape_cast %756 : vector<8xf32> to vector<8x1xf32>
    %758 = tpu.reciprocal %757 {approx = true} : vector<8x1xf32> -> vector<8x1xf32>
    %759 = vector.broadcast %758 : vector<8x1xf32> to vector<8x8xf32>
    %760 = arith.mulf %755, %759 : vector<8x8xf32>
    %761 = arith.truncf %760 : vector<8x8xf32> to vector<8x8xbf16>
    %762 = arith.truncf %745 : vector<8x8xf32> to vector<8x8xbf16>
    %cst_317 = arith.constant dense<0.000000e+00> : vector<8x8xf32>
    %763 = tpu.matmul %761, %762, %cst_317 {dimension_numbers = #tpu.dot_dimension_numbers<[1], [0], [0], [1], [0, 0, 1, 1], [], []>} : vector<8x8xbf16>, vector<8x8xbf16>, vector<8x8xf32> -> vector<8x8xf32>
    %c8_318 = arith.constant 8 : index
    %c8_319 = arith.constant 8 : index
    %764 = vector.load %arg45[%c8_318, %c8_319] : memref<16x32xf32, #tpu.memory_space<vmem>>, vector<8x8xf32>
    tpu.vector_store %arg45[%c8_318, %c8_319], %763 {strides = array<i32>} : memref<16x32xf32, #tpu.memory_space<vmem>>, vector<8x8xf32>,
    %765 = vector.extract_strided_slice %632 {offsets = [8, 16], sizes = [8, 8], strides = [1, 1]} : vector<16x96xf32> to vector<8x8xf32>
    %766 = vector.extract_strided_slice %632 {offsets = [8, 48], sizes = [8, 8], strides = [1, 1]} : vector<16x96xf32> to vector<8x8xf32>
    %767 = vector.extract_strided_slice %632 {offsets = [8, 80], sizes = [8, 8], strides = [1, 1]} : vector<16x96xf32> to vector<8x8xf32>
    %768 = arith.truncf %765 : vector<8x8xf32> to vector<8x8xbf16>
    %769 = arith.truncf %766 : vector<8x8xf32> to vector<8x8xbf16>
    %cst_320 = arith.constant dense<0.000000e+00> : vector<8x8xf32>
    %770 = tpu.matmul %768, %769, %cst_320 {dimension_numbers = #tpu.dot_dimension_numbers<[1], [1], [0], [0], [0, 0, 1, 0], [], []>} : vector<8x8xbf16>, vector<8x8xbf16>, vector<8x8xf32> -> vector<8x8xf32>
    %cst_321 = arith.constant 0.353553385 : f32
    %771 = vector.broadcast %cst_321 : f32 to vector<8x8xf32>
    %772 = arith.mulf %770, %771 : vector<8x8xf32>
    %cst_322 = arith.constant dense<0xFF800000> : vector<8xf32>
    %773 = vector.multi_reduction <maximumf>, %772, %cst_322 [1] : vector<8x8xf32> to vector<8xf32>
    %774 = vector.shape_cast %773 : vector<8xf32> to vector<8x1xf32>
    %775 = vector.broadcast %774 : vector<8x1xf32> to vector<8x8xf32>
    %776 = arith.subf %772, %775 : vector<8x8xf32>
    %777 = math.exp %776 : vector<8x8xf32>
    %cst_323 = arith.constant dense<0.000000e+00> : vector<8xf32>
    %778 = vector.multi_reduction <add>, %777, %cst_323 [1] : vector<8x8xf32> to vector<8xf32>
    %779 = vector.shape_cast %778 : vector<8xf32> to vector<8x1xf32>
    %780 = tpu.reciprocal %779 {approx = true} : vector<8x1xf32> -> vector<8x1xf32>
    %781 = vector.broadcast %780 : vector<8x1xf32> to vector<8x8xf32>
    %782 = arith.mulf %777, %781 : vector<8x8xf32>
    %783 = arith.truncf %782 : vector<8x8xf32> to vector<8x8xbf16>
    %784 = arith.truncf %767 : vector<8x8xf32> to vector<8x8xbf16>
    %cst_324 = arith.constant dense<0.000000e+00> : vector<8x8xf32>
    %785 = tpu.matmul %783, %784, %cst_324 {dimension_numbers = #tpu.dot_dimension_numbers<[1], [0], [0], [1], [0, 0, 1, 1], [], []>} : vector<8x8xbf16>, vector<8x8xbf16>, vector<8x8xf32> -> vector<8x8xf32>
    %c8_325 = arith.constant 8 : index
    %c16_326 = arith.constant 16 : index
    %786 = vector.load %arg45[%c8_325, %c16_326] : memref<16x32xf32, #tpu.memory_space<vmem>>, vector<8x8xf32>
    tpu.vector_store %arg45[%c8_325, %c16_326], %785 {strides = array<i32>} : memref<16x32xf32, #tpu.memory_space<vmem>>, vector<8x8xf32>,
    %787 = vector.extract_strided_slice %632 {offsets = [8, 24], sizes = [8, 8], strides = [1, 1]} : vector<16x96xf32> to vector<8x8xf32>
    %788 = vector.extract_strided_slice %632 {offsets = [8, 56], sizes = [8, 8], strides = [1, 1]} : vector<16x96xf32> to vector<8x8xf32>
    %789 = vector.extract_strided_slice %632 {offsets = [8, 88], sizes = [8, 8], strides = [1, 1]} : vector<16x96xf32> to vector<8x8xf32>
    %790 = arith.truncf %787 : vector<8x8xf32> to vector<8x8xbf16>
    %791 = arith.truncf %788 : vector<8x8xf32> to vector<8x8xbf16>
    %cst_327 = arith.constant dense<0.000000e+00> : vector<8x8xf32>
    %792 = tpu.matmul %790, %791, %cst_327 {dimension_numbers = #tpu.dot_dimension_numbers<[1], [1], [0], [0], [0, 0, 1, 0], [], []>} : vector<8x8xbf16>, vector<8x8xbf16>, vector<8x8xf32> -> vector<8x8xf32>
    %cst_328 = arith.constant 0.353553385 : f32
    %793 = vector.broadcast %cst_328 : f32 to vector<8x8xf32>
    %794 = arith.mulf %792, %793 : vector<8x8xf32>
    %cst_329 = arith.constant dense<0xFF800000> : vector<8xf32>
    %795 = vector.multi_reduction <maximumf>, %794, %cst_329 [1] : vector<8x8xf32> to vector<8xf32>
    %796 = vector.shape_cast %795 : vector<8xf32> to vector<8x1xf32>
    %797 = vector.broadcast %796 : vector<8x1xf32> to vector<8x8xf32>
    %798 = arith.subf %794, %797 : vector<8x8xf32>
    %799 = math.exp %798 : vector<8x8xf32>
    %cst_330 = arith.constant dense<0.000000e+00> : vector<8xf32>
    %800 = vector.multi_reduction <add>, %799, %cst_330 [1] : vector<8x8xf32> to vector<8xf32>
    %801 = vector.shape_cast %800 : vector<8xf32> to vector<8x1xf32>
    %802 = tpu.reciprocal %801 {approx = true} : vector<8x1xf32> -> vector<8x1xf32>
    %803 = vector.broadcast %802 : vector<8x1xf32> to vector<8x8xf32>
    %804 = arith.mulf %799, %803 : vector<8x8xf32>
    %805 = arith.truncf %804 : vector<8x8xf32> to vector<8x8xbf16>
    %806 = arith.truncf %789 : vector<8x8xf32> to vector<8x8xbf16>
    %cst_331 = arith.constant dense<0.000000e+00> : vector<8x8xf32>
    %807 = tpu.matmul %805, %806, %cst_331 {dimension_numbers = #tpu.dot_dimension_numbers<[1], [0], [0], [1], [0, 0, 1, 1], [], []>} : vector<8x8xbf16>, vector<8x8xbf16>, vector<8x8xf32> -> vector<8x8xf32>
    %c8_332 = arith.constant 8 : index
    %c24_333 = arith.constant 24 : index
    %808 = vector.load %arg45[%c8_332, %c24_333] : memref<16x32xf32, #tpu.memory_space<vmem>>, vector<8x8xf32>
    tpu.vector_store %arg45[%c8_332, %c24_333], %807 {strides = array<i32>} : memref<16x32xf32, #tpu.memory_space<vmem>>, vector<8x8xf32>,
    %c0_334 = arith.constant 0 : index
    %c0_335 = arith.constant 0 : index
    %809 = vector.load %arg45[%c0_334, %c0_335] : memref<16x32xf32, #tpu.memory_space<vmem>>, vector<16x32xf32>
    %810 = arith.truncf %809 : vector<16x32xf32> to vector<16x32xbf16>
    %cst_336 = arith.constant dense<0.000000e+00> : vector<16x32xf32>
    %811 = tpu.matmul %810, %610, %cst_336 {dimension_numbers = #tpu.dot_dimension_numbers<[1], [0], [0], [1], [0, 0, 1, 1], [], []>} : vector<16x32xbf16>, vector<32x32xbf16>, vector<16x32xf32> -> vector<16x32xf32>
    %812 = vector.broadcast %612 : vector<1x32xf32> to vector<16x32xf32>
    %813 = arith.addf %811, %812 : vector<16x32xf32>
    %814 = arith.addf %604, %813 : vector<16x32xf32>
    %cst_337 = arith.constant dense<0.000000e+00> : vector<16xf32>
    %815 = vector.multi_reduction <add>, %814, %cst_337 [1] : vector<16x32xf32> to vector<16xf32>
    %816 = vector.shape_cast %815 : vector<16xf32> to vector<16x1xf32>
    %cst_338 = arith.constant 3.200000e+01 : f32
    %817 = vector.broadcast %cst_338 : f32 to vector<16x1xf32>
    %818 = arith.divf %816, %817 : vector<16x1xf32>
    %819 = vector.broadcast %818 : vector<16x1xf32> to vector<16x32xf32>
    %820 = arith.subf %814, %819 : vector<16x32xf32>
    %821 = arith.mulf %820, %820 : vector<16x32xf32>
    %cst_339 = arith.constant dense<0.000000e+00> : vector<16xf32>
    %822 = vector.multi_reduction <add>, %821, %cst_339 [1] : vector<16x32xf32> to vector<16xf32>
    %823 = vector.shape_cast %822 : vector<16xf32> to vector<16x1xf32>
    %cst_340 = arith.constant 3.200000e+01 : f32
    %824 = vector.broadcast %cst_340 : f32 to vector<16x1xf32>
    %825 = arith.divf %823, %824 : vector<16x1xf32>
    %826 = vector.broadcast %818 : vector<16x1xf32> to vector<16x32xf32>
    %827 = arith.subf %814, %826 : vector<16x32xf32>
    %cst_341 = arith.constant 9.99999996E-13 : f32
    %828 = vector.broadcast %cst_341 : f32 to vector<16x1xf32>
    %829 = arith.addf %825, %828 : vector<16x1xf32>
    %830 = math.rsqrt %829 : vector<16x1xf32>
    %831 = vector.broadcast %830 : vector<16x1xf32> to vector<16x32xf32>
    %832 = arith.mulf %827, %831 : vector<16x32xf32>
    %833 = vector.broadcast %614 : vector<1x32xf32> to vector<16x32xf32>
    %834 = arith.mulf %832, %833 : vector<16x32xf32>
    %835 = vector.broadcast %616 : vector<1x32xf32> to vector<16x32xf32>
    %836 = arith.addf %834, %835 : vector<16x32xf32>
    %837 = arith.truncf %836 : vector<16x32xf32> to vector<16x32xbf16>
    %cst_342 = arith.constant dense<0.000000e+00> : vector<16x64xf32>
    %838 = tpu.matmul %837, %618, %cst_342 {dimension_numbers = #tpu.dot_dimension_numbers<[1], [0], [0], [1], [0, 0, 1, 1], [], []>} : vector<16x32xbf16>, vector<32x64xbf16>, vector<16x64xf32> -> vector<16x64xf32>
    %839 = vector.broadcast %620 : vector<1x64xf32> to vector<16x64xf32>
    %840 = arith.addf %838, %839 : vector<16x64xf32>
    %841 = arith.mulf %840, %840 : vector<16x64xf32>
    %842 = arith.mulf %840, %841 : vector<16x64xf32>
    %cst_343 = arith.constant 4.471500e-02 : f32
    %843 = vector.broadcast %cst_343 : f32 to vector<16x64xf32>
    %844 = arith.mulf %843, %842 : vector<16x64xf32>
    %845 = arith.addf %840, %844 : vector<16x64xf32>
    %cst_344 = arith.constant 0.797884583 : f32
    %846 = vector.broadcast %cst_344 : f32 to vector<16x64xf32>
    %847 = arith.mulf %846, %845 : vector<16x64xf32>
    %848 = math.tanh %847 : vector<16x64xf32>
    %cst_345 = arith.constant 1.000000e+00 : f32
    %849 = vector.broadcast %cst_345 : f32 to vector<16x64xf32>
    %850 = arith.addf %849, %848 : vector<16x64xf32>
    %cst_346 = arith.constant 5.000000e-01 : f32
    %851 = vector.broadcast %cst_346 : f32 to vector<16x64xf32>
    %852 = arith.mulf %851, %850 : vector<16x64xf32>
    %853 = arith.mulf %840, %852 : vector<16x64xf32>
    %854 = arith.truncf %853 : vector<16x64xf32> to vector<16x64xbf16>
    %cst_347 = arith.constant dense<0.000000e+00> : vector<16x32xf32>
    %855 = tpu.matmul %854, %622, %cst_347 {dimension_numbers = #tpu.dot_dimension_numbers<[1], [0], [0], [1], [0, 0, 1, 1], [], []>} : vector<16x64xbf16>, vector<64x32xbf16>, vector<16x32xf32> -> vector<16x32xf32>
    %856 = vector.broadcast %624 : vector<1x32xf32> to vector<16x32xf32>
    %857 = arith.addf %855, %856 : vector<16x32xf32>
    %858 = arith.addf %836, %857 : vector<16x32xf32>
    %cst_348 = arith.constant dense<0.000000e+00> : vector<16xf32>
    %859 = vector.multi_reduction <add>, %858, %cst_348 [1] : vector<16x32xf32> to vector<16xf32>
    %860 = vector.shape_cast %859 : vector<16xf32> to vector<16x1xf32>
    %cst_349 = arith.constant 3.200000e+01 : f32
    %861 = vector.broadcast %cst_349 : f32 to vector<16x1xf32>
    %862 = arith.divf %860, %861 : vector<16x1xf32>
    %863 = vector.broadcast %862 : vector<16x1xf32> to vector<16x32xf32>
    %864 = arith.subf %858, %863 : vector<16x32xf32>
    %865 = arith.mulf %864, %864 : vector<16x32xf32>
    %cst_350 = arith.constant dense<0.000000e+00> : vector<16xf32>
    %866 = vector.multi_reduction <add>, %865, %cst_350 [1] : vector<16x32xf32> to vector<16xf32>
    %867 = vector.shape_cast %866 : vector<16xf32> to vector<16x1xf32>
    %cst_351 = arith.constant 3.200000e+01 : f32
    %868 = vector.broadcast %cst_351 : f32 to vector<16x1xf32>
    %869 = arith.divf %867, %868 : vector<16x1xf32>
    %870 = vector.broadcast %862 : vector<16x1xf32> to vector<16x32xf32>
    %871 = arith.subf %858, %870 : vector<16x32xf32>
    %cst_352 = arith.constant 9.99999996E-13 : f32
    %872 = vector.broadcast %cst_352 : f32 to vector<16x1xf32>
    %873 = arith.addf %869, %872 : vector<16x1xf32>
    %874 = math.rsqrt %873 : vector<16x1xf32>
    %875 = vector.broadcast %874 : vector<16x1xf32> to vector<16x32xf32>
    %876 = arith.mulf %871, %875 : vector<16x32xf32>
    %877 = vector.broadcast %626 : vector<1x32xf32> to vector<16x32xf32>
    %878 = arith.mulf %876, %877 : vector<16x32xf32>
    %879 = vector.broadcast %628 : vector<1x32xf32> to vector<16x32xf32>
    %880 = arith.addf %878, %879 : vector<16x32xf32>
    %c0_353 = arith.constant 0 : index
    %c0_354 = arith.constant 0 : index
    %881 = vector.load %arg36[%c0_353, %c0_354] : memref<32x32xbf16, #tpu.memory_space<vmem>>, vector<32x32xbf16>
    %882 = arith.truncf %880 : vector<16x32xf32> to vector<16x32xbf16>
    %cst_355 = arith.constant dense<0.000000e+00> : vector<16x32xf32>
    %883 = tpu.matmul %882, %881, %cst_355 {dimension_numbers = #tpu.dot_dimension_numbers<[1], [0], [0], [1], [0, 0, 1, 1], [], []>} : vector<16x32xbf16>, vector<32x32xbf16>, vector<16x32xf32> -> vector<16x32xf32>
    %c0_356 = arith.constant 0 : index
    %c0_357 = arith.constant 0 : index
    %884 = vector.load %arg37[%c0_356, %c0_357] : memref<1x32xf32, #tpu.memory_space<vmem>>, vector<1x32xf32>
    %885 = vector.broadcast %884 : vector<1x32xf32> to vector<16x32xf32>
    %886 = arith.addf %883, %885 : vector<16x32xf32>
    %887 = arith.mulf %886, %886 : vector<16x32xf32>
    %888 = arith.mulf %886, %887 : vector<16x32xf32>
    %cst_358 = arith.constant 4.471500e-02 : f32
    %889 = vector.broadcast %cst_358 : f32 to vector<16x32xf32>
    %890 = arith.mulf %889, %888 : vector<16x32xf32>
    %891 = arith.addf %886, %890 : vector<16x32xf32>
    %cst_359 = arith.constant 0.797884583 : f32
    %892 = vector.broadcast %cst_359 : f32 to vector<16x32xf32>
    %893 = arith.mulf %892, %891 : vector<16x32xf32>
    %894 = math.tanh %893 : vector<16x32xf32>
    %cst_360 = arith.constant 1.000000e+00 : f32
    %895 = vector.broadcast %cst_360 : f32 to vector<16x32xf32>
    %896 = arith.addf %895, %894 : vector<16x32xf32>
    %cst_361 = arith.constant 5.000000e-01 : f32
    %897 = vector.broadcast %cst_361 : f32 to vector<16x32xf32>
    %898 = arith.mulf %897, %896 : vector<16x32xf32>
    %899 = arith.mulf %886, %898 : vector<16x32xf32>
    %c0_362 = arith.constant 0 : index
    %c0_363 = arith.constant 0 : index
    %900 = vector.load %arg38[%c0_362, %c0_363] : memref<1x32xf32, #tpu.memory_space<vmem>>, vector<1x32xf32>
    %c0_364 = arith.constant 0 : index
    %c0_365 = arith.constant 0 : index
    %901 = vector.load %arg39[%c0_364, %c0_365] : memref<1x32xf32, #tpu.memory_space<vmem>>, vector<1x32xf32>
    %cst_366 = arith.constant dense<0.000000e+00> : vector<16xf32>
    %902 = vector.multi_reduction <add>, %899, %cst_366 [1] : vector<16x32xf32> to vector<16xf32>
    %903 = vector.shape_cast %902 : vector<16xf32> to vector<16x1xf32>
    %cst_367 = arith.constant 3.200000e+01 : f32
    %904 = vector.broadcast %cst_367 : f32 to vector<16x1xf32>
    %905 = arith.divf %903, %904 : vector<16x1xf32>
    %906 = vector.broadcast %905 : vector<16x1xf32> to vector<16x32xf32>
    %907 = arith.subf %899, %906 : vector<16x32xf32>
    %908 = arith.mulf %907, %907 : vector<16x32xf32>
    %cst_368 = arith.constant dense<0.000000e+00> : vector<16xf32>
    %909 = vector.multi_reduction <add>, %908, %cst_368 [1] : vector<16x32xf32> to vector<16xf32>
    %910 = vector.shape_cast %909 : vector<16xf32> to vector<16x1xf32>
    %cst_369 = arith.constant 3.200000e+01 : f32
    %911 = vector.broadcast %cst_369 : f32 to vector<16x1xf32>
    %912 = arith.divf %910, %911 : vector<16x1xf32>
    %913 = vector.broadcast %905 : vector<16x1xf32> to vector<16x32xf32>
    %914 = arith.subf %899, %913 : vector<16x32xf32>
    %cst_370 = arith.constant 9.99999996E-13 : f32
    %915 = vector.broadcast %cst_370 : f32 to vector<16x1xf32>
    %916 = arith.addf %912, %915 : vector<16x1xf32>
    %917 = math.rsqrt %916 : vector<16x1xf32>
    %918 = vector.broadcast %917 : vector<16x1xf32> to vector<16x32xf32>
    %919 = arith.mulf %914, %918 : vector<16x32xf32>
    %920 = vector.broadcast %900 : vector<1x32xf32> to vector<16x32xf32>
    %921 = arith.mulf %919, %920 : vector<16x32xf32>
    %922 = vector.broadcast %901 : vector<1x32xf32> to vector<16x32xf32>
    %923 = arith.addf %921, %922 : vector<16x32xf32>
    %c0_371 = arith.constant 0 : index
    %c0_372 = arith.constant 0 : index
    %924 = vector.load %arg40[%c0_371, %c0_372] : memref<32x128xbf16, #tpu.memory_space<vmem>>, vector<32x128xbf16>
    %925 = arith.truncf %923 : vector<16x32xf32> to vector<16x32xbf16>
    %cst_373 = arith.constant dense<0.000000e+00> : vector<16x128xf32>
    %926 = tpu.matmul %925, %924, %cst_373 {dimension_numbers = #tpu.dot_dimension_numbers<[1], [0], [0], [1], [0, 0, 1, 1], [], []>} : vector<16x32xbf16>, vector<32x128xbf16>, vector<16x128xf32> -> vector<16x128xf32>
    %c0_374 = arith.constant 0 : index
    %c0_375 = arith.constant 0 : index
    %927 = vector.load %arg41[%c0_374, %c0_375] : memref<1x128xf32, #tpu.memory_space<vmem>>, vector<1x128xf32>
    %928 = vector.broadcast %927 : vector<1x128xf32> to vector<16x128xf32>
    %929 = arith.addf %926, %928 : vector<16x128xf32>
    %c0_376 = arith.constant 0 : index
    %c0_377 = arith.constant 0 : index
    %930 = vector.load %arg43[%c0_376, %c0_377] : memref<16x128xf32, #tpu.memory_space<vmem>>, vector<16x128xf32>
    tpu.vector_store %arg43[%c0_376, %c0_377], %929 {strides = array<i32>} : memref<16x128xf32, #tpu.memory_space<vmem>>, vector<16x128xf32>,
    %cst_378 = arith.constant dense<0xFF800000> : vector<16xf32>
    %931 = vector.multi_reduction <maximumf>, %929, %cst_378 [1] : vector<16x128xf32> to vector<16xf32>
    %932 = vector.shape_cast %931 : vector<16xf32> to vector<16x1xf32>
    %933 = vector.broadcast %932 : vector<16x1xf32> to vector<16x128xf32>
    %934 = arith.subf %929, %933 : vector<16x128xf32>
    %935 = math.exp %934 : vector<16x128xf32>
    %cst_379 = arith.constant dense<0.000000e+00> : vector<16xf32>
    %936 = vector.multi_reduction <add>, %935, %cst_379 [1] : vector<16x128xf32> to vector<16xf32>
    %937 = vector.shape_cast %936 : vector<16xf32> to vector<16x1xf32>
    %938 = math.log %937 : vector<16x1xf32>
    %939 = arith.addf %938, %932 : vector<16x1xf32>
    %940 = vector.broadcast %939 : vector<16x1xf32> to vector<16x128xf32>
    %941 = arith.subf %929, %940 : vector<16x128xf32>
    %c0_380 = arith.constant 0 : index
    %c0_381 = arith.constant 0 : index
    %942 = vector.load %arg42[%c0_380, %c0_381] : memref<16x1xi32, #tpu.memory_space<vmem>>, vector<16x1xi32>
    %943 = tpu.iota {dimensions = array<i32: 1>} : vector<16x128xi32>
    %944 = vector.broadcast %942 : vector<16x1xi32> to vector<16x128xi32>
    %945 = arith.cmpi eq, %943, %944 : vector<16x128xi32>
    %cst_382 = arith.constant 0.000000e+00 : f32
    %946 = vector.broadcast %cst_382 : f32 to vector<16x128xf32>
    %947 = arith.select %945, %941, %946 : vector<16x128xi1>, vector<16x128xf32>
    %cst_383 = arith.constant dense<0.000000e+00> : vector<16xf32>
    %948 = vector.multi_reduction <add>, %947, %cst_383 [1] : vector<16x128xf32> to vector<16xf32>
    %949 = vector.shape_cast %948 : vector<16xf32> to vector<16x1xf32>
    %cst_384 = arith.constant 0.000000e+00 : f32
    %950 = vector.broadcast %cst_384 : f32 to vector<16x1xf32>
    %951 = arith.subf %950, %949 : vector<16x1xf32>
    %c0_i32 = arith.constant 0 : i32
    %952 = vector.broadcast %c0_i32 : i32 to vector<16x1xi32>
    %953 = arith.cmpi sge, %942, %952 : vector<16x1xi32>
    %954 = arith.extui %953 : vector<16x1xi1> to vector<16x1xi32>
    %955 = arith.sitofp %954 : vector<16x1xi32> to vector<16x1xf32>
    %956 = arith.mulf %951, %955 : vector<16x1xf32>
    %957 = vector.shape_cast %956 : vector<16x1xf32> to vector<1x16x1xf32>
    %cst_385 = arith.constant dense<0.000000e+00> : vector<1xf32>
    %958 = vector.multi_reduction <add>, %957, %cst_385 [1, 2] : vector<1x16x1xf32> to vector<1xf32>
    %959 = vector.shape_cast %958 : vector<1xf32> to vector<1x1x1xf32>
    %960 = vector.extract %959[0, 0, 0] : f32 from vector<1x1x1xf32>
    %961 = vector.shape_cast %955 : vector<16x1xf32> to vector<1x16x1xf32>
    %cst_386 = arith.constant dense<0.000000e+00> : vector<1xf32>
    %962 = vector.multi_reduction <add>, %961, %cst_386 [1, 2] : vector<1x16x1xf32> to vector<1xf32>
    %963 = vector.shape_cast %962 : vector<1xf32> to vector<1x1x1xf32>
    %964 = vector.extract %963[0, 0, 0] : f32 from vector<1x1x1xf32>
    %965 = arith.divf %960, %964 : f32
    %c0_387 = arith.constant 0 : index
    %966 = memref.load %arg44[%c0_387] : memref<1xf32, #tpu.memory_space<smem>>
    memref.store %965, %arg44[%c0_387] : memref<1xf32, #tpu.memory_space<smem>>
    return
  }
  func.func @transform_0(%arg0: i32) -> (i32, i32) {
    %c0_i32 = arith.constant 0 : i32
    %c0_i32_0 = arith.constant 0 : i32
    %c0_i32_1 = arith.constant 0 : i32
    return %c0_i32, %c0_i32_0 : i32, i32
  }
  func.func @transform_1(%arg0: i32) -> (i32, i32) {
    %c0_i32 = arith.constant 0 : i32
    %c0_i32_0 = arith.constant 0 : i32
    %c0_i32_1 = arith.constant 0 : i32
    return %c0_i32, %c0_i32_0 : i32, i32
  }
  func.func @transform_2(%arg0: i32) -> (i32, i32) {
    %c0_i32 = arith.constant 0 : i32
    %c0_i32_0 = arith.constant 0 : i32
    %c0_i32_1 = arith.constant 0 : i32
    return %c0_i32, %c0_i32_0 : i32, i32
  }
  func.func @transform_3(%arg0: i32) -> (i32, i32, i32) {
    %c0_i32 = arith.constant 0 : i32
    %c0_i32_0 = arith.constant 0 : i32
    %c0_i32_1 = arith.constant 0 : i32
    %c0_i32_2 = arith.constant 0 : i32
    return %c0_i32, %c0_i32_0, %c0_i32_1 : i32, i32, i32
  }
  func.func @transform_4(%arg0: i32) -> (i32, i32, i32) {
    %c0_i32 = arith.constant 0 : i32
    %c0_i32_0 = arith.constant 0 : i32
    %c0_i32_1 = arith.constant 0 : i32
    %c0_i32_2 = arith.constant 0 : i32
    return %c0_i32, %c0_i32_0, %c0_i32_1 : i32, i32, i32
  }
  func.func @transform_5(%arg0: i32) -> (i32, i32, i32) {
    %c0_i32 = arith.constant 0 : i32
    %c0_i32_0 = arith.constant 0 : i32
    %c0_i32_1 = arith.constant 0 : i32
    %c0_i32_2 = arith.constant 0 : i32
    return %c0_i32, %c0_i32_0, %c0_i32_1 : i32, i32, i32
  }
  func.func @transform_6(%arg0: i32) -> (i32, i32, i32) {
    %c0_i32 = arith.constant 0 : i32
    %c0_i32_0 = arith.constant 0 : i32
    %c0_i32_1 = arith.constant 0 : i32
    %c0_i32_2 = arith.constant 0 : i32
    return %c0_i32, %c0_i32_0, %c0_i32_1 : i32, i32, i32
  }
  func.func @transform_7(%arg0: i32) -> (i32, i32, i32) {
    %c0_i32 = arith.constant 0 : i32
    %c0_i32_0 = arith.constant 0 : i32
    %c0_i32_1 = arith.constant 0 : i32
    %c0_i32_2 = arith.constant 0 : i32
    return %c0_i32, %c0_i32_0, %c0_i32_1 : i32, i32, i32
  }
  func.func @transform_8(%arg0: i32) -> (i32, i32, i32) {
    %c0_i32 = arith.constant 0 : i32
    %c0_i32_0 = arith.constant 0 : i32
    %c0_i32_1 = arith.constant 0 : i32
    %c0_i32_2 = arith.constant 0 : i32
    return %c0_i32, %c0_i32_0, %c0_i32_1 : i32, i32, i32
  }
  func.func @transform_9(%arg0: i32) -> (i32, i32, i32) {
    %c0_i32 = arith.constant 0 : i32
    %c0_i32_0 = arith.constant 0 : i32
    %c0_i32_1 = arith.constant 0 : i32
    %c0_i32_2 = arith.constant 0 : i32
    return %c0_i32, %c0_i32_0, %c0_i32_1 : i32, i32, i32
  }
  func.func @transform_10(%arg0: i32) -> (i32, i32, i32) {
    %c0_i32 = arith.constant 0 : i32
    %c0_i32_0 = arith.constant 0 : i32
    %c0_i32_1 = arith.constant 0 : i32
    %c0_i32_2 = arith.constant 0 : i32
    return %c0_i32, %c0_i32_0, %c0_i32_1 : i32, i32, i32
  }
  func.func @transform_11(%arg0: i32) -> (i32, i32, i32) {
    %c0_i32 = arith.constant 0 : i32
    %c0_i32_0 = arith.constant 0 : i32
    %c0_i32_1 = arith.constant 0 : i32
    %c0_i32_2 = arith.constant 0 : i32
    return %c0_i32, %c0_i32_0, %c0_i32_1 : i32, i32, i32
  }
  func.func @transform_12(%arg0: i32) -> (i32, i32, i32) {
    %c0_i32 = arith.constant 0 : i32
    %c0_i32_0 = arith.constant 0 : i32
    %c0_i32_1 = arith.constant 0 : i32
    %c0_i32_2 = arith.constant 0 : i32
    return %c0_i32, %c0_i32_0, %c0_i32_1 : i32, i32, i32
  }
  func.func @transform_13(%arg0: i32) -> (i32, i32, i32) {
    %c0_i32 = arith.constant 0 : i32
    %c0_i32_0 = arith.constant 0 : i32
    %c0_i32_1 = arith.constant 0 : i32
    %c0_i32_2 = arith.constant 0 : i32
    return %c0_i32, %c0_i32_0, %c0_i32_1 : i32, i32, i32
  }
  func.func @transform_14(%arg0: i32) -> (i32, i32, i32) {
    %c0_i32 = arith.constant 0 : i32
    %c0_i32_0 = arith.constant 0 : i32
    %c0_i32_1 = arith.constant 0 : i32
    %c0_i32_2 = arith.constant 0 : i32
    return %c0_i32, %c0_i32_0, %c0_i32_1 : i32, i32, i32
  }
  func.func @transform_15(%arg0: i32) -> (i32, i32) {
    %c0_i32 = arith.constant 0 : i32
    %c0_i32_0 = arith.constant 0 : i32
    %c0_i32_1 = arith.constant 0 : i32
    return %c0_i32, %c0_i32_0 : i32, i32
  }
  func.func @transform_16(%arg0: i32) -> (i32, i32) {
    %c0_i32 = arith.constant 0 : i32
    %c0_i32_0 = arith.constant 0 : i32
    %c0_i32_1 = arith.constant 0 : i32
    return %c0_i32, %c0_i32_0 : i32, i32
  }
  func.func @transform_17(%arg0: i32) -> (i32, i32) {
    %c0_i32 = arith.constant 0 : i32
    %c0_i32_0 = arith.constant 0 : i32
    %c0_i32_1 = arith.constant 0 : i32
    return %c0_i32, %c0_i32_0 : i32, i32
  }
  func.func @transform_18(%arg0: i32) -> (i32, i32) {
    %c0_i32 = arith.constant 0 : i32
    %c0_i32_0 = arith.constant 0 : i32
    %c0_i32_1 = arith.constant 0 : i32
    return %c0_i32, %c0_i32_0 : i32, i32
  }
  func.func @transform_19(%arg0: i32) -> (i32, i32) {
    %c0_i32 = arith.constant 0 : i32
    %c0_i32_0 = arith.constant 0 : i32
    %c0_i32_1 = arith.constant 0 : i32
    return %c0_i32, %c0_i32_0 : i32, i32
  }
  func.func @transform_20(%arg0: i32) -> (i32, i32) {
    %c0_i32 = arith.constant 0 : i32
    %c0_i32_0 = arith.constant 0 : i32
    %c0_i32_1 = arith.constant 0 : i32
    return %c0_i32, %c0_i32_0 : i32, i32
  }
  func.func @transform_21(%arg0: i32) -> (i32, i32) {
    %c0_i32 = arith.constant 0 : i32
    %c0_i32_0 = arith.constant 0 : i32
    %c0_i32_1 = arith.constant 0 : i32
    return %c0_i32, %c0_i32_0 : i32, i32
  }
  func.func @transform_22(%arg0: i32) -> (i32, i32) {
    %c0_i32 = arith.constant 0 : i32
    %c0_i32_0 = arith.constant 0 : i32
    %c0_i32_1 = arith.constant 0 : i32
    return %c0_i32, %c0_i32_0 : i32, i32
  }
  func.func @transform_23(%arg0: i32) -> (i32, i32) {
    %c0_i32 = arith.constant 0 : i32
    %c0_i32_0 = arith.constant 0 : i32
    %c0_i32_1 = arith.constant 0 : i32
    return %c0_i32, %c0_i32_0 : i32, i32
  }
  func.func @transform_24(%arg0: i32) -> (i32, i32) {
    %c0_i32 = arith.constant 0 : i32
    %c0_i32_0 = arith.constant 0 : i32
    %c0_i32_1 = arith.constant 0 : i32
    return %c0_i32, %c0_i32_0 : i32, i32
  }
  func.func @transform_25(%arg0: i32) -> (i32, i32) {
    %c0_i32 = arith.constant 0 : i32
    %c0_i32_0 = arith.constant 0 : i32
    %c0_i32_1 = arith.constant 0 : i32
    return %c0_i32, %c0_i32_0 : i32, i32
  }
  func.func @transform_26(%arg0: i32) -> (i32, i32) {
    %c0_i32 = arith.constant 0 : i32
    %c0_i32_0 = arith.constant 0 : i32
    %c0_i32_1 = arith.constant 0 : i32
    return %c0_i32, %c0_i32_0 : i32, i32
  }
  func.func @transform_27(%arg0: i32) -> (i32, i32) {
    %c0_i32 = arith.constant 0 : i32
    %c0_i32_0 = arith.constant 0 : i32
    %c0_i32_1 = arith.constant 0 : i32
    return %c0_i32, %c0_i32_0 : i32, i32
  }
  func.func @transform_28(%arg0: i32) -> (i32, i32) {
    %c0_i32 = arith.constant 0 : i32
    %c0_i32_0 = arith.constant 0 : i32
    %c0_i32_1 = arith.constant 0 : i32
    return %c0_i32, %c0_i32_0 : i32, i32
  }
  func.func @transform_29(%arg0: i32) -> (i32, i32) {
    %c0_i32 = arith.constant 0 : i32
    %c0_i32_0 = arith.constant 0 : i32
    %c0_i32_1 = arith.constant 0 : i32
    return %c0_i32, %c0_i32_0 : i32, i32
  }
  func.func @transform_30(%arg0: i32) -> (i32, i32) {
    %c0_i32 = arith.constant 0 : i32
    %c0_i32_0 = arith.constant 0 : i32
    %c0_i32_1 = arith.constant 0 : i32
    return %c0_i32, %c0_i32_0 : i32, i32
  }
  func.func @transform_31(%arg0: i32) -> (i32, i32) {
    %c0_i32 = arith.constant 0 : i32
    %c0_i32_0 = arith.constant 0 : i32
    %c0_i32_1 = arith.constant 0 : i32
    return %c0_i32, %c0_i32_0 : i32, i32
  }
  func.func @transform_32(%arg0: i32) -> (i32, i32) {
    %c0_i32 = arith.constant 0 : i32
    %c0_i32_0 = arith.constant 0 : i32
    %c0_i32_1 = arith.constant 0 : i32
    return %c0_i32, %c0_i32_0 : i32, i32
  }
  func.func @transform_33(%arg0: i32) -> (i32, i32) {
    %c0_i32 = arith.constant 0 : i32
    %c0_i32_0 = arith.constant 0 : i32
    %c0_i32_1 = arith.constant 0 : i32
    return %c0_i32, %c0_i32_0 : i32, i32
  }
  func.func @transform_34(%arg0: i32) -> (i32, i32) {
    %c0_i32 = arith.constant 0 : i32
    %c0_i32_0 = arith.constant 0 : i32
    %c0_i32_1 = arith.constant 0 : i32
    return %c0_i32, %c0_i32_0 : i32, i32
  }
  func.func @transform_35(%arg0: i32) -> (i32, i32) {
    %c0_i32 = arith.constant 0 : i32
    %c0_i32_0 = arith.constant 0 : i32
    %c0_i32_1 = arith.constant 0 : i32
    return %c0_i32, %c0_i32_0 : i32, i32
  }
  func.func @transform_36(%arg0: i32) -> (i32, i32) {
    %c0_i32 = arith.constant 0 : i32
    %c0_i32_0 = arith.constant 0 : i32
    %c0_i32_1 = arith.constant 0 : i32
    return %c0_i32, %c0_i32_0 : i32, i32
  }
  func.func @transform_37(%arg0: i32) -> (i32, i32) {
    %c0_i32 = arith.constant 0 : i32
    %c0_i32_0 = arith.constant 0 : i32
    %c0_i32_1 = arith.constant 0 : i32
    return %c0_i32, %c0_i32_0 : i32, i32
  }
  func.func @transform_38(%arg0: i32) -> (i32, i32) {
    %c0_i32 = arith.constant 0 : i32
    %c0_i32_0 = arith.constant 0 : i32
    %c0_i32_1 = arith.constant 0 : i32
    return %c0_i32, %c0_i32_0 : i32, i32
  }
  func.func @transform_39(%arg0: i32) -> (i32, i32) {
    %c0_i32 = arith.constant 0 : i32
    %c0_i32_0 = arith.constant 0 : i32
    %c0_i32_1 = arith.constant 0 : i32
    return %c0_i32, %c0_i32_0 : i32, i32
  }
  func.func @transform_40(%arg0: i32) -> (i32, i32) {
    %c0_i32 = arith.constant 0 : i32
    %c0_i32_0 = arith.constant 0 : i32
    %c0_i32_1 = arith.constant 0 : i32
    return %c0_i32, %c0_i32_0 : i32, i32
  }
  func.func @transform_41(%arg0: i32) -> (i32, i32) {
    %c0_i32 = arith.constant 0 : i32
    %c0_i32_0 = arith.constant 0 : i32
    %c0_i32_1 = arith.constant 0 : i32
    return %c0_i32, %c0_i32_0 : i32, i32
  }
  func.func @transform_42(%arg0: i32) -> (i32, i32) {
    %c0_i32 = arith.constant 0 : i32
    %c0_i32_0 = arith.constant 0 : i32
    %c0_i32_1 = arith.constant 0 : i32
    return %c0_i32, %c0_i32_0 : i32, i32
  }
  func.func @transform_43(%arg0: i32) -> i32 {
    %c0_i32 = arith.constant 0 : i32
    %c0_i32_0 = arith.constant 0 : i32
    return %c0_i32 : i32
  }
}

</mosaic_0001>

<llo_original>
// kernel: audio_imagination_bert_forward.2
$region0: #{audio_imagination_bert_forward.2}
  #allocation0 [shape = 'u32[]', space=smem, size = 0x4, offset = 0x4, fixed_abs, tag = 'smem constant byte address 0x4 - core index']
  #allocation1 [shape = 'u32[72,128]{1,0:T(1,128)}', space=vmem, size = 0x9000, scoped, tag = 'internal scratch']
  #allocation2 [shape = 'f32[16,32]{1,0:T(8,128)}', space=vmem, size = 0x2000, scoped, tag = 'scratch operand']
  %s0 = inlined_call_operand.vmem [shape: f32[16,16], index: 0, kind: input, shape index: {}]
  %s1 = inlined_call_operand.vmem [shape: bf16[16,32], index: 1, kind: input, shape index: {}]
  %s2 = inlined_call_operand.vmem [shape: f32[1,32], index: 2, kind: input, shape index: {}]
  %s3 = inlined_call_operand.vmem [shape: f32[16,32], index: 3, kind: input, shape index: {}]
  %s4 = inlined_call_operand.vmem [shape: bf16[32,96], index: 4, kind: input, shape index: {}]
  %s5 = inlined_call_operand.vmem [shape: f32[1,96], index: 5, kind: input, shape index: {}]
  %s6 = inlined_call_operand.vmem [shape: bf16[32,32], index: 6, kind: input, shape index: {}]
  %s7 = inlined_call_operand.vmem [shape: f32[1,32], index: 7, kind: input, shape index: {}]
  %s8 = inlined_call_operand.vmem [shape: f32[1,32], index: 8, kind: input, shape index: {}]
  %s9 = inlined_call_operand.vmem [shape: f32[1,32], index: 9, kind: input, shape index: {}]
  %s10 = inlined_call_operand.vmem [shape: bf16[32,64], index: 10, kind: input, shape index: {}]
  %s11 = inlined_call_operand.vmem [shape: f32[1,64], index: 11, kind: input, shape index: {}]
  %s12 = inlined_call_operand.vmem [shape: bf16[64,32], index: 12, kind: input, shape index: {}]
  %s13 = inlined_call_operand.vmem [shape: f32[1,32], index: 13, kind: input, shape index: {}]
  %s14 = inlined_call_operand.vmem [shape: f32[1,32], index: 14, kind: input, shape index: {}]
  %s15 = inlined_call_operand.vmem [shape: f32[1,32], index: 15, kind: input, shape index: {}]
  %s16 = inlined_call_operand.vmem [shape: bf16[32,32], index: 16, kind: input, shape index: {}]
  %s17 = inlined_call_operand.vmem [shape: f32[1,32], index: 17, kind: input, shape index: {}]
  %s18 = inlined_call_operand.vmem [shape: bf16[32,32], index: 18, kind: input, shape index: {}]
  %s19 = inlined_call_operand.vmem [shape: f32[1,32], index: 19, kind: input, shape index: {}]
  %s20 = inlined_call_operand.vmem [shape: f32[16,32], index: 20, kind: output, shape index: {}]
  %s21 = sld [smem:[#allocation0]]
  $region90: #{audio_imagination_bert_forward.2} parent=0
    _
  %s23 = ssub.s32 1, %s21
  %s24 = scalar_select 0, %s23, %s21
  // Predicated region
  $region2: #{audio_imagination_bert_forward.2} parent=0 // pred_check
    _
  $region3: #{audio_imagination_bert_forward.2} parent=0 // pred_check_branch
    %26 = sbr.rel (0) target = $region5
  $region4: #{audio_imagination_bert_forward.2} parent=0 // pred_region
    _
  $region5: #{audio_imagination_bert_forward.2} parent=0 // pred_fallthru
    _
  // Predicated region
  $region6: #{audio_imagination_bert_forward.2} parent=0 // pred_check
    _
  $region7: #{audio_imagination_bert_forward.2} parent=0 // pred_check_branch
    %28 = sbr.rel (0) target = $region9
  $region8: #{audio_imagination_bert_forward.2} parent=0 // pred_region
    _
  $region9: #{audio_imagination_bert_forward.2} parent=0 // pred_fallthru
    _
  // Predicated region
  $region10: #{audio_imagination_bert_forward.2} parent=0 // pred_check
    _
  $region11: #{audio_imagination_bert_forward.2} parent=0 // pred_check_branch
    %30 = sbr.rel (0) target = $region13
  $region12: #{audio_imagination_bert_forward.2} parent=0 // pred_region
    _
  $region13: #{audio_imagination_bert_forward.2} parent=0 // pred_fallthru
    _
  // Predicated region
  $region14: #{audio_imagination_bert_forward.2} parent=0 // pred_check
    _
  $region15: #{audio_imagination_bert_forward.2} parent=0 // pred_check_branch
    %32 = sbr.rel (0) target = $region17
  $region16: #{audio_imagination_bert_forward.2} parent=0 // pred_region
    _
  $region17: #{audio_imagination_bert_forward.2} parent=0 // pred_fallthru
    _
  // Predicated region
  $region18: #{audio_imagination_bert_forward.2} parent=0 // pred_check
    _
  $region19: #{audio_imagination_bert_forward.2} parent=0 // pred_check_branch
    %34 = sbr.rel (0) target = $region21
  $region20: #{audio_imagination_bert_forward.2} parent=0 // pred_region
    _
  $region21: #{audio_imagination_bert_forward.2} parent=0 // pred_fallthru
    _
  // Predicated region
  $region22: #{audio_imagination_bert_forward.2} parent=0 // pred_check
    _
  $region23: #{audio_imagination_bert_forward.2} parent=0 // pred_check_branch
    %36 = sbr.rel (0) target = $region25
  $region24: #{audio_imagination_bert_forward.2} parent=0 // pred_region
    _
  $region25: #{audio_imagination_bert_forward.2} parent=0 // pred_fallthru
    _
  // Predicated region
  $region26: #{audio_imagination_bert_forward.2} parent=0 // pred_check
    _
  $region27: #{audio_imagination_bert_forward.2} parent=0 // pred_check_branch
    %38 = sbr.rel (0) target = $region29
  $region28: #{audio_imagination_bert_forward.2} parent=0 // pred_region
    _
  $region29: #{audio_imagination_bert_forward.2} parent=0 // pred_fallthru
    _
  // Predicated region
  $region30: #{audio_imagination_bert_forward.2} parent=0 // pred_check
    _
  $region31: #{audio_imagination_bert_forward.2} parent=0 // pred_check_branch
    %40 = sbr.rel (0) target = $region33
  $region32: #{audio_imagination_bert_forward.2} parent=0 // pred_region
    _
  $region33: #{audio_imagination_bert_forward.2} parent=0 // pred_fallthru
    _
  // Predicated region
  $region34: #{audio_imagination_bert_forward.2} parent=0 // pred_check
    _
  $region35: #{audio_imagination_bert_forward.2} parent=0 // pred_check_branch
    %42 = sbr.rel (0) target = $region37
  $region36: #{audio_imagination_bert_forward.2} parent=0 // pred_region
    _
  $region37: #{audio_imagination_bert_forward.2} parent=0 // pred_fallthru
    _
  // Predicated region
  $region38: #{audio_imagination_bert_forward.2} parent=0 // pred_check
    _
  $region39: #{audio_imagination_bert_forward.2} parent=0 // pred_check_branch
    %44 = sbr.rel (0) target = $region41
  $region40: #{audio_imagination_bert_forward.2} parent=0 // pred_region
    _
  $region41: #{audio_imagination_bert_forward.2} parent=0 // pred_fallthru
    _
  // Predicated region
  $region42: #{audio_imagination_bert_forward.2} parent=0 // pred_check
    _
  $region43: #{audio_imagination_bert_forward.2} parent=0 // pred_check_branch
    %46 = sbr.rel (0) target = $region45
  $region44: #{audio_imagination_bert_forward.2} parent=0 // pred_region
    _
  $region45: #{audio_imagination_bert_forward.2} parent=0 // pred_fallthru
    _
  // Predicated region
  $region46: #{audio_imagination_bert_forward.2} parent=0 // pred_check
    _
  $region47: #{audio_imagination_bert_forward.2} parent=0 // pred_check_branch
    %48 = sbr.rel (0) target = $region49
  $region48: #{audio_imagination_bert_forward.2} parent=0 // pred_region
    _
  $region49: #{audio_imagination_bert_forward.2} parent=0 // pred_fallthru
    _
  // Predicated region
  $region50: #{audio_imagination_bert_forward.2} parent=0 // pred_check
    _
  $region51: #{audio_imagination_bert_forward.2} parent=0 // pred_check_branch
    %50 = sbr.rel (0) target = $region53
  $region52: #{audio_imagination_bert_forward.2} parent=0 // pred_region
    _
  $region53: #{audio_imagination_bert_forward.2} parent=0 // pred_fallthru
    _
  // Predicated region
  $region54: #{audio_imagination_bert_forward.2} parent=0 // pred_check
    _
  $region55: #{audio_imagination_bert_forward.2} parent=0 // pred_check_branch
    %52 = sbr.rel (0) target = $region57
  $region56: #{audio_imagination_bert_forward.2} parent=0 // pred_region
    _
  $region57: #{audio_imagination_bert_forward.2} parent=0 // pred_fallthru
    _
  // Predicated region
  $region58: #{audio_imagination_bert_forward.2} parent=0 // pred_check
    _
  $region59: #{audio_imagination_bert_forward.2} parent=0 // pred_check_branch
    %54 = sbr.rel (0) target = $region61
  $region60: #{audio_imagination_bert_forward.2} parent=0 // pred_region
    _
  $region61: #{audio_imagination_bert_forward.2} parent=0 // pred_fallthru
    _
  // Predicated region
  $region62: #{audio_imagination_bert_forward.2} parent=0 // pred_check
    _
  $region63: #{audio_imagination_bert_forward.2} parent=0 // pred_check_branch
    %56 = sbr.rel (0) target = $region65
  $region64: #{audio_imagination_bert_forward.2} parent=0 // pred_region
    _
  $region65: #{audio_imagination_bert_forward.2} parent=0 // pred_fallthru
    _
  // Predicated region
  $region66: #{audio_imagination_bert_forward.2} parent=0 // pred_check
    _
  $region67: #{audio_imagination_bert_forward.2} parent=0 // pred_check_branch
    %58 = sbr.rel (0) target = $region69
  $region68: #{audio_imagination_bert_forward.2} parent=0 // pred_region
    _
  $region69: #{audio_imagination_bert_forward.2} parent=0 // pred_fallthru
    _
  // Predicated region
  $region70: #{audio_imagination_bert_forward.2} parent=0 // pred_check
    _
  $region71: #{audio_imagination_bert_forward.2} parent=0 // pred_check_branch
    %60 = sbr.rel (0) target = $region73
  $region72: #{audio_imagination_bert_forward.2} parent=0 // pred_region
    _
  $region73: #{audio_imagination_bert_forward.2} parent=0 // pred_fallthru
    _
  // Predicated region
  $region74: #{audio_imagination_bert_forward.2} parent=0 // pred_check
    _
  $region75: #{audio_imagination_bert_forward.2} parent=0 // pred_check_branch
    %62 = sbr.rel (0) target = $region77
  $region76: #{audio_imagination_bert_forward.2} parent=0 // pred_region
    _
  $region77: #{audio_imagination_bert_forward.2} parent=0 // pred_fallthru
    _
  // Predicated region
  $region78: #{audio_imagination_bert_forward.2} parent=0 // pred_check
    _
  $region79: #{audio_imagination_bert_forward.2} parent=0 // pred_check_branch
    %64 = sbr.rel (0) target = $region81
  $region80: #{audio_imagination_bert_forward.2} parent=0 // pred_region
    _
  $region81: #{audio_imagination_bert_forward.2} parent=0 // pred_fallthru
    _
  %v66 = vld [vmem:[%s0] sm:$0xff]
  %v67 = vld [vmem:[%s0 + $0x8] sm:$0xff]
  %v68 = vld [vmem:[%s1] sm:$0xf]
  %v69 = vld [vmem:[%s1 + $0x4] sm:$0xf]
  %v70 = vpack.c.bf16 %v67, %v66
  %v71 = vld [vmem:[%s2] sm:$0x1]
  %v73 = vperm.slane %v71, 0
  %v77 = vunpack.c.l.b16 %v68
  %v78 = vunpack.c.l.b16 %v69
  %v79 = vpack.c.b16 %v78, %v77
  %vm81 = vcmask 130048
  %v83 = vsel %vm81, %v70, 0
  %85 = vmatpush.bf16.msra.mxu0 0
  %86 = vmatpush.bf16.msra.mxu0 0
  %87 = vmatpush.bf16.msra.mxu0 0
  %88 = vmatpush.bf16.msra.mxu0 0
  %89 = vmatpush.bf16.msra.mxu0 0
  %90 = vmatpush.bf16.msra.mxu0 0
  %91 = vmatpush.bf16.msra.mxu0 0
  %92 = vmatpush.bf16.msra.mxu0 %v79
  %93 = vmatmul.bf16.gmra.mxu0 %v83
  %v94 = vpop.f32.mrf.mxu0
  %v95 = vadd.f32 %v73, %v94
  %v96 = vpop.f32.mrf.mxu0
  %v97 = vadd.f32 %v73, %v96
  %98 = vdwg.mxu0
  %v99 = vld [vmem:[%s3] sm:$0xff]
  %v100 = vld [vmem:[%s3 + $0x8] sm:$0xff]
  %v101 = vadd.f32 %v95, %v99
  %v102 = vadd.f32 %v97, %v100
  %v103 = vld [vmem:[%s4] sm:$0xf]
  %v104 = vld [vmem:[%s4 + $0x4] sm:$0xf]
  %v105 = vld [vmem:[%s4 + $0x8] sm:$0xf]
  %v106 = vld [vmem:[%s4 + $0xc] sm:$0xf]
  %v107 = vld [vmem:[%s5] sm:$0x1]
  %v108 = vld [vmem:[%s6] sm:$0xf]
  %v109 = vld [vmem:[%s6 + $0x4] sm:$0xf]
  %v110 = vld [vmem:[%s6 + $0x8] sm:$0xf]
  %v111 = vld [vmem:[%s6 + $0xc] sm:$0xf]
  %v112 = vld [vmem:[%s7] sm:$0x1]
  %v113 = vld [vmem:[%s8] sm:$0x1]
  %v114 = vld [vmem:[%s9] sm:$0x1]
  %v115 = vld [vmem:[%s10] sm:$0xf]
  %v116 = vld [vmem:[%s10 + $0x4] sm:$0xf]
  %v117 = vld [vmem:[%s10 + $0x8] sm:$0xf]
  %v118 = vld [vmem:[%s10 + $0xc] sm:$0xf]
  %v119 = vld [vmem:[%s11] sm:$0x1]
  %v120 = vld [vmem:[%s12] sm:$0xf]
  %v121 = vld [vmem:[%s12 + $0x4] sm:$0xf]
  %v122 = vld [vmem:[%s12 + $0x8] sm:$0xf]
  %v123 = vld [vmem:[%s12 + $0xc] sm:$0xf]
  %v124 = vld [vmem:[%s12 + $0x10] sm:$0xf]
  %v125 = vld [vmem:[%s12 + $0x14] sm:$0xf]
  %v126 = vld [vmem:[%s12 + $0x18] sm:$0xf]
  %v127 = vld [vmem:[%s12 + $0x1c] sm:$0xf]
  %v128 = vld [vmem:[%s13] sm:$0x1]
  %v129 = vld [vmem:[%s14] sm:$0x1]
  %v130 = vld [vmem:[%s15] sm:$0x1]
  %v131 = vpack.c.bf16 %v102, %v101
  %v133 = vperm.slane %v107, 0
  %v139 = vunpack.c.l.b16 %v103
  %v140 = vunpack.c.l.b16 %v104
  %v141 = vunpack.c.l.b16 %v105
  %v142 = vunpack.c.l.b16 %v106
  %v143 = vpack.c.b16 %v140, %v139
  %v144 = vpack.c.b16 %v142, %v141
  %vm147 = vcmask 261120
  %v149 = vsel %vm147, %v131, 0
  %151 = vmatpush.bf16.msra.mxu0 0
  %152 = vmatpush.bf16.msra.mxu0 0
  %153 = vmatpush.bf16.msra.mxu0 0
  %154 = vmatpush.bf16.msra.mxu0 0
  %155 = vmatpush.bf16.msra.mxu0 0
  %156 = vmatpush.bf16.msra.mxu0 0
  %157 = vmatpush.bf16.msra.mxu0 %v144
  %158 = vmatpush.bf16.msra.mxu0 %v143
  %159 = vmatmul.bf16.gmra.mxu0 %v149
  %v160 = vpop.f32.mrf.mxu0
  %v161 = vadd.f32 %v133, %v160
  %v162 = vpop.f32.mrf.mxu0
  %v163 = vadd.f32 %v133, %v162
  %164 = vdwg.mxu0
  %v165 = vpack.c.bf16 %v161, %v161
  %167 = vrot.lane.b32.xlu0 %v165, 96
  %v168 = vpop.permute.xlu0 %167
  %vm169 = vcmask 64512
  %v171 = vsel %vm169, %v165, 0
  %v174 = vsel %vm169, %v168, 0
  %176 = vmatpush.bf16.xpose.msra.mxu0 0
  %177 = vmatpush.bf16.xpose.msra.mxu0 0
  %178 = vmatpush.bf16.xpose.msra.mxu0 0
  %179 = vmatpush.bf16.xpose.msra.mxu0 0
  %180 = vmatpush.bf16.xpose.msra.mxu0 0
  %181 = vmatpush.bf16.xpose.msra.mxu0 0
  %182 = vmatpush.bf16.xpose.msra.mxu0 0
  %183 = vmatpush.bf16.xpose.msra.mxu0 %v174
  %184 = vmatmul.bf16.gmra.mxu0 %v171
  %v185 = vpop.f32.mrf.mxu0
  %v186 = vadd.f32 0.0, %v185
  %v187 = vpop.f32.mrf.mxu0
  %188 = vdwg.mxu0
  %v189 = vmul.f32 %v186, 0.35355338
  %v190 = vsel %vm169, %v189, -inf
  %191 = vmax.xlane.f32.xlu0 %v190
  %v192 = vpop.xlane.xlu0 %191
  %v193 = vsub.f32 %v189, %v192
  %v194 = vmul.f32 %v193, 1.442695
  %v195 = vpow.pop %v194
  %v196 = vsel %vm169, %v195, 0.0
  %197 = vadd.xlane.f32.xlu0 %v196
  %v198 = vpop.xlane.xlu0 %197
  %v199 = vrcp.pop %v198
  %v200 = vmul.f32 %v195, %v199
  %v201 = vpack.c.bf16 %v200, %v200
  %202 = vrot.lane.b32.xlu0 %v165, 64
  %v203 = vpop.permute.xlu0 %202
  %v205 = vsel %vm169, %v201, 0
  %vm207 = vcmask 1043456
  %v209 = vsel %vm207, %v203, 0
  %211 = vmatpush.bf16.msra.mxu0 0
  %212 = vmatpush.bf16.msra.mxu0 0
  %213 = vmatpush.bf16.msra.mxu0 0
  %214 = vmatpush.bf16.msra.mxu0 0
  %215 = vmatpush.bf16.msra.mxu0 0
  %216 = vmatpush.bf16.msra.mxu0 0
  %217 = vmatpush.bf16.msra.mxu0 0
  %218 = vmatpush.bf16.msra.mxu0 %v209
  %219 = vmatmul.bf16.gmra.mxu0 %v205
  %v220 = vpop.f32.mrf.mxu0
  %v221 = vadd.f32 0.0, %v220
  %v222 = vpop.f32.mrf.mxu0
  %223 = vdwg.mxu0
  %224 = vst.msk [vmem:[#allocation2] sm:$0xff] %vm169, %v221
  %225 = vrot.lane.b32.xlu0 %v165, 120
  %v226 = vpop.permute.xlu0 %225
  %227 = vrot.lane.b32.xlu0 %v165, 88
  %v228 = vpop.permute.xlu0 %227
  %v230 = vsel %vm169, %v226, 0
  %v233 = vsel %vm169, %v228, 0
  %235 = vmatpush.bf16.xpose.msra.mxu0 0
  %236 = vmatpush.bf16.xpose.msra.mxu0 0
  %237 = vmatpush.bf16.xpose.msra.mxu0 0
  %238 = vmatpush.bf16.xpose.msra.mxu0 0
  %239 = vmatpush.bf16.xpose.msra.mxu0 0
  %240 = vmatpush.bf16.xpose.msra.mxu0 0
  %241 = vmatpush.bf16.xpose.msra.mxu0 0
  %242 = vmatpush.bf16.xpose.msra.mxu0 %v233
  %243 = vmatmul.bf16.gmra.mxu0 %v230
  %v244 = vpop.f32.mrf.mxu0
  %v245 = vadd.f32 0.0, %v244
  %v246 = vpop.f32.mrf.mxu0
  %247 = vdwg.mxu0
  %v248 = vmul.f32 %v245, 0.35355338
  %v249 = vsel %vm169, %v248, -inf
  %250 = vmax.xlane.f32.xlu0 %v249
  %v251 = vpop.xlane.xlu0 %250
  %v252 = vsub.f32 %v248, %v251
  %v253 = vmul.f32 %v252, 1.442695
  %v254 = vpow.pop %v253
  %v255 = vsel %vm169, %v254, 0.0
  %256 = vadd.xlane.f32.xlu0 %v255
  %v257 = vpop.xlane.xlu0 %256
  %v258 = vrcp.pop %v257
  %v259 = vmul.f32 %v254, %v258
  %v260 = vpack.c.bf16 %v259, %v259
  %261 = vrot.lane.b32.xlu0 %v165, 56
  %v262 = vpop.permute.xlu0 %261
  %v264 = vsel %vm169, %v260, 0
  %v267 = vsel %vm207, %v262, 0
  %269 = vmatpush.bf16.msra.mxu0 0
  %270 = vmatpush.bf16.msra.mxu0 0
  %271 = vmatpush.bf16.msra.mxu0 0
  %272 = vmatpush.bf16.msra.mxu0 0
  %273 = vmatpush.bf16.msra.mxu0 0
  %274 = vmatpush.bf16.msra.mxu0 0
  %275 = vmatpush.bf16.msra.mxu0 0
  %276 = vmatpush.bf16.msra.mxu0 %v267
  %277 = vmatmul.bf16.gmra.mxu0 %v264
  %v278 = vpop.f32.mrf.mxu0
  %v279 = vadd.f32 0.0, %v278
  %v280 = vpop.f32.mrf.mxu0
  %281 = vdwg.mxu0
  %283 = vrot.lane.b32.xlu0 %v279, 8
  %v284 = vpop.permute.xlu0 %283
  %vm286 = vcmask 130112
  %287 = vst.msk [vmem:[#allocation2] sm:$0xff] %vm286, %v284
  %288 = vrot.lane.b32.xlu0 %v165, 112
  %v289 = vpop.permute.xlu0 %288
  %290 = vrot.lane.b32.xlu0 %v165, 80
  %v291 = vpop.permute.xlu0 %290
  %v293 = vsel %vm169, %v289, 0
  %v296 = vsel %vm169, %v291, 0
  %298 = vmatpush.bf16.xpose.msra.mxu0 0
  %299 = vmatpush.bf16.xpose.msra.mxu0 0
  %300 = vmatpush.bf16.xpose.msra.mxu0 0
  %301 = vmatpush.bf16.xpose.msra.mxu0 0
  %302 = vmatpush.bf16.xpose.msra.mxu0 0
  %303 = vmatpush.bf16.xpose.msra.mxu0 0
  %304 = vmatpush.bf16.xpose.msra.mxu0 0
  %305 = vmatpush.bf16.xpose.msra.mxu0 %v296
  %306 = vmatmul.bf16.gmra.mxu0 %v293
  %v307 = vpop.f32.mrf.mxu0
  %v308 = vadd.f32 0.0, %v307
  %v309 = vpop.f32.mrf.mxu0
  %310 = vdwg.mxu0
  %v311 = vmul.f32 %v308, 0.35355338
  %v312 = vsel %vm169, %v311, -inf
  %313 = vmax.xlane.f32.xlu0 %v312
  %v314 = vpop.xlane.xlu0 %313
  %v315 = vsub.f32 %v311, %v314
  %v316 = vmul.f32 %v315, 1.442695
  %v317 = vpow.pop %v316
  %v318 = vsel %vm169, %v317, 0.0
  %319 = vadd.xlane.f32.xlu0 %v318
  %v320 = vpop.xlane.xlu0 %319
  %v321 = vrcp.pop %v320
  %v322 = vmul.f32 %v317, %v321
  %v323 = vpack.c.bf16 %v322, %v322
  %324 = vrot.lane.b32.xlu0 %v165, 48
  %v325 = vpop.permute.xlu0 %324
  %v327 = vsel %vm169, %v323, 0
  %v330 = vsel %vm207, %v325, 0
  %332 = vmatpush.bf16.msra.mxu0 0
  %333 = vmatpush.bf16.msra.mxu0 0
  %334 = vmatpush.bf16.msra.mxu0 0
  %335 = vmatpush.bf16.msra.mxu0 0
  %336 = vmatpush.bf16.msra.mxu0 0
  %337 = vmatpush.bf16.msra.mxu0 0
  %338 = vmatpush.bf16.msra.mxu0 0
  %339 = vmatpush.bf16.msra.mxu0 %v330
  %340 = vmatmul.bf16.gmra.mxu0 %v327
  %v341 = vpop.f32.mrf.mxu0
  %v342 = vadd.f32 0.0, %v341
  %v343 = vpop.f32.mrf.mxu0
  %344 = vdwg.mxu0
  %346 = vrot.lane.b32.xlu0 %v342, 16
  %v347 = vpop.permute.xlu0 %346
  %vm349 = vcmask 195712
  %350 = vst.msk [vmem:[#allocation2] sm:$0xff] %vm349, %v347
  %351 = vrot.lane.b32.xlu0 %v165, 104
  %v352 = vpop.permute.xlu0 %351
  %353 = vrot.lane.b32.xlu0 %v165, 72
  %v354 = vpop.permute.xlu0 %353
  %v356 = vsel %vm169, %v352, 0
  %v359 = vsel %vm169, %v354, 0
  %361 = vmatpush.bf16.xpose.msra.mxu0 0
  %362 = vmatpush.bf16.xpose.msra.mxu0 0
  %363 = vmatpush.bf16.xpose.msra.mxu0 0
  %364 = vmatpush.bf16.xpose.msra.mxu0 0
  %365 = vmatpush.bf16.xpose.msra.mxu0 0
  %366 = vmatpush.bf16.xpose.msra.mxu0 0
  %367 = vmatpush.bf16.xpose.msra.mxu0 0
  %368 = vmatpush.bf16.xpose.msra.mxu0 %v359
  %369 = vmatmul.bf16.gmra.mxu0 %v356
  %v370 = vpop.f32.mrf.mxu0
  %v371 = vadd.f32 0.0, %v370
  %v372 = vpop.f32.mrf.mxu0
  %373 = vdwg.mxu0
  %v374 = vmul.f32 %v371, 0.35355338
  %v375 = vsel %vm169, %v374, -inf
  %376 = vmax.xlane.f32.xlu0 %v375
  %v377 = vpop.xlane.xlu0 %376
  %v378 = vsub.f32 %v374, %v377
  %v379 = vmul.f32 %v378, 1.442695
  %v380 = vpow.pop %v379
  %v381 = vsel %vm169, %v380, 0.0
  %382 = vadd.xlane.f32.xlu0 %v381
  %v383 = vpop.xlane.xlu0 %382
  %v384 = vrcp.pop %v383
  %v385 = vmul.f32 %v380, %v384
  %v386 = vpack.c.bf16 %v385, %v385
  %387 = vrot.lane.b32.xlu0 %v165, 40
  %v388 = vpop.permute.xlu0 %387
  %v390 = vsel %vm169, %v386, 0
  %v393 = vsel %vm207, %v388, 0
  %395 = vmatpush.bf16.msra.mxu0 0
  %396 = vmatpush.bf16.msra.mxu0 0
  %397 = vmatpush.bf16.msra.mxu0 0
  %398 = vmatpush.bf16.msra.mxu0 0
  %399 = vmatpush.bf16.msra.mxu0 0
  %400 = vmatpush.bf16.msra.mxu0 0
  %401 = vmatpush.bf16.msra.mxu0 0
  %402 = vmatpush.bf16.msra.mxu0 %v393
  %403 = vmatmul.bf16.gmra.mxu0 %v390
  %v404 = vpop.f32.mrf.mxu0
  %v405 = vadd.f32 0.0, %v404
  %v406 = vpop.f32.mrf.mxu0
  %407 = vdwg.mxu0
  %409 = vrot.lane.b32.xlu0 %v405, 24
  %v410 = vpop.permute.xlu0 %409
  %vm412 = vcmask 261312
  %413 = vst.msk [vmem:[#allocation2] sm:$0xff] %vm412, %v410
  %v414 = vpack.c.bf16 %v163, %v163
  %416 = vrot.lane.b32.xlu0 %v414, 96
  %v417 = vpop.permute.xlu0 %416
  %v419 = vsel %vm169, %v414, 0
  %v422 = vsel %vm169, %v417, 0
  %424 = vmatpush.bf16.xpose.msra.mxu0 0
  %425 = vmatpush.bf16.xpose.msra.mxu0 0
  %426 = vmatpush.bf16.xpose.msra.mxu0 0
  %427 = vmatpush.bf16.xpose.msra.mxu0 0
  %428 = vmatpush.bf16.xpose.msra.mxu0 0
  %429 = vmatpush.bf16.xpose.msra.mxu0 0
  %430 = vmatpush.bf16.xpose.msra.mxu0 0
  %431 = vmatpush.bf16.xpose.msra.mxu0 %v422
  %432 = vmatmul.bf16.gmra.mxu0 %v419
  %v433 = vpop.f32.mrf.mxu0
  %v434 = vadd.f32 0.0, %v433
  %v435 = vpop.f32.mrf.mxu0
  %436 = vdwg.mxu0
  %v437 = vmul.f32 %v434, 0.35355338
  %v438 = vsel %vm169, %v437, -inf
  %439 = vmax.xlane.f32.xlu0 %v438
  %v440 = vpop.xlane.xlu0 %439
  %v441 = vsub.f32 %v437, %v440
  %v442 = vmul.f32 %v441, 1.442695
  %v443 = vpow.pop %v442
  %v444 = vsel %vm169, %v443, 0.0
  %445 = vadd.xlane.f32.xlu0 %v444
  %v446 = vpop.xlane.xlu0 %445
  %v447 = vrcp.pop %v446
  %v448 = vmul.f32 %v443, %v447
  %v449 = vpack.c.bf16 %v448, %v448
  %450 = vrot.lane.b32.xlu0 %v414, 64
  %v451 = vpop.permute.xlu0 %450
  %v453 = vsel %vm169, %v449, 0
  %v456 = vsel %vm207, %v451, 0
  %458 = vmatpush.bf16.msra.mxu0 0
  %459 = vmatpush.bf16.msra.mxu0 0
  %460 = vmatpush.bf16.msra.mxu0 0
  %461 = vmatpush.bf16.msra.mxu0 0
  %462 = vmatpush.bf16.msra.mxu0 0
  %463 = vmatpush.bf16.msra.mxu0 0
  %464 = vmatpush.bf16.msra.mxu0 0
  %465 = vmatpush.bf16.msra.mxu0 %v456
  %466 = vmatmul.bf16.gmra.mxu0 %v453
  %v467 = vpop.f32.mrf.mxu0
  %v468 = vadd.f32 0.0, %v467
  %v469 = vpop.f32.mrf.mxu0
  %470 = vdwg.mxu0
  %471 = vst.msk [vmem:[#allocation2 + $0x8] sm:$0xff] %vm169, %v468
  %472 = vrot.lane.b32.xlu0 %v414, 120
  %v473 = vpop.permute.xlu0 %472
  %474 = vrot.lane.b32.xlu0 %v414, 88
  %v475 = vpop.permute.xlu0 %474
  %v477 = vsel %vm169, %v473, 0
  %v480 = vsel %vm169, %v475, 0
  %482 = vmatpush.bf16.xpose.msra.mxu0 0
  %483 = vmatpush.bf16.xpose.msra.mxu0 0
  %484 = vmatpush.bf16.xpose.msra.mxu0 0
  %485 = vmatpush.bf16.xpose.msra.mxu0 0
  %486 = vmatpush.bf16.xpose.msra.mxu0 0
  %487 = vmatpush.bf16.xpose.msra.mxu0 0
  %488 = vmatpush.bf16.xpose.msra.mxu0 0
  %489 = vmatpush.bf16.xpose.msra.mxu0 %v480
  %490 = vmatmul.bf16.gmra.mxu0 %v477
  %v491 = vpop.f32.mrf.mxu0
  %v492 = vadd.f32 0.0, %v491
  %v493 = vpop.f32.mrf.mxu0
  %494 = vdwg.mxu0
  %v495 = vmul.f32 %v492, 0.35355338
  %v496 = vsel %vm169, %v495, -inf
  %497 = vmax.xlane.f32.xlu0 %v496
  %v498 = vpop.xlane.xlu0 %497
  %v499 = vsub.f32 %v495, %v498
  %v500 = vmul.f32 %v499, 1.442695
  %v501 = vpow.pop %v500
  %v502 = vsel %vm169, %v501, 0.0
  %503 = vadd.xlane.f32.xlu0 %v502
  %v504 = vpop.xlane.xlu0 %503
  %v505 = vrcp.pop %v504
  %v506 = vmul.f32 %v501, %v505
  %v507 = vpack.c.bf16 %v506, %v506
  %508 = vrot.lane.b32.xlu0 %v414, 56
  %v509 = vpop.permute.xlu0 %508
  %v511 = vsel %vm169, %v507, 0
  %v514 = vsel %vm207, %v509, 0
  %516 = vmatpush.bf16.msra.mxu0 0
  %517 = vmatpush.bf16.msra.mxu0 0
  %518 = vmatpush.bf16.msra.mxu0 0
  %519 = vmatpush.bf16.msra.mxu0 0
  %520 = vmatpush.bf16.msra.mxu0 0
  %521 = vmatpush.bf16.msra.mxu0 0
  %522 = vmatpush.bf16.msra.mxu0 0
  %523 = vmatpush.bf16.msra.mxu0 %v514
  %524 = vmatmul.bf16.gmra.mxu0 %v511
  %v525 = vpop.f32.mrf.mxu0
  %v526 = vadd.f32 0.0, %v525
  %v527 = vpop.f32.mrf.mxu0
  %528 = vdwg.mxu0
  %530 = vrot.lane.b32.xlu0 %v526, 8
  %v531 = vpop.permute.xlu0 %530
  %533 = vst.msk [vmem:[#allocation2 + $0x8] sm:$0xff] %vm286, %v531
  %534 = vrot.lane.b32.xlu0 %v414, 112
  %v535 = vpop.permute.xlu0 %534
  %536 = vrot.lane.b32.xlu0 %v414, 80
  %v537 = vpop.permute.xlu0 %536
  %v539 = vsel %vm169, %v535, 0
  %v542 = vsel %vm169, %v537, 0
  %544 = vmatpush.bf16.xpose.msra.mxu0 0
  %545 = vmatpush.bf16.xpose.msra.mxu0 0
  %546 = vmatpush.bf16.xpose.msra.mxu0 0
  %547 = vmatpush.bf16.xpose.msra.mxu0 0
  %548 = vmatpush.bf16.xpose.msra.mxu0 0
  %549 = vmatpush.bf16.xpose.msra.mxu0 0
  %550 = vmatpush.bf16.xpose.msra.mxu0 0
  %551 = vmatpush.bf16.xpose.msra.mxu0 %v542
  %552 = vmatmul.bf16.gmra.mxu0 %v539
  %v553 = vpop.f32.mrf.mxu0
  %v554 = vadd.f32 0.0, %v553
  %v555 = vpop.f32.mrf.mxu0
  %556 = vdwg.mxu0
  %v557 = vmul.f32 %v554, 0.35355338
  %v558 = vsel %vm169, %v557, -inf
  %559 = vmax.xlane.f32.xlu0 %v558
  %v560 = vpop.xlane.xlu0 %559
  %v561 = vsub.f32 %v557, %v560
  %v562 = vmul.f32 %v561, 1.442695
  %v563 = vpow.pop %v562
  %v564 = vsel %vm169, %v563, 0.0
  %565 = vadd.xlane.f32.xlu0 %v564
  %v566 = vpop.xlane.xlu0 %565
  %v567 = vrcp.pop %v566
  %v568 = vmul.f32 %v563, %v567
  %v569 = vpack.c.bf16 %v568, %v568
  %570 = vrot.lane.b32.xlu0 %v414, 48
  %v571 = vpop.permute.xlu0 %570
  %v573 = vsel %vm169, %v569, 0
  %v576 = vsel %vm207, %v571, 0
  %578 = vmatpush.bf16.msra.mxu0 0
  %579 = vmatpush.bf16.msra.mxu0 0
  %580 = vmatpush.bf16.msra.mxu0 0
  %581 = vmatpush.bf16.msra.mxu0 0
  %582 = vmatpush.bf16.msra.mxu0 0
  %583 = vmatpush.bf16.msra.mxu0 0
  %584 = vmatpush.bf16.msra.mxu0 0
  %585 = vmatpush.bf16.msra.mxu0 %v576
  %586 = vmatmul.bf16.gmra.mxu0 %v573
  %v587 = vpop.f32.mrf.mxu0
  %v588 = vadd.f32 0.0, %v587
  %v589 = vpop.f32.mrf.mxu0
  %590 = vdwg.mxu0
  %592 = vrot.lane.b32.xlu0 %v588, 16
  %v593 = vpop.permute.xlu0 %592
  %595 = vst.msk [vmem:[#allocation2 + $0x8] sm:$0xff] %vm349, %v593
  %596 = vrot.lane.b32.xlu0 %v414, 104
  %v597 = vpop.permute.xlu0 %596
  %598 = vrot.lane.b32.xlu0 %v414, 72
  %v599 = vpop.permute.xlu0 %598
  %v601 = vsel %vm169, %v597, 0
  %v604 = vsel %vm169, %v599, 0
  %606 = vmatpush.bf16.xpose.msra.mxu0 0
  %607 = vmatpush.bf16.xpose.msra.mxu0 0
  %608 = vmatpush.bf16.xpose.msra.mxu0 0
  %609 = vmatpush.bf16.xpose.msra.mxu0 0
  %610 = vmatpush.bf16.xpose.msra.mxu0 0
  %611 = vmatpush.bf16.xpose.msra.mxu0 0
  %612 = vmatpush.bf16.xpose.msra.mxu0 0
  %613 = vmatpush.bf16.xpose.msra.mxu0 %v604
  %614 = vmatmul.bf16.gmra.mxu0 %v601
  %v615 = vpop.f32.mrf.mxu0
  %v616 = vadd.f32 0.0, %v615
  %v617 = vpop.f32.mrf.mxu0
  %618 = vdwg.mxu0
  %v619 = vmul.f32 %v616, 0.35355338
  %v620 = vsel %vm169, %v619, -inf
  %621 = vmax.xlane.f32.xlu0 %v620
  %v622 = vpop.xlane.xlu0 %621
  %v623 = vsub.f32 %v619, %v622
  %v624 = vmul.f32 %v623, 1.442695
  %v625 = vpow.pop %v624
  %v626 = vsel %vm169, %v625, 0.0
  %627 = vadd.xlane.f32.xlu0 %v626
  %v628 = vpop.xlane.xlu0 %627
  %v629 = vrcp.pop %v628
  %v630 = vmul.f32 %v625, %v629
  %v631 = vpack.c.bf16 %v630, %v630
  %632 = vrot.lane.b32.xlu0 %v414, 40
  %v633 = vpop.permute.xlu0 %632
  %v635 = vsel %vm169, %v631, 0
  %v638 = vsel %vm207, %v633, 0
  %640 = vmatpush.bf16.msra.mxu0 0
  %641 = vmatpush.bf16.msra.mxu0 0
  %642 = vmatpush.bf16.msra.mxu0 0
  %643 = vmatpush.bf16.msra.mxu0 0
  %644 = vmatpush.bf16.msra.mxu0 0
  %645 = vmatpush.bf16.msra.mxu0 0
  %646 = vmatpush.bf16.msra.mxu0 0
  %647 = vmatpush.bf16.msra.mxu0 %v638
  %648 = vmatmul.bf16.gmra.mxu0 %v635
  %v649 = vpop.f32.mrf.mxu0
  %v650 = vadd.f32 0.0, %v649
  %v651 = vpop.f32.mrf.mxu0
  %652 = vdwg.mxu0
  %654 = vrot.lane.b32.xlu0 %v650, 24
  %v655 = vpop.permute.xlu0 %654
  %657 = vst.msk [vmem:[#allocation2 + $0x8] sm:$0xff] %vm412, %v655
  %v658 = vld [vmem:[#allocation2] sm:$0xff]
  %v659 = vld [vmem:[#allocation2 + $0x8] sm:$0xff]
  %v660 = vpack.c.bf16 %v659, %v658
  %v662 = vperm.slane %v112, 0
  %v668 = vunpack.c.l.b16 %v108
  %v669 = vunpack.c.l.b16 %v109
  %v670 = vunpack.c.l.b16 %v110
  %v671 = vunpack.c.l.b16 %v111
  %v672 = vpack.c.b16 %v669, %v668
  %v673 = vpack.c.b16 %v671, %v670
  %v677 = vsel %vm147, %v660, 0
  %679 = vmatpush.bf16.msra.mxu0 0
  %680 = vmatpush.bf16.msra.mxu0 0
  %681 = vmatpush.bf16.msra.mxu0 0
  %682 = vmatpush.bf16.msra.mxu0 0
  %683 = vmatpush.bf16.msra.mxu0 0
  %684 = vmatpush.bf16.msra.mxu0 0
  %685 = vmatpush.bf16.msra.mxu0 %v673
  %686 = vmatpush.bf16.msra.mxu0 %v672
  %687 = vmatmul.bf16.gmra.mxu0 %v677
  %v688 = vpop.f32.mrf.mxu0
  %v689 = vadd.f32 %v662, %v688
  %v690 = vpop.f32.mrf.mxu0
  %v691 = vadd.f32 %v662, %v690
  %692 = vdwg.mxu0
  %v693 = vadd.f32 %v101, %v689
  %v694 = vadd.f32 %v102, %v691
  %v695 = vsel %vm147, %v693, 0.0
  %696 = vadd.xlane.f32.xlu0 %v695
  %v697 = vpop.xlane.xlu0 %696
  %v698 = vsel %vm147, %v694, 0.0
  %699 = vadd.xlane.f32.xlu0 %v698
  %v700 = vpop.xlane.xlu0 %699
  %v701 = vrcp.pop 32.0
  %v702 = vmul.f32 32.0, %v701
  %v703 = vsub.f32 1.0, %v702
  %v704 = vmul.f32 %v701, %v703
  %v705 = vadd.f32 %v701, %v704
  %vm706 = vweird.f32 %v701
  %v707 = vsel %vm706, %v701, %v705
  %v708 = vmul.f32 %v697, %v707
  %v709 = vmul.f32 %v700, %v707
  %v710 = vsub.f32 %v693, %v708
  %v711 = vsub.f32 %v694, %v709
  %v712 = vmul.f32 %v710, %v710
  %v713 = vmul.f32 %v711, %v711
  %v714 = vsel %vm147, %v712, 0.0
  %715 = vadd.xlane.f32.xlu0 %v714
  %v716 = vpop.xlane.xlu0 %715
  %v717 = vsel %vm147, %v713, 0.0
  %718 = vadd.xlane.f32.xlu0 %v717
  %v719 = vpop.xlane.xlu0 %718
  %v720 = vmul.f32 %v716, %v707
  %v721 = vmul.f32 %v719, %v707
  %v722 = vadd.f32 %v720, 1e-12
  %v723 = vadd.f32 %v721, 1e-12
  %v724 = vrsqrt.pop %v722
  %v725 = vmul.f32 %v724, %v722
  %v726 = vmul.f32 %v725, %v724
  %v727 = vmul.f32 0.5, %v726
  %v728 = vsub.f32 1.5, %v727
  %v729 = vmul.f32 %v724, %v728
  %vm730 = vweird.f32 %v722
  %vm731 = vweird.f32 %v724
  %vm732 = vmor %vm730, %vm731
  %v733 = vsel %vm732, %v724, %v729
  %v734 = vrsqrt.pop %v723
  %v735 = vmul.f32 %v734, %v723
  %v736 = vmul.f32 %v735, %v734
  %v737 = vmul.f32 0.5, %v736
  %v738 = vsub.f32 1.5, %v737
  %v739 = vmul.f32 %v734, %v738
  %vm740 = vweird.f32 %v723
  %vm741 = vweird.f32 %v734
  %vm742 = vmor %vm740, %vm741
  %v743 = vsel %vm742, %v734, %v739
  %v744 = vmul.f32 %v710, %v733
  %v745 = vmul.f32 %v711, %v743
  %v747 = vperm.slane %v113, 0
  %v749 = vmul.f32 %v744, %v747
  %v750 = vmul.f32 %v745, %v747
  %v752 = vperm.slane %v114, 0
  %v754 = vadd.f32 %v749, %v752
  %v755 = vadd.f32 %v750, %v752
  %v756 = vpack.c.bf16 %v755, %v754
  %v758 = vperm.slane %v119, 0
  %v764 = vunpack.c.l.b16 %v115
  %v765 = vunpack.c.l.b16 %v116
  %v766 = vunpack.c.l.b16 %v117
  %v767 = vunpack.c.l.b16 %v118
  %v768 = vpack.c.b16 %v765, %v764
  %v769 = vpack.c.b16 %v767, %v766
  %v773 = vsel %vm147, %v756, 0
  %775 = vmatpush.bf16.msra.mxu0 0
  %776 = vmatpush.bf16.msra.mxu0 0
  %777 = vmatpush.bf16.msra.mxu0 0
  %778 = vmatpush.bf16.msra.mxu0 0
  %779 = vmatpush.bf16.msra.mxu0 0
  %780 = vmatpush.bf16.msra.mxu0 0
  %781 = vmatpush.bf16.msra.mxu0 %v769
  %782 = vmatpush.bf16.msra.mxu0 %v768
  %783 = vmatmul.bf16.gmra.mxu0 %v773
  %v784 = vpop.f32.mrf.mxu0
  %v785 = vadd.f32 %v758, %v784
  %v786 = vpop.f32.mrf.mxu0
  %v787 = vadd.f32 %v758, %v786
  %788 = vdwg.mxu0
  %v789 = vmul.f32 %v785, %v785
  %v790 = vmul.f32 %v787, %v787
  %v791 = vmul.f32 %v785, %v789
  %v792 = vmul.f32 %v787, %v790
  %v793 = vmul.f32 %v791, 0.044715
  %v794 = vmul.f32 %v792, 0.044715
  %v795 = vadd.f32 %v785, %v793
  %v796 = vadd.f32 %v787, %v794
  %v797 = vmul.f32 %v795, 0.7978846
  %v798 = vmul.f32 %v796, 0.7978846
  %v799 = vtanh.pop %v797
  %v800 = vtanh.pop %v798
  %v801 = vadd.f32 %v799, 1.0
  %v802 = vadd.f32 %v800, 1.0
  %v803 = vmul.f32 %v801, 0.5
  %v804 = vmul.f32 %v802, 0.5
  %v805 = vmul.f32 %v785, %v803
  %v806 = vmul.f32 %v787, %v804
  %v807 = vpack.c.bf16 %v806, %v805
  %v809 = vperm.slane %v128, 0
  %v819 = vunpack.c.l.b16 %v120
  %v820 = vunpack.c.l.b16 %v121
  %v821 = vunpack.c.l.b16 %v122
  %v822 = vunpack.c.l.b16 %v123
  %v823 = vunpack.c.l.b16 %v124
  %v824 = vunpack.c.l.b16 %v125
  %v825 = vunpack.c.l.b16 %v126
  %v826 = vunpack.c.l.b16 %v127
  %v827 = vpack.c.b16 %v820, %v819
  %v828 = vpack.c.b16 %v822, %v821
  %v829 = vpack.c.b16 %v824, %v823
  %v830 = vpack.c.b16 %v826, %v825
  %vm835 = vcmask 523264
  %v837 = vsel %vm835, %v807, 0
  %839 = vmatpush.bf16.msra.mxu0 0
  %840 = vmatpush.bf16.msra.mxu0 0
  %841 = vmatpush.bf16.msra.mxu0 0
  %842 = vmatpush.bf16.msra.mxu0 0
  %843 = vmatpush.bf16.msra.mxu0 %v830
  %844 = vmatpush.bf16.msra.mxu0 %v829
  %845 = vmatpush.bf16.msra.mxu0 %v828
  %846 = vmatpush.bf16.msra.mxu0 %v827
  %847 = vmatmul.bf16.gmra.mxu0 %v837
  %v848 = vpop.f32.mrf.mxu0
  %v849 = vadd.f32 %v809, %v848
  %v850 = vpop.f32.mrf.mxu0
  %v851 = vadd.f32 %v809, %v850
  %852 = vdwg.mxu0
  %v853 = vadd.f32 %v754, %v849
  %v854 = vadd.f32 %v755, %v851
  %v855 = vsel %vm147, %v853, 0.0
  %856 = vadd.xlane.f32.xlu0 %v855
  %v857 = vpop.xlane.xlu0 %856
  %v858 = vsel %vm147, %v854, 0.0
  %859 = vadd.xlane.f32.xlu0 %v858
  %v860 = vpop.xlane.xlu0 %859
  %v861 = vmul.f32 %v857, %v707
  %v862 = vmul.f32 %v860, %v707
  %v863 = vsub.f32 %v853, %v861
  %v864 = vsub.f32 %v854, %v862
  %v865 = vmul.f32 %v863, %v863
  %v866 = vmul.f32 %v864, %v864
  %v867 = vsel %vm147, %v865, 0.0
  %868 = vadd.xlane.f32.xlu0 %v867
  %v869 = vpop.xlane.xlu0 %868
  %v870 = vsel %vm147, %v866, 0.0
  %871 = vadd.xlane.f32.xlu0 %v870
  %v872 = vpop.xlane.xlu0 %871
  %v873 = vmul.f32 %v869, %v707
  %v874 = vmul.f32 %v872, %v707
  %v875 = vadd.f32 %v873, 1e-12
  %v876 = vadd.f32 %v874, 1e-12
  %v877 = vrsqrt.pop %v875
  %v878 = vmul.f32 %v877, %v875
  %v879 = vmul.f32 %v878, %v877
  %v880 = vmul.f32 0.5, %v879
  %v881 = vsub.f32 1.5, %v880
  %v882 = vmul.f32 %v877, %v881
  %vm883 = vweird.f32 %v875
  %vm884 = vweird.f32 %v877
  %vm885 = vmor %vm883, %vm884
  %v886 = vsel %vm885, %v877, %v882
  %v887 = vrsqrt.pop %v876
  %v888 = vmul.f32 %v887, %v876
  %v889 = vmul.f32 %v888, %v887
  %v890 = vmul.f32 0.5, %v889
  %v891 = vsub.f32 1.5, %v890
  %v892 = vmul.f32 %v887, %v891
  %vm893 = vweird.f32 %v876
  %vm894 = vweird.f32 %v887
  %vm895 = vmor %vm893, %vm894
  %v896 = vsel %vm895, %v887, %v892
  %v897 = vmul.f32 %v863, %v886
  %v898 = vmul.f32 %v864, %v896
  %v900 = vperm.slane %v129, 0
  %v902 = vmul.f32 %v897, %v900
  %v903 = vmul.f32 %v898, %v900
  %v905 = vperm.slane %v130, 0
  %v907 = vadd.f32 %v902, %v905
  %v908 = vadd.f32 %v903, %v905
  %v909 = vld [vmem:[%s16] sm:$0xf]
  %v910 = vld [vmem:[%s16 + $0x4] sm:$0xf]
  %v911 = vld [vmem:[%s16 + $0x8] sm:$0xf]
  %v912 = vld [vmem:[%s16 + $0xc] sm:$0xf]
  %v913 = vpack.c.bf16 %v908, %v907
  %v914 = vld [vmem:[%s17] sm:$0x1]
  %v916 = vperm.slane %v914, 0
  %v922 = vunpack.c.l.b16 %v909
  %v923 = vunpack.c.l.b16 %v910
  %v924 = vunpack.c.l.b16 %v911
  %v925 = vunpack.c.l.b16 %v912
  %v926 = vpack.c.b16 %v923, %v922
  %v927 = vpack.c.b16 %v925, %v924
  %v931 = vsel %vm147, %v913, 0
  %933 = vmatpush.bf16.msra.mxu0 0
  %934 = vmatpush.bf16.msra.mxu0 0
  %935 = vmatpush.bf16.msra.mxu0 0
  %936 = vmatpush.bf16.msra.mxu0 0
  %937 = vmatpush.bf16.msra.mxu0 0
  %938 = vmatpush.bf16.msra.mxu0 0
  %939 = vmatpush.bf16.msra.mxu0 %v927
  %940 = vmatpush.bf16.msra.mxu0 %v926
  %941 = vmatmul.bf16.gmra.mxu0 %v931
  %v942 = vpop.f32.mrf.mxu0
  %v943 = vadd.f32 %v916, %v942
  %v944 = vpop.f32.mrf.mxu0
  %v945 = vadd.f32 %v916, %v944
  %946 = vdwg.mxu0
  %v947 = vmax.f32 %v943, 0.0
  %v948 = vmax.f32 %v945, 0.0
  %v949 = vld [vmem:[%s18] sm:$0xf]
  %v950 = vld [vmem:[%s18 + $0x4] sm:$0xf]
  %v951 = vld [vmem:[%s18 + $0x8] sm:$0xf]
  %v952 = vld [vmem:[%s18 + $0xc] sm:$0xf]
  %v953 = vpack.c.bf16 %v948, %v947
  %v954 = vld [vmem:[%s19] sm:$0x1]
  %v956 = vperm.slane %v954, 0
  %v962 = vunpack.c.l.b16 %v949
  %v963 = vunpack.c.l.b16 %v950
  %v964 = vunpack.c.l.b16 %v951
  %v965 = vunpack.c.l.b16 %v952
  %v966 = vpack.c.b16 %v963, %v962
  %v967 = vpack.c.b16 %v965, %v964
  %v971 = vsel %vm147, %v953, 0
  %973 = vmatpush.bf16.msra.mxu0 0
  %974 = vmatpush.bf16.msra.mxu0 0
  %975 = vmatpush.bf16.msra.mxu0 0
  %976 = vmatpush.bf16.msra.mxu0 0
  %977 = vmatpush.bf16.msra.mxu0 0
  %978 = vmatpush.bf16.msra.mxu0 0
  %979 = vmatpush.bf16.msra.mxu0 %v967
  %980 = vmatpush.bf16.msra.mxu0 %v966
  %981 = vmatmul.bf16.gmra.mxu0 %v971
  %v982 = vpop.f32.mrf.mxu0
  %v983 = vadd.f32 %v956, %v982
  %v984 = vpop.f32.mrf.mxu0
  %v985 = vadd.f32 %v956, %v984
  %986 = vdwg.mxu0
  %987 = vst.msk [vmem:[%s20] sm:$0xff] %vm147, %v983
  %988 = vst.msk [vmem:[%s20 + $0x8] sm:$0xff] %vm147, %v985
  // Predicated region
  $region82: #{audio_imagination_bert_forward.2} parent=0 // pred_check
    _
  $region83: #{audio_imagination_bert_forward.2} parent=0 // pred_check_branch
    %990 = sbr.rel (0) target = $region85
  $region84: #{audio_imagination_bert_forward.2} parent=0 // pred_region
    _
  $region85: #{audio_imagination_bert_forward.2} parent=0 // pred_fallthru
    _
  // Predicated region
  $region86: #{audio_imagination_bert_forward.2} parent=0 // pred_check
    _
  $region87: #{audio_imagination_bert_forward.2} parent=0 // pred_check_branch
    %992 = sbr.rel (0) target = $region89
  $region88: #{audio_imagination_bert_forward.2} parent=0 // pred_region
    _
  $region89: #{audio_imagination_bert_forward.2} parent=0 // pred_fallthru
    _

// kernel: audio_imagination_bert_forward.3
$region0: #{audio_imagination_bert_forward.3}
  #allocation0 [shape = 'u32[]', space=smem, size = 0x4, offset = 0x4, fixed_abs, tag = 'smem constant byte address 0x4 - core index']
  #allocation1 [shape = 'u32[72,128]{1,0:T(1,128)}', space=vmem, size = 0x9000, scoped, tag = 'internal scratch']
  #allocation2 [shape = 'f32[16,32]{1,0:T(8,128)}', space=vmem, size = 0x2000, scoped, tag = 'scratch operand']
  %s0 = inlined_call_operand.smem [shape: u32[44], index: -1, kind: input, shape index: {}]
  %s1 = sld [smem:[%s0]]
  %s2 = scalar_lea.smem %s0, 1
  %s3 = sld [smem:[%s2]]
  %s4 = scalar_lea.smem %s0, 2
  %s5 = sld [smem:[%s4]]
  %s6 = scalar_lea.smem %s0, 3
  %s7 = sld [smem:[%s6]]
  %s8 = scalar_lea.smem %s0, 4
  %s9 = sld [smem:[%s8]]
  %s10 = scalar_lea.smem %s0, 5
  %s11 = sld [smem:[%s10]]
  %s12 = scalar_lea.smem %s0, 6
  %s13 = sld [smem:[%s12]]
  %s14 = scalar_lea.smem %s0, 7
  %s15 = sld [smem:[%s14]]
  %s16 = scalar_lea.smem %s0, 8
  %s17 = sld [smem:[%s16]]
  %s18 = scalar_lea.smem %s0, 9
  %s19 = sld [smem:[%s18]]
  %s20 = scalar_lea.smem %s0, 10
  %s21 = sld [smem:[%s20]]
  %s22 = scalar_lea.smem %s0, 11
  %s23 = sld [smem:[%s22]]
  %s24 = scalar_lea.smem %s0, 12
  %s25 = sld [smem:[%s24]]
  %s26 = scalar_lea.smem %s0, 13
  %s27 = sld [smem:[%s26]]
  %s28 = scalar_lea.smem %s0, 14
  %s29 = sld [smem:[%s28]]
  %s30 = scalar_lea.smem %s0, 15
  %s31 = sld [smem:[%s30]]
  %s32 = scalar_lea.smem %s0, 16
  %s33 = sld [smem:[%s32]]
  %s34 = scalar_lea.smem %s0, 17
  %s35 = sld [smem:[%s34]]
  %s36 = scalar_lea.smem %s0, 18
  %s37 = sld [smem:[%s36]]
  %s38 = scalar_lea.smem %s0, 19
  %s39 = sld [smem:[%s38]]
  %s40 = scalar_lea.smem %s0, 20
  %s41 = sld [smem:[%s40]]
  %s42 = scalar_lea.smem %s0, 21
  %s43 = sld [smem:[%s42]]
  %s44 = scalar_lea.smem %s0, 22
  %s45 = sld [smem:[%s44]]
  %s46 = scalar_lea.smem %s0, 23
  %s47 = sld [smem:[%s46]]
  %s48 = scalar_lea.smem %s0, 24
  %s49 = sld [smem:[%s48]]
  %s50 = scalar_lea.smem %s0, 25
  %s51 = sld [smem:[%s50]]
  %s52 = scalar_lea.smem %s0, 26
  %s53 = sld [smem:[%s52]]
  %s54 = scalar_lea.smem %s0, 27
  %s55 = sld [smem:[%s54]]
  %s56 = scalar_lea.smem %s0, 28
  %s57 = sld [smem:[%s56]]
  %s58 = scalar_lea.smem %s0, 29
  %s59 = sld [smem:[%s58]]
  %s60 = scalar_lea.smem %s0, 30
  %s61 = sld [smem:[%s60]]
  %s62 = scalar_lea.smem %s0, 31
  %s63 = sld [smem:[%s62]]
  %s64 = scalar_lea.smem %s0, 32
  %s65 = sld [smem:[%s64]]
  %s66 = scalar_lea.smem %s0, 33
  %s67 = sld [smem:[%s66]]
  %s68 = scalar_lea.smem %s0, 34
  %s69 = sld [smem:[%s68]]
  %s70 = scalar_lea.smem %s0, 35
  %s71 = sld [smem:[%s70]]
  %s72 = scalar_lea.smem %s0, 36
  %s73 = sld [smem:[%s72]]
  %s74 = scalar_lea.smem %s0, 37
  %s75 = sld [smem:[%s74]]
  %s76 = scalar_lea.smem %s0, 38
  %s77 = sld [smem:[%s76]]
  %s78 = scalar_lea.smem %s0, 39
  %s79 = sld [smem:[%s78]]
  %s80 = scalar_lea.smem %s0, 40
  %s81 = sld [smem:[%s80]]
  %s82 = scalar_lea.smem %s0, 41
  %s83 = sld [smem:[%s82]]
  %s84 = scalar_lea.smem %s0, 42
  %s85 = sld [smem:[%s84]]
  %s86 = scalar_lea.smem %s0, 43
  %s87 = sld [smem:[%s86]]
  %88 = xla_tuple %s85, %s87
  %s89 = sld [smem:[#allocation0]]
  $region254: #{audio_imagination_bert_forward.3} parent=0
    _
  %s91 = ssub.s32 1, %s89
  %s92 = scalar_select 0, %s91, %s89
  $region1: #{audio_imagination_bert_forward.3} parent=0
    #allocation3 [shape = 'u8[512]{0}', space=vmem, size = 0x400, scoped, tag = 'input window, operand 1, single buffered']
    #allocation4 [shape = 's32[1]{0}', space=sflag, size = 0x4, scoped, tag = 'scoped memory for audio_imagination_bert_forward.3']
    #allocation5 [shape = 's32[1]{0}', space=sflag, size = 0x4, scoped, tag = 'scoped memory for audio_imagination_bert_forward.3']
    #allocation6 [shape = 's32[1]{0}', space=sflag, size = 0x4, scoped, tag = 'scoped memory for audio_imagination_bert_forward.3']
    #allocation7 [shape = 'u8[512]{0}', space=vmem, size = 0x400, scoped, tag = 'input window, operand 2, single buffered']
    #allocation8 [shape = 's32[1]{0}', space=sflag, size = 0x4, scoped, tag = 'scoped memory for audio_imagination_bert_forward.3']
    #allocation9 [shape = 'u8[512]{0}', space=vmem, size = 0x400, scoped, tag = 'input window, operand 18, single buffered']
    #allocation10 [shape = 'u8[512]{0}', space=vmem, size = 0x400, scoped, tag = 'input window, operand 20, single buffered']
    #allocation11 [shape = 's32[1]{0}', space=sflag, size = 0x4, scoped, tag = 'scoped memory for audio_imagination_bert_forward.3']
    #allocation12 [shape = 'u8[512]{0}', space=vmem, size = 0x400, scoped, tag = 'input window, operand 22, single buffered']
    #allocation13 [shape = 'u8[512]{0}', space=vmem, size = 0x400, scoped, tag = 'input window, operand 23, single buffered']
    #allocation14 [shape = 's32[1]{0}', space=sflag, size = 0x4, scoped, tag = 'scoped memory for audio_imagination_bert_forward.3']
    #allocation15 [shape = 'u8[512]{0}', space=vmem, size = 0x400, scoped, tag = 'input window, operand 24, single buffered']
    #allocation16 [shape = 'u8[512]{0}', space=vmem, size = 0x400, scoped, tag = 'input window, operand 26, single buffered']
    #allocation17 [shape = 's32[1]{0}', space=sflag, size = 0x4, scoped, tag = 'scoped memory for audio_imagination_bert_forward.3']
    #allocation18 [shape = 'u8[512]{0}', space=vmem, size = 0x400, scoped, tag = 'input window, operand 28, single buffered']
    #allocation19 [shape = 'u8[512]{0}', space=vmem, size = 0x400, scoped, tag = 'input window, operand 29, single buffered']
    #allocation20 [shape = 's32[1]{0}', space=sflag, size = 0x4, scoped, tag = 'scoped memory for audio_imagination_bert_forward.3']
    #allocation21 [shape = 'u8[512]{0}', space=vmem, size = 0x400, scoped, tag = 'input window, operand 30, single buffered']
    #allocation22 [shape = 'u8[512]{0}', space=vmem, size = 0x400, scoped, tag = 'input window, operand 32, single buffered']
    #allocation23 [shape = 's32[1]{0}', space=sflag, size = 0x4, scoped, tag = 'scoped memory for audio_imagination_bert_forward.3']
    #allocation24 [shape = 'u8[512]{0}', space=vmem, size = 0x400, scoped, tag = 'input window, operand 34, single buffered']
    #allocation25 [shape = 'u8[512]{0}', space=vmem, size = 0x400, scoped, tag = 'input window, operand 36, single buffered']
    #allocation26 [shape = 's32[1]{0}', space=sflag, size = 0x4, scoped, tag = 'scoped memory for audio_imagination_bert_forward.3']
    #allocation27 [shape = 'u8[512]{0}', space=vmem, size = 0x400, scoped, tag = 'input window, operand 37, single buffered']
    #allocation28 [shape = 'u8[512]{0}', space=vmem, size = 0x400, scoped, tag = 'input window, operand 38, single buffered']
    #allocation29 [shape = 's32[1]{0}', space=sflag, size = 0x4, scoped, tag = 'scoped memory for audio_imagination_bert_forward.3']
    #allocation30 [shape = 'u8[512]{0}', space=vmem, size = 0x400, scoped, tag = 'input window, operand 40, single buffered']
    #allocation31 [shape = 'u8[8192]{0}', space=vmem, size = 0x2000, scoped, tag = 'output window, operand 0, single buffered']
    #allocation32 [shape = 'u8[512]{0}', space=smem, size = 0x200, scoped, tag = 'output window, operand 1, single buffered']
    %93 = vsyncpa [#allocation4], 0
    %94 = vsyncpa [#allocation8], 0
    %95 = vsyncpa [#allocation11], 0
    %96 = vsyncpa [#allocation14], 0
    %97 = vsyncpa [#allocation17], 0
    %98 = vsyncpa [#allocation20], 0
    %99 = vsyncpa [#allocation23], 0
    %100 = vsyncpa [#allocation26], 0
    %101 = vsyncpa [#allocation29], 0
    %102 = vsyncpa [#allocation5], 0
    %103 = vsyncpa [#allocation6], 0
    // Predicated region
    $region2: #{audio_imagination_bert_forward.3} parent=1 // pred_check
      _
    $region3: #{audio_imagination_bert_forward.3} parent=1 // pred_check_branch
      %105 = sbr.rel (0) target = $region5
    $region4: #{audio_imagination_bert_forward.3} parent=1 // pred_region
      _
    $region5: #{audio_imagination_bert_forward.3} parent=1 // pred_fallthru
      _
    // Predicated region
    $region6: #{audio_imagination_bert_forward.3} parent=1 // pred_check
      _
    $region7: #{audio_imagination_bert_forward.3} parent=1 // pred_check_branch
      %107 = sbr.rel (0) target = $region9
    $region8: #{audio_imagination_bert_forward.3} parent=1 // pred_region
      %109 = vsyncadd [#allocation4], 0
      %s111 = sshll.u32 %s3, 4
      %s112 = int_to_ptr.hbm [resolvable:$true] %s111
      %s113 = sshll.u32 [#allocation3], 4
      %s114 = int_to_ptr.vmem [resolvable:$true] %s113
      %116 = dma.hbm_to_vmem [thread:$0]  %s112, 16, %s114, [#allocation4]
    $region9: #{audio_imagination_bert_forward.3} parent=1 // pred_fallthru
      _
    // Predicated region
    $region10: #{audio_imagination_bert_forward.3} parent=1 // pred_check
      _
    $region11: #{audio_imagination_bert_forward.3} parent=1 // pred_check_branch
      %118 = sbr.rel (0) target = $region13
    $region12: #{audio_imagination_bert_forward.3} parent=1 // pred_region
      %120 = vsyncadd [#allocation8], 0
      %s122 = sshll.u32 %s5, 4
      %s123 = int_to_ptr.hbm [resolvable:$true] %s122
      %s124 = sshll.u32 [#allocation7], 4
      %s125 = int_to_ptr.vmem [resolvable:$true] %s124
      %127 = dma.hbm_to_vmem [thread:$0]  %s123, 16, %s125, [#allocation8]
    $region13: #{audio_imagination_bert_forward.3} parent=1 // pred_fallthru
      _
    // Predicated region
    $region14: #{audio_imagination_bert_forward.3} parent=1 // pred_check
      _
    $region15: #{audio_imagination_bert_forward.3} parent=1 // pred_check_branch
      %129 = sbr.rel (0) target = $region17
    $region16: #{audio_imagination_bert_forward.3} parent=1 // pred_region
      _
    $region17: #{audio_imagination_bert_forward.3} parent=1 // pred_fallthru
      _
    // Predicated region
    $region18: #{audio_imagination_bert_forward.3} parent=1 // pred_check
      _
    $region19: #{audio_imagination_bert_forward.3} parent=1 // pred_check_branch
      %131 = sbr.rel (0) target = $region21
    $region20: #{audio_imagination_bert_forward.3} parent=1 // pred_region
      _
    $region21: #{audio_imagination_bert_forward.3} parent=1 // pred_fallthru
      _
    // Predicated region
    $region22: #{audio_imagination_bert_forward.3} parent=1 // pred_check
      _
    $region23: #{audio_imagination_bert_forward.3} parent=1 // pred_check_branch
      %133 = sbr.rel (0) target = $region25
    $region24: #{audio_imagination_bert_forward.3} parent=1 // pred_region
      _
    $region25: #{audio_imagination_bert_forward.3} parent=1 // pred_fallthru
      _
    // Predicated region
    $region26: #{audio_imagination_bert_forward.3} parent=1 // pred_check
      _
    $region27: #{audio_imagination_bert_forward.3} parent=1 // pred_check_branch
      %135 = sbr.rel (0) target = $region29
    $region28: #{audio_imagination_bert_forward.3} parent=1 // pred_region
      _
    $region29: #{audio_imagination_bert_forward.3} parent=1 // pred_fallthru
      _
    // Predicated region
    $region30: #{audio_imagination_bert_forward.3} parent=1 // pred_check
      _
    $region31: #{audio_imagination_bert_forward.3} parent=1 // pred_check_branch
      %137 = sbr.rel (0) target = $region33
    $region32: #{audio_imagination_bert_forward.3} parent=1 // pred_region
      _
    $region33: #{audio_imagination_bert_forward.3} parent=1 // pred_fallthru
      _
    // Predicated region
    $region34: #{audio_imagination_bert_forward.3} parent=1 // pred_check
      _
    $region35: #{audio_imagination_bert_forward.3} parent=1 // pred_check_branch
      %139 = sbr.rel (0) target = $region37
    $region36: #{audio_imagination_bert_forward.3} parent=1 // pred_region
      _
    $region37: #{audio_imagination_bert_forward.3} parent=1 // pred_fallthru
      _
    // Predicated region
    $region38: #{audio_imagination_bert_forward.3} parent=1 // pred_check
      _
    $region39: #{audio_imagination_bert_forward.3} parent=1 // pred_check_branch
      %141 = sbr.rel (0) target = $region41
    $region40: #{audio_imagination_bert_forward.3} parent=1 // pred_region
      _
    $region41: #{audio_imagination_bert_forward.3} parent=1 // pred_fallthru
      _
    // Predicated region
    $region42: #{audio_imagination_bert_forward.3} parent=1 // pred_check
      _
    $region43: #{audio_imagination_bert_forward.3} parent=1 // pred_check_branch
      %143 = sbr.rel (0) target = $region45
    $region44: #{audio_imagination_bert_forward.3} parent=1 // pred_region
      _
    $region45: #{audio_imagination_bert_forward.3} parent=1 // pred_fallthru
      _
    // Predicated region
    $region46: #{audio_imagination_bert_forward.3} parent=1 // pred_check
      _
    $region47: #{audio_imagination_bert_forward.3} parent=1 // pred_check_branch
      %145 = sbr.rel (0) target = $region49
    $region48: #{audio_imagination_bert_forward.3} parent=1 // pred_region
      _
    $region49: #{audio_imagination_bert_forward.3} parent=1 // pred_fallthru
      _
    // Predicated region
    $region50: #{audio_imagination_bert_forward.3} parent=1 // pred_check
      _
    $region51: #{audio_imagination_bert_forward.3} parent=1 // pred_check_branch
      %147 = sbr.rel (0) target = $region53
    $region52: #{audio_imagination_bert_forward.3} parent=1 // pred_region
      _
    $region53: #{audio_imagination_bert_forward.3} parent=1 // pred_fallthru
      _
    // Predicated region
    $region54: #{audio_imagination_bert_forward.3} parent=1 // pred_check
      _
    $region55: #{audio_imagination_bert_forward.3} parent=1 // pred_check_branch
      %149 = sbr.rel (0) target = $region57
    $region56: #{audio_imagination_bert_forward.3} parent=1 // pred_region
      _
    $region57: #{audio_imagination_bert_forward.3} parent=1 // pred_fallthru
      _
    // Predicated region
    $region58: #{audio_imagination_bert_forward.3} parent=1 // pred_check
      _
    $region59: #{audio_imagination_bert_forward.3} parent=1 // pred_check_branch
      %151 = sbr.rel (0) target = $region61
    $region60: #{audio_imagination_bert_forward.3} parent=1 // pred_region
      _
    $region61: #{audio_imagination_bert_forward.3} parent=1 // pred_fallthru
      _
    // Predicated region
    $region62: #{audio_imagination_bert_forward.3} parent=1 // pred_check
      _
    $region63: #{audio_imagination_bert_forward.3} parent=1 // pred_check_branch
      %153 = sbr.rel (0) target = $region65
    $region64: #{audio_imagination_bert_forward.3} parent=1 // pred_region
      _
    $region65: #{audio_imagination_bert_forward.3} parent=1 // pred_fallthru
      _
    // Predicated region
    $region66: #{audio_imagination_bert_forward.3} parent=1 // pred_check
      _
    $region67: #{audio_imagination_bert_forward.3} parent=1 // pred_check_branch
      %155 = sbr.rel (0) target = $region69
    $region68: #{audio_imagination_bert_forward.3} parent=1 // pred_region
      _
    $region69: #{audio_imagination_bert_forward.3} parent=1 // pred_fallthru
      _
    // Predicated region
    $region70: #{audio_imagination_bert_forward.3} parent=1 // pred_check
      _
    $region71: #{audio_imagination_bert_forward.3} parent=1 // pred_check_branch
      %157 = sbr.rel (0) target = $region73
    $region72: #{audio_imagination_bert_forward.3} parent=1 // pred_region
      _
    $region73: #{audio_imagination_bert_forward.3} parent=1 // pred_fallthru
      _
    // Predicated region
    $region74: #{audio_imagination_bert_forward.3} parent=1 // pred_check
      _
    $region75: #{audio_imagination_bert_forward.3} parent=1 // pred_check_branch
      %159 = sbr.rel (0) target = $region77
    $region76: #{audio_imagination_bert_forward.3} parent=1 // pred_region
      %161 = vsyncadd [#allocation8], 0
      %s163 = sshll.u32 %s37, 4
      %s164 = int_to_ptr.hbm [resolvable:$true] %s163
      %s165 = sshll.u32 [#allocation9], 4
      %s166 = int_to_ptr.vmem [resolvable:$true] %s165
      %168 = dma.hbm_to_vmem [thread:$0]  %s164, 16, %s166, [#allocation8]
    $region77: #{audio_imagination_bert_forward.3} parent=1 // pred_fallthru
      _
    // Predicated region
    $region78: #{audio_imagination_bert_forward.3} parent=1 // pred_check
      _
    $region79: #{audio_imagination_bert_forward.3} parent=1 // pred_check_branch
      %170 = sbr.rel (0) target = $region81
    $region80: #{audio_imagination_bert_forward.3} parent=1 // pred_region
      _
    $region81: #{audio_imagination_bert_forward.3} parent=1 // pred_fallthru
      _
    // Predicated region
    $region82: #{audio_imagination_bert_forward.3} parent=1 // pred_check
      _
    $region83: #{audio_imagination_bert_forward.3} parent=1 // pred_check_branch
      %172 = sbr.rel (0) target = $region85
    $region84: #{audio_imagination_bert_forward.3} parent=1 // pred_region
      %174 = vsyncadd [#allocation11], 0
      %s176 = sshll.u32 %s41, 4
      %s177 = int_to_ptr.hbm [resolvable:$true] %s176
      %s178 = sshll.u32 [#allocation10], 4
      %s179 = int_to_ptr.vmem [resolvable:$true] %s178
      %181 = dma.hbm_to_vmem [thread:$0]  %s177, 16, %s179, [#allocation11]
    $region85: #{audio_imagination_bert_forward.3} parent=1 // pred_fallthru
      _
    // Predicated region
    $region86: #{audio_imagination_bert_forward.3} parent=1 // pred_check
      _
    $region87: #{audio_imagination_bert_forward.3} parent=1 // pred_check_branch
      %183 = sbr.rel (0) target = $region89
    $region88: #{audio_imagination_bert_forward.3} parent=1 // pred_region
      _
    $region89: #{audio_imagination_bert_forward.3} parent=1 // pred_fallthru
      _
    // Predicated region
    $region90: #{audio_imagination_bert_forward.3} parent=1 // pred_check
      _
    $region91: #{audio_imagination_bert_forward.3} parent=1 // pred_check_branch
      %185 = sbr.rel (0) target = $region93
    $region92: #{audio_imagination_bert_forward.3} parent=1 // pred_region
      %187 = vsyncadd [#allocation11], 0
      %s189 = sshll.u32 %s45, 4
      %s190 = int_to_ptr.hbm [resolvable:$true] %s189
      %s191 = sshll.u32 [#allocation12], 4
      %s192 = int_to_ptr.vmem [resolvable:$true] %s191
      %194 = dma.hbm_to_vmem [thread:$0]  %s190, 16, %s192, [#allocation11]
    $region93: #{audio_imagination_bert_forward.3} parent=1 // pred_fallthru
      _
    // Predicated region
    $region94: #{audio_imagination_bert_forward.3} parent=1 // pred_check
      _
    $region95: #{audio_imagination_bert_forward.3} parent=1 // pred_check_branch
      %196 = sbr.rel (0) target = $region97
    $region96: #{audio_imagination_bert_forward.3} parent=1 // pred_region
      %198 = vsyncadd [#allocation14], 0
      %s200 = sshll.u32 %s47, 4
      %s201 = int_to_ptr.hbm [resolvable:$true] %s200
      %s202 = sshll.u32 [#allocation13], 4
      %s203 = int_to_ptr.vmem [resolvable:$true] %s202
      %205 = dma.hbm_to_vmem [thread:$0]  %s201, 16, %s203, [#allocation14]
    $region97: #{audio_imagination_bert_forward.3} parent=1 // pred_fallthru
      _
    // Predicated region
    $region98: #{audio_imagination_bert_forward.3} parent=1 // pred_check
      _
    $region99: #{audio_imagination_bert_forward.3} parent=1 // pred_check_branch
      %207 = sbr.rel (0) target = $region101
    $region100: #{audio_imagination_bert_forward.3} parent=1 // pred_region
      %209 = vsyncadd [#allocation14], 0
      %s211 = sshll.u32 %s49, 4
      %s212 = int_to_ptr.hbm [resolvable:$true] %s211
      %s213 = sshll.u32 [#allocation15], 4
      %s214 = int_to_ptr.vmem [resolvable:$true] %s213
      %216 = dma.hbm_to_vmem [thread:$0]  %s212, 16, %s214, [#allocation14]
    $region101: #{audio_imagination_bert_forward.3} parent=1 // pred_fallthru
      _
    // Predicated region
    $region102: #{audio_imagination_bert_forward.3} parent=1 // pred_check
      _
    $region103: #{audio_imagination_bert_forward.3} parent=1 // pred_check_branch
      %218 = sbr.rel (0) target = $region105
    $region104: #{audio_imagination_bert_forward.3} parent=1 // pred_region
      _
    $region105: #{audio_imagination_bert_forward.3} parent=1 // pred_fallthru
      _
    // Predicated region
    $region106: #{audio_imagination_bert_forward.3} parent=1 // pred_check
      _
    $region107: #{audio_imagination_bert_forward.3} parent=1 // pred_check_branch
      %220 = sbr.rel (0) target = $region109
    $region108: #{audio_imagination_bert_forward.3} parent=1 // pred_region
      %222 = vsyncadd [#allocation17], 0
      %s224 = sshll.u32 %s53, 4
      %s225 = int_to_ptr.hbm [resolvable:$true] %s224
      %s226 = sshll.u32 [#allocation16], 4
      %s227 = int_to_ptr.vmem [resolvable:$true] %s226
      %229 = dma.hbm_to_vmem [thread:$0]  %s225, 16, %s227, [#allocation17]
    $region109: #{audio_imagination_bert_forward.3} parent=1 // pred_fallthru
      _
    // Predicated region
    $region110: #{audio_imagination_bert_forward.3} parent=1 // pred_check
      _
    $region111: #{audio_imagination_bert_forward.3} parent=1 // pred_check_branch
      %231 = sbr.rel (0) target = $region113
    $region112: #{audio_imagination_bert_forward.3} parent=1 // pred_region
      _
    $region113: #{audio_imagination_bert_forward.3} parent=1 // pred_fallthru
      _
    // Predicated region
    $region114: #{audio_imagination_bert_forward.3} parent=1 // pred_check
      _
    $region115: #{audio_imagination_bert_forward.3} parent=1 // pred_check_branch
      %233 = sbr.rel (0) target = $region117
    $region116: #{audio_imagination_bert_forward.3} parent=1 // pred_region
      %235 = vsyncadd [#allocation17], 0
      %s237 = sshll.u32 %s57, 4
      %s238 = int_to_ptr.hbm [resolvable:$true] %s237
      %s239 = sshll.u32 [#allocation18], 4
      %s240 = int_to_ptr.vmem [resolvable:$true] %s239
      %242 = dma.hbm_to_vmem [thread:$0]  %s238, 16, %s240, [#allocation17]
    $region117: #{audio_imagination_bert_forward.3} parent=1 // pred_fallthru
      _
    // Predicated region
    $region118: #{audio_imagination_bert_forward.3} parent=1 // pred_check
      _
    $region119: #{audio_imagination_bert_forward.3} parent=1 // pred_check_branch
      %244 = sbr.rel (0) target = $region121
    $region120: #{audio_imagination_bert_forward.3} parent=1 // pred_region
      %246 = vsyncadd [#allocation20], 0
      %s248 = sshll.u32 %s59, 4
      %s249 = int_to_ptr.hbm [resolvable:$true] %s248
      %s250 = sshll.u32 [#allocation19], 4
      %s251 = int_to_ptr.vmem [resolvable:$true] %s250
      %253 = dma.hbm_to_vmem [thread:$0]  %s249, 16, %s251, [#allocation20]
    $region121: #{audio_imagination_bert_forward.3} parent=1 // pred_fallthru
      _
    // Predicated region
    $region122: #{audio_imagination_bert_forward.3} parent=1 // pred_check
      _
    $region123: #{audio_imagination_bert_forward.3} parent=1 // pred_check_branch
      %255 = sbr.rel (0) target = $region125
    $region124: #{audio_imagination_bert_forward.3} parent=1 // pred_region
      %257 = vsyncadd [#allocation20], 0
      %s259 = sshll.u32 %s61, 4
      %s260 = int_to_ptr.hbm [resolvable:$true] %s259
      %s261 = sshll.u32 [#allocation21], 4
      %s262 = int_to_ptr.vmem [resolvable:$true] %s261
      %264 = dma.hbm_to_vmem [thread:$0]  %s260, 16, %s262, [#allocation20]
    $region125: #{audio_imagination_bert_forward.3} parent=1 // pred_fallthru
      _
    // Predicated region
    $region126: #{audio_imagination_bert_forward.3} parent=1 // pred_check
      _
    $region127: #{audio_imagination_bert_forward.3} parent=1 // pred_check_branch
      %266 = sbr.rel (0) target = $region129
    $region128: #{audio_imagination_bert_forward.3} parent=1 // pred_region
      _
    $region129: #{audio_imagination_bert_forward.3} parent=1 // pred_fallthru
      _
    // Predicated region
    $region130: #{audio_imagination_bert_forward.3} parent=1 // pred_check
      _
    $region131: #{audio_imagination_bert_forward.3} parent=1 // pred_check_branch
      %268 = sbr.rel (0) target = $region133
    $region132: #{audio_imagination_bert_forward.3} parent=1 // pred_region
      %270 = vsyncadd [#allocation23], 0
      %s272 = sshll.u32 %s65, 4
      %s273 = int_to_ptr.hbm [resolvable:$true] %s272
      %s274 = sshll.u32 [#allocation22], 4
      %s275 = int_to_ptr.vmem [resolvable:$true] %s274
      %277 = dma.hbm_to_vmem [thread:$0]  %s273, 16, %s275, [#allocation23]
    $region133: #{audio_imagination_bert_forward.3} parent=1 // pred_fallthru
      _
    // Predicated region
    $region134: #{audio_imagination_bert_forward.3} parent=1 // pred_check
      _
    $region135: #{audio_imagination_bert_forward.3} parent=1 // pred_check_branch
      %279 = sbr.rel (0) target = $region137
    $region136: #{audio_imagination_bert_forward.3} parent=1 // pred_region
      _
    $region137: #{audio_imagination_bert_forward.3} parent=1 // pred_fallthru
      _
    // Predicated region
    $region138: #{audio_imagination_bert_forward.3} parent=1 // pred_check
      _
    $region139: #{audio_imagination_bert_forward.3} parent=1 // pred_check_branch
      %281 = sbr.rel (0) target = $region141
    $region140: #{audio_imagination_bert_forward.3} parent=1 // pred_region
      %283 = vsyncadd [#allocation23], 0
      %s285 = sshll.u32 %s69, 4
      %s286 = int_to_ptr.hbm [resolvable:$true] %s285
      %s287 = sshll.u32 [#allocation24], 4
      %s288 = int_to_ptr.vmem [resolvable:$true] %s287
      %290 = dma.hbm_to_vmem [thread:$0]  %s286, 16, %s288, [#allocation23]
    $region141: #{audio_imagination_bert_forward.3} parent=1 // pred_fallthru
      _
    // Predicated region
    $region142: #{audio_imagination_bert_forward.3} parent=1 // pred_check
      _
    $region143: #{audio_imagination_bert_forward.3} parent=1 // pred_check_branch
      %292 = sbr.rel (0) target = $region145
    $region144: #{audio_imagination_bert_forward.3} parent=1 // pred_region
      _
    $region145: #{audio_imagination_bert_forward.3} parent=1 // pred_fallthru
      _
    // Predicated region
    $region146: #{audio_imagination_bert_forward.3} parent=1 // pred_check
      _
    $region147: #{audio_imagination_bert_forward.3} parent=1 // pred_check_branch
      %294 = sbr.rel (0) target = $region149
    $region148: #{audio_imagination_bert_forward.3} parent=1 // pred_region
      %296 = vsyncadd [#allocation26], 0
      %s298 = sshll.u32 %s73, 4
      %s299 = int_to_ptr.hbm [resolvable:$true] %s298
      %s300 = sshll.u32 [#allocation25], 4
      %s301 = int_to_ptr.vmem [resolvable:$true] %s300
      %303 = dma.hbm_to_vmem [thread:$0]  %s299, 16, %s301, [#allocation26]
    $region149: #{audio_imagination_bert_forward.3} parent=1 // pred_fallthru
      _
    // Predicated region
    $region150: #{audio_imagination_bert_forward.3} parent=1 // pred_check
      _
    $region151: #{audio_imagination_bert_forward.3} parent=1 // pred_check_branch
      %305 = sbr.rel (0) target = $region153
    $region152: #{audio_imagination_bert_forward.3} parent=1 // pred_region
      %307 = vsyncadd [#allocation26], 0
      %s309 = sshll.u32 %s75, 4
      %s310 = int_to_ptr.hbm [resolvable:$true] %s309
      %s311 = sshll.u32 [#allocation27], 4
      %s312 = int_to_ptr.vmem [resolvable:$true] %s311
      %314 = dma.hbm_to_vmem [thread:$0]  %s310, 16, %s312, [#allocation26]
    $region153: #{audio_imagination_bert_forward.3} parent=1 // pred_fallthru
      _
    // Predicated region
    $region154: #{audio_imagination_bert_forward.3} parent=1 // pred_check
      _
    $region155: #{audio_imagination_bert_forward.3} parent=1 // pred_check_branch
      %316 = sbr.rel (0) target = $region157
    $region156: #{audio_imagination_bert_forward.3} parent=1 // pred_region
      %318 = vsyncadd [#allocation29], 0
      %s320 = sshll.u32 %s77, 4
      %s321 = int_to_ptr.hbm [resolvable:$true] %s320
      %s322 = sshll.u32 [#allocation28], 4
      %s323 = int_to_ptr.vmem [resolvable:$true] %s322
      %325 = dma.hbm_to_vmem [thread:$0]  %s321, 16, %s323, [#allocation29]
    $region157: #{audio_imagination_bert_forward.3} parent=1 // pred_fallthru
      _
    // Predicated region
    $region158: #{audio_imagination_bert_forward.3} parent=1 // pred_check
      _
    $region159: #{audio_imagination_bert_forward.3} parent=1 // pred_check_branch
      %327 = sbr.rel (0) target = $region161
    $region160: #{audio_imagination_bert_forward.3} parent=1 // pred_region
      _
    $region161: #{audio_imagination_bert_forward.3} parent=1 // pred_fallthru
      _
    // Predicated region
    $region162: #{audio_imagination_bert_forward.3} parent=1 // pred_check
      _
    $region163: #{audio_imagination_bert_forward.3} parent=1 // pred_check_branch
      %329 = sbr.rel (0) target = $region165
    $region164: #{audio_imagination_bert_forward.3} parent=1 // pred_region
      %331 = vsyncadd [#allocation29], 0
      %s333 = sshll.u32 %s81, 4
      %s334 = int_to_ptr.hbm [resolvable:$true] %s333
      %s335 = sshll.u32 [#allocation30], 4
      %s336 = int_to_ptr.vmem [resolvable:$true] %s335
      %338 = dma.hbm_to_vmem [thread:$0]  %s334, 16, %s336, [#allocation29]
    $region165: #{audio_imagination_bert_forward.3} parent=1 // pred_fallthru
      _
    // Predicated region
    $region166: #{audio_imagination_bert_forward.3} parent=1 // pred_check
      _
    $region167: #{audio_imagination_bert_forward.3} parent=1 // pred_check_branch
      %340 = sbr.rel (0) target = $region169
    $region168: #{audio_imagination_bert_forward.3} parent=1 // pred_region
      _
    $region169: #{audio_imagination_bert_forward.3} parent=1 // pred_fallthru
      _
    // Predicated region
    $region170: #{audio_imagination_bert_forward.3} parent=1 // pred_check
      _
    $region171: #{audio_imagination_bert_forward.3} parent=1 // pred_check_branch
      %342 = sbr.rel (0) target = $region173
    $region172: #{audio_imagination_bert_forward.3} parent=1 // pred_region
      %344 = dma.done [#allocation4], 16
    $region173: #{audio_imagination_bert_forward.3} parent=1 // pred_fallthru
      _
    // Predicated region
    $region174: #{audio_imagination_bert_forward.3} parent=1 // pred_check
      _
    $region175: #{audio_imagination_bert_forward.3} parent=1 // pred_check_branch
      %346 = sbr.rel (0) target = $region177
    $region176: #{audio_imagination_bert_forward.3} parent=1 // pred_region
      %348 = dma.done [#allocation8], 16
    $region177: #{audio_imagination_bert_forward.3} parent=1 // pred_fallthru
      _
    // Predicated region
    $region178: #{audio_imagination_bert_forward.3} parent=1 // pred_check
      _
    $region179: #{audio_imagination_bert_forward.3} parent=1 // pred_check_branch
      %350 = sbr.rel (0) target = $region181
    $region180: #{audio_imagination_bert_forward.3} parent=1 // pred_region
      %352 = dma.done [#allocation8], 16
    $region181: #{audio_imagination_bert_forward.3} parent=1 // pred_fallthru
      _
    // Predicated region
    $region182: #{audio_imagination_bert_forward.3} parent=1 // pred_check
      _
    $region183: #{audio_imagination_bert_forward.3} parent=1 // pred_check_branch
      %354 = sbr.rel (0) target = $region185
    $region184: #{audio_imagination_bert_forward.3} parent=1 // pred_region
      %356 = dma.done [#allocation11], 16
    $region185: #{audio_imagination_bert_forward.3} parent=1 // pred_fallthru
      _
    // Predicated region
    $region186: #{audio_imagination_bert_forward.3} parent=1 // pred_check
      _
    $region187: #{audio_imagination_bert_forward.3} parent=1 // pred_check_branch
      %358 = sbr.rel (0) target = $region189
    $region188: #{audio_imagination_bert_forward.3} parent=1 // pred_region
      %360 = dma.done [#allocation11], 16
    $region189: #{audio_imagination_bert_forward.3} parent=1 // pred_fallthru
      _
    // Predicated region
    $region190: #{audio_imagination_bert_forward.3} parent=1 // pred_check
      _
    $region191: #{audio_imagination_bert_forward.3} parent=1 // pred_check_branch
      %362 = sbr.rel (0) target = $region193
    $region192: #{audio_imagination_bert_forward.3} parent=1 // pred_region
      %364 = dma.done [#allocation14], 16
    $region193: #{audio_imagination_bert_forward.3} parent=1 // pred_fallthru
      _
    // Predicated region
    $region194: #{audio_imagination_bert_forward.3} parent=1 // pred_check
      _
    $region195: #{audio_imagination_bert_forward.3} parent=1 // pred_check_branch
      %366 = sbr.rel (0) target = $region197
    $region196: #{audio_imagination_bert_forward.3} parent=1 // pred_region
      %368 = dma.done [#allocation14], 16
    $region197: #{audio_imagination_bert_forward.3} parent=1 // pred_fallthru
      _
    // Predicated region
    $region198: #{audio_imagination_bert_forward.3} parent=1 // pred_check
      _
    $region199: #{audio_imagination_bert_forward.3} parent=1 // pred_check_branch
      %370 = sbr.rel (0) target = $region201
    $region200: #{audio_imagination_bert_forward.3} parent=1 // pred_region
      %372 = dma.done [#allocation17], 16
    $region201: #{audio_imagination_bert_forward.3} parent=1 // pred_fallthru
      _
    // Predicated region
    $region202: #{audio_imagination_bert_forward.3} parent=1 // pred_check
      _
    $region203: #{audio_imagination_bert_forward.3} parent=1 // pred_check_branch
      %374 = sbr.rel (0) target = $region205
    $region204: #{audio_imagination_bert_forward.3} parent=1 // pred_region
      %376 = dma.done [#allocation17], 16
    $region205: #{audio_imagination_bert_forward.3} parent=1 // pred_fallthru
      _
    // Predicated region
    $region206: #{audio_imagination_bert_forward.3} parent=1 // pred_check
      _
    $region207: #{audio_imagination_bert_forward.3} parent=1 // pred_check_branch
      %378 = sbr.rel (0) target = $region209
    $region208: #{audio_imagination_bert_forward.3} parent=1 // pred_region
      %380 = dma.done [#allocation20], 16
    $region209: #{audio_imagination_bert_forward.3} parent=1 // pred_fallthru
      _
    // Predicated region
    $region210: #{audio_imagination_bert_forward.3} parent=1 // pred_check
      _
    $region211: #{audio_imagination_bert_forward.3} parent=1 // pred_check_branch
      %382 = sbr.rel (0) target = $region213
    $region212: #{audio_imagination_bert_forward.3} parent=1 // pred_region
      %384 = dma.done [#allocation20], 16
    $region213: #{audio_imagination_bert_forward.3} parent=1 // pred_fallthru
      _
    // Predicated region
    $region214: #{audio_imagination_bert_forward.3} parent=1 // pred_check
      _
    $region215: #{audio_imagination_bert_forward.3} parent=1 // pred_check_branch
      %386 = sbr.rel (0) target = $region217
    $region216: #{audio_imagination_bert_forward.3} parent=1 // pred_region
      %388 = dma.done [#allocation23], 16
    $region217: #{audio_imagination_bert_forward.3} parent=1 // pred_fallthru
      _
    // Predicated region
    $region218: #{audio_imagination_bert_forward.3} parent=1 // pred_check
      _
    $region219: #{audio_imagination_bert_forward.3} parent=1 // pred_check_branch
      %390 = sbr.rel (0) target = $region221
    $region220: #{audio_imagination_bert_forward.3} parent=1 // pred_region
      %392 = dma.done [#allocation23], 16
    $region221: #{audio_imagination_bert_forward.3} parent=1 // pred_fallthru
      _
    // Predicated region
    $region222: #{audio_imagination_bert_forward.3} parent=1 // pred_check
      _
    $region223: #{audio_imagination_bert_forward.3} parent=1 // pred_check_branch
      %394 = sbr.rel (0) target = $region225
    $region224: #{audio_imagination_bert_forward.3} parent=1 // pred_region
      %396 = dma.done [#allocation26], 16
    $region225: #{audio_imagination_bert_forward.3} parent=1 // pred_fallthru
      _
    // Predicated region
    $region226: #{audio_imagination_bert_forward.3} parent=1 // pred_check
      _
    $region227: #{audio_imagination_bert_forward.3} parent=1 // pred_check_branch
      %398 = sbr.rel (0) target = $region229
    $region228: #{audio_imagination_bert_forward.3} parent=1 // pred_region
      %400 = dma.done [#allocation26], 16
    $region229: #{audio_imagination_bert_forward.3} parent=1 // pred_fallthru
      _
    // Predicated region
    $region230: #{audio_imagination_bert_forward.3} parent=1 // pred_check
      _
    $region231: #{audio_imagination_bert_forward.3} parent=1 // pred_check_branch
      %402 = sbr.rel (0) target = $region233
    $region232: #{audio_imagination_bert_forward.3} parent=1 // pred_region
      %404 = dma.done [#allocation29], 16
    $region233: #{audio_imagination_bert_forward.3} parent=1 // pred_fallthru
      _
    // Predicated region
    $region234: #{audio_imagination_bert_forward.3} parent=1 // pred_check
      _
    $region235: #{audio_imagination_bert_forward.3} parent=1 // pred_check_branch
      %406 = sbr.rel (0) target = $region237
    $region236: #{audio_imagination_bert_forward.3} parent=1 // pred_region
      %408 = dma.done [#allocation29], 16
    $region237: #{audio_imagination_bert_forward.3} parent=1 // pred_fallthru
      _
    %v410 = vld [vmem:[%s1] sm:$0xff]
    %v411 = vld [vmem:[%s1 + $0x8] sm:$0xff]
    %v412 = vld [vmem:[#allocation3] sm:$0x1]
    %v413 = vld [vmem:[#allocation7] sm:$0x1]
    %vm414 = vcmask 261120
    %v415 = vsel %vm414, %v410, 0.0
    %416 = vadd.xlane.f32.xlu0 %v415
    %v417 = vpop.xlane.xlu0 %416
    %v418 = vsel %vm414, %v411, 0.0
    %419 = vadd.xlane.f32.xlu0 %v418
    %v420 = vpop.xlane.xlu0 %419
    %v421 = vrcp.pop 32.0
    %v422 = vmul.f32 32.0, %v421
    %v423 = vsub.f32 1.0, %v422
    %v424 = vmul.f32 %v421, %v423
    %v425 = vadd.f32 %v421, %v424
    %vm426 = vweird.f32 %v421
    %v427 = vsel %vm426, %v421, %v425
    %v428 = vmul.f32 %v417, %v427
    %v429 = vmul.f32 %v420, %v427
    %v430 = vsub.f32 %v410, %v428
    %v431 = vsub.f32 %v411, %v429
    %v432 = vmul.f32 %v430, %v430
    %v433 = vmul.f32 %v431, %v431
    %v434 = vsel %vm414, %v432, 0.0
    %435 = vadd.xlane.f32.xlu0 %v434
    %v436 = vpop.xlane.xlu0 %435
    %v437 = vsel %vm414, %v433, 0.0
    %438 = vadd.xlane.f32.xlu0 %v437
    %v439 = vpop.xlane.xlu0 %438
    %v440 = vmul.f32 %v436, %v427
    %v441 = vmul.f32 %v439, %v427
    %v442 = vadd.f32 %v440, 1e-12
    %v443 = vadd.f32 %v441, 1e-12
    %v444 = vrsqrt.pop %v442
    %v445 = vmul.f32 %v444, %v442
    %v446 = vmul.f32 %v445, %v444
    %v447 = vmul.f32 0.5, %v446
    %v448 = vsub.f32 1.5, %v447
    %v449 = vmul.f32 %v444, %v448
    %vm450 = vweird.f32 %v442
    %vm451 = vweird.f32 %v444
    %vm452 = vmor %vm450, %vm451
    %v453 = vsel %vm452, %v444, %v449
    %v454 = vrsqrt.pop %v443
    %v455 = vmul.f32 %v454, %v443
    %v456 = vmul.f32 %v455, %v454
    %v457 = vmul.f32 0.5, %v456
    %v458 = vsub.f32 1.5, %v457
    %v459 = vmul.f32 %v454, %v458
    %vm460 = vweird.f32 %v443
    %vm461 = vweird.f32 %v454
    %vm462 = vmor %vm460, %vm461
    %v463 = vsel %vm462, %v454, %v459
    %v464 = vmul.f32 %v430, %v453
    %v465 = vmul.f32 %v431, %v463
    %v467 = vperm.slane %v412, 0
    %v469 = vmul.f32 %v464, %v467
    %v470 = vmul.f32 %v465, %v467
    %v472 = vperm.slane %v413, 0
    %v474 = vadd.f32 %v469, %v472
    %v475 = vadd.f32 %v470, %v472
    %v476 = vld [vmem:[%s35] sm:$0xf]
    %v477 = vld [vmem:[%s35 + $0x4] sm:$0xf]
    %v478 = vld [vmem:[%s35 + $0x8] sm:$0xf]
    %v479 = vld [vmem:[%s35 + $0xc] sm:$0xf]
    %v480 = vld [vmem:[#allocation9] sm:$0x1]
    %v481 = vld [vmem:[%s39] sm:$0xf]
    %v482 = vld [vmem:[%s39 + $0x4] sm:$0xf]
    %v483 = vld [vmem:[%s39 + $0x8] sm:$0xf]
    %v484 = vld [vmem:[%s39 + $0xc] sm:$0xf]
    %v485 = vld [vmem:[#allocation10] sm:$0x1]
    %v486 = vld [vmem:[%s43] sm:$0xf]
    %v487 = vld [vmem:[%s43 + $0x4] sm:$0xf]
    %v488 = vld [vmem:[%s43 + $0x8] sm:$0xf]
    %v489 = vld [vmem:[%s43 + $0xc] sm:$0xf]
    %v490 = vld [vmem:[#allocation12] sm:$0x1]
    %v491 = vld [vmem:[#allocation13] sm:$0x1]
    %v492 = vld [vmem:[#allocation15] sm:$0x1]
    %v493 = vld [vmem:[%s51] sm:$0xf]
    %v494 = vld [vmem:[%s51 + $0x4] sm:$0xf]
    %v495 = vld [vmem:[%s51 + $0x8] sm:$0xf]
    %v496 = vld [vmem:[%s51 + $0xc] sm:$0xf]
    %v497 = vld [vmem:[#allocation16] sm:$0x1]
    %v498 = vld [vmem:[%s55] sm:$0xf]
    %v499 = vld [vmem:[%s55 + $0x4] sm:$0xf]
    %v500 = vld [vmem:[%s55 + $0x8] sm:$0xf]
    %v501 = vld [vmem:[%s55 + $0xc] sm:$0xf]
    %v502 = vld [vmem:[%s55 + $0x10] sm:$0xf]
    %v503 = vld [vmem:[%s55 + $0x14] sm:$0xf]
    %v504 = vld [vmem:[%s55 + $0x18] sm:$0xf]
    %v505 = vld [vmem:[%s55 + $0x1c] sm:$0xf]
    %v506 = vld [vmem:[#allocation18] sm:$0x1]
    %v507 = vld [vmem:[#allocation19] sm:$0x1]
    %v508 = vld [vmem:[#allocation21] sm:$0x1]
    %v509 = vld [vmem:[%s63] sm:$0xf]
    %v510 = vld [vmem:[%s63 + $0x4] sm:$0xf]
    %v511 = vld [vmem:[%s63 + $0x8] sm:$0xf]
    %v512 = vld [vmem:[%s63 + $0xc] sm:$0xf]
    %v513 = vld [vmem:[#allocation22] sm:$0x1]
    %v514 = vld [vmem:[%s67] sm:$0xf]
    %v515 = vld [vmem:[%s67 + $0x4] sm:$0xf]
    %v516 = vld [vmem:[%s67 + $0x8] sm:$0xf]
    %v517 = vld [vmem:[%s67 + $0xc] sm:$0xf]
    %v518 = vld [vmem:[#allocation24] sm:$0x1]
    %v519 = vld [vmem:[%s31] sm:$0xff]
    %v520 = vld [vmem:[%s31 + $0x8] sm:$0xff]
    %v521 = vld [vmem:[%s33] sm:$0xff]
    %v522 = vld [vmem:[%s33 + $0x8] sm:$0xff]
    %v523 = vld [vmem:[%s7] sm:$0xf]
    %v524 = vld [vmem:[%s7 + $0x4] sm:$0xf]
    %v525 = vld [vmem:[%s7 + $0x8] sm:$0xf]
    %v526 = vld [vmem:[%s7 + $0xc] sm:$0xf]
    %v527 = vld [vmem:[%s9] sm:$0x1]
    %v528 = vld [vmem:[%s11] sm:$0xf]
    %v529 = vld [vmem:[%s11 + $0x4] sm:$0xf]
    %v530 = vld [vmem:[%s11 + $0x8] sm:$0xf]
    %v531 = vld [vmem:[%s11 + $0xc] sm:$0xf]
    %v532 = vld [vmem:[%s13] sm:$0x1]
    %v533 = vld [vmem:[%s15] sm:$0x1]
    %v534 = vld [vmem:[%s17] sm:$0x1]
    %v535 = vld [vmem:[%s19] sm:$0xf]
    %v536 = vld [vmem:[%s19 + $0x4] sm:$0xf]
    %v537 = vld [vmem:[%s19 + $0x8] sm:$0xf]
    %v538 = vld [vmem:[%s19 + $0xc] sm:$0xf]
    %v539 = vld [vmem:[%s21] sm:$0x1]
    %v540 = vld [vmem:[%s23] sm:$0xf]
    %v541 = vld [vmem:[%s23 + $0x4] sm:$0xf]
    %v542 = vld [vmem:[%s23 + $0x8] sm:$0xf]
    %v543 = vld [vmem:[%s23 + $0xc] sm:$0xf]
    %v544 = vld [vmem:[%s23 + $0x10] sm:$0xf]
    %v545 = vld [vmem:[%s23 + $0x14] sm:$0xf]
    %v546 = vld [vmem:[%s23 + $0x18] sm:$0xf]
    %v547 = vld [vmem:[%s23 + $0x1c] sm:$0xf]
    %v548 = vld [vmem:[%s25] sm:$0x1]
    %v549 = vld [vmem:[%s27] sm:$0x1]
    %v550 = vld [vmem:[%s29] sm:$0x1]
    %v551 = vpack.c.bf16 %v475, %v474
    %v553 = vperm.slane %v527, 0
    %v559 = vunpack.c.l.b16 %v523
    %v560 = vunpack.c.l.b16 %v524
    %v561 = vunpack.c.l.b16 %v525
    %v562 = vunpack.c.l.b16 %v526
    %v563 = vpack.c.b16 %v560, %v559
    %v564 = vpack.c.b16 %v562, %v561
    %v568 = vsel %vm414, %v551, 0
    %570 = vmatpush.bf16.msra.mxu0 0
    %571 = vmatpush.bf16.msra.mxu0 0
    %572 = vmatpush.bf16.msra.mxu0 0
    %573 = vmatpush.bf16.msra.mxu0 0
    %574 = vmatpush.bf16.msra.mxu0 0
    %575 = vmatpush.bf16.msra.mxu0 0
    %576 = vmatpush.bf16.msra.mxu0 %v564
    %577 = vmatpush.bf16.msra.mxu0 %v563
    %578 = vmatmul.bf16.gmra.mxu0 %v568
    %v579 = vpop.f32.mrf.mxu0
    %v580 = vadd.f32 %v553, %v579
    %v581 = vpop.f32.mrf.mxu0
    %v582 = vadd.f32 %v553, %v581
    %583 = vdwg.mxu0
    %v584 = vpack.c.bf16 %v580, %v580
    %586 = vrot.lane.b32.xlu0 %v584, 96
    %v587 = vpop.permute.xlu0 %586
    %vm588 = vcmask 64512
    %v590 = vsel %vm588, %v584, 0
    %v593 = vsel %vm588, %v587, 0
    %595 = vmatpush.bf16.xpose.msra.mxu0 0
    %596 = vmatpush.bf16.xpose.msra.mxu0 0
    %597 = vmatpush.bf16.xpose.msra.mxu0 0
    %598 = vmatpush.bf16.xpose.msra.mxu0 0
    %599 = vmatpush.bf16.xpose.msra.mxu0 0
    %600 = vmatpush.bf16.xpose.msra.mxu0 0
    %601 = vmatpush.bf16.xpose.msra.mxu0 0
    %602 = vmatpush.bf16.xpose.msra.mxu0 %v593
    %603 = vmatmul.bf16.gmra.mxu0 %v590
    %v604 = vpop.f32.mrf.mxu0
    %v605 = vadd.f32 0.0, %v604
    %v606 = vpop.f32.mrf.mxu0
    %607 = vdwg.mxu0
    %v608 = vmul.f32 %v605, 0.35355338
    %v609 = vsel %vm588, %v608, -inf
    %610 = vmax.xlane.f32.xlu0 %v609
    %v611 = vpop.xlane.xlu0 %610
    %v612 = vsub.f32 %v608, %v611
    %v613 = vmul.f32 %v612, 1.442695
    %v614 = vpow.pop %v613
    %v615 = vsel %vm588, %v614, 0.0
    %616 = vadd.xlane.f32.xlu0 %v615
    %v617 = vpop.xlane.xlu0 %616
    %v618 = vrcp.pop %v617
    %v619 = vmul.f32 %v614, %v618
    %v620 = vpack.c.bf16 %v619, %v619
    %621 = vrot.lane.b32.xlu0 %v584, 64
    %v622 = vpop.permute.xlu0 %621
    %v624 = vsel %vm588, %v620, 0
    %vm626 = vcmask 1043456
    %v628 = vsel %vm626, %v622, 0
    %630 = vmatpush.bf16.msra.mxu0 0
    %631 = vmatpush.bf16.msra.mxu0 0
    %632 = vmatpush.bf16.msra.mxu0 0
    %633 = vmatpush.bf16.msra.mxu0 0
    %634 = vmatpush.bf16.msra.mxu0 0
    %635 = vmatpush.bf16.msra.mxu0 0
    %636 = vmatpush.bf16.msra.mxu0 0
    %637 = vmatpush.bf16.msra.mxu0 %v628
    %638 = vmatmul.bf16.gmra.mxu0 %v624
    %v639 = vpop.f32.mrf.mxu0
    %v640 = vadd.f32 0.0, %v639
    %v641 = vpop.f32.mrf.mxu0
    %642 = vdwg.mxu0
    %643 = vst.msk [vmem:[#allocation2] sm:$0xff] %vm588, %v640
    %644 = vrot.lane.b32.xlu0 %v584, 120
    %v645 = vpop.permute.xlu0 %644
    %646 = vrot.lane.b32.xlu0 %v584, 88
    %v647 = vpop.permute.xlu0 %646
    %v649 = vsel %vm588, %v645, 0
    %v652 = vsel %vm588, %v647, 0
    %654 = vmatpush.bf16.xpose.msra.mxu0 0
    %655 = vmatpush.bf16.xpose.msra.mxu0 0
    %656 = vmatpush.bf16.xpose.msra.mxu0 0
    %657 = vmatpush.bf16.xpose.msra.mxu0 0
    %658 = vmatpush.bf16.xpose.msra.mxu0 0
    %659 = vmatpush.bf16.xpose.msra.mxu0 0
    %660 = vmatpush.bf16.xpose.msra.mxu0 0
    %661 = vmatpush.bf16.xpose.msra.mxu0 %v652
    %662 = vmatmul.bf16.gmra.mxu0 %v649
    %v663 = vpop.f32.mrf.mxu0
    %v664 = vadd.f32 0.0, %v663
    %v665 = vpop.f32.mrf.mxu0
    %666 = vdwg.mxu0
    %v667 = vmul.f32 %v664, 0.35355338
    %v668 = vsel %vm588, %v667, -inf
    %669 = vmax.xlane.f32.xlu0 %v668
    %v670 = vpop.xlane.xlu0 %669
    %v671 = vsub.f32 %v667, %v670
    %v672 = vmul.f32 %v671, 1.442695
    %v673 = vpow.pop %v672
    %v674 = vsel %vm588, %v673, 0.0
    %675 = vadd.xlane.f32.xlu0 %v674
    %v676 = vpop.xlane.xlu0 %675
    %v677 = vrcp.pop %v676
    %v678 = vmul.f32 %v673, %v677
    %v679 = vpack.c.bf16 %v678, %v678
    %680 = vrot.lane.b32.xlu0 %v584, 56
    %v681 = vpop.permute.xlu0 %680
    %v683 = vsel %vm588, %v679, 0
    %v686 = vsel %vm626, %v681, 0
    %688 = vmatpush.bf16.msra.mxu0 0
    %689 = vmatpush.bf16.msra.mxu0 0
    %690 = vmatpush.bf16.msra.mxu0 0
    %691 = vmatpush.bf16.msra.mxu0 0
    %692 = vmatpush.bf16.msra.mxu0 0
    %693 = vmatpush.bf16.msra.mxu0 0
    %694 = vmatpush.bf16.msra.mxu0 0
    %695 = vmatpush.bf16.msra.mxu0 %v686
    %696 = vmatmul.bf16.gmra.mxu0 %v683
    %v697 = vpop.f32.mrf.mxu0
    %v698 = vadd.f32 0.0, %v697
    %v699 = vpop.f32.mrf.mxu0
    %700 = vdwg.mxu0
    %702 = vrot.lane.b32.xlu0 %v698, 8
    %v703 = vpop.permute.xlu0 %702
    %vm705 = vcmask 130112
    %706 = vst.msk [vmem:[#allocation2] sm:$0xff] %vm705, %v703
    %707 = vrot.lane.b32.xlu0 %v584, 112
    %v708 = vpop.permute.xlu0 %707
    %709 = vrot.lane.b32.xlu0 %v584, 80
    %v710 = vpop.permute.xlu0 %709
    %v712 = vsel %vm588, %v708, 0
    %v715 = vsel %vm588, %v710, 0
    %717 = vmatpush.bf16.xpose.msra.mxu0 0
    %718 = vmatpush.bf16.xpose.msra.mxu0 0
    %719 = vmatpush.bf16.xpose.msra.mxu0 0
    %720 = vmatpush.bf16.xpose.msra.mxu0 0
    %721 = vmatpush.bf16.xpose.msra.mxu0 0
    %722 = vmatpush.bf16.xpose.msra.mxu0 0
    %723 = vmatpush.bf16.xpose.msra.mxu0 0
    %724 = vmatpush.bf16.xpose.msra.mxu0 %v715
    %725 = vmatmul.bf16.gmra.mxu0 %v712
    %v726 = vpop.f32.mrf.mxu0
    %v727 = vadd.f32 0.0, %v726
    %v728 = vpop.f32.mrf.mxu0
    %729 = vdwg.mxu0
    %v730 = vmul.f32 %v727, 0.35355338
    %v731 = vsel %vm588, %v730, -inf
    %732 = vmax.xlane.f32.xlu0 %v731
    %v733 = vpop.xlane.xlu0 %732
    %v734 = vsub.f32 %v730, %v733
    %v735 = vmul.f32 %v734, 1.442695
    %v736 = vpow.pop %v735
    %v737 = vsel %vm588, %v736, 0.0
    %738 = vadd.xlane.f32.xlu0 %v737
    %v739 = vpop.xlane.xlu0 %738
    %v740 = vrcp.pop %v739
    %v741 = vmul.f32 %v736, %v740
    %v742 = vpack.c.bf16 %v741, %v741
    %743 = vrot.lane.b32.xlu0 %v584, 48
    %v744 = vpop.permute.xlu0 %743
    %v746 = vsel %vm588, %v742, 0
    %v749 = vsel %vm626, %v744, 0
    %751 = vmatpush.bf16.msra.mxu0 0
    %752 = vmatpush.bf16.msra.mxu0 0
    %753 = vmatpush.bf16.msra.mxu0 0
    %754 = vmatpush.bf16.msra.mxu0 0
    %755 = vmatpush.bf16.msra.mxu0 0
    %756 = vmatpush.bf16.msra.mxu0 0
    %757 = vmatpush.bf16.msra.mxu0 0
    %758 = vmatpush.bf16.msra.mxu0 %v749
    %759 = vmatmul.bf16.gmra.mxu0 %v746
    %v760 = vpop.f32.mrf.mxu0
    %v761 = vadd.f32 0.0, %v760
    %v762 = vpop.f32.mrf.mxu0
    %763 = vdwg.mxu0
    %765 = vrot.lane.b32.xlu0 %v761, 16
    %v766 = vpop.permute.xlu0 %765
    %vm768 = vcmask 195712
    %769 = vst.msk [vmem:[#allocation2] sm:$0xff] %vm768, %v766
    %770 = vrot.lane.b32.xlu0 %v584, 104
    %v771 = vpop.permute.xlu0 %770
    %772 = vrot.lane.b32.xlu0 %v584, 72
    %v773 = vpop.permute.xlu0 %772
    %v775 = vsel %vm588, %v771, 0
    %v778 = vsel %vm588, %v773, 0
    %780 = vmatpush.bf16.xpose.msra.mxu0 0
    %781 = vmatpush.bf16.xpose.msra.mxu0 0
    %782 = vmatpush.bf16.xpose.msra.mxu0 0
    %783 = vmatpush.bf16.xpose.msra.mxu0 0
    %784 = vmatpush.bf16.xpose.msra.mxu0 0
    %785 = vmatpush.bf16.xpose.msra.mxu0 0
    %786 = vmatpush.bf16.xpose.msra.mxu0 0
    %787 = vmatpush.bf16.xpose.msra.mxu0 %v778
    %788 = vmatmul.bf16.gmra.mxu0 %v775
    %v789 = vpop.f32.mrf.mxu0
    %v790 = vadd.f32 0.0, %v789
    %v791 = vpop.f32.mrf.mxu0
    %792 = vdwg.mxu0
    %v793 = vmul.f32 %v790, 0.35355338
    %v794 = vsel %vm588, %v793, -inf
    %795 = vmax.xlane.f32.xlu0 %v794
    %v796 = vpop.xlane.xlu0 %795
    %v797 = vsub.f32 %v793, %v796
    %v798 = vmul.f32 %v797, 1.442695
    %v799 = vpow.pop %v798
    %v800 = vsel %vm588, %v799, 0.0
    %801 = vadd.xlane.f32.xlu0 %v800
    %v802 = vpop.xlane.xlu0 %801
    %v803 = vrcp.pop %v802
    %v804 = vmul.f32 %v799, %v803
    %v805 = vpack.c.bf16 %v804, %v804
    %806 = vrot.lane.b32.xlu0 %v584, 40
    %v807 = vpop.permute.xlu0 %806
    %v809 = vsel %vm588, %v805, 0
    %v812 = vsel %vm626, %v807, 0
    %814 = vmatpush.bf16.msra.mxu0 0
    %815 = vmatpush.bf16.msra.mxu0 0
    %816 = vmatpush.bf16.msra.mxu0 0
    %817 = vmatpush.bf16.msra.mxu0 0
    %818 = vmatpush.bf16.msra.mxu0 0
    %819 = vmatpush.bf16.msra.mxu0 0
    %820 = vmatpush.bf16.msra.mxu0 0
    %821 = vmatpush.bf16.msra.mxu0 %v812
    %822 = vmatmul.bf16.gmra.mxu0 %v809
    %v823 = vpop.f32.mrf.mxu0
    %v824 = vadd.f32 0.0, %v823
    %v825 = vpop.f32.mrf.mxu0
    %826 = vdwg.mxu0
    %828 = vrot.lane.b32.xlu0 %v824, 24
    %v829 = vpop.permute.xlu0 %828
    %vm831 = vcmask 261312
    %832 = vst.msk [vmem:[#allocation2] sm:$0xff] %vm831, %v829
    %v833 = vpack.c.bf16 %v582, %v582
    %835 = vrot.lane.b32.xlu0 %v833, 96
    %v836 = vpop.permute.xlu0 %835
    %v838 = vsel %vm588, %v833, 0
    %v841 = vsel %vm588, %v836, 0
    %843 = vmatpush.bf16.xpose.msra.mxu0 0
    %844 = vmatpush.bf16.xpose.msra.mxu0 0
    %845 = vmatpush.bf16.xpose.msra.mxu0 0
    %846 = vmatpush.bf16.xpose.msra.mxu0 0
    %847 = vmatpush.bf16.xpose.msra.mxu0 0
    %848 = vmatpush.bf16.xpose.msra.mxu0 0
    %849 = vmatpush.bf16.xpose.msra.mxu0 0
    %850 = vmatpush.bf16.xpose.msra.mxu0 %v841
    %851 = vmatmul.bf16.gmra.mxu0 %v838
    %v852 = vpop.f32.mrf.mxu0
    %v853 = vadd.f32 0.0, %v852
    %v854 = vpop.f32.mrf.mxu0
    %855 = vdwg.mxu0
    %v856 = vmul.f32 %v853, 0.35355338
    %v857 = vsel %vm588, %v856, -inf
    %858 = vmax.xlane.f32.xlu0 %v857
    %v859 = vpop.xlane.xlu0 %858
    %v860 = vsub.f32 %v856, %v859
    %v861 = vmul.f32 %v860, 1.442695
    %v862 = vpow.pop %v861
    %v863 = vsel %vm588, %v862, 0.0
    %864 = vadd.xlane.f32.xlu0 %v863
    %v865 = vpop.xlane.xlu0 %864
    %v866 = vrcp.pop %v865
    %v867 = vmul.f32 %v862, %v866
    %v868 = vpack.c.bf16 %v867, %v867
    %869 = vrot.lane.b32.xlu0 %v833, 64
    %v870 = vpop.permute.xlu0 %869
    %v872 = vsel %vm588, %v868, 0
    %v875 = vsel %vm626, %v870, 0
    %877 = vmatpush.bf16.msra.mxu0 0
    %878 = vmatpush.bf16.msra.mxu0 0
    %879 = vmatpush.bf16.msra.mxu0 0
    %880 = vmatpush.bf16.msra.mxu0 0
    %881 = vmatpush.bf16.msra.mxu0 0
    %882 = vmatpush.bf16.msra.mxu0 0
    %883 = vmatpush.bf16.msra.mxu0 0
    %884 = vmatpush.bf16.msra.mxu0 %v875
    %885 = vmatmul.bf16.gmra.mxu0 %v872
    %v886 = vpop.f32.mrf.mxu0
    %v887 = vadd.f32 0.0, %v886
    %v888 = vpop.f32.mrf.mxu0
    %889 = vdwg.mxu0
    %890 = vst.msk [vmem:[#allocation2 + $0x8] sm:$0xff] %vm588, %v887
    %891 = vrot.lane.b32.xlu0 %v833, 120
    %v892 = vpop.permute.xlu0 %891
    %893 = vrot.lane.b32.xlu0 %v833, 88
    %v894 = vpop.permute.xlu0 %893
    %v896 = vsel %vm588, %v892, 0
    %v899 = vsel %vm588, %v894, 0
    %901 = vmatpush.bf16.xpose.msra.mxu0 0
    %902 = vmatpush.bf16.xpose.msra.mxu0 0
    %903 = vmatpush.bf16.xpose.msra.mxu0 0
    %904 = vmatpush.bf16.xpose.msra.mxu0 0
    %905 = vmatpush.bf16.xpose.msra.mxu0 0
    %906 = vmatpush.bf16.xpose.msra.mxu0 0
    %907 = vmatpush.bf16.xpose.msra.mxu0 0
    %908 = vmatpush.bf16.xpose.msra.mxu0 %v899
    %909 = vmatmul.bf16.gmra.mxu0 %v896
    %v910 = vpop.f32.mrf.mxu0
    %v911 = vadd.f32 0.0, %v910
    %v912 = vpop.f32.mrf.mxu0
    %913 = vdwg.mxu0
    %v914 = vmul.f32 %v911, 0.35355338
    %v915 = vsel %vm588, %v914, -inf
    %916 = vmax.xlane.f32.xlu0 %v915
    %v917 = vpop.xlane.xlu0 %916
    %v918 = vsub.f32 %v914, %v917
    %v919 = vmul.f32 %v918, 1.442695
    %v920 = vpow.pop %v919
    %v921 = vsel %vm588, %v920, 0.0
    %922 = vadd.xlane.f32.xlu0 %v921
    %v923 = vpop.xlane.xlu0 %922
    %v924 = vrcp.pop %v923
    %v925 = vmul.f32 %v920, %v924
    %v926 = vpack.c.bf16 %v925, %v925
    %927 = vrot.lane.b32.xlu0 %v833, 56
    %v928 = vpop.permute.xlu0 %927
    %v930 = vsel %vm588, %v926, 0
    %v933 = vsel %vm626, %v928, 0
    %935 = vmatpush.bf16.msra.mxu0 0
    %936 = vmatpush.bf16.msra.mxu0 0
    %937 = vmatpush.bf16.msra.mxu0 0
    %938 = vmatpush.bf16.msra.mxu0 0
    %939 = vmatpush.bf16.msra.mxu0 0
    %940 = vmatpush.bf16.msra.mxu0 0
    %941 = vmatpush.bf16.msra.mxu0 0
    %942 = vmatpush.bf16.msra.mxu0 %v933
    %943 = vmatmul.bf16.gmra.mxu0 %v930
    %v944 = vpop.f32.mrf.mxu0
    %v945 = vadd.f32 0.0, %v944
    %v946 = vpop.f32.mrf.mxu0
    %947 = vdwg.mxu0
    %949 = vrot.lane.b32.xlu0 %v945, 8
    %v950 = vpop.permute.xlu0 %949
    %952 = vst.msk [vmem:[#allocation2 + $0x8] sm:$0xff] %vm705, %v950
    %953 = vrot.lane.b32.xlu0 %v833, 112
    %v954 = vpop.permute.xlu0 %953
    %955 = vrot.lane.b32.xlu0 %v833, 80
    %v956 = vpop.permute.xlu0 %955
    %v958 = vsel %vm588, %v954, 0
    %v961 = vsel %vm588, %v956, 0
    %963 = vmatpush.bf16.xpose.msra.mxu0 0
    %964 = vmatpush.bf16.xpose.msra.mxu0 0
    %965 = vmatpush.bf16.xpose.msra.mxu0 0
    %966 = vmatpush.bf16.xpose.msra.mxu0 0
    %967 = vmatpush.bf16.xpose.msra.mxu0 0
    %968 = vmatpush.bf16.xpose.msra.mxu0 0
    %969 = vmatpush.bf16.xpose.msra.mxu0 0
    %970 = vmatpush.bf16.xpose.msra.mxu0 %v961
    %971 = vmatmul.bf16.gmra.mxu0 %v958
    %v972 = vpop.f32.mrf.mxu0
    %v973 = vadd.f32 0.0, %v972
    %v974 = vpop.f32.mrf.mxu0
    %975 = vdwg.mxu0
    %v976 = vmul.f32 %v973, 0.35355338
    %v977 = vsel %vm588, %v976, -inf
    %978 = vmax.xlane.f32.xlu0 %v977
    %v979 = vpop.xlane.xlu0 %978
    %v980 = vsub.f32 %v976, %v979
    %v981 = vmul.f32 %v980, 1.442695
    %v982 = vpow.pop %v981
    %v983 = vsel %vm588, %v982, 0.0
    %984 = vadd.xlane.f32.xlu0 %v983
    %v985 = vpop.xlane.xlu0 %984
    %v986 = vrcp.pop %v985
    %v987 = vmul.f32 %v982, %v986
    %v988 = vpack.c.bf16 %v987, %v987
    %989 = vrot.lane.b32.xlu0 %v833, 48
    %v990 = vpop.permute.xlu0 %989
    %v992 = vsel %vm588, %v988, 0
    %v995 = vsel %vm626, %v990, 0
    %997 = vmatpush.bf16.msra.mxu0 0
    %998 = vmatpush.bf16.msra.mxu0 0
    %999 = vmatpush.bf16.msra.mxu0 0
    %1000 = vmatpush.bf16.msra.mxu0 0
    %1001 = vmatpush.bf16.msra.mxu0 0
    %1002 = vmatpush.bf16.msra.mxu0 0
    %1003 = vmatpush.bf16.msra.mxu0 0
    %1004 = vmatpush.bf16.msra.mxu0 %v995
    %1005 = vmatmul.bf16.gmra.mxu0 %v992
    %v1006 = vpop.f32.mrf.mxu0
    %v1007 = vadd.f32 0.0, %v1006
    %v1008 = vpop.f32.mrf.mxu0
    %1009 = vdwg.mxu0
    %1011 = vrot.lane.b32.xlu0 %v1007, 16
    %v1012 = vpop.permute.xlu0 %1011
    %1014 = vst.msk [vmem:[#allocation2 + $0x8] sm:$0xff] %vm768, %v1012
    %1015 = vrot.lane.b32.xlu0 %v833, 104
    %v1016 = vpop.permute.xlu0 %1015
    %1017 = vrot.lane.b32.xlu0 %v833, 72
    %v1018 = vpop.permute.xlu0 %1017
    %v1020 = vsel %vm588, %v1016, 0
    %v1023 = vsel %vm588, %v1018, 0
    %1025 = vmatpush.bf16.xpose.msra.mxu0 0
    %1026 = vmatpush.bf16.xpose.msra.mxu0 0
    %1027 = vmatpush.bf16.xpose.msra.mxu0 0
    %1028 = vmatpush.bf16.xpose.msra.mxu0 0
    %1029 = vmatpush.bf16.xpose.msra.mxu0 0
    %1030 = vmatpush.bf16.xpose.msra.mxu0 0
    %1031 = vmatpush.bf16.xpose.msra.mxu0 0
    %1032 = vmatpush.bf16.xpose.msra.mxu0 %v1023
    %1033 = vmatmul.bf16.gmra.mxu0 %v1020
    %v1034 = vpop.f32.mrf.mxu0
    %v1035 = vadd.f32 0.0, %v1034
    %v1036 = vpop.f32.mrf.mxu0
    %1037 = vdwg.mxu0
    %v1038 = vmul.f32 %v1035, 0.35355338
    %v1039 = vsel %vm588, %v1038, -inf
    %1040 = vmax.xlane.f32.xlu0 %v1039
    %v1041 = vpop.xlane.xlu0 %1040
    %v1042 = vsub.f32 %v1038, %v1041
    %v1043 = vmul.f32 %v1042, 1.442695
    %v1044 = vpow.pop %v1043
    %v1045 = vsel %vm588, %v1044, 0.0
    %1046 = vadd.xlane.f32.xlu0 %v1045
    %v1047 = vpop.xlane.xlu0 %1046
    %v1048 = vrcp.pop %v1047
    %v1049 = vmul.f32 %v1044, %v1048
    %v1050 = vpack.c.bf16 %v1049, %v1049
    %1051 = vrot.lane.b32.xlu0 %v833, 40
    %v1052 = vpop.permute.xlu0 %1051
    %v1054 = vsel %vm588, %v1050, 0
    %v1057 = vsel %vm626, %v1052, 0
    %1059 = vmatpush.bf16.msra.mxu0 0
    %1060 = vmatpush.bf16.msra.mxu0 0
    %1061 = vmatpush.bf16.msra.mxu0 0
    %1062 = vmatpush.bf16.msra.mxu0 0
    %1063 = vmatpush.bf16.msra.mxu0 0
    %1064 = vmatpush.bf16.msra.mxu0 0
    %1065 = vmatpush.bf16.msra.mxu0 0
    %1066 = vmatpush.bf16.msra.mxu0 %v1057
    %1067 = vmatmul.bf16.gmra.mxu0 %v1054
    %v1068 = vpop.f32.mrf.mxu0
    %v1069 = vadd.f32 0.0, %v1068
    %v1070 = vpop.f32.mrf.mxu0
    %1071 = vdwg.mxu0
    %1073 = vrot.lane.b32.xlu0 %v1069, 24
    %v1074 = vpop.permute.xlu0 %1073
    %1076 = vst.msk [vmem:[#allocation2 + $0x8] sm:$0xff] %vm831, %v1074
    %v1077 = vld [vmem:[#allocation2] sm:$0xff]
    %v1078 = vld [vmem:[#allocation2 + $0x8] sm:$0xff]
    %v1079 = vpack.c.bf16 %v1078, %v1077
    %v1081 = vperm.slane %v532, 0
    %v1087 = vunpack.c.l.b16 %v528
    %v1088 = vunpack.c.l.b16 %v529
    %v1089 = vunpack.c.l.b16 %v530
    %v1090 = vunpack.c.l.b16 %v531
    %v1091 = vpack.c.b16 %v1088, %v1087
    %v1092 = vpack.c.b16 %v1090, %v1089
    %v1096 = vsel %vm414, %v1079, 0
    %1098 = vmatpush.bf16.msra.mxu0 0
    %1099 = vmatpush.bf16.msra.mxu0 0
    %1100 = vmatpush.bf16.msra.mxu0 0
    %1101 = vmatpush.bf16.msra.mxu0 0
    %1102 = vmatpush.bf16.msra.mxu0 0
    %1103 = vmatpush.bf16.msra.mxu0 0
    %1104 = vmatpush.bf16.msra.mxu0 %v1092
    %1105 = vmatpush.bf16.msra.mxu0 %v1091
    %1106 = vmatmul.bf16.gmra.mxu0 %v1096
    %v1107 = vpop.f32.mrf.mxu0
    %v1108 = vadd.f32 %v1081, %v1107
    %v1109 = vpop.f32.mrf.mxu0
    %v1110 = vadd.f32 %v1081, %v1109
    %1111 = vdwg.mxu0
    %v1112 = vadd.f32 %v474, %v1108
    %v1113 = vadd.f32 %v475, %v1110
    %v1114 = vsel %vm414, %v1112, 0.0
    %1115 = vadd.xlane.f32.xlu0 %v1114
    %v1116 = vpop.xlane.xlu0 %1115
    %v1117 = vsel %vm414, %v1113, 0.0
    %1118 = vadd.xlane.f32.xlu0 %v1117
    %v1119 = vpop.xlane.xlu0 %1118
    %v1120 = vmul.f32 %v1116, %v427
    %v1121 = vmul.f32 %v1119, %v427
    %v1122 = vsub.f32 %v1112, %v1120
    %v1123 = vsub.f32 %v1113, %v1121
    %v1124 = vmul.f32 %v1122, %v1122
    %v1125 = vmul.f32 %v1123, %v1123
    %v1126 = vsel %vm414, %v1124, 0.0
    %1127 = vadd.xlane.f32.xlu0 %v1126
    %v1128 = vpop.xlane.xlu0 %1127
    %v1129 = vsel %vm414, %v1125, 0.0
    %1130 = vadd.xlane.f32.xlu0 %v1129
    %v1131 = vpop.xlane.xlu0 %1130
    %v1132 = vmul.f32 %v1128, %v427
    %v1133 = vmul.f32 %v1131, %v427
    %v1134 = vadd.f32 %v1132, 1e-12
    %v1135 = vadd.f32 %v1133, 1e-12
    %v1136 = vrsqrt.pop %v1134
    %v1137 = vmul.f32 %v1136, %v1134
    %v1138 = vmul.f32 %v1137, %v1136
    %v1139 = vmul.f32 0.5, %v1138
    %v1140 = vsub.f32 1.5, %v1139
    %v1141 = vmul.f32 %v1136, %v1140
    %vm1142 = vweird.f32 %v1134
    %vm1143 = vweird.f32 %v1136
    %vm1144 = vmor %vm1142, %vm1143
    %v1145 = vsel %vm1144, %v1136, %v1141
    %v1146 = vrsqrt.pop %v1135
    %v1147 = vmul.f32 %v1146, %v1135
    %v1148 = vmul.f32 %v1147, %v1146
    %v1149 = vmul.f32 0.5, %v1148
    %v1150 = vsub.f32 1.5, %v1149
    %v1151 = vmul.f32 %v1146, %v1150
    %vm1152 = vweird.f32 %v1135
    %vm1153 = vweird.f32 %v1146
    %vm1154 = vmor %vm1152, %vm1153
    %v1155 = vsel %vm1154, %v1146, %v1151
    %v1156 = vmul.f32 %v1122, %v1145
    %v1157 = vmul.f32 %v1123, %v1155
    %v1159 = vperm.slane %v533, 0
    %v1161 = vmul.f32 %v1156, %v1159
    %v1162 = vmul.f32 %v1157, %v1159
    %v1164 = vperm.slane %v534, 0
    %v1166 = vadd.f32 %v1161, %v1164
    %v1167 = vadd.f32 %v1162, %v1164
    %v1168 = vpack.c.bf16 %v1167, %v1166
    %v1170 = vperm.slane %v539, 0
    %v1176 = vunpack.c.l.b16 %v535
    %v1177 = vunpack.c.l.b16 %v536
    %v1178 = vunpack.c.l.b16 %v537
    %v1179 = vunpack.c.l.b16 %v538
    %v1180 = vpack.c.b16 %v1177, %v1176
    %v1181 = vpack.c.b16 %v1179, %v1178
    %v1185 = vsel %vm414, %v1168, 0
    %1187 = vmatpush.bf16.msra.mxu0 0
    %1188 = vmatpush.bf16.msra.mxu0 0
    %1189 = vmatpush.bf16.msra.mxu0 0
    %1190 = vmatpush.bf16.msra.mxu0 0
    %1191 = vmatpush.bf16.msra.mxu0 0
    %1192 = vmatpush.bf16.msra.mxu0 0
    %1193 = vmatpush.bf16.msra.mxu0 %v1181
    %1194 = vmatpush.bf16.msra.mxu0 %v1180
    %1195 = vmatmul.bf16.gmra.mxu0 %v1185
    %v1196 = vpop.f32.mrf.mxu0
    %v1197 = vadd.f32 %v1170, %v1196
    %v1198 = vpop.f32.mrf.mxu0
    %v1199 = vadd.f32 %v1170, %v1198
    %1200 = vdwg.mxu0
    %v1201 = vmul.f32 %v1197, %v1197
    %v1202 = vmul.f32 %v1199, %v1199
    %v1203 = vmul.f32 %v1197, %v1201
    %v1204 = vmul.f32 %v1199, %v1202
    %v1205 = vmul.f32 %v1203, 0.044715
    %v1206 = vmul.f32 %v1204, 0.044715
    %v1207 = vadd.f32 %v1197, %v1205
    %v1208 = vadd.f32 %v1199, %v1206
    %v1209 = vmul.f32 %v1207, 0.7978846
    %v1210 = vmul.f32 %v1208, 0.7978846
    %v1211 = vtanh.pop %v1209
    %v1212 = vtanh.pop %v1210
    %v1213 = vadd.f32 %v1211, 1.0
    %v1214 = vadd.f32 %v1212, 1.0
    %v1215 = vmul.f32 %v1213, 0.5
    %v1216 = vmul.f32 %v1214, 0.5
    %v1217 = vmul.f32 %v1197, %v1215
    %v1218 = vmul.f32 %v1199, %v1216
    %v1219 = vpack.c.bf16 %v1218, %v1217
    %v1221 = vperm.slane %v548, 0
    %v1231 = vunpack.c.l.b16 %v540
    %v1232 = vunpack.c.l.b16 %v541
    %v1233 = vunpack.c.l.b16 %v542
    %v1234 = vunpack.c.l.b16 %v543
    %v1235 = vunpack.c.l.b16 %v544
    %v1236 = vunpack.c.l.b16 %v545
    %v1237 = vunpack.c.l.b16 %v546
    %v1238 = vunpack.c.l.b16 %v547
    %v1239 = vpack.c.b16 %v1232, %v1231
    %v1240 = vpack.c.b16 %v1234, %v1233
    %v1241 = vpack.c.b16 %v1236, %v1235
    %v1242 = vpack.c.b16 %v1238, %v1237
    %vm1247 = vcmask 523264
    %v1249 = vsel %vm1247, %v1219, 0
    %1251 = vmatpush.bf16.msra.mxu0 0
    %1252 = vmatpush.bf16.msra.mxu0 0
    %1253 = vmatpush.bf16.msra.mxu0 0
    %1254 = vmatpush.bf16.msra.mxu0 0
    %1255 = vmatpush.bf16.msra.mxu0 %v1242
    %1256 = vmatpush.bf16.msra.mxu0 %v1241
    %1257 = vmatpush.bf16.msra.mxu0 %v1240
    %1258 = vmatpush.bf16.msra.mxu0 %v1239
    %1259 = vmatmul.bf16.gmra.mxu0 %v1249
    %v1260 = vpop.f32.mrf.mxu0
    %v1261 = vadd.f32 %v1221, %v1260
    %v1262 = vpop.f32.mrf.mxu0
    %v1263 = vadd.f32 %v1221, %v1262
    %1264 = vdwg.mxu0
    %v1265 = vadd.f32 %v1166, %v1261
    %v1266 = vadd.f32 %v1167, %v1263
    %v1267 = vsel %vm414, %v1265, 0.0
    %1268 = vadd.xlane.f32.xlu0 %v1267
    %v1269 = vpop.xlane.xlu0 %1268
    %v1270 = vsel %vm414, %v1266, 0.0
    %1271 = vadd.xlane.f32.xlu0 %v1270
    %v1272 = vpop.xlane.xlu0 %1271
    %v1273 = vmul.f32 %v1269, %v427
    %v1274 = vmul.f32 %v1272, %v427
    %v1275 = vsub.f32 %v1265, %v1273
    %v1276 = vsub.f32 %v1266, %v1274
    %v1277 = vmul.f32 %v1275, %v1275
    %v1278 = vmul.f32 %v1276, %v1276
    %v1279 = vsel %vm414, %v1277, 0.0
    %1280 = vadd.xlane.f32.xlu0 %v1279
    %v1281 = vpop.xlane.xlu0 %1280
    %v1282 = vsel %vm414, %v1278, 0.0
    %1283 = vadd.xlane.f32.xlu0 %v1282
    %v1284 = vpop.xlane.xlu0 %1283
    %v1285 = vmul.f32 %v1281, %v427
    %v1286 = vmul.f32 %v1284, %v427
    %v1287 = vadd.f32 %v1285, 1e-12
    %v1288 = vadd.f32 %v1286, 1e-12
    %v1289 = vrsqrt.pop %v1287
    %v1290 = vmul.f32 %v1289, %v1287
    %v1291 = vmul.f32 %v1290, %v1289
    %v1292 = vmul.f32 0.5, %v1291
    %v1293 = vsub.f32 1.5, %v1292
    %v1294 = vmul.f32 %v1289, %v1293
    %vm1295 = vweird.f32 %v1287
    %vm1296 = vweird.f32 %v1289
    %vm1297 = vmor %vm1295, %vm1296
    %v1298 = vsel %vm1297, %v1289, %v1294
    %v1299 = vrsqrt.pop %v1288
    %v1300 = vmul.f32 %v1299, %v1288
    %v1301 = vmul.f32 %v1300, %v1299
    %v1302 = vmul.f32 0.5, %v1301
    %v1303 = vsub.f32 1.5, %v1302
    %v1304 = vmul.f32 %v1299, %v1303
    %vm1305 = vweird.f32 %v1288
    %vm1306 = vweird.f32 %v1299
    %vm1307 = vmor %vm1305, %vm1306
    %v1308 = vsel %vm1307, %v1299, %v1304
    %v1309 = vmul.f32 %v1275, %v1298
    %v1310 = vmul.f32 %v1276, %v1308
    %v1312 = vperm.slane %v549, 0
    %v1314 = vmul.f32 %v1309, %v1312
    %v1315 = vmul.f32 %v1310, %v1312
    %v1317 = vperm.slane %v550, 0
    %v1319 = vadd.f32 %v1314, %v1317
    %v1320 = vadd.f32 %v1315, %v1317
    %v1321 = vpack.c.bf16 %v1320, %v1319
    %v1323 = vperm.slane %v480, 0
    %v1329 = vunpack.c.l.b16 %v476
    %v1330 = vunpack.c.l.b16 %v477
    %v1331 = vunpack.c.l.b16 %v478
    %v1332 = vunpack.c.l.b16 %v479
    %v1333 = vpack.c.b16 %v1330, %v1329
    %v1334 = vpack.c.b16 %v1332, %v1331
    %v1338 = vsel %vm414, %v1321, 0
    %1340 = vmatpush.bf16.msra.mxu0 0
    %1341 = vmatpush.bf16.msra.mxu0 0
    %1342 = vmatpush.bf16.msra.mxu0 0
    %1343 = vmatpush.bf16.msra.mxu0 0
    %1344 = vmatpush.bf16.msra.mxu0 0
    %1345 = vmatpush.bf16.msra.mxu0 0
    %1346 = vmatpush.bf16.msra.mxu0 %v1334
    %1347 = vmatpush.bf16.msra.mxu0 %v1333
    %1348 = vmatmul.bf16.gmra.mxu0 %v1338
    %v1349 = vpop.f32.mrf.mxu0
    %v1350 = vadd.f32 %v1323, %v1349
    %v1351 = vpop.f32.mrf.mxu0
    %v1352 = vadd.f32 %v1323, %v1351
    %1353 = vdwg.mxu0
    %v1354 = vpack.c.bf16 %v520, %v519
    %v1356 = vperm.slane %v485, 0
    %v1362 = vunpack.c.l.b16 %v481
    %v1363 = vunpack.c.l.b16 %v482
    %v1364 = vunpack.c.l.b16 %v483
    %v1365 = vunpack.c.l.b16 %v484
    %v1366 = vpack.c.b16 %v1363, %v1362
    %v1367 = vpack.c.b16 %v1365, %v1364
    %v1371 = vsel %vm414, %v1354, 0
    %1373 = vmatpush.bf16.msra.mxu0 0
    %1374 = vmatpush.bf16.msra.mxu0 0
    %1375 = vmatpush.bf16.msra.mxu0 0
    %1376 = vmatpush.bf16.msra.mxu0 0
    %1377 = vmatpush.bf16.msra.mxu0 0
    %1378 = vmatpush.bf16.msra.mxu0 0
    %1379 = vmatpush.bf16.msra.mxu0 %v1367
    %1380 = vmatpush.bf16.msra.mxu0 %v1366
    %1381 = vmatmul.bf16.gmra.mxu0 %v1371
    %v1382 = vpop.f32.mrf.mxu0
    %v1383 = vadd.f32 %v1356, %v1382
    %v1384 = vpop.f32.mrf.mxu0
    %v1385 = vadd.f32 %v1356, %v1384
    %1386 = vdwg.mxu0
    %v1387 = vpack.c.bf16 %v1350, %v1350
    %v1388 = vpack.c.bf16 %v1383, %v1383
    %v1390 = vsel %vm588, %v1387, 0
    %v1393 = vsel %vm588, %v1388, 0
    %1395 = vmatpush.bf16.xpose.msra.mxu0 0
    %1396 = vmatpush.bf16.xpose.msra.mxu0 0
    %1397 = vmatpush.bf16.xpose.msra.mxu0 0
    %1398 = vmatpush.bf16.xpose.msra.mxu0 0
    %1399 = vmatpush.bf16.xpose.msra.mxu0 0
    %1400 = vmatpush.bf16.xpose.msra.mxu0 0
    %1401 = vmatpush.bf16.xpose.msra.mxu0 0
    %1402 = vmatpush.bf16.xpose.msra.mxu0 %v1393
    %1403 = vmatmul.bf16.gmra.mxu0 %v1390
    %v1404 = vpop.f32.mrf.mxu0
    %v1405 = vadd.f32 0.0, %v1404
    %v1406 = vpop.f32.mrf.mxu0
    %1407 = vdwg.mxu0
    %v1408 = vmul.f32 %v1405, 0.35355338
    %v1409 = vsel %vm588, %v1408, -inf
    %1410 = vmax.xlane.f32.xlu0 %v1409
    %v1411 = vpop.xlane.xlu0 %1410
    %v1412 = vsub.f32 %v1408, %v1411
    %v1413 = vmul.f32 %v1412, 1.442695
    %v1414 = vpow.pop %v1413
    %v1415 = vsel %vm588, %v1414, 0.0
    %1416 = vadd.xlane.f32.xlu0 %v1415
    %v1417 = vpop.xlane.xlu0 %1416
    %v1418 = vrcp.pop %v1417
    %v1419 = vmul.f32 %v1414, %v1418
    %v1420 = vpack.c.bf16 %v1419, %v1419
    %1422 = vrot.lane.b32.xlu0 %v1388, 96
    %v1423 = vpop.permute.xlu0 %1422
    %v1425 = vsel %vm588, %v1420, 0
    %v1428 = vsel %vm626, %v1423, 0
    %1430 = vmatpush.bf16.msra.mxu0 0
    %1431 = vmatpush.bf16.msra.mxu0 0
    %1432 = vmatpush.bf16.msra.mxu0 0
    %1433 = vmatpush.bf16.msra.mxu0 0
    %1434 = vmatpush.bf16.msra.mxu0 0
    %1435 = vmatpush.bf16.msra.mxu0 0
    %1436 = vmatpush.bf16.msra.mxu0 0
    %1437 = vmatpush.bf16.msra.mxu0 %v1428
    %1438 = vmatmul.bf16.gmra.mxu0 %v1425
    %v1439 = vpop.f32.mrf.mxu0
    %v1440 = vadd.f32 0.0, %v1439
    %v1441 = vpop.f32.mrf.mxu0
    %1442 = vdwg.mxu0
    %1443 = vst.msk [vmem:[#allocation2] sm:$0xff] %vm588, %v1440
    %1445 = vrot.lane.b32.xlu0 %v1387, 120
    %v1446 = vpop.permute.xlu0 %1445
    %1447 = vrot.lane.b32.xlu0 %v1388, 120
    %v1448 = vpop.permute.xlu0 %1447
    %v1450 = vsel %vm588, %v1446, 0
    %v1453 = vsel %vm588, %v1448, 0
    %1455 = vmatpush.bf16.xpose.msra.mxu0 0
    %1456 = vmatpush.bf16.xpose.msra.mxu0 0
    %1457 = vmatpush.bf16.xpose.msra.mxu0 0
    %1458 = vmatpush.bf16.xpose.msra.mxu0 0
    %1459 = vmatpush.bf16.xpose.msra.mxu0 0
    %1460 = vmatpush.bf16.xpose.msra.mxu0 0
    %1461 = vmatpush.bf16.xpose.msra.mxu0 0
    %1462 = vmatpush.bf16.xpose.msra.mxu0 %v1453
    %1463 = vmatmul.bf16.gmra.mxu0 %v1450
    %v1464 = vpop.f32.mrf.mxu0
    %v1465 = vadd.f32 0.0, %v1464
    %v1466 = vpop.f32.mrf.mxu0
    %1467 = vdwg.mxu0
    %v1468 = vmul.f32 %v1465, 0.35355338
    %v1469 = vsel %vm588, %v1468, -inf
    %1470 = vmax.xlane.f32.xlu0 %v1469
    %v1471 = vpop.xlane.xlu0 %1470
    %v1472 = vsub.f32 %v1468, %v1471
    %v1473 = vmul.f32 %v1472, 1.442695
    %v1474 = vpow.pop %v1473
    %v1475 = vsel %vm588, %v1474, 0.0
    %1476 = vadd.xlane.f32.xlu0 %v1475
    %v1477 = vpop.xlane.xlu0 %1476
    %v1478 = vrcp.pop %v1477
    %v1479 = vmul.f32 %v1474, %v1478
    %v1480 = vpack.c.bf16 %v1479, %v1479
    %1481 = vrot.lane.b32.xlu0 %v1388, 88
    %v1482 = vpop.permute.xlu0 %1481
    %v1484 = vsel %vm588, %v1480, 0
    %v1487 = vsel %vm626, %v1482, 0
    %1489 = vmatpush.bf16.msra.mxu0 0
    %1490 = vmatpush.bf16.msra.mxu0 0
    %1491 = vmatpush.bf16.msra.mxu0 0
    %1492 = vmatpush.bf16.msra.mxu0 0
    %1493 = vmatpush.bf16.msra.mxu0 0
    %1494 = vmatpush.bf16.msra.mxu0 0
    %1495 = vmatpush.bf16.msra.mxu0 0
    %1496 = vmatpush.bf16.msra.mxu0 %v1487
    %1497 = vmatmul.bf16.gmra.mxu0 %v1484
    %v1498 = vpop.f32.mrf.mxu0
    %v1499 = vadd.f32 0.0, %v1498
    %v1500 = vpop.f32.mrf.mxu0
    %1501 = vdwg.mxu0
    %1503 = vrot.lane.b32.xlu0 %v1499, 8
    %v1504 = vpop.permute.xlu0 %1503
    %1506 = vst.msk [vmem:[#allocation2] sm:$0xff] %vm705, %v1504
    %1507 = vrot.lane.b32.xlu0 %v1387, 112
    %v1508 = vpop.permute.xlu0 %1507
    %1509 = vrot.lane.b32.xlu0 %v1388, 112
    %v1510 = vpop.permute.xlu0 %1509
    %v1512 = vsel %vm588, %v1508, 0
    %v1515 = vsel %vm588, %v1510, 0
    %1517 = vmatpush.bf16.xpose.msra.mxu0 0
    %1518 = vmatpush.bf16.xpose.msra.mxu0 0
    %1519 = vmatpush.bf16.xpose.msra.mxu0 0
    %1520 = vmatpush.bf16.xpose.msra.mxu0 0
    %1521 = vmatpush.bf16.xpose.msra.mxu0 0
    %1522 = vmatpush.bf16.xpose.msra.mxu0 0
    %1523 = vmatpush.bf16.xpose.msra.mxu0 0
    %1524 = vmatpush.bf16.xpose.msra.mxu0 %v1515
    %1525 = vmatmul.bf16.gmra.mxu0 %v1512
    %v1526 = vpop.f32.mrf.mxu0
    %v1527 = vadd.f32 0.0, %v1526
    %v1528 = vpop.f32.mrf.mxu0
    %1529 = vdwg.mxu0
    %v1530 = vmul.f32 %v1527, 0.35355338
    %v1531 = vsel %vm588, %v1530, -inf
    %1532 = vmax.xlane.f32.xlu0 %v1531
    %v1533 = vpop.xlane.xlu0 %1532
    %v1534 = vsub.f32 %v1530, %v1533
    %v1535 = vmul.f32 %v1534, 1.442695
    %v1536 = vpow.pop %v1535
    %v1537 = vsel %vm588, %v1536, 0.0
    %1538 = vadd.xlane.f32.xlu0 %v1537
    %v1539 = vpop.xlane.xlu0 %1538
    %v1540 = vrcp.pop %v1539
    %v1541 = vmul.f32 %v1536, %v1540
    %v1542 = vpack.c.bf16 %v1541, %v1541
    %1543 = vrot.lane.b32.xlu0 %v1388, 80
    %v1544 = vpop.permute.xlu0 %1543
    %v1546 = vsel %vm588, %v1542, 0
    %v1549 = vsel %vm626, %v1544, 0
    %1551 = vmatpush.bf16.msra.mxu0 0
    %1552 = vmatpush.bf16.msra.mxu0 0
    %1553 = vmatpush.bf16.msra.mxu0 0
    %1554 = vmatpush.bf16.msra.mxu0 0
    %1555 = vmatpush.bf16.msra.mxu0 0
    %1556 = vmatpush.bf16.msra.mxu0 0
    %1557 = vmatpush.bf16.msra.mxu0 0
    %1558 = vmatpush.bf16.msra.mxu0 %v1549
    %1559 = vmatmul.bf16.gmra.mxu0 %v1546
    %v1560 = vpop.f32.mrf.mxu0
    %v1561 = vadd.f32 0.0, %v1560
    %v1562 = vpop.f32.mrf.mxu0
    %1563 = vdwg.mxu0
    %1565 = vrot.lane.b32.xlu0 %v1561, 16
    %v1566 = vpop.permute.xlu0 %1565
    %1568 = vst.msk [vmem:[#allocation2] sm:$0xff] %vm768, %v1566
    %1569 = vrot.lane.b32.xlu0 %v1387, 104
    %v1570 = vpop.permute.xlu0 %1569
    %1571 = vrot.lane.b32.xlu0 %v1388, 104
    %v1572 = vpop.permute.xlu0 %1571
    %v1574 = vsel %vm588, %v1570, 0
    %v1577 = vsel %vm588, %v1572, 0
    %1579 = vmatpush.bf16.xpose.msra.mxu0 0
    %1580 = vmatpush.bf16.xpose.msra.mxu0 0
    %1581 = vmatpush.bf16.xpose.msra.mxu0 0
    %1582 = vmatpush.bf16.xpose.msra.mxu0 0
    %1583 = vmatpush.bf16.xpose.msra.mxu0 0
    %1584 = vmatpush.bf16.xpose.msra.mxu0 0
    %1585 = vmatpush.bf16.xpose.msra.mxu0 0
    %1586 = vmatpush.bf16.xpose.msra.mxu0 %v1577
    %1587 = vmatmul.bf16.gmra.mxu0 %v1574
    %v1588 = vpop.f32.mrf.mxu0
    %v1589 = vadd.f32 0.0, %v1588
    %v1590 = vpop.f32.mrf.mxu0
    %1591 = vdwg.mxu0
    %v1592 = vmul.f32 %v1589, 0.35355338
    %v1593 = vsel %vm588, %v1592, -inf
    %1594 = vmax.xlane.f32.xlu0 %v1593
    %v1595 = vpop.xlane.xlu0 %1594
    %v1596 = vsub.f32 %v1592, %v1595
    %v1597 = vmul.f32 %v1596, 1.442695
    %v1598 = vpow.pop %v1597
    %v1599 = vsel %vm588, %v1598, 0.0
    %1600 = vadd.xlane.f32.xlu0 %v1599
    %v1601 = vpop.xlane.xlu0 %1600
    %v1602 = vrcp.pop %v1601
    %v1603 = vmul.f32 %v1598, %v1602
    %v1604 = vpack.c.bf16 %v1603, %v1603
    %1605 = vrot.lane.b32.xlu0 %v1388, 72
    %v1606 = vpop.permute.xlu0 %1605
    %v1608 = vsel %vm588, %v1604, 0
    %v1611 = vsel %vm626, %v1606, 0
    %1613 = vmatpush.bf16.msra.mxu0 0
    %1614 = vmatpush.bf16.msra.mxu0 0
    %1615 = vmatpush.bf16.msra.mxu0 0
    %1616 = vmatpush.bf16.msra.mxu0 0
    %1617 = vmatpush.bf16.msra.mxu0 0
    %1618 = vmatpush.bf16.msra.mxu0 0
    %1619 = vmatpush.bf16.msra.mxu0 0
    %1620 = vmatpush.bf16.msra.mxu0 %v1611
    %1621 = vmatmul.bf16.gmra.mxu0 %v1608
    %v1622 = vpop.f32.mrf.mxu0
    %v1623 = vadd.f32 0.0, %v1622
    %v1624 = vpop.f32.mrf.mxu0
    %1625 = vdwg.mxu0
    %1627 = vrot.lane.b32.xlu0 %v1623, 24
    %v1628 = vpop.permute.xlu0 %1627
    %1630 = vst.msk [vmem:[#allocation2] sm:$0xff] %vm831, %v1628
    %v1631 = vpack.c.bf16 %v1352, %v1352
    %v1632 = vpack.c.bf16 %v1385, %v1385
    %v1634 = vsel %vm588, %v1631, 0
    %v1637 = vsel %vm588, %v1632, 0
    %1639 = vmatpush.bf16.xpose.msra.mxu0 0
    %1640 = vmatpush.bf16.xpose.msra.mxu0 0
    %1641 = vmatpush.bf16.xpose.msra.mxu0 0
    %1642 = vmatpush.bf16.xpose.msra.mxu0 0
    %1643 = vmatpush.bf16.xpose.msra.mxu0 0
    %1644 = vmatpush.bf16.xpose.msra.mxu0 0
    %1645 = vmatpush.bf16.xpose.msra.mxu0 0
    %1646 = vmatpush.bf16.xpose.msra.mxu0 %v1637
    %1647 = vmatmul.bf16.gmra.mxu0 %v1634
    %v1648 = vpop.f32.mrf.mxu0
    %v1649 = vadd.f32 0.0, %v1648
    %v1650 = vpop.f32.mrf.mxu0
    %1651 = vdwg.mxu0
    %v1652 = vmul.f32 %v1649, 0.35355338
    %v1653 = vsel %vm588, %v1652, -inf
    %1654 = vmax.xlane.f32.xlu0 %v1653
    %v1655 = vpop.xlane.xlu0 %1654
    %v1656 = vsub.f32 %v1652, %v1655
    %v1657 = vmul.f32 %v1656, 1.442695
    %v1658 = vpow.pop %v1657
    %v1659 = vsel %vm588, %v1658, 0.0
    %1660 = vadd.xlane.f32.xlu0 %v1659
    %v1661 = vpop.xlane.xlu0 %1660
    %v1662 = vrcp.pop %v1661
    %v1663 = vmul.f32 %v1658, %v1662
    %v1664 = vpack.c.bf16 %v1663, %v1663
    %1666 = vrot.lane.b32.xlu0 %v1632, 96
    %v1667 = vpop.permute.xlu0 %1666
    %v1669 = vsel %vm588, %v1664, 0
    %v1672 = vsel %vm626, %v1667, 0
    %1674 = vmatpush.bf16.msra.mxu0 0
    %1675 = vmatpush.bf16.msra.mxu0 0
    %1676 = vmatpush.bf16.msra.mxu0 0
    %1677 = vmatpush.bf16.msra.mxu0 0
    %1678 = vmatpush.bf16.msra.mxu0 0
    %1679 = vmatpush.bf16.msra.mxu0 0
    %1680 = vmatpush.bf16.msra.mxu0 0
    %1681 = vmatpush.bf16.msra.mxu0 %v1672
    %1682 = vmatmul.bf16.gmra.mxu0 %v1669
    %v1683 = vpop.f32.mrf.mxu0
    %v1684 = vadd.f32 0.0, %v1683
    %v1685 = vpop.f32.mrf.mxu0
    %1686 = vdwg.mxu0
    %1687 = vst.msk [vmem:[#allocation2 + $0x8] sm:$0xff] %vm588, %v1684
    %1689 = vrot.lane.b32.xlu0 %v1631, 120
    %v1690 = vpop.permute.xlu0 %1689
    %1691 = vrot.lane.b32.xlu0 %v1632, 120
    %v1692 = vpop.permute.xlu0 %1691
    %v1694 = vsel %vm588, %v1690, 0
    %v1697 = vsel %vm588, %v1692, 0
    %1699 = vmatpush.bf16.xpose.msra.mxu0 0
    %1700 = vmatpush.bf16.xpose.msra.mxu0 0
    %1701 = vmatpush.bf16.xpose.msra.mxu0 0
    %1702 = vmatpush.bf16.xpose.msra.mxu0 0
    %1703 = vmatpush.bf16.xpose.msra.mxu0 0
    %1704 = vmatpush.bf16.xpose.msra.mxu0 0
    %1705 = vmatpush.bf16.xpose.msra.mxu0 0
    %1706 = vmatpush.bf16.xpose.msra.mxu0 %v1697
    %1707 = vmatmul.bf16.gmra.mxu0 %v1694
    %v1708 = vpop.f32.mrf.mxu0
    %v1709 = vadd.f32 0.0, %v1708
    %v1710 = vpop.f32.mrf.mxu0
    %1711 = vdwg.mxu0
    %v1712 = vmul.f32 %v1709, 0.35355338
    %v1713 = vsel %vm588, %v1712, -inf
    %1714 = vmax.xlane.f32.xlu0 %v1713
    %v1715 = vpop.xlane.xlu0 %1714
    %v1716 = vsub.f32 %v1712, %v1715
    %v1717 = vmul.f32 %v1716, 1.442695
    %v1718 = vpow.pop %v1717
    %v1719 = vsel %vm588, %v1718, 0.0
    %1720 = vadd.xlane.f32.xlu0 %v1719
    %v1721 = vpop.xlane.xlu0 %1720
    %v1722 = vrcp.pop %v1721
    %v1723 = vmul.f32 %v1718, %v1722
    %v1724 = vpack.c.bf16 %v1723, %v1723
    %1725 = vrot.lane.b32.xlu0 %v1632, 88
    %v1726 = vpop.permute.xlu0 %1725
    %v1728 = vsel %vm588, %v1724, 0
    %v1731 = vsel %vm626, %v1726, 0
    %1733 = vmatpush.bf16.msra.mxu0 0
    %1734 = vmatpush.bf16.msra.mxu0 0
    %1735 = vmatpush.bf16.msra.mxu0 0
    %1736 = vmatpush.bf16.msra.mxu0 0
    %1737 = vmatpush.bf16.msra.mxu0 0
    %1738 = vmatpush.bf16.msra.mxu0 0
    %1739 = vmatpush.bf16.msra.mxu0 0
    %1740 = vmatpush.bf16.msra.mxu0 %v1731
    %1741 = vmatmul.bf16.gmra.mxu0 %v1728
    %v1742 = vpop.f32.mrf.mxu0
    %v1743 = vadd.f32 0.0, %v1742
    %v1744 = vpop.f32.mrf.mxu0
    %1745 = vdwg.mxu0
    %1747 = vrot.lane.b32.xlu0 %v1743, 8
    %v1748 = vpop.permute.xlu0 %1747
    %1750 = vst.msk [vmem:[#allocation2 + $0x8] sm:$0xff] %vm705, %v1748
    %1751 = vrot.lane.b32.xlu0 %v1631, 112
    %v1752 = vpop.permute.xlu0 %1751
    %1753 = vrot.lane.b32.xlu0 %v1632, 112
    %v1754 = vpop.permute.xlu0 %1753
    %v1756 = vsel %vm588, %v1752, 0
    %v1759 = vsel %vm588, %v1754, 0
    %1761 = vmatpush.bf16.xpose.msra.mxu0 0
    %1762 = vmatpush.bf16.xpose.msra.mxu0 0
    %1763 = vmatpush.bf16.xpose.msra.mxu0 0
    %1764 = vmatpush.bf16.xpose.msra.mxu0 0
    %1765 = vmatpush.bf16.xpose.msra.mxu0 0
    %1766 = vmatpush.bf16.xpose.msra.mxu0 0
    %1767 = vmatpush.bf16.xpose.msra.mxu0 0
    %1768 = vmatpush.bf16.xpose.msra.mxu0 %v1759
    %1769 = vmatmul.bf16.gmra.mxu0 %v1756
    %v1770 = vpop.f32.mrf.mxu0
    %v1771 = vadd.f32 0.0, %v1770
    %v1772 = vpop.f32.mrf.mxu0
    %1773 = vdwg.mxu0
    %v1774 = vmul.f32 %v1771, 0.35355338
    %v1775 = vsel %vm588, %v1774, -inf
    %1776 = vmax.xlane.f32.xlu0 %v1775
    %v1777 = vpop.xlane.xlu0 %1776
    %v1778 = vsub.f32 %v1774, %v1777
    %v1779 = vmul.f32 %v1778, 1.442695
    %v1780 = vpow.pop %v1779
    %v1781 = vsel %vm588, %v1780, 0.0
    %1782 = vadd.xlane.f32.xlu0 %v1781
    %v1783 = vpop.xlane.xlu0 %1782
    %v1784 = vrcp.pop %v1783
    %v1785 = vmul.f32 %v1780, %v1784
    %v1786 = vpack.c.bf16 %v1785, %v1785
    %1787 = vrot.lane.b32.xlu0 %v1632, 80
    %v1788 = vpop.permute.xlu0 %1787
    %v1790 = vsel %vm588, %v1786, 0
    %v1793 = vsel %vm626, %v1788, 0
    %1795 = vmatpush.bf16.msra.mxu0 0
    %1796 = vmatpush.bf16.msra.mxu0 0
    %1797 = vmatpush.bf16.msra.mxu0 0
    %1798 = vmatpush.bf16.msra.mxu0 0
    %1799 = vmatpush.bf16.msra.mxu0 0
    %1800 = vmatpush.bf16.msra.mxu0 0
    %1801 = vmatpush.bf16.msra.mxu0 0
    %1802 = vmatpush.bf16.msra.mxu0 %v1793
    %1803 = vmatmul.bf16.gmra.mxu0 %v1790
    %v1804 = vpop.f32.mrf.mxu0
    %v1805 = vadd.f32 0.0, %v1804
    %v1806 = vpop.f32.mrf.mxu0
    %1807 = vdwg.mxu0
    %1809 = vrot.lane.b32.xlu0 %v1805, 16
    %v1810 = vpop.permute.xlu0 %1809
    %1812 = vst.msk [vmem:[#allocation2 + $0x8] sm:$0xff] %vm768, %v1810
    %1813 = vrot.lane.b32.xlu0 %v1631, 104
    %v1814 = vpop.permute.xlu0 %1813
    %1815 = vrot.lane.b32.xlu0 %v1632, 104
    %v1816 = vpop.permute.xlu0 %1815
    %v1818 = vsel %vm588, %v1814, 0
    %v1821 = vsel %vm588, %v1816, 0
    %1823 = vmatpush.bf16.xpose.msra.mxu0 0
    %1824 = vmatpush.bf16.xpose.msra.mxu0 0
    %1825 = vmatpush.bf16.xpose.msra.mxu0 0
    %1826 = vmatpush.bf16.xpose.msra.mxu0 0
    %1827 = vmatpush.bf16.xpose.msra.mxu0 0
    %1828 = vmatpush.bf16.xpose.msra.mxu0 0
    %1829 = vmatpush.bf16.xpose.msra.mxu0 0
    %1830 = vmatpush.bf16.xpose.msra.mxu0 %v1821
    %1831 = vmatmul.bf16.gmra.mxu0 %v1818
    %v1832 = vpop.f32.mrf.mxu0
    %v1833 = vadd.f32 0.0, %v1832
    %v1834 = vpop.f32.mrf.mxu0
    %1835 = vdwg.mxu0
    %v1836 = vmul.f32 %v1833, 0.35355338
    %v1837 = vsel %vm588, %v1836, -inf
    %1838 = vmax.xlane.f32.xlu0 %v1837
    %v1839 = vpop.xlane.xlu0 %1838
    %v1840 = vsub.f32 %v1836, %v1839
    %v1841 = vmul.f32 %v1840, 1.442695
    %v1842 = vpow.pop %v1841
    %v1843 = vsel %vm588, %v1842, 0.0
    %1844 = vadd.xlane.f32.xlu0 %v1843
    %v1845 = vpop.xlane.xlu0 %1844
    %v1846 = vrcp.pop %v1845
    %v1847 = vmul.f32 %v1842, %v1846
    %v1848 = vpack.c.bf16 %v1847, %v1847
    %1849 = vrot.lane.b32.xlu0 %v1632, 72
    %v1850 = vpop.permute.xlu0 %1849
    %v1852 = vsel %vm588, %v1848, 0
    %v1855 = vsel %vm626, %v1850, 0
    %1857 = vmatpush.bf16.msra.mxu0 0
    %1858 = vmatpush.bf16.msra.mxu0 0
    %1859 = vmatpush.bf16.msra.mxu0 0
    %1860 = vmatpush.bf16.msra.mxu0 0
    %1861 = vmatpush.bf16.msra.mxu0 0
    %1862 = vmatpush.bf16.msra.mxu0 0
    %1863 = vmatpush.bf16.msra.mxu0 0
    %1864 = vmatpush.bf16.msra.mxu0 %v1855
    %1865 = vmatmul.bf16.gmra.mxu0 %v1852
    %v1866 = vpop.f32.mrf.mxu0
    %v1867 = vadd.f32 0.0, %v1866
    %v1868 = vpop.f32.mrf.mxu0
    %1869 = vdwg.mxu0
    %1871 = vrot.lane.b32.xlu0 %v1867, 24
    %v1872 = vpop.permute.xlu0 %1871
    %1874 = vst.msk [vmem:[#allocation2 + $0x8] sm:$0xff] %vm831, %v1872
    %v1875 = vld [vmem:[#allocation2] sm:$0xff]
    %v1876 = vld [vmem:[#allocation2 + $0x8] sm:$0xff]
    %v1877 = vpack.c.bf16 %v1876, %v1875
    %v1879 = vperm.slane %v490, 0
    %v1885 = vunpack.c.l.b16 %v486
    %v1886 = vunpack.c.l.b16 %v487
    %v1887 = vunpack.c.l.b16 %v488
    %v1888 = vunpack.c.l.b16 %v489
    %v1889 = vpack.c.b16 %v1886, %v1885
    %v1890 = vpack.c.b16 %v1888, %v1887
    %v1894 = vsel %vm414, %v1877, 0
    %1896 = vmatpush.bf16.msra.mxu0 0
    %1897 = vmatpush.bf16.msra.mxu0 0
    %1898 = vmatpush.bf16.msra.mxu0 0
    %1899 = vmatpush.bf16.msra.mxu0 0
    %1900 = vmatpush.bf16.msra.mxu0 0
    %1901 = vmatpush.bf16.msra.mxu0 0
    %1902 = vmatpush.bf16.msra.mxu0 %v1890
    %1903 = vmatpush.bf16.msra.mxu0 %v1889
    %1904 = vmatmul.bf16.gmra.mxu0 %v1894
    %v1905 = vpop.f32.mrf.mxu0
    %v1906 = vadd.f32 %v1879, %v1905
    %v1907 = vpop.f32.mrf.mxu0
    %v1908 = vadd.f32 %v1879, %v1907
    %1909 = vdwg.mxu0
    %v1910 = vadd.f32 %v1319, %v1906
    %v1911 = vadd.f32 %v1320, %v1908
    %v1912 = vsel %vm414, %v1910, 0.0
    %1913 = vadd.xlane.f32.xlu0 %v1912
    %v1914 = vpop.xlane.xlu0 %1913
    %v1915 = vsel %vm414, %v1911, 0.0
    %1916 = vadd.xlane.f32.xlu0 %v1915
    %v1917 = vpop.xlane.xlu0 %1916
    %v1918 = vmul.f32 %v1914, %v427
    %v1919 = vmul.f32 %v1917, %v427
    %v1920 = vsub.f32 %v1910, %v1918
    %v1921 = vsub.f32 %v1911, %v1919
    %v1922 = vmul.f32 %v1920, %v1920
    %v1923 = vmul.f32 %v1921, %v1921
    %v1924 = vsel %vm414, %v1922, 0.0
    %1925 = vadd.xlane.f32.xlu0 %v1924
    %v1926 = vpop.xlane.xlu0 %1925
    %v1927 = vsel %vm414, %v1923, 0.0
    %1928 = vadd.xlane.f32.xlu0 %v1927
    %v1929 = vpop.xlane.xlu0 %1928
    %v1930 = vmul.f32 %v1926, %v427
    %v1931 = vmul.f32 %v1929, %v427
    %v1932 = vadd.f32 %v1930, 1e-05
    %v1933 = vadd.f32 %v1931, 1e-05
    %v1934 = vrsqrt.pop %v1932
    %v1935 = vmul.f32 %v1934, %v1932
    %v1936 = vmul.f32 %v1935, %v1934
    %v1937 = vmul.f32 0.5, %v1936
    %v1938 = vsub.f32 1.5, %v1937
    %v1939 = vmul.f32 %v1934, %v1938
    %vm1940 = vweird.f32 %v1932
    %vm1941 = vweird.f32 %v1934
    %vm1942 = vmor %vm1940, %vm1941
    %v1943 = vsel %vm1942, %v1934, %v1939
    %v1944 = vrsqrt.pop %v1933
    %v1945 = vmul.f32 %v1944, %v1933
    %v1946 = vmul.f32 %v1945, %v1944
    %v1947 = vmul.f32 0.5, %v1946
    %v1948 = vsub.f32 1.5, %v1947
    %v1949 = vmul.f32 %v1944, %v1948
    %vm1950 = vweird.f32 %v1933
    %vm1951 = vweird.f32 %v1944
    %vm1952 = vmor %vm1950, %vm1951
    %v1953 = vsel %vm1952, %v1944, %v1949
    %v1954 = vmul.f32 %v1920, %v1943
    %v1955 = vmul.f32 %v1921, %v1953
    %v1957 = vperm.slane %v491, 0
    %v1959 = vmul.f32 %v1954, %v1957
    %v1960 = vmul.f32 %v1955, %v1957
    %v1962 = vperm.slane %v492, 0
    %v1964 = vadd.f32 %v1959, %v1962
    %v1965 = vadd.f32 %v1960, %v1962
    %v1966 = vpack.c.bf16 %v1965, %v1964
    %v1968 = vperm.slane %v497, 0
    %v1974 = vunpack.c.l.b16 %v493
    %v1975 = vunpack.c.l.b16 %v494
    %v1976 = vunpack.c.l.b16 %v495
    %v1977 = vunpack.c.l.b16 %v496
    %v1978 = vpack.c.b16 %v1975, %v1974
    %v1979 = vpack.c.b16 %v1977, %v1976
    %v1983 = vsel %vm414, %v1966, 0
    %1985 = vmatpush.bf16.msra.mxu0 0
    %1986 = vmatpush.bf16.msra.mxu0 0
    %1987 = vmatpush.bf16.msra.mxu0 0
    %1988 = vmatpush.bf16.msra.mxu0 0
    %1989 = vmatpush.bf16.msra.mxu0 0
    %1990 = vmatpush.bf16.msra.mxu0 0
    %1991 = vmatpush.bf16.msra.mxu0 %v1979
    %1992 = vmatpush.bf16.msra.mxu0 %v1978
    %1993 = vmatmul.bf16.gmra.mxu0 %v1983
    %v1994 = vpop.f32.mrf.mxu0
    %v1995 = vadd.f32 %v1968, %v1994
    %v1996 = vpop.f32.mrf.mxu0
    %v1997 = vadd.f32 %v1968, %v1996
    %1998 = vdwg.mxu0
    %v1999 = vmul.f32 %v1995, %v1995
    %v2000 = vmul.f32 %v1997, %v1997
    %v2001 = vmul.f32 %v1995, %v1999
    %v2002 = vmul.f32 %v1997, %v2000
    %v2003 = vmul.f32 %v2001, 0.044715
    %v2004 = vmul.f32 %v2002, 0.044715
    %v2005 = vadd.f32 %v1995, %v2003
    %v2006 = vadd.f32 %v1997, %v2004
    %v2007 = vmul.f32 %v2005, 0.7978846
    %v2008 = vmul.f32 %v2006, 0.7978846
    %v2009 = vtanh.pop %v2007
    %v2010 = vtanh.pop %v2008
    %v2011 = vadd.f32 %v2009, 1.0
    %v2012 = vadd.f32 %v2010, 1.0
    %v2013 = vmul.f32 %v2011, 0.5
    %v2014 = vmul.f32 %v2012, 0.5
    %v2015 = vmul.f32 %v1995, %v2013
    %v2016 = vmul.f32 %v1997, %v2014
    %v2017 = vpack.c.bf16 %v2016, %v2015
    %v2019 = vperm.slane %v506, 0
    %v2029 = vunpack.c.l.b16 %v498
    %v2030 = vunpack.c.l.b16 %v499
    %v2031 = vunpack.c.l.b16 %v500
    %v2032 = vunpack.c.l.b16 %v501
    %v2033 = vunpack.c.l.b16 %v502
    %v2034 = vunpack.c.l.b16 %v503
    %v2035 = vunpack.c.l.b16 %v504
    %v2036 = vunpack.c.l.b16 %v505
    %v2037 = vpack.c.b16 %v2030, %v2029
    %v2038 = vpack.c.b16 %v2032, %v2031
    %v2039 = vpack.c.b16 %v2034, %v2033
    %v2040 = vpack.c.b16 %v2036, %v2035
    %v2046 = vsel %vm1247, %v2017, 0
    %2048 = vmatpush.bf16.msra.mxu0 0
    %2049 = vmatpush.bf16.msra.mxu0 0
    %2050 = vmatpush.bf16.msra.mxu0 0
    %2051 = vmatpush.bf16.msra.mxu0 0
    %2052 = vmatpush.bf16.msra.mxu0 %v2040
    %2053 = vmatpush.bf16.msra.mxu0 %v2039
    %2054 = vmatpush.bf16.msra.mxu0 %v2038
    %2055 = vmatpush.bf16.msra.mxu0 %v2037
    %2056 = vmatmul.bf16.gmra.mxu0 %v2046
    %v2057 = vpop.f32.mrf.mxu0
    %v2058 = vadd.f32 %v2019, %v2057
    %v2059 = vpop.f32.mrf.mxu0
    %v2060 = vadd.f32 %v2019, %v2059
    %2061 = vdwg.mxu0
    %v2062 = vadd.f32 %v1964, %v2058
    %v2063 = vadd.f32 %v1965, %v2060
    %v2064 = vsel %vm414, %v2062, 0.0
    %2065 = vadd.xlane.f32.xlu0 %v2064
    %v2066 = vpop.xlane.xlu0 %2065
    %v2067 = vsel %vm414, %v2063, 0.0
    %2068 = vadd.xlane.f32.xlu0 %v2067
    %v2069 = vpop.xlane.xlu0 %2068
    %v2070 = vmul.f32 %v2066, %v427
    %v2071 = vmul.f32 %v2069, %v427
    %v2072 = vsub.f32 %v2062, %v2070
    %v2073 = vsub.f32 %v2063, %v2071
    %v2074 = vmul.f32 %v2072, %v2072
    %v2075 = vmul.f32 %v2073, %v2073
    %v2076 = vsel %vm414, %v2074, 0.0
    %2077 = vadd.xlane.f32.xlu0 %v2076
    %v2078 = vpop.xlane.xlu0 %2077
    %v2079 = vsel %vm414, %v2075, 0.0
    %2080 = vadd.xlane.f32.xlu0 %v2079
    %v2081 = vpop.xlane.xlu0 %2080
    %v2082 = vmul.f32 %v2078, %v427
    %v2083 = vmul.f32 %v2081, %v427
    %v2084 = vadd.f32 %v2082, 1e-05
    %v2085 = vadd.f32 %v2083, 1e-05
    %v2086 = vrsqrt.pop %v2084
    %v2087 = vmul.f32 %v2086, %v2084
    %v2088 = vmul.f32 %v2087, %v2086
    %v2089 = vmul.f32 0.5, %v2088
    %v2090 = vsub.f32 1.5, %v2089
    %v2091 = vmul.f32 %v2086, %v2090
    %vm2092 = vweird.f32 %v2084
    %vm2093 = vweird.f32 %v2086
    %vm2094 = vmor %vm2092, %vm2093
    %v2095 = vsel %vm2094, %v2086, %v2091
    %v2096 = vrsqrt.pop %v2085
    %v2097 = vmul.f32 %v2096, %v2085
    %v2098 = vmul.f32 %v2097, %v2096
    %v2099 = vmul.f32 0.5, %v2098
    %v2100 = vsub.f32 1.5, %v2099
    %v2101 = vmul.f32 %v2096, %v2100
    %vm2102 = vweird.f32 %v2085
    %vm2103 = vweird.f32 %v2096
    %vm2104 = vmor %vm2102, %vm2103
    %v2105 = vsel %vm2104, %v2096, %v2101
    %v2106 = vmul.f32 %v2072, %v2095
    %v2107 = vmul.f32 %v2073, %v2105
    %v2109 = vperm.slane %v507, 0
    %v2111 = vmul.f32 %v2106, %v2109
    %v2112 = vmul.f32 %v2107, %v2109
    %v2114 = vperm.slane %v508, 0
    %v2116 = vadd.f32 %v2111, %v2114
    %v2117 = vadd.f32 %v2112, %v2114
    %v2118 = vpack.c.bf16 %v2117, %v2116
    %v2120 = vperm.slane %v513, 0
    %v2126 = vunpack.c.l.b16 %v509
    %v2127 = vunpack.c.l.b16 %v510
    %v2128 = vunpack.c.l.b16 %v511
    %v2129 = vunpack.c.l.b16 %v512
    %v2130 = vpack.c.b16 %v2127, %v2126
    %v2131 = vpack.c.b16 %v2129, %v2128
    %v2135 = vsel %vm414, %v2118, 0
    %2137 = vmatpush.bf16.msra.mxu0 0
    %2138 = vmatpush.bf16.msra.mxu0 0
    %2139 = vmatpush.bf16.msra.mxu0 0
    %2140 = vmatpush.bf16.msra.mxu0 0
    %2141 = vmatpush.bf16.msra.mxu0 0
    %2142 = vmatpush.bf16.msra.mxu0 0
    %2143 = vmatpush.bf16.msra.mxu0 %v2131
    %2144 = vmatpush.bf16.msra.mxu0 %v2130
    %2145 = vmatmul.bf16.gmra.mxu0 %v2135
    %v2146 = vpop.f32.mrf.mxu0
    %v2147 = vadd.f32 %v2120, %v2146
    %v2148 = vpop.f32.mrf.mxu0
    %v2149 = vadd.f32 %v2120, %v2148
    %2150 = vdwg.mxu0
    %v2155 = vunpack.c.l.b16 %v514
    %v2156 = vunpack.c.l.b16 %v515
    %v2157 = vunpack.c.l.b16 %v516
    %v2158 = vunpack.c.l.b16 %v517
    %v2159 = vpack.c.b16 %v2156, %v2155
    %v2160 = vpack.c.b16 %v2158, %v2157
    %2163 = vmatpush.bf16.msra.mxu0 0
    %2164 = vmatpush.bf16.msra.mxu0 0
    %2165 = vmatpush.bf16.msra.mxu0 0
    %2166 = vmatpush.bf16.msra.mxu0 0
    %2167 = vmatpush.bf16.msra.mxu0 0
    %2168 = vmatpush.bf16.msra.mxu0 0
    %2169 = vmatpush.bf16.msra.mxu0 %v2160
    %2170 = vmatpush.bf16.msra.mxu0 %v2159
    %2171 = vmatmul.bf16.gmra.mxu0 %v1338
    %v2172 = vpop.f32.mrf.mxu0
    %v2173 = vadd.f32 0.0, %v2172
    %v2174 = vpop.f32.mrf.mxu0
    %v2175 = vadd.f32 0.0, %v2174
    %2176 = vdwg.mxu0
    %v2177 = vadd.f32 %v2147, %v2173
    %v2178 = vadd.f32 %v2149, %v2175
    %v2180 = vperm.slane %v518, 0
    %v2182 = vadd.f32 %v2177, %v2180
    %v2183 = vadd.f32 %v2178, %v2180
    %v2184 = vsub.f32 0.0, %v2182
    %v2185 = vsub.f32 0.0, %v2183
    %v2186 = vmul.f32 %v2184, 1.442695
    %v2187 = vpow.pop %v2186
    %v2188 = vmul.f32 %v2185, 1.442695
    %v2189 = vpow.pop %v2188
    %v2190 = vadd.f32 %v2187, 1.0
    %v2191 = vadd.f32 %v2189, 1.0
    %v2192 = vrcp.pop %v2190
    %v2193 = vmul.f32 %v2190, %v2192
    %v2194 = vsub.f32 1.0, %v2193
    %v2195 = vmul.f32 %v2192, %v2194
    %v2196 = vadd.f32 %v2192, %v2195
    %vm2197 = vweird.f32 %v2190
    %vm2198 = vweird.f32 %v2192
    %vm2199 = vmor %vm2197, %vm2198
    %v2200 = vsel %vm2199, %v2192, %v2196
    %v2201 = vand.u32 2147483647, %v2190
    %vm2202 = vcmp.eq.f32.partialorder %v2201, 8.507059e+37
    %v2203 = vand.u32 %v2190, 2147483648
    %v2204 = vor.u32 1.1754944e-38, %v2203
    %v2205 = vsel %vm2202, %v2204, %v2200
    %v2206 = vmul.f32 1.0, %v2205
    %v2207 = vrcp.pop %v2191
    %v2208 = vmul.f32 %v2191, %v2207
    %v2209 = vsub.f32 1.0, %v2208
    %v2210 = vmul.f32 %v2207, %v2209
    %v2211 = vadd.f32 %v2207, %v2210
    %vm2212 = vweird.f32 %v2191
    %vm2213 = vweird.f32 %v2207
    %vm2214 = vmor %vm2212, %vm2213
    %v2215 = vsel %vm2214, %v2207, %v2211
    %v2216 = vand.u32 2147483647, %v2191
    %vm2217 = vcmp.eq.f32.partialorder %v2216, 8.507059e+37
    %v2218 = vand.u32 %v2191, 2147483648
    %v2219 = vor.u32 1.1754944e-38, %v2218
    %v2220 = vsel %vm2217, %v2219, %v2215
    %v2221 = vmul.f32 1.0, %v2220
    %v2222 = vmul.f32 %v2206, %v2116
    %v2223 = vmul.f32 %v2221, %v2117
    %v2224 = vsub.f32 1.0, %v2206
    %v2225 = vsub.f32 1.0, %v2221
    %v2226 = vmul.f32 %v2224, %v1319
    %v2227 = vmul.f32 %v2225, %v1320
    %v2228 = vadd.f32 %v2222, %v2226
    %v2229 = vadd.f32 %v2223, %v2227
    %2231 = vset.pattern.permute.xlu0 0
    %2232 = vperm.xlu0 %2231, %v521
    %v2233 = vpop.permute.xlu0 %2232
    %2236 = vset.pattern.permute.xlu0 0
    %2237 = vperm.xlu0 %2236, %v522
    %v2238 = vpop.permute.xlu0 %2237
    %v2240 = vmul.f32 %v2233, %v2228
    %v2241 = vmul.f32 %v2238, %v2229
    %v2242 = vsub.f32 1.0, %v521
    %v2243 = vsub.f32 1.0, %v522
    %2245 = vset.pattern.permute.xlu0 0
    %2246 = vperm.xlu0 %2245, %v2242
    %v2247 = vpop.permute.xlu0 %2246
    %2250 = vset.pattern.permute.xlu0 0
    %2251 = vperm.xlu0 %2250, %v2243
    %v2252 = vpop.permute.xlu0 %2251
    %v2254 = vmul.f32 %v2247, %v1319
    %v2255 = vmul.f32 %v2252, %v1320
    %v2256 = vadd.f32 %v2240, %v2254
    %v2257 = vadd.f32 %v2241, %v2255
    %s2258 = scalar_lea.vmem %s7, 16
    %v2259 = vld [vmem:[%s2258] sm:$0xf]
    %v2260 = vld [vmem:[%s2258 + $0x4] sm:$0xf]
    %v2261 = vld [vmem:[%s2258 + $0x8] sm:$0xf]
    %v2262 = vld [vmem:[%s2258 + $0xc] sm:$0xf]
    %s2263 = scalar_lea.vmem %s9, 1
    %v2264 = vld [vmem:[%s2263] sm:$0x1]
    %s2265 = scalar_lea.vmem %s11, 16
    %v2266 = vld [vmem:[%s2265] sm:$0xf]
    %v2267 = vld [vmem:[%s2265 + $0x4] sm:$0xf]
    %v2268 = vld [vmem:[%s2265 + $0x8] sm:$0xf]
    %v2269 = vld [vmem:[%s2265 + $0xc] sm:$0xf]
    %s2270 = scalar_lea.vmem %s13, 1
    %v2271 = vld [vmem:[%s2270] sm:$0x1]
    %s2272 = scalar_lea.vmem %s15, 1
    %v2273 = vld [vmem:[%s2272] sm:$0x1]
    %s2274 = scalar_lea.vmem %s17, 1
    %v2275 = vld [vmem:[%s2274] sm:$0x1]
    %s2276 = scalar_lea.vmem %s19, 16
    %v2277 = vld [vmem:[%s2276] sm:$0xf]
    %v2278 = vld [vmem:[%s2276 + $0x4] sm:$0xf]
    %v2279 = vld [vmem:[%s2276 + $0x8] sm:$0xf]
    %v2280 = vld [vmem:[%s2276 + $0xc] sm:$0xf]
    %s2281 = scalar_lea.vmem %s21, 1
    %v2282 = vld [vmem:[%s2281] sm:$0x1]
    %s2283 = scalar_lea.vmem %s23, 32
    %v2284 = vld [vmem:[%s2283] sm:$0xf]
    %v2285 = vld [vmem:[%s2283 + $0x4] sm:$0xf]
    %v2286 = vld [vmem:[%s2283 + $0x8] sm:$0xf]
    %v2287 = vld [vmem:[%s2283 + $0xc] sm:$0xf]
    %v2288 = vld [vmem:[%s2283 + $0x10] sm:$0xf]
    %v2289 = vld [vmem:[%s2283 + $0x14] sm:$0xf]
    %v2290 = vld [vmem:[%s2283 + $0x18] sm:$0xf]
    %v2291 = vld [vmem:[%s2283 + $0x1c] sm:$0xf]
    %s2292 = scalar_lea.vmem %s25, 1
    %v2293 = vld [vmem:[%s2292] sm:$0x1]
    %s2294 = scalar_lea.vmem %s27, 1
    %v2295 = vld [vmem:[%s2294] sm:$0x1]
    %s2296 = scalar_lea.vmem %s29, 1
    %v2297 = vld [vmem:[%s2296] sm:$0x1]
    %v2298 = vpack.c.bf16 %v2257, %v2256
    %v2300 = vperm.slane %v2264, 0
    %v2306 = vunpack.c.l.b16 %v2259
    %v2307 = vunpack.c.l.b16 %v2260
    %v2308 = vunpack.c.l.b16 %v2261
    %v2309 = vunpack.c.l.b16 %v2262
    %v2310 = vpack.c.b16 %v2307, %v2306
    %v2311 = vpack.c.b16 %v2309, %v2308
    %v2315 = vsel %vm414, %v2298, 0
    %2317 = vmatpush.bf16.msra.mxu0 0
    %2318 = vmatpush.bf16.msra.mxu0 0
    %2319 = vmatpush.bf16.msra.mxu0 0
    %2320 = vmatpush.bf16.msra.mxu0 0
    %2321 = vmatpush.bf16.msra.mxu0 0
    %2322 = vmatpush.bf16.msra.mxu0 0
    %2323 = vmatpush.bf16.msra.mxu0 %v2311
    %2324 = vmatpush.bf16.msra.mxu0 %v2310
    %2325 = vmatmul.bf16.gmra.mxu0 %v2315
    %v2326 = vpop.f32.mrf.mxu0
    %v2327 = vadd.f32 %v2300, %v2326
    %v2328 = vpop.f32.mrf.mxu0
    %v2329 = vadd.f32 %v2300, %v2328
    %2330 = vdwg.mxu0
    %v2331 = vpack.c.bf16 %v2327, %v2327
    %2333 = vrot.lane.b32.xlu0 %v2331, 96
    %v2334 = vpop.permute.xlu0 %2333
    %v2336 = vsel %vm588, %v2331, 0
    %v2339 = vsel %vm588, %v2334, 0
    %2341 = vmatpush.bf16.xpose.msra.mxu0 0
    %2342 = vmatpush.bf16.xpose.msra.mxu0 0
    %2343 = vmatpush.bf16.xpose.msra.mxu0 0
    %2344 = vmatpush.bf16.xpose.msra.mxu0 0
    %2345 = vmatpush.bf16.xpose.msra.mxu0 0
    %2346 = vmatpush.bf16.xpose.msra.mxu0 0
    %2347 = vmatpush.bf16.xpose.msra.mxu0 0
    %2348 = vmatpush.bf16.xpose.msra.mxu0 %v2339
    %2349 = vmatmul.bf16.gmra.mxu0 %v2336
    %v2350 = vpop.f32.mrf.mxu0
    %v2351 = vadd.f32 0.0, %v2350
    %v2352 = vpop.f32.mrf.mxu0
    %2353 = vdwg.mxu0
    %v2354 = vmul.f32 %v2351, 0.35355338
    %v2355 = vsel %vm588, %v2354, -inf
    %2356 = vmax.xlane.f32.xlu0 %v2355
    %v2357 = vpop.xlane.xlu0 %2356
    %v2358 = vsub.f32 %v2354, %v2357
    %v2359 = vmul.f32 %v2358, 1.442695
    %v2360 = vpow.pop %v2359
    %v2361 = vsel %vm588, %v2360, 0.0
    %2362 = vadd.xlane.f32.xlu0 %v2361
    %v2363 = vpop.xlane.xlu0 %2362
    %v2364 = vrcp.pop %v2363
    %v2365 = vmul.f32 %v2360, %v2364
    %v2366 = vpack.c.bf16 %v2365, %v2365
    %2367 = vrot.lane.b32.xlu0 %v2331, 64
    %v2368 = vpop.permute.xlu0 %2367
    %v2370 = vsel %vm588, %v2366, 0
    %v2373 = vsel %vm626, %v2368, 0
    %2375 = vmatpush.bf16.msra.mxu0 0
    %2376 = vmatpush.bf16.msra.mxu0 0
    %2377 = vmatpush.bf16.msra.mxu0 0
    %2378 = vmatpush.bf16.msra.mxu0 0
    %2379 = vmatpush.bf16.msra.mxu0 0
    %2380 = vmatpush.bf16.msra.mxu0 0
    %2381 = vmatpush.bf16.msra.mxu0 0
    %2382 = vmatpush.bf16.msra.mxu0 %v2373
    %2383 = vmatmul.bf16.gmra.mxu0 %v2370
    %v2384 = vpop.f32.mrf.mxu0
    %v2385 = vadd.f32 0.0, %v2384
    %v2386 = vpop.f32.mrf.mxu0
    %2387 = vdwg.mxu0
    %2388 = vst.msk [vmem:[#allocation2] sm:$0xff] %vm588, %v2385
    %2389 = vrot.lane.b32.xlu0 %v2331, 120
    %v2390 = vpop.permute.xlu0 %2389
    %2391 = vrot.lane.b32.xlu0 %v2331, 88
    %v2392 = vpop.permute.xlu0 %2391
    %v2394 = vsel %vm588, %v2390, 0
    %v2397 = vsel %vm588, %v2392, 0
    %2399 = vmatpush.bf16.xpose.msra.mxu0 0
    %2400 = vmatpush.bf16.xpose.msra.mxu0 0
    %2401 = vmatpush.bf16.xpose.msra.mxu0 0
    %2402 = vmatpush.bf16.xpose.msra.mxu0 0
    %2403 = vmatpush.bf16.xpose.msra.mxu0 0
    %2404 = vmatpush.bf16.xpose.msra.mxu0 0
    %2405 = vmatpush.bf16.xpose.msra.mxu0 0
    %2406 = vmatpush.bf16.xpose.msra.mxu0 %v2397
    %2407 = vmatmul.bf16.gmra.mxu0 %v2394
    %v2408 = vpop.f32.mrf.mxu0
    %v2409 = vadd.f32 0.0, %v2408
    %v2410 = vpop.f32.mrf.mxu0
    %2411 = vdwg.mxu0
    %v2412 = vmul.f32 %v2409, 0.35355338
    %v2413 = vsel %vm588, %v2412, -inf
    %2414 = vmax.xlane.f32.xlu0 %v2413
    %v2415 = vpop.xlane.xlu0 %2414
    %v2416 = vsub.f32 %v2412, %v2415
    %v2417 = vmul.f32 %v2416, 1.442695
    %v2418 = vpow.pop %v2417
    %v2419 = vsel %vm588, %v2418, 0.0
    %2420 = vadd.xlane.f32.xlu0 %v2419
    %v2421 = vpop.xlane.xlu0 %2420
    %v2422 = vrcp.pop %v2421
    %v2423 = vmul.f32 %v2418, %v2422
    %v2424 = vpack.c.bf16 %v2423, %v2423
    %2425 = vrot.lane.b32.xlu0 %v2331, 56
    %v2426 = vpop.permute.xlu0 %2425
    %v2428 = vsel %vm588, %v2424, 0
    %v2431 = vsel %vm626, %v2426, 0
    %2433 = vmatpush.bf16.msra.mxu0 0
    %2434 = vmatpush.bf16.msra.mxu0 0
    %2435 = vmatpush.bf16.msra.mxu0 0
    %2436 = vmatpush.bf16.msra.mxu0 0
    %2437 = vmatpush.bf16.msra.mxu0 0
    %2438 = vmatpush.bf16.msra.mxu0 0
    %2439 = vmatpush.bf16.msra.mxu0 0
    %2440 = vmatpush.bf16.msra.mxu0 %v2431
    %2441 = vmatmul.bf16.gmra.mxu0 %v2428
    %v2442 = vpop.f32.mrf.mxu0
    %v2443 = vadd.f32 0.0, %v2442
    %v2444 = vpop.f32.mrf.mxu0
    %2445 = vdwg.mxu0
    %2447 = vrot.lane.b32.xlu0 %v2443, 8
    %v2448 = vpop.permute.xlu0 %2447
    %2450 = vst.msk [vmem:[#allocation2] sm:$0xff] %vm705, %v2448
    %2451 = vrot.lane.b32.xlu0 %v2331, 112
    %v2452 = vpop.permute.xlu0 %2451
    %2453 = vrot.lane.b32.xlu0 %v2331, 80
    %v2454 = vpop.permute.xlu0 %2453
    %v2456 = vsel %vm588, %v2452, 0
    %v2459 = vsel %vm588, %v2454, 0
    %2461 = vmatpush.bf16.xpose.msra.mxu0 0
    %2462 = vmatpush.bf16.xpose.msra.mxu0 0
    %2463 = vmatpush.bf16.xpose.msra.mxu0 0
    %2464 = vmatpush.bf16.xpose.msra.mxu0 0
    %2465 = vmatpush.bf16.xpose.msra.mxu0 0
    %2466 = vmatpush.bf16.xpose.msra.mxu0 0
    %2467 = vmatpush.bf16.xpose.msra.mxu0 0
    %2468 = vmatpush.bf16.xpose.msra.mxu0 %v2459
    %2469 = vmatmul.bf16.gmra.mxu0 %v2456
    %v2470 = vpop.f32.mrf.mxu0
    %v2471 = vadd.f32 0.0, %v2470
    %v2472 = vpop.f32.mrf.mxu0
    %2473 = vdwg.mxu0
    %v2474 = vmul.f32 %v2471, 0.35355338
    %v2475 = vsel %vm588, %v2474, -inf
    %2476 = vmax.xlane.f32.xlu0 %v2475
    %v2477 = vpop.xlane.xlu0 %2476
    %v2478 = vsub.f32 %v2474, %v2477
    %v2479 = vmul.f32 %v2478, 1.442695
    %v2480 = vpow.pop %v2479
    %v2481 = vsel %vm588, %v2480, 0.0
    %2482 = vadd.xlane.f32.xlu0 %v2481
    %v2483 = vpop.xlane.xlu0 %2482
    %v2484 = vrcp.pop %v2483
    %v2485 = vmul.f32 %v2480, %v2484
    %v2486 = vpack.c.bf16 %v2485, %v2485
    %2487 = vrot.lane.b32.xlu0 %v2331, 48
    %v2488 = vpop.permute.xlu0 %2487
    %v2490 = vsel %vm588, %v2486, 0
    %v2493 = vsel %vm626, %v2488, 0
    %2495 = vmatpush.bf16.msra.mxu0 0
    %2496 = vmatpush.bf16.msra.mxu0 0
    %2497 = vmatpush.bf16.msra.mxu0 0
    %2498 = vmatpush.bf16.msra.mxu0 0
    %2499 = vmatpush.bf16.msra.mxu0 0
    %2500 = vmatpush.bf16.msra.mxu0 0
    %2501 = vmatpush.bf16.msra.mxu0 0
    %2502 = vmatpush.bf16.msra.mxu0 %v2493
    %2503 = vmatmul.bf16.gmra.mxu0 %v2490
    %v2504 = vpop.f32.mrf.mxu0
    %v2505 = vadd.f32 0.0, %v2504
    %v2506 = vpop.f32.mrf.mxu0
    %2507 = vdwg.mxu0
    %2509 = vrot.lane.b32.xlu0 %v2505, 16
    %v2510 = vpop.permute.xlu0 %2509
    %2512 = vst.msk [vmem:[#allocation2] sm:$0xff] %vm768, %v2510
    %2513 = vrot.lane.b32.xlu0 %v2331, 104
    %v2514 = vpop.permute.xlu0 %2513
    %2515 = vrot.lane.b32.xlu0 %v2331, 72
    %v2516 = vpop.permute.xlu0 %2515
    %v2518 = vsel %vm588, %v2514, 0
    %v2521 = vsel %vm588, %v2516, 0
    %2523 = vmatpush.bf16.xpose.msra.mxu0 0
    %2524 = vmatpush.bf16.xpose.msra.mxu0 0
    %2525 = vmatpush.bf16.xpose.msra.mxu0 0
    %2526 = vmatpush.bf16.xpose.msra.mxu0 0
    %2527 = vmatpush.bf16.xpose.msra.mxu0 0
    %2528 = vmatpush.bf16.xpose.msra.mxu0 0
    %2529 = vmatpush.bf16.xpose.msra.mxu0 0
    %2530 = vmatpush.bf16.xpose.msra.mxu0 %v2521
    %2531 = vmatmul.bf16.gmra.mxu0 %v2518
    %v2532 = vpop.f32.mrf.mxu0
    %v2533 = vadd.f32 0.0, %v2532
    %v2534 = vpop.f32.mrf.mxu0
    %2535 = vdwg.mxu0
    %v2536 = vmul.f32 %v2533, 0.35355338
    %v2537 = vsel %vm588, %v2536, -inf
    %2538 = vmax.xlane.f32.xlu0 %v2537
    %v2539 = vpop.xlane.xlu0 %2538
    %v2540 = vsub.f32 %v2536, %v2539
    %v2541 = vmul.f32 %v2540, 1.442695
    %v2542 = vpow.pop %v2541
    %v2543 = vsel %vm588, %v2542, 0.0
    %2544 = vadd.xlane.f32.xlu0 %v2543
    %v2545 = vpop.xlane.xlu0 %2544
    %v2546 = vrcp.pop %v2545
    %v2547 = vmul.f32 %v2542, %v2546
    %v2548 = vpack.c.bf16 %v2547, %v2547
    %2549 = vrot.lane.b32.xlu0 %v2331, 40
    %v2550 = vpop.permute.xlu0 %2549
    %v2552 = vsel %vm588, %v2548, 0
    %v2555 = vsel %vm626, %v2550, 0
    %2557 = vmatpush.bf16.msra.mxu0 0
    %2558 = vmatpush.bf16.msra.mxu0 0
    %2559 = vmatpush.bf16.msra.mxu0 0
    %2560 = vmatpush.bf16.msra.mxu0 0
    %2561 = vmatpush.bf16.msra.mxu0 0
    %2562 = vmatpush.bf16.msra.mxu0 0
    %2563 = vmatpush.bf16.msra.mxu0 0
    %2564 = vmatpush.bf16.msra.mxu0 %v2555
    %2565 = vmatmul.bf16.gmra.mxu0 %v2552
    %v2566 = vpop.f32.mrf.mxu0
    %v2567 = vadd.f32 0.0, %v2566
    %v2568 = vpop.f32.mrf.mxu0
    %2569 = vdwg.mxu0
    %2571 = vrot.lane.b32.xlu0 %v2567, 24
    %v2572 = vpop.permute.xlu0 %2571
    %2574 = vst.msk [vmem:[#allocation2] sm:$0xff] %vm831, %v2572
    %v2575 = vpack.c.bf16 %v2329, %v2329
    %2577 = vrot.lane.b32.xlu0 %v2575, 96
    %v2578 = vpop.permute.xlu0 %2577
    %v2580 = vsel %vm588, %v2575, 0
    %v2583 = vsel %vm588, %v2578, 0
    %2585 = vmatpush.bf16.xpose.msra.mxu0 0
    %2586 = vmatpush.bf16.xpose.msra.mxu0 0
    %2587 = vmatpush.bf16.xpose.msra.mxu0 0
    %2588 = vmatpush.bf16.xpose.msra.mxu0 0
    %2589 = vmatpush.bf16.xpose.msra.mxu0 0
    %2590 = vmatpush.bf16.xpose.msra.mxu0 0
    %2591 = vmatpush.bf16.xpose.msra.mxu0 0
    %2592 = vmatpush.bf16.xpose.msra.mxu0 %v2583
    %2593 = vmatmul.bf16.gmra.mxu0 %v2580
    %v2594 = vpop.f32.mrf.mxu0
    %v2595 = vadd.f32 0.0, %v2594
    %v2596 = vpop.f32.mrf.mxu0
    %2597 = vdwg.mxu0
    %v2598 = vmul.f32 %v2595, 0.35355338
    %v2599 = vsel %vm588, %v2598, -inf
    %2600 = vmax.xlane.f32.xlu0 %v2599
    %v2601 = vpop.xlane.xlu0 %2600
    %v2602 = vsub.f32 %v2598, %v2601
    %v2603 = vmul.f32 %v2602, 1.442695
    %v2604 = vpow.pop %v2603
    %v2605 = vsel %vm588, %v2604, 0.0
    %2606 = vadd.xlane.f32.xlu0 %v2605
    %v2607 = vpop.xlane.xlu0 %2606
    %v2608 = vrcp.pop %v2607
    %v2609 = vmul.f32 %v2604, %v2608
    %v2610 = vpack.c.bf16 %v2609, %v2609
    %2611 = vrot.lane.b32.xlu0 %v2575, 64
    %v2612 = vpop.permute.xlu0 %2611
    %v2614 = vsel %vm588, %v2610, 0
    %v2617 = vsel %vm626, %v2612, 0
    %2619 = vmatpush.bf16.msra.mxu0 0
    %2620 = vmatpush.bf16.msra.mxu0 0
    %2621 = vmatpush.bf16.msra.mxu0 0
    %2622 = vmatpush.bf16.msra.mxu0 0
    %2623 = vmatpush.bf16.msra.mxu0 0
    %2624 = vmatpush.bf16.msra.mxu0 0
    %2625 = vmatpush.bf16.msra.mxu0 0
    %2626 = vmatpush.bf16.msra.mxu0 %v2617
    %2627 = vmatmul.bf16.gmra.mxu0 %v2614
    %v2628 = vpop.f32.mrf.mxu0
    %v2629 = vadd.f32 0.0, %v2628
    %v2630 = vpop.f32.mrf.mxu0
    %2631 = vdwg.mxu0
    %2632 = vst.msk [vmem:[#allocation2 + $0x8] sm:$0xff] %vm588, %v2629
    %2633 = vrot.lane.b32.xlu0 %v2575, 120
    %v2634 = vpop.permute.xlu0 %2633
    %2635 = vrot.lane.b32.xlu0 %v2575, 88
    %v2636 = vpop.permute.xlu0 %2635
    %v2638 = vsel %vm588, %v2634, 0
    %v2641 = vsel %vm588, %v2636, 0
    %2643 = vmatpush.bf16.xpose.msra.mxu0 0
    %2644 = vmatpush.bf16.xpose.msra.mxu0 0
    %2645 = vmatpush.bf16.xpose.msra.mxu0 0
    %2646 = vmatpush.bf16.xpose.msra.mxu0 0
    %2647 = vmatpush.bf16.xpose.msra.mxu0 0
    %2648 = vmatpush.bf16.xpose.msra.mxu0 0
    %2649 = vmatpush.bf16.xpose.msra.mxu0 0
    %2650 = vmatpush.bf16.xpose.msra.mxu0 %v2641
    %2651 = vmatmul.bf16.gmra.mxu0 %v2638
    %v2652 = vpop.f32.mrf.mxu0
    %v2653 = vadd.f32 0.0, %v2652
    %v2654 = vpop.f32.mrf.mxu0
    %2655 = vdwg.mxu0
    %v2656 = vmul.f32 %v2653, 0.35355338
    %v2657 = vsel %vm588, %v2656, -inf
    %2658 = vmax.xlane.f32.xlu0 %v2657
    %v2659 = vpop.xlane.xlu0 %2658
    %v2660 = vsub.f32 %v2656, %v2659
    %v2661 = vmul.f32 %v2660, 1.442695
    %v2662 = vpow.pop %v2661
    %v2663 = vsel %vm588, %v2662, 0.0
    %2664 = vadd.xlane.f32.xlu0 %v2663
    %v2665 = vpop.xlane.xlu0 %2664
    %v2666 = vrcp.pop %v2665
    %v2667 = vmul.f32 %v2662, %v2666
    %v2668 = vpack.c.bf16 %v2667, %v2667
    %2669 = vrot.lane.b32.xlu0 %v2575, 56
    %v2670 = vpop.permute.xlu0 %2669
    %v2672 = vsel %vm588, %v2668, 0
    %v2675 = vsel %vm626, %v2670, 0
    %2677 = vmatpush.bf16.msra.mxu0 0
    %2678 = vmatpush.bf16.msra.mxu0 0
    %2679 = vmatpush.bf16.msra.mxu0 0
    %2680 = vmatpush.bf16.msra.mxu0 0
    %2681 = vmatpush.bf16.msra.mxu0 0
    %2682 = vmatpush.bf16.msra.mxu0 0
    %2683 = vmatpush.bf16.msra.mxu0 0
    %2684 = vmatpush.bf16.msra.mxu0 %v2675
    %2685 = vmatmul.bf16.gmra.mxu0 %v2672
    %v2686 = vpop.f32.mrf.mxu0
    %v2687 = vadd.f32 0.0, %v2686
    %v2688 = vpop.f32.mrf.mxu0
    %2689 = vdwg.mxu0
    %2691 = vrot.lane.b32.xlu0 %v2687, 8
    %v2692 = vpop.permute.xlu0 %2691
    %2694 = vst.msk [vmem:[#allocation2 + $0x8] sm:$0xff] %vm705, %v2692
    %2695 = vrot.lane.b32.xlu0 %v2575, 112
    %v2696 = vpop.permute.xlu0 %2695
    %2697 = vrot.lane.b32.xlu0 %v2575, 80
    %v2698 = vpop.permute.xlu0 %2697
    %v2700 = vsel %vm588, %v2696, 0
    %v2703 = vsel %vm588, %v2698, 0
    %2705 = vmatpush.bf16.xpose.msra.mxu0 0
    %2706 = vmatpush.bf16.xpose.msra.mxu0 0
    %2707 = vmatpush.bf16.xpose.msra.mxu0 0
    %2708 = vmatpush.bf16.xpose.msra.mxu0 0
    %2709 = vmatpush.bf16.xpose.msra.mxu0 0
    %2710 = vmatpush.bf16.xpose.msra.mxu0 0
    %2711 = vmatpush.bf16.xpose.msra.mxu0 0
    %2712 = vmatpush.bf16.xpose.msra.mxu0 %v2703
    %2713 = vmatmul.bf16.gmra.mxu0 %v2700
    %v2714 = vpop.f32.mrf.mxu0
    %v2715 = vadd.f32 0.0, %v2714
    %v2716 = vpop.f32.mrf.mxu0
    %2717 = vdwg.mxu0
    %v2718 = vmul.f32 %v2715, 0.35355338
    %v2719 = vsel %vm588, %v2718, -inf
    %2720 = vmax.xlane.f32.xlu0 %v2719
    %v2721 = vpop.xlane.xlu0 %2720
    %v2722 = vsub.f32 %v2718, %v2721
    %v2723 = vmul.f32 %v2722, 1.442695
    %v2724 = vpow.pop %v2723
    %v2725 = vsel %vm588, %v2724, 0.0
    %2726 = vadd.xlane.f32.xlu0 %v2725
    %v2727 = vpop.xlane.xlu0 %2726
    %v2728 = vrcp.pop %v2727
    %v2729 = vmul.f32 %v2724, %v2728
    %v2730 = vpack.c.bf16 %v2729, %v2729
    %2731 = vrot.lane.b32.xlu0 %v2575, 48
    %v2732 = vpop.permute.xlu0 %2731
    %v2734 = vsel %vm588, %v2730, 0
    %v2737 = vsel %vm626, %v2732, 0
    %2739 = vmatpush.bf16.msra.mxu0 0
    %2740 = vmatpush.bf16.msra.mxu0 0
    %2741 = vmatpush.bf16.msra.mxu0 0
    %2742 = vmatpush.bf16.msra.mxu0 0
    %2743 = vmatpush.bf16.msra.mxu0 0
    %2744 = vmatpush.bf16.msra.mxu0 0
    %2745 = vmatpush.bf16.msra.mxu0 0
    %2746 = vmatpush.bf16.msra.mxu0 %v2737
    %2747 = vmatmul.bf16.gmra.mxu0 %v2734
    %v2748 = vpop.f32.mrf.mxu0
    %v2749 = vadd.f32 0.0, %v2748
    %v2750 = vpop.f32.mrf.mxu0
    %2751 = vdwg.mxu0
    %2753 = vrot.lane.b32.xlu0 %v2749, 16
    %v2754 = vpop.permute.xlu0 %2753
    %2756 = vst.msk [vmem:[#allocation2 + $0x8] sm:$0xff] %vm768, %v2754
    %2757 = vrot.lane.b32.xlu0 %v2575, 104
    %v2758 = vpop.permute.xlu0 %2757
    %2759 = vrot.lane.b32.xlu0 %v2575, 72
    %v2760 = vpop.permute.xlu0 %2759
    %v2762 = vsel %vm588, %v2758, 0
    %v2765 = vsel %vm588, %v2760, 0
    %2767 = vmatpush.bf16.xpose.msra.mxu0 0
    %2768 = vmatpush.bf16.xpose.msra.mxu0 0
    %2769 = vmatpush.bf16.xpose.msra.mxu0 0
    %2770 = vmatpush.bf16.xpose.msra.mxu0 0
    %2771 = vmatpush.bf16.xpose.msra.mxu0 0
    %2772 = vmatpush.bf16.xpose.msra.mxu0 0
    %2773 = vmatpush.bf16.xpose.msra.mxu0 0
    %2774 = vmatpush.bf16.xpose.msra.mxu0 %v2765
    %2775 = vmatmul.bf16.gmra.mxu0 %v2762
    %v2776 = vpop.f32.mrf.mxu0
    %v2777 = vadd.f32 0.0, %v2776
    %v2778 = vpop.f32.mrf.mxu0
    %2779 = vdwg.mxu0
    %v2780 = vmul.f32 %v2777, 0.35355338
    %v2781 = vsel %vm588, %v2780, -inf
    %2782 = vmax.xlane.f32.xlu0 %v2781
    %v2783 = vpop.xlane.xlu0 %2782
    %v2784 = vsub.f32 %v2780, %v2783
    %v2785 = vmul.f32 %v2784, 1.442695
    %v2786 = vpow.pop %v2785
    %v2787 = vsel %vm588, %v2786, 0.0
    %2788 = vadd.xlane.f32.xlu0 %v2787
    %v2789 = vpop.xlane.xlu0 %2788
    %v2790 = vrcp.pop %v2789
    %v2791 = vmul.f32 %v2786, %v2790
    %v2792 = vpack.c.bf16 %v2791, %v2791
    %2793 = vrot.lane.b32.xlu0 %v2575, 40
    %v2794 = vpop.permute.xlu0 %2793
    %v2796 = vsel %vm588, %v2792, 0
    %v2799 = vsel %vm626, %v2794, 0
    %2801 = vmatpush.bf16.msra.mxu0 0
    %2802 = vmatpush.bf16.msra.mxu0 0
    %2803 = vmatpush.bf16.msra.mxu0 0
    %2804 = vmatpush.bf16.msra.mxu0 0
    %2805 = vmatpush.bf16.msra.mxu0 0
    %2806 = vmatpush.bf16.msra.mxu0 0
    %2807 = vmatpush.bf16.msra.mxu0 0
    %2808 = vmatpush.bf16.msra.mxu0 %v2799
    %2809 = vmatmul.bf16.gmra.mxu0 %v2796
    %v2810 = vpop.f32.mrf.mxu0
    %v2811 = vadd.f32 0.0, %v2810
    %v2812 = vpop.f32.mrf.mxu0
    %2813 = vdwg.mxu0
    %2815 = vrot.lane.b32.xlu0 %v2811, 24
    %v2816 = vpop.permute.xlu0 %2815
    %2818 = vst.msk [vmem:[#allocation2 + $0x8] sm:$0xff] %vm831, %v2816
    %v2819 = vld [vmem:[#allocation2] sm:$0xff]
    %v2820 = vld [vmem:[#allocation2 + $0x8] sm:$0xff]
    %v2821 = vpack.c.bf16 %v2820, %v2819
    %v2823 = vperm.slane %v2271, 0
    %v2829 = vunpack.c.l.b16 %v2266
    %v2830 = vunpack.c.l.b16 %v2267
    %v2831 = vunpack.c.l.b16 %v2268
    %v2832 = vunpack.c.l.b16 %v2269
    %v2833 = vpack.c.b16 %v2830, %v2829
    %v2834 = vpack.c.b16 %v2832, %v2831
    %v2838 = vsel %vm414, %v2821, 0
    %2840 = vmatpush.bf16.msra.mxu0 0
    %2841 = vmatpush.bf16.msra.mxu0 0
    %2842 = vmatpush.bf16.msra.mxu0 0
    %2843 = vmatpush.bf16.msra.mxu0 0
    %2844 = vmatpush.bf16.msra.mxu0 0
    %2845 = vmatpush.bf16.msra.mxu0 0
    %2846 = vmatpush.bf16.msra.mxu0 %v2834
    %2847 = vmatpush.bf16.msra.mxu0 %v2833
    %2848 = vmatmul.bf16.gmra.mxu0 %v2838
    %v2849 = vpop.f32.mrf.mxu0
    %v2850 = vadd.f32 %v2823, %v2849
    %v2851 = vpop.f32.mrf.mxu0
    %v2852 = vadd.f32 %v2823, %v2851
    %2853 = vdwg.mxu0
    %v2854 = vadd.f32 %v2256, %v2850
    %v2855 = vadd.f32 %v2257, %v2852
    %v2856 = vsel %vm414, %v2854, 0.0
    %2857 = vadd.xlane.f32.xlu0 %v2856
    %v2858 = vpop.xlane.xlu0 %2857
    %v2859 = vsel %vm414, %v2855, 0.0
    %2860 = vadd.xlane.f32.xlu0 %v2859
    %v2861 = vpop.xlane.xlu0 %2860
    %v2862 = vmul.f32 %v2858, %v427
    %v2863 = vmul.f32 %v2861, %v427
    %v2864 = vsub.f32 %v2854, %v2862
    %v2865 = vsub.f32 %v2855, %v2863
    %v2866 = vmul.f32 %v2864, %v2864
    %v2867 = vmul.f32 %v2865, %v2865
    %v2868 = vsel %vm414, %v2866, 0.0
    %2869 = vadd.xlane.f32.xlu0 %v2868
    %v2870 = vpop.xlane.xlu0 %2869
    %v2871 = vsel %vm414, %v2867, 0.0
    %2872 = vadd.xlane.f32.xlu0 %v2871
    %v2873 = vpop.xlane.xlu0 %2872
    %v2874 = vmul.f32 %v2870, %v427
    %v2875 = vmul.f32 %v2873, %v427
    %v2876 = vadd.f32 %v2874, 1e-12
    %v2877 = vadd.f32 %v2875, 1e-12
    %v2878 = vrsqrt.pop %v2876
    %v2879 = vmul.f32 %v2878, %v2876
    %v2880 = vmul.f32 %v2879, %v2878
    %v2881 = vmul.f32 0.5, %v2880
    %v2882 = vsub.f32 1.5, %v2881
    %v2883 = vmul.f32 %v2878, %v2882
    %vm2884 = vweird.f32 %v2876
    %vm2885 = vweird.f32 %v2878
    %vm2886 = vmor %vm2884, %vm2885
    %v2887 = vsel %vm2886, %v2878, %v2883
    %v2888 = vrsqrt.pop %v2877
    %v2889 = vmul.f32 %v2888, %v2877
    %v2890 = vmul.f32 %v2889, %v2888
    %v2891 = vmul.f32 0.5, %v2890
    %v2892 = vsub.f32 1.5, %v2891
    %v2893 = vmul.f32 %v2888, %v2892
    %vm2894 = vweird.f32 %v2877
    %vm2895 = vweird.f32 %v2888
    %vm2896 = vmor %vm2894, %vm2895
    %v2897 = vsel %vm2896, %v2888, %v2893
    %v2898 = vmul.f32 %v2864, %v2887
    %v2899 = vmul.f32 %v2865, %v2897
    %v2901 = vperm.slane %v2273, 0
    %v2903 = vmul.f32 %v2898, %v2901
    %v2904 = vmul.f32 %v2899, %v2901
    %v2906 = vperm.slane %v2275, 0
    %v2908 = vadd.f32 %v2903, %v2906
    %v2909 = vadd.f32 %v2904, %v2906
    %v2910 = vpack.c.bf16 %v2909, %v2908
    %v2912 = vperm.slane %v2282, 0
    %v2918 = vunpack.c.l.b16 %v2277
    %v2919 = vunpack.c.l.b16 %v2278
    %v2920 = vunpack.c.l.b16 %v2279
    %v2921 = vunpack.c.l.b16 %v2280
    %v2922 = vpack.c.b16 %v2919, %v2918
    %v2923 = vpack.c.b16 %v2921, %v2920
    %v2927 = vsel %vm414, %v2910, 0
    %2929 = vmatpush.bf16.msra.mxu0 0
    %2930 = vmatpush.bf16.msra.mxu0 0
    %2931 = vmatpush.bf16.msra.mxu0 0
    %2932 = vmatpush.bf16.msra.mxu0 0
    %2933 = vmatpush.bf16.msra.mxu0 0
    %2934 = vmatpush.bf16.msra.mxu0 0
    %2935 = vmatpush.bf16.msra.mxu0 %v2923
    %2936 = vmatpush.bf16.msra.mxu0 %v2922
    %2937 = vmatmul.bf16.gmra.mxu0 %v2927
    %v2938 = vpop.f32.mrf.mxu0
    %v2939 = vadd.f32 %v2912, %v2938
    %v2940 = vpop.f32.mrf.mxu0
    %v2941 = vadd.f32 %v2912, %v2940
    %2942 = vdwg.mxu0
    %v2943 = vmul.f32 %v2939, %v2939
    %v2944 = vmul.f32 %v2941, %v2941
    %v2945 = vmul.f32 %v2939, %v2943
    %v2946 = vmul.f32 %v2941, %v2944
    %v2947 = vmul.f32 %v2945, 0.044715
    %v2948 = vmul.f32 %v2946, 0.044715
    %v2949 = vadd.f32 %v2939, %v2947
    %v2950 = vadd.f32 %v2941, %v2948
    %v2951 = vmul.f32 %v2949, 0.7978846
    %v2952 = vmul.f32 %v2950, 0.7978846
    %v2953 = vtanh.pop %v2951
    %v2954 = vtanh.pop %v2952
    %v2955 = vadd.f32 %v2953, 1.0
    %v2956 = vadd.f32 %v2954, 1.0
    %v2957 = vmul.f32 %v2955, 0.5
    %v2958 = vmul.f32 %v2956, 0.5
    %v2959 = vmul.f32 %v2939, %v2957
    %v2960 = vmul.f32 %v2941, %v2958
    %v2961 = vpack.c.bf16 %v2960, %v2959
    %v2963 = vperm.slane %v2293, 0
    %v2973 = vunpack.c.l.b16 %v2284
    %v2974 = vunpack.c.l.b16 %v2285
    %v2975 = vunpack.c.l.b16 %v2286
    %v2976 = vunpack.c.l.b16 %v2287
    %v2977 = vunpack.c.l.b16 %v2288
    %v2978 = vunpack.c.l.b16 %v2289
    %v2979 = vunpack.c.l.b16 %v2290
    %v2980 = vunpack.c.l.b16 %v2291
    %v2981 = vpack.c.b16 %v2974, %v2973
    %v2982 = vpack.c.b16 %v2976, %v2975
    %v2983 = vpack.c.b16 %v2978, %v2977
    %v2984 = vpack.c.b16 %v2980, %v2979
    %v2990 = vsel %vm1247, %v2961, 0
    %2992 = vmatpush.bf16.msra.mxu0 0
    %2993 = vmatpush.bf16.msra.mxu0 0
    %2994 = vmatpush.bf16.msra.mxu0 0
    %2995 = vmatpush.bf16.msra.mxu0 0
    %2996 = vmatpush.bf16.msra.mxu0 %v2984
    %2997 = vmatpush.bf16.msra.mxu0 %v2983
    %2998 = vmatpush.bf16.msra.mxu0 %v2982
    %2999 = vmatpush.bf16.msra.mxu0 %v2981
    %3000 = vmatmul.bf16.gmra.mxu0 %v2990
    %v3001 = vpop.f32.mrf.mxu0
    %v3002 = vadd.f32 %v2963, %v3001
    %v3003 = vpop.f32.mrf.mxu0
    %v3004 = vadd.f32 %v2963, %v3003
    %3005 = vdwg.mxu0
    %v3006 = vadd.f32 %v2908, %v3002
    %v3007 = vadd.f32 %v2909, %v3004
    %v3008 = vsel %vm414, %v3006, 0.0
    %3009 = vadd.xlane.f32.xlu0 %v3008
    %v3010 = vpop.xlane.xlu0 %3009
    %v3011 = vsel %vm414, %v3007, 0.0
    %3012 = vadd.xlane.f32.xlu0 %v3011
    %v3013 = vpop.xlane.xlu0 %3012
    %v3014 = vmul.f32 %v3010, %v427
    %v3015 = vmul.f32 %v3013, %v427
    %v3016 = vsub.f32 %v3006, %v3014
    %v3017 = vsub.f32 %v3007, %v3015
    %v3018 = vmul.f32 %v3016, %v3016
    %v3019 = vmul.f32 %v3017, %v3017
    %v3020 = vsel %vm414, %v3018, 0.0
    %3021 = vadd.xlane.f32.xlu0 %v3020
    %v3022 = vpop.xlane.xlu0 %3021
    %v3023 = vsel %vm414, %v3019, 0.0
    %3024 = vadd.xlane.f32.xlu0 %v3023
    %v3025 = vpop.xlane.xlu0 %3024
    %v3026 = vmul.f32 %v3022, %v427
    %v3027 = vmul.f32 %v3025, %v427
    %v3028 = vadd.f32 %v3026, 1e-12
    %v3029 = vadd.f32 %v3027, 1e-12
    %v3030 = vrsqrt.pop %v3028
    %v3031 = vmul.f32 %v3030, %v3028
    %v3032 = vmul.f32 %v3031, %v3030
    %v3033 = vmul.f32 0.5, %v3032
    %v3034 = vsub.f32 1.5, %v3033
    %v3035 = vmul.f32 %v3030, %v3034
    %vm3036 = vweird.f32 %v3028
    %vm3037 = vweird.f32 %v3030
    %vm3038 = vmor %vm3036, %vm3037
    %v3039 = vsel %vm3038, %v3030, %v3035
    %v3040 = vrsqrt.pop %v3029
    %v3041 = vmul.f32 %v3040, %v3029
    %v3042 = vmul.f32 %v3041, %v3040
    %v3043 = vmul.f32 0.5, %v3042
    %v3044 = vsub.f32 1.5, %v3043
    %v3045 = vmul.f32 %v3040, %v3044
    %vm3046 = vweird.f32 %v3029
    %vm3047 = vweird.f32 %v3040
    %vm3048 = vmor %vm3046, %vm3047
    %v3049 = vsel %vm3048, %v3040, %v3045
    %v3050 = vmul.f32 %v3016, %v3039
    %v3051 = vmul.f32 %v3017, %v3049
    %v3053 = vperm.slane %v2295, 0
    %v3055 = vmul.f32 %v3050, %v3053
    %v3056 = vmul.f32 %v3051, %v3053
    %v3058 = vperm.slane %v2297, 0
    %v3060 = vadd.f32 %v3055, %v3058
    %v3061 = vadd.f32 %v3056, %v3058
    %v3062 = vld [vmem:[%s71] sm:$0xf]
    %v3063 = vld [vmem:[%s71 + $0x4] sm:$0xf]
    %v3064 = vld [vmem:[%s71 + $0x8] sm:$0xf]
    %v3065 = vld [vmem:[%s71 + $0xc] sm:$0xf]
    %v3066 = vpack.c.bf16 %v3061, %v3060
    %v3067 = vld [vmem:[#allocation25] sm:$0x1]
    %v3069 = vperm.slane %v3067, 0
    %v3075 = vunpack.c.l.b16 %v3062
    %v3076 = vunpack.c.l.b16 %v3063
    %v3077 = vunpack.c.l.b16 %v3064
    %v3078 = vunpack.c.l.b16 %v3065
    %v3079 = vpack.c.b16 %v3076, %v3075
    %v3080 = vpack.c.b16 %v3078, %v3077
    %v3084 = vsel %vm414, %v3066, 0
    %3086 = vmatpush.bf16.msra.mxu0 0
    %3087 = vmatpush.bf16.msra.mxu0 0
    %3088 = vmatpush.bf16.msra.mxu0 0
    %3089 = vmatpush.bf16.msra.mxu0 0
    %3090 = vmatpush.bf16.msra.mxu0 0
    %3091 = vmatpush.bf16.msra.mxu0 0
    %3092 = vmatpush.bf16.msra.mxu0 %v3080
    %3093 = vmatpush.bf16.msra.mxu0 %v3079
    %3094 = vmatmul.bf16.gmra.mxu0 %v3084
    %v3095 = vpop.f32.mrf.mxu0
    %v3096 = vadd.f32 %v3069, %v3095
    %v3097 = vpop.f32.mrf.mxu0
    %v3098 = vadd.f32 %v3069, %v3097
    %3099 = vdwg.mxu0
    %v3100 = vmul.f32 %v3096, %v3096
    %v3101 = vmul.f32 %v3098, %v3098
    %v3102 = vmul.f32 %v3096, %v3100
    %v3103 = vmul.f32 %v3098, %v3101
    %v3104 = vmul.f32 %v3102, 0.044715
    %v3105 = vmul.f32 %v3103, 0.044715
    %v3106 = vadd.f32 %v3096, %v3104
    %v3107 = vadd.f32 %v3098, %v3105
    %v3108 = vmul.f32 %v3106, 0.7978846
    %v3109 = vmul.f32 %v3107, 0.7978846
    %v3110 = vtanh.pop %v3108
    %v3111 = vtanh.pop %v3109
    %v3112 = vadd.f32 %v3110, 1.0
    %v3113 = vadd.f32 %v3111, 1.0
    %v3114 = vmul.f32 %v3112, 0.5
    %v3115 = vmul.f32 %v3113, 0.5
    %v3116 = vmul.f32 %v3096, %v3114
    %v3117 = vmul.f32 %v3098, %v3115
    %v3118 = vld [vmem:[#allocation27] sm:$0x1]
    %v3119 = vld [vmem:[#allocation28] sm:$0x1]
    %v3120 = vsel %vm414, %v3116, 0.0
    %3121 = vadd.xlane.f32.xlu0 %v3120
    %v3122 = vpop.xlane.xlu0 %3121
    %v3123 = vsel %vm414, %v3117, 0.0
    %3124 = vadd.xlane.f32.xlu0 %v3123
    %v3125 = vpop.xlane.xlu0 %3124
    %v3126 = vmul.f32 %v3122, %v427
    %v3127 = vmul.f32 %v3125, %v427
    %v3128 = vsub.f32 %v3116, %v3126
    %v3129 = vsub.f32 %v3117, %v3127
    %v3130 = vmul.f32 %v3128, %v3128
    %v3131 = vmul.f32 %v3129, %v3129
    %v3132 = vsel %vm414, %v3130, 0.0
    %3133 = vadd.xlane.f32.xlu0 %v3132
    %v3134 = vpop.xlane.xlu0 %3133
    %v3135 = vsel %vm414, %v3131, 0.0
    %3136 = vadd.xlane.f32.xlu0 %v3135
    %v3137 = vpop.xlane.xlu0 %3136
    %v3138 = vmul.f32 %v3134, %v427
    %v3139 = vmul.f32 %v3137, %v427
    %v3140 = vadd.f32 %v3138, 1e-12
    %v3141 = vadd.f32 %v3139, 1e-12
    %v3142 = vrsqrt.pop %v3140
    %v3143 = vmul.f32 %v3142, %v3140
    %v3144 = vmul.f32 %v3143, %v3142
    %v3145 = vmul.f32 0.5, %v3144
    %v3146 = vsub.f32 1.5, %v3145
    %v3147 = vmul.f32 %v3142, %v3146
    %vm3148 = vweird.f32 %v3140
    %vm3149 = vweird.f32 %v3142
    %vm3150 = vmor %vm3148, %vm3149
    %v3151 = vsel %vm3150, %v3142, %v3147
    %v3152 = vrsqrt.pop %v3141
    %v3153 = vmul.f32 %v3152, %v3141
    %v3154 = vmul.f32 %v3153, %v3152
    %v3155 = vmul.f32 0.5, %v3154
    %v3156 = vsub.f32 1.5, %v3155
    %v3157 = vmul.f32 %v3152, %v3156
    %vm3158 = vweird.f32 %v3141
    %vm3159 = vweird.f32 %v3152
    %vm3160 = vmor %vm3158, %vm3159
    %v3161 = vsel %vm3160, %v3152, %v3157
    %v3162 = vmul.f32 %v3128, %v3151
    %v3163 = vmul.f32 %v3129, %v3161
    %v3165 = vperm.slane %v3118, 0
    %v3167 = vmul.f32 %v3162, %v3165
    %v3168 = vmul.f32 %v3163, %v3165
    %v3170 = vperm.slane %v3119, 0
    %v3172 = vadd.f32 %v3167, %v3170
    %v3173 = vadd.f32 %v3168, %v3170
    %v3174 = vld [vmem:[%s79] sm:$0xf]
    %v3175 = vld [vmem:[%s79 + $0x4] sm:$0xf]
    %v3176 = vld [vmem:[%s79 + $0x8] sm:$0xf]
    %v3177 = vld [vmem:[%s79 + $0xc] sm:$0xf]
    %v3178 = vpack.c.bf16 %v3173, %v3172
    %v3179 = vld [vmem:[#allocation30] sm:$0x1]
    %v3181 = vperm.slane %v3179, 0
    %v3187 = vunpack.c.l.b16 %v3174
    %v3188 = vunpack.c.l.b16 %v3175
    %v3189 = vunpack.c.l.b16 %v3176
    %v3190 = vunpack.c.l.b16 %v3177
    %v3191 = vpack.c.b16 %v3188, %v3187
    %v3192 = vpack.c.b16 %v3190, %v3189
    %v3196 = vsel %vm414, %v3178, 0
    %3198 = vmatpush.bf16.msra.mxu0 0
    %3199 = vmatpush.bf16.msra.mxu0 0
    %3200 = vmatpush.bf16.msra.mxu0 0
    %3201 = vmatpush.bf16.msra.mxu0 0
    %3202 = vmatpush.bf16.msra.mxu0 0
    %3203 = vmatpush.bf16.msra.mxu0 0
    %3204 = vmatpush.bf16.msra.mxu0 %v3192
    %3205 = vmatpush.bf16.msra.mxu0 %v3191
    %3206 = vmatmul.bf16.gmra.mxu0 %v3196
    %v3207 = vpop.f32.mrf.mxu0
    %v3208 = vadd.f32 %v3181, %v3207
    %v3209 = vpop.f32.mrf.mxu0
    %v3210 = vadd.f32 %v3181, %v3209
    %3211 = vdwg.mxu0
    %3212 = vst [vmem:[#allocation31] sm:$0xff] %v3208
    %3213 = vst [vmem:[#allocation31 + $0x8] sm:$0xff] %v3210
    %3214 = vmax.xlane.f32.xlu0 %v3208
    %v3215 = vpop.xlane.xlu0 %3214
    %3216 = vmax.xlane.f32.xlu0 %v3210
    %v3217 = vpop.xlane.xlu0 %3216
    %v3218 = vsub.f32 %v3208, %v3215
    %v3219 = vsub.f32 %v3210, %v3217
    %v3220 = vmul.f32 %v3218, 1.442695
    %v3221 = vpow.pop %v3220
    %v3222 = vmul.f32 %v3219, 1.442695
    %v3223 = vpow.pop %v3222
    %3224 = vadd.xlane.f32.xlu0 %v3221
    %v3225 = vpop.xlane.xlu0 %3224
    %3226 = vadd.xlane.f32.xlu0 %v3223
    %v3227 = vpop.xlane.xlu0 %3226
    %v3228 = vlog2.pop %v3225
    %v3229 = vmul.f32 %v3228, 0.6931472
    %v3230 = vlog2.pop %v3227
    %v3231 = vmul.f32 %v3230, 0.6931472
    %v3232 = vadd.f32 %v3229, %v3215
    %v3233 = vadd.f32 %v3231, %v3217
    %v3234 = vsub.f32 %v3208, %v3232
    %v3235 = vsub.f32 %v3210, %v3233
    %v3236 = vld [vmem:[%s83] sm:$0xff]
    %v3237 = vld [vmem:[%s83 + $0x8] sm:$0xff]
    %v3238 = vlaneseq
    %v3239 = vand.u32 %v3238, 127
    %3240 = vset.pattern.permute.xlu0 0
    %3241 = vperm.xlu0 %3240, %v3236
    %v3242 = vpop.permute.xlu0 %3241
    %3243 = vset.pattern.permute.xlu0 0
    %3244 = vperm.xlu0 %3243, %v3237
    %v3245 = vpop.permute.xlu0 %3244
    %vm3246 = vcmp.eq.s32.totalorder %v3239, %v3242
    %vm3247 = vcmp.eq.s32.totalorder %v3239, %v3245
    %v3248 = vsel %vm3246, %v3234, 0.0
    %v3249 = vsel %vm3247, %v3235, 0.0
    %3250 = vadd.xlane.f32.xlu0 %v3248
    %v3251 = vpop.xlane.xlu0 %3250
    %3252 = vadd.xlane.f32.xlu0 %v3249
    %v3253 = vpop.xlane.xlu0 %3252
    %v3254 = vsub.f32 0.0, %v3251
    %v3255 = vsub.f32 0.0, %v3253
    %vm3256 = vcmp.ge.s32.totalorder %v3236, 0
    %vm3257 = vcmp.ge.s32.totalorder %v3237, 0
    %v3258 = vsel %vm3256, 1, 0
    %v3259 = vsel %vm3257, 1, 0
    %v3260 = vcvt.s32.f32 %v3258
    %v3261 = vcvt.s32.f32 %v3259
    %v3262 = vmul.f32 %v3254, %v3260
    %v3263 = vmul.f32 %v3255, %v3261
    %vm3264 = vcmask 7168
    %v3265 = vsel %vm3264, %v3262, 0.0
    %v3266 = vsel %vm3264, %v3263, 0.0
    %v3267 = vadd.f32 %v3265, %v3266
    %3268 = vadd.xlane.f32.xlu0 %v3267
    %v3269 = vpop.xlane.xlu0 %3268
    %v3270 = vrot.slane %v3269, 4
    %v3271 = vadd.f32 %v3269, %v3270
    %v3272 = vrot.slane %v3271, 2
    %v3273 = vadd.f32 %v3271, %v3272
    %v3274 = vrot.slane %v3273, 1
    %v3275 = vadd.f32 %v3273, %v3274
    %s3276 = vtos %v3275
    %v3277 = vsel %vm3264, %v3260, 0.0
    %v3278 = vsel %vm3264, %v3261, 0.0
    %v3279 = vadd.f32 %v3277, %v3278
    %3280 = vadd.xlane.f32.xlu0 %v3279
    %v3281 = vpop.xlane.xlu0 %3280
    %v3282 = vrot.slane %v3281, 4
    %v3283 = vadd.f32 %v3281, %v3282
    %v3284 = vrot.slane %v3283, 2
    %v3285 = vadd.f32 %v3283, %v3284
    %v3286 = vrot.slane %v3285, 1
    %v3287 = vadd.f32 %v3285, %v3286
    %s3288 = vtos %v3287
    %v3289 = vstv %s3288
    %v3290 = vrcp.pop %v3289
    %v3291 = vmul.f32 %v3289, %v3290
    %v3292 = vsub.f32 1.0, %v3291
    %v3293 = vmul.f32 %v3290, %v3292
    %v3294 = vadd.f32 %v3290, %v3293
    %vm3295 = vweird.f32 %v3289
    %vm3296 = vweird.f32 %v3290
    %vm3297 = vmor %vm3295, %vm3296
    %v3298 = vsel %vm3297, %v3290, %v3294
    %v3299 = vand.u32 2147483647, %v3289
    %vm3300 = vcmp.eq.f32.partialorder %v3299, 8.507059e+37
    %v3301 = vand.u32 %v3289, 2147483648
    %v3302 = vor.u32 1.1754944e-38, %v3301
    %v3303 = vsel %vm3300, %v3302, %v3298
    %s3304 = vtos %v3303
    %s3305 = smul.f32 %s3276, %s3304
    %s3306 = scalar_lea.smem [#allocation32], 0
    %3307 = sst [smem:[%s3306]] %s3305
    // Predicated region
    $region238: #{audio_imagination_bert_forward.3} parent=1 // pred_check
      _
    $region239: #{audio_imagination_bert_forward.3} parent=1 // pred_check_branch
      %3309 = sbr.rel (0) target = $region241
    $region240: #{audio_imagination_bert_forward.3} parent=1 // pred_region
      %3311 = vsyncadd [#allocation5], 0
      %s3312 = sshll.u32 [#allocation31], 4
      %s3313 = int_to_ptr.vmem [resolvable:$true] %s3312
      %s3314 = sshll.u32 %s85, 4
      %s3315 = int_to_ptr.hbm [resolvable:$true] %s3314
      %3320 = dma.vmem_to_hbm [thread:$0]  %s3313, 256, %s3315, [#allocation5], 128, 128, 8
    $region241: #{audio_imagination_bert_forward.3} parent=1 // pred_fallthru
      _
    // Predicated region
    $region242: #{audio_imagination_bert_forward.3} parent=1 // pred_check
      _
    $region243: #{audio_imagination_bert_forward.3} parent=1 // pred_check_branch
      %3322 = sbr.rel (0) target = $region245
    $region244: #{audio_imagination_bert_forward.3} parent=1 // pred_region
      %3324 = vsyncadd [#allocation6], 0
      %s3326 = sshll.u32 %s87, 4
      %s3327 = int_to_ptr.hbm [resolvable:$true] %s3326
      %3329 = dma.smem_to_hbm [#allocation32], 16, %s3327, [#allocation6]
    $region245: #{audio_imagination_bert_forward.3} parent=1 // pred_fallthru
      _
    // Predicated region
    $region246: #{audio_imagination_bert_forward.3} parent=1 // pred_check
      _
    $region247: #{audio_imagination_bert_forward.3} parent=1 // pred_check_branch
      %3331 = sbr.rel (0) target = $region249
    $region248: #{audio_imagination_bert_forward.3} parent=1 // pred_region
      %3333 = dma.done [#allocation5], 256
    $region249: #{audio_imagination_bert_forward.3} parent=1 // pred_fallthru
      _
    // Predicated region
    $region250: #{audio_imagination_bert_forward.3} parent=1 // pred_check
      _
    $region251: #{audio_imagination_bert_forward.3} parent=1 // pred_check_branch
      %3335 = sbr.rel (0) target = $region253
    $region252: #{audio_imagination_bert_forward.3} parent=1 // pred_region
      %3337 = dma.done [#allocation6], 16
    $region253: #{audio_imagination_bert_forward.3} parent=1 // pred_fallthru
      _
    %3338 = sfence
    %3339 = vsyncpa [#allocation4], 1
    %3340 = vsyncpa [#allocation8], 1
    %3341 = vsyncpa [#allocation11], 1
    %3342 = vsyncpa [#allocation14], 1
    %3343 = vsyncpa [#allocation17], 1
    %3344 = vsyncpa [#allocation20], 1
    %3345 = vsyncpa [#allocation23], 1
    %3346 = vsyncpa [#allocation26], 1
    %3347 = vsyncpa [#allocation29], 1
    %3348 = vsyncpa [#allocation5], 1
    %3349 = vsyncpa [#allocation6], 1

</llo_original>
